<compile_context>
chip_gen: v7x
topology: tpu7x:2x2x1
jax: 0.10.0
libtpu: 0.0.40
codegen_flags: <defaults>
</compile_context>

<pallas_src>
import math
import functools

import jax
import jax.numpy as jnp
from jax.experimental import pallas as pl
from jax.experimental.pallas import tpu as pltpu

NEG_INF = -1e30   # additive mask value for disallowed attention positions
LN_EPS = 1e-5     # PyTorch LayerNorm default


def _layernorm(y, gamma, beta):
    mu = jnp.mean(y, axis=-1, keepdims=True)
    var = jnp.mean((y - mu) ** 2, axis=-1, keepdims=True)
    return (y - mu) * jax.lax.rsqrt(var + LN_EPS) * gamma + beta


# --------------------- single fused whole-forward kernel ---------------------

def _transformer_kernel(src_ref, tgt_ref, smask_ref, tmask_ref, xmask_ref,
                        e_win_ref, e_wo_ref, e_w1_ref, e_w2_ref,
                        e_bin_ref, e_b1_ref, e_dv_ref,
                        d_sa_win_ref, d_sa_wo_ref, d_ca_win_ref, d_ca_wo_ref,
                        d_w1_ref, d_w2_ref, d_bin_ref, d_b1_ref, d_dv_ref,
                        fc_w_ref, fc_b_ref, o_ref, *, n_head):
    f32, bf16 = jnp.float32, jnp.bfloat16
    D = src_ref.shape[1]
    H = n_head
    dh = D // H
    L = e_win_ref.shape[0]

    smask = smask_ref[...]          # (B*Ss, B*Ss) additive causal+block mask
    tmask = tmask_ref[...]          # (B*St, B*St) additive causal+block mask
    xmask = xmask_ref[...]          # (B*St, B*Ss) additive block-diag mask

    def mha(xq, xkv, mask, w_in, b_in, wo, bo):
        # xq: (Nq, D) f32, all batch rows flattened; batch separation is done
        # by the additive mask.  w_in q-columns / b_in q-part are pre-scaled
        # by 1/sqrt(dh) at init.
        xqb = xq.astype(bf16)
        if xkv is None:
            # fused QKV: one (Nq, D) x (D, 3D) MXU matmul
            qkv = jnp.dot(xqb, w_in, preferred_element_type=f32) + b_in
            q, k, v = qkv[:, :D], qkv[:, D:2 * D], qkv[:, 2 * D:]
        else:
            q = jnp.dot(xqb, w_in[:, :D], preferred_element_type=f32) + b_in[:, :D]
            kv = jnp.dot(xkv.astype(bf16), w_in[:, D:],
                         preferred_element_type=f32) + b_in[:, D:]
            k, v = kv[:, :D], kv[:, D:]
        heads = []
        for h in range(H):                       # static unroll over heads
            lo, hi = h * dh, (h + 1) * dh
            qh = q[:, lo:hi].astype(bf16)
            kh = k[:, lo:hi].astype(bf16)
            vh = v[:, lo:hi].astype(bf16)
            s = jax.lax.dot_general(qh, kh, (((1,), (1,)), ((), ())),
                                    preferred_element_type=f32)
            s = s + mask
            m = jnp.max(s, axis=-1, keepdims=True)
            e = jnp.exp(s - m)
            p = e * pl.reciprocal(jnp.sum(e, axis=-1, keepdims=True), approx=True)
            heads.append(jnp.dot(p.astype(bf16), vh, preferred_element_type=f32))
        o = jnp.concatenate(heads, axis=-1)      # (Nq, D)
        # single output projection for all heads
        return jnp.dot(o.astype(bf16), wo, preferred_element_type=f32) + bo

    def ffn(x, w1, b1, w2, b2):
        h = jnp.dot(x.astype(bf16), w1, preferred_element_type=f32) + b1
        h = jnp.maximum(h, 0.0)
        return jnp.dot(h.astype(bf16), w2, preferred_element_type=f32) + b2

    # ----- encoder stack (post-norm, ReLU; dropout = identity / eval) -----
    x = src_ref[...]                              # (B*Ss, D) f32
    for l in range(L):
        dv = e_dv_ref[l]                          # rows: bo, b2, g1, be1, g2, be2
        a = mha(x, None, smask, e_win_ref[l], e_bin_ref[l], e_wo_ref[l], dv[0:1])
        x = _layernorm(x + a, dv[2:3], dv[3:4])
        ff = ffn(x, e_w1_ref[l], e_b1_ref[l], e_w2_ref[l], dv[1:2])
        x = _layernorm(x + ff, dv[4:5], dv[5:6])
    mem = x                                       # encoder memory, stays in VMEM

    # ----- decoder stack -----
    y = tgt_ref[...]                              # (B*St, D) f32
    for l in range(L):
        dv = d_dv_ref[l]        # rows: sa_bo, ca_bo, b2, g1, be1, g2, be2, g3, be3
        dbin = d_bin_ref[l]     # rows: sa_b_in, ca_b_in
        a = mha(y, None, tmask, d_sa_win_ref[l], dbin[0:1],
                d_sa_wo_ref[l], dv[0:1])
        y = _layernorm(y + a, dv[3:4], dv[4:5])
        a = mha(y, mem, xmask, d_ca_win_ref[l], dbin[1:2],
                d_ca_wo_ref[l], dv[1:2])
        y = _layernorm(y + a, dv[5:6], dv[6:7])
        ff = ffn(y, d_w1_ref[l], d_b1_ref[l], d_w2_ref[l], dv[2:3])
        y = _layernorm(y + ff, dv[7:8], dv[8:9])

    # ----- classifier: lane-dense output (Np is a multiple of 128) -----
    o_ref[...] = jnp.dot(y.astype(bf16), fc_w_ref[...],
                         preferred_element_type=f32) + fc_b_ref[...]


# ------------------------------ masks (wrapper) -------------------------------

def _causal_block_mask(B, S):
    """(B*S, B*S) additive mask: causal within each batch block, fully masked
    across batch blocks (attention runs over flattened batch rows)."""
    allow = jnp.kron(jnp.eye(B, dtype=jnp.float32),
                     jnp.tril(jnp.ones((S, S), jnp.float32)))
    return jnp.where(allow > 0, 0.0, NEG_INF).astype(jnp.float32)


def _block_diag_mask(B, Sq, Skv):
    """(B*Sq, B*Skv) additive mask allowing attention only within the same
    batch element (no causal restriction) — decoder cross-attention."""
    allow = jnp.kron(jnp.eye(B, dtype=jnp.float32),
                     jnp.ones((Sq, Skv), jnp.float32))
    return jnp.where(allow > 0, 0.0, NEG_INF).astype(jnp.float32)


def positional_encoding_table(max_len, d_model):
    position = jnp.arange(max_len, dtype=jnp.float32)[:, None]
    div_term = jnp.exp(jnp.arange(0, d_model, 2, dtype=jnp.float32)
                       * (-math.log(10000.0) / d_model))
    pe = jnp.zeros((max_len, d_model), jnp.float32)
    pe = pe.at[:, 0::2].set(jnp.sin(position * div_term))
    pe = pe.at[:, 1::2].set(jnp.cos(position * div_term))
    return pe


# ------------------------------ forward wrapper -------------------------------

def transformer_forward(packed, src, tgt, *, n_head, out_vocab):
    B, Ss = src.shape
    _, St = tgt.shape
    D = packed["enc_emb"].shape[1]
    emb_scale = math.sqrt(D)
    pe = packed["pe"]

    # Embedding gathers + positional encoding stay in XLA.
    # NOTE: reproduces the reference PositionalEncoding exactly: with
    # batch_first (B,S,D) input, the (L,1,D) pe buffer is indexed by the
    # *batch* dimension (x.size(0)) and broadcast over the sequence dimension.
    x = packed["enc_emb"][src] * emb_scale + pe[:B][:, None, :]
    y = packed["dec_emb"][tgt] * emb_scale + pe[:B][:, None, :]
    # TODO(synk): dropout (PositionalEncoding and all layer dropouts) is
    # treated as identity (inference/eval semantics); no RNG mask applied.

    smask = _causal_block_mask(B, Ss)
    tmask = _causal_block_mask(B, St)
    xmask = _block_diag_mask(B, St, Ss)
    Np = packed["fc_w"].shape[1]

    operands = (
        x.reshape(B * Ss, D), y.reshape(B * St, D), smask, tmask, xmask,
        packed["e_win"], packed["e_wo"], packed["e_w1"], packed["e_w2"],
        packed["e_bin"], packed["e_b1"], packed["e_dv"],
        packed["d_sa_win"], packed["d_sa_wo"],
        packed["d_ca_win"], packed["d_ca_wo"],
        packed["d_w1"], packed["d_w2"],
        packed["d_bin"], packed["d_b1"], packed["d_dv"],
        packed["fc_w"], packed["fc_b"],
    )
    out = pl.pallas_call(
        functools.partial(_transformer_kernel, n_head=n_head),
        out_shape=jax.ShapeDtypeStruct((B * St, Np), jnp.float32),
        in_specs=[pl.BlockSpec(memory_space=pltpu.MemorySpace.VMEM)] * len(operands),
        out_specs=pl.BlockSpec(memory_space=pltpu.MemorySpace.VMEM),
    )(*operands)
    return out[:, :out_vocab].reshape(B, St, out_vocab)


# ------------------------------ parameter init --------------------------------

def init_params(key, in_vocab, out_vocab, d_model, n_head, num_layers, d_ff):
    keys = iter(jax.random.split(key, 256))

    def w(shape, scale=0.02):
        return jax.random.normal(next(keys), shape, jnp.float32) * scale

    # NOTE: to load real PyTorch weights: w_in = in_proj_weight.T (packed q|k|v
    # along columns), b_in = in_proj_bias, wo = out_proj.weight.T,
    # w1/w2 = linear1/linear2.weight.T (PyTorch Linear computes y = x @ W.T).
    def mha_p():
        return dict(
            w_in=w((d_model, 3 * d_model)),
            b_in=jnp.zeros(3 * d_model, jnp.float32),
            wo=w((d_model, d_model)),
            bo=jnp.zeros(d_model, jnp.float32))

    def enc_layer_p():
        return dict(
            sa=mha_p(),
            w1=w((d_model, d_ff)), b1=jnp.zeros(d_ff, jnp.float32),
            w2=w((d_ff, d_model)), b2=jnp.zeros(d_model, jnp.float32),
            g1=jnp.ones(d_model, jnp.float32), be1=jnp.zeros(d_model, jnp.float32),
            g2=jnp.ones(d_model, jnp.float32), be2=jnp.zeros(d_model, jnp.float32))

    def dec_layer_p():
        return dict(
            sa=mha_p(), ca=mha_p(),
            w1=w((d_model, d_ff)), b1=jnp.zeros(d_ff, jnp.float32),
            w2=w((d_ff, d_model)), b2=jnp.zeros(d_model, jnp.float32),
            g1=jnp.ones(d_model, jnp.float32), be1=jnp.zeros(d_model, jnp.float32),
            g2=jnp.ones(d_model, jnp.float32), be2=jnp.zeros(d_model, jnp.float32),
            g3=jnp.ones(d_model, jnp.float32), be3=jnp.zeros(d_model, jnp.float32))

    return dict(
        enc_emb=jax.random.uniform(next(keys), (in_vocab, d_model),
                                   jnp.float32, -0.1, 0.1),
        dec_emb=jax.random.uniform(next(keys), (out_vocab, d_model),
                                   jnp.float32, -0.1, 0.1),
        enc_layers=[enc_layer_p() for _ in range(num_layers)],
        dec_layers=[dec_layer_p() for _ in range(num_layers)],
        fc_w=jax.random.uniform(next(keys), (d_model, out_vocab),
                                jnp.float32, -0.1, 0.1),
        fc_b=jnp.zeros(out_vocab, jnp.float32),
    )


def prepare_params(params, d_model, n_head):
    """One-time packing (outside the jitted forward):
       * matmul weights -> bf16 (f32 MXU accumulation)
       * 1/sqrt(dh) folded into every in-projection's q columns / q bias
       * per-layer small vectors stacked into a few arrays
       * classifier padded to a lane-dense 128-wide output
    """
    D = d_model
    dh = D // n_head
    qscale = 1.0 / math.sqrt(dh)
    bf16 = jnp.bfloat16

    def prep_in(w_in, b_in):
        w = w_in.at[:, :D].multiply(qscale)
        b = b_in.at[:D].multiply(qscale)
        return w.astype(bf16), b.reshape(1, 3 * D).astype(jnp.float32)

    e_win, e_wo, e_w1, e_w2, e_bin, e_b1, e_dv = ([] for _ in range(7))
    for lp in params["enc_layers"]:
        wi, bi = prep_in(lp["sa"]["w_in"], lp["sa"]["b_in"])
        e_win.append(wi); e_bin.append(bi)
        e_wo.append(lp["sa"]["wo"].astype(bf16))
        e_w1.append(lp["w1"].astype(bf16))
        e_w2.append(lp["w2"].astype(bf16))
        e_b1.append(lp["b1"].reshape(1, -1))
        e_dv.append(jnp.stack([lp["sa"]["bo"], lp["b2"], lp["g1"], lp["be1"],
                               lp["g2"], lp["be2"]]))

    (d_sa_win, d_sa_wo, d_ca_win, d_ca_wo, d_w1, d_w2,
     d_bin, d_b1, d_dv) = ([] for _ in range(9))
    for lp in params["dec_layers"]:
        ws, bs = prep_in(lp["sa"]["w_in"], lp["sa"]["b_in"])
        wc, bc = prep_in(lp["ca"]["w_in"], lp["ca"]["b_in"])
        d_sa_win.append(ws); d_ca_win.append(wc)
        d_bin.append(jnp.concatenate([bs, bc], axis=0))           # (2, 3D)
        d_sa_wo.append(lp["sa"]["wo"].astype(bf16))
        d_ca_wo.append(lp["ca"]["wo"].astype(bf16))
        d_w1.append(lp["w1"].astype(bf16))
        d_w2.append(lp["w2"].astype(bf16))
        d_b1.append(lp["b1"].reshape(1, -1))
        d_dv.append(jnp.stack([lp["sa"]["bo"], lp["ca"]["bo"], lp["b2"],
                               lp["g1"], lp["be1"], lp["g2"], lp["be2"],
                               lp["g3"], lp["be3"]]))

    out_vocab = params["fc_w"].shape[1]
    Np = max(128, ((out_vocab + 127) // 128) * 128)
    fc_w = jnp.pad(params["fc_w"], ((0, 0), (0, Np - out_vocab))).astype(bf16)
    fc_b = jnp.pad(params["fc_b"], (0, Np - out_vocab)).reshape(1, Np)

    return dict(
        enc_emb=params["enc_emb"], dec_emb=params["dec_emb"],
        pe=positional_encoding_table(5000, D),
        e_win=jnp.stack(e_win), e_wo=jnp.stack(e_wo),
        e_w1=jnp.stack(e_w1), e_w2=jnp.stack(e_w2),
        e_bin=jnp.stack(e_bin), e_b1=jnp.stack(e_b1), e_dv=jnp.stack(e_dv),
        d_sa_win=jnp.stack(d_sa_win), d_sa_wo=jnp.stack(d_sa_wo),
        d_ca_win=jnp.stack(d_ca_win), d_ca_wo=jnp.stack(d_ca_wo),
        d_w1=jnp.stack(d_w1), d_w2=jnp.stack(d_w2),
        d_bin=jnp.stack(d_bin), d_b1=jnp.stack(d_b1), d_dv=jnp.stack(d_dv),
        fc_w=fc_w, fc_b=fc_b,
    )


# ----------------------------------- main -------------------------------------

if __name__ == "__main__":
    INPUT_VOCAB = 50
    OUTPUT_VOCAB = 60
    D_MODEL = 32
    N_HEAD = 4
    NUM_LAYERS = 2
    DIM_FF = 64
    BATCH = 2
    SRC_SEQ = 8
    TGT_SEQ = 8

    root = jax.random.PRNGKey(0)
    k_params, k_src, k_tgt = jax.random.split(root, 3)

    params = init_params(k_params, INPUT_VOCAB, OUTPUT_VOCAB,
                         D_MODEL, N_HEAD, NUM_LAYERS, DIM_FF)
    packed = prepare_params(params, D_MODEL, N_HEAD)

    src = jax.random.randint(k_src, (BATCH, SRC_SEQ), 0, INPUT_VOCAB, jnp.int32)
    tgt = jax.random.randint(k_tgt, (BATCH, TGT_SEQ), 0, OUTPUT_VOCAB, jnp.int32)

    fwd = jax.jit(functools.partial(transformer_forward,
                                    n_head=N_HEAD, out_vocab=OUTPUT_VOCAB))
    out = fwd(packed, src, tgt)
    out = jax.block_until_ready(out)

    assert out.shape == (BATCH, TGT_SEQ, OUTPUT_VOCAB)
    assert bool(jnp.all(jnp.isfinite(out)))
    print("KERNEL_OK")
</pallas_src>

<mosaic_0001>
module attributes {stable_mosaic.version = 11 : i64} {
  func.func @_transformer_kernel(%arg0: memref<16x32xf32, #tpu.memory_space<vmem>>, %arg1: memref<16x32xf32, #tpu.memory_space<vmem>>, %arg2: memref<16x16xf32, #tpu.memory_space<vmem>>, %arg3: memref<16x16xf32, #tpu.memory_space<vmem>>, %arg4: memref<16x16xf32, #tpu.memory_space<vmem>>, %arg5: memref<2x32x96xbf16, #tpu.memory_space<vmem>>, %arg6: memref<2x32x32xbf16, #tpu.memory_space<vmem>>, %arg7: memref<2x32x64xbf16, #tpu.memory_space<vmem>>, %arg8: memref<2x64x32xbf16, #tpu.memory_space<vmem>>, %arg9: memref<2x1x96xf32, #tpu.memory_space<vmem>>, %arg10: memref<2x1x64xf32, #tpu.memory_space<vmem>>, %arg11: memref<2x6x32xf32, #tpu.memory_space<vmem>>, %arg12: memref<2x32x96xbf16, #tpu.memory_space<vmem>>, %arg13: memref<2x32x32xbf16, #tpu.memory_space<vmem>>, %arg14: memref<2x32x96xbf16, #tpu.memory_space<vmem>>, %arg15: memref<2x32x32xbf16, #tpu.memory_space<vmem>>, %arg16: memref<2x32x64xbf16, #tpu.memory_space<vmem>>, %arg17: memref<2x64x32xbf16, #tpu.memory_space<vmem>>, %arg18: memref<2x2x96xf32, #tpu.memory_space<vmem>>, %arg19: memref<2x1x64xf32, #tpu.memory_space<vmem>>, %arg20: memref<2x9x32xf32, #tpu.memory_space<vmem>>, %arg21: memref<32x128xbf16, #tpu.memory_space<vmem>>, %arg22: memref<1x128xf32, #tpu.memory_space<vmem>>, %arg23: memref<16x128xf32, #tpu.memory_space<vmem>>) attributes {dimension_semantics = [], scalar_prefetch = 0 : i64, scratch_operands = 0 : i64, tpu.core_type = #tpu.core_type<tc>} {
    %c0 = arith.constant 0 : index
    %c0_0 = arith.constant 0 : index
    %0 = vector.load %arg2[%c0, %c0_0] : memref<16x16xf32, #tpu.memory_space<vmem>>, vector<16x16xf32>
    %c0_1 = arith.constant 0 : index
    %c0_2 = arith.constant 0 : index
    %1 = vector.load %arg3[%c0_1, %c0_2] : memref<16x16xf32, #tpu.memory_space<vmem>>, vector<16x16xf32>
    %c0_3 = arith.constant 0 : index
    %c0_4 = arith.constant 0 : index
    %2 = vector.load %arg4[%c0_3, %c0_4] : memref<16x16xf32, #tpu.memory_space<vmem>>, vector<16x16xf32>
    %c0_5 = arith.constant 0 : index
    %c0_6 = arith.constant 0 : index
    %3 = vector.load %arg0[%c0_5, %c0_6] : memref<16x32xf32, #tpu.memory_space<vmem>>, vector<16x32xf32>
    %c0_7 = arith.constant 0 : index
    %c0_8 = arith.constant 0 : index
    %c0_9 = arith.constant 0 : index
    %4 = vector.load %arg11[%c0_7, %c0_8, %c0_9] : memref<2x6x32xf32, #tpu.memory_space<vmem>>, vector<1x6x32xf32>
    %5 = vector.shape_cast %4 : vector<1x6x32xf32> to vector<6x32xf32>
    %c0_10 = arith.constant 0 : index
    %c0_11 = arith.constant 0 : index
    %c0_12 = arith.constant 0 : index
    %6 = vector.load %arg5[%c0_10, %c0_11, %c0_12] : memref<2x32x96xbf16, #tpu.memory_space<vmem>>, vector<1x32x96xbf16>
    %7 = vector.shape_cast %6 : vector<1x32x96xbf16> to vector<32x96xbf16>
    %c0_13 = arith.constant 0 : index
    %c0_14 = arith.constant 0 : index
    %c0_15 = arith.constant 0 : index
    %8 = vector.load %arg9[%c0_13, %c0_14, %c0_15] : memref<2x1x96xf32, #tpu.memory_space<vmem>>, vector<1x1x96xf32>
    %9 = vector.shape_cast %8 : vector<1x1x96xf32> to vector<1x96xf32>
    %c0_16 = arith.constant 0 : index
    %c0_17 = arith.constant 0 : index
    %c0_18 = arith.constant 0 : index
    %10 = vector.load %arg6[%c0_16, %c0_17, %c0_18] : memref<2x32x32xbf16, #tpu.memory_space<vmem>>, vector<1x32x32xbf16>
    %11 = vector.shape_cast %10 : vector<1x32x32xbf16> to vector<32x32xbf16>
    %12 = vector.extract_strided_slice %5 {offsets = [0, 0], sizes = [1, 32], strides = [1, 1]} : vector<6x32xf32> to vector<1x32xf32>
    %13 = arith.truncf %3 : vector<16x32xf32> to vector<16x32xbf16>
    %cst = arith.constant dense<0.000000e+00> : vector<16x96xf32>
    %14 = tpu.matmul %13, %7, %cst {dimension_numbers = #tpu.dot_dimension_numbers<[1], [0], [0], [1], [0, 0, 1, 1], [], []>} : vector<16x32xbf16>, vector<32x96xbf16>, vector<16x96xf32> -> vector<16x96xf32>
    %15 = vector.broadcast %9 : vector<1x96xf32> to vector<16x96xf32>
    %16 = arith.addf %14, %15 : vector<16x96xf32>
    %17 = vector.extract_strided_slice %16 {offsets = [0, 0], sizes = [16, 32], strides = [1, 1]} : vector<16x96xf32> to vector<16x32xf32>
    %18 = vector.extract_strided_slice %16 {offsets = [0, 32], sizes = [16, 32], strides = [1, 1]} : vector<16x96xf32> to vector<16x32xf32>
    %19 = vector.extract_strided_slice %16 {offsets = [0, 64], sizes = [16, 32], strides = [1, 1]} : vector<16x96xf32> to vector<16x32xf32>
    %20 = vector.extract_strided_slice %17 {offsets = [0, 0], sizes = [16, 8], strides = [1, 1]} : vector<16x32xf32> to vector<16x8xf32>
    %21 = arith.truncf %20 : vector<16x8xf32> to vector<16x8xbf16>
    %22 = vector.extract_strided_slice %18 {offsets = [0, 0], sizes = [16, 8], strides = [1, 1]} : vector<16x32xf32> to vector<16x8xf32>
    %23 = arith.truncf %22 : vector<16x8xf32> to vector<16x8xbf16>
    %24 = vector.extract_strided_slice %19 {offsets = [0, 0], sizes = [16, 8], strides = [1, 1]} : vector<16x32xf32> to vector<16x8xf32>
    %25 = arith.truncf %24 : vector<16x8xf32> to vector<16x8xbf16>
    %cst_19 = arith.constant dense<0.000000e+00> : vector<16x16xf32>
    %26 = tpu.matmul %21, %23, %cst_19 {dimension_numbers = #tpu.dot_dimension_numbers<[1], [1], [0], [0], [0, 0, 1, 0], [], []>} : vector<16x8xbf16>, vector<16x8xbf16>, vector<16x16xf32> -> vector<16x16xf32>
    %27 = arith.addf %26, %0 : vector<16x16xf32>
    %cst_20 = arith.constant dense<0xFF800000> : vector<16xf32>
    %28 = vector.multi_reduction <maximumf>, %27, %cst_20 [1] : vector<16x16xf32> to vector<16xf32>
    %29 = vector.shape_cast %28 : vector<16xf32> to vector<16x1xf32>
    %30 = vector.broadcast %29 : vector<16x1xf32> to vector<16x16xf32>
    %31 = arith.subf %27, %30 : vector<16x16xf32>
    %32 = math.exp %31 : vector<16x16xf32>
    %cst_21 = arith.constant dense<0.000000e+00> : vector<16xf32>
    %33 = vector.multi_reduction <add>, %32, %cst_21 [1] : vector<16x16xf32> to vector<16xf32>
    %34 = vector.shape_cast %33 : vector<16xf32> to vector<16x1xf32>
    %35 = tpu.reciprocal %34 {approx = true} : vector<16x1xf32> -> vector<16x1xf32>
    %36 = vector.broadcast %35 : vector<16x1xf32> to vector<16x16xf32>
    %37 = arith.mulf %32, %36 : vector<16x16xf32>
    %38 = arith.truncf %37 : vector<16x16xf32> to vector<16x16xbf16>
    %cst_22 = arith.constant dense<0.000000e+00> : vector<16x8xf32>
    %39 = tpu.matmul %38, %25, %cst_22 {dimension_numbers = #tpu.dot_dimension_numbers<[1], [0], [0], [1], [0, 0, 1, 1], [], []>} : vector<16x16xbf16>, vector<16x8xbf16>, vector<16x8xf32> -> vector<16x8xf32>
    %40 = vector.extract_strided_slice %17 {offsets = [0, 8], sizes = [16, 8], strides = [1, 1]} : vector<16x32xf32> to vector<16x8xf32>
    %41 = arith.truncf %40 : vector<16x8xf32> to vector<16x8xbf16>
    %42 = vector.extract_strided_slice %18 {offsets = [0, 8], sizes = [16, 8], strides = [1, 1]} : vector<16x32xf32> to vector<16x8xf32>
    %43 = arith.truncf %42 : vector<16x8xf32> to vector<16x8xbf16>
    %44 = vector.extract_strided_slice %19 {offsets = [0, 8], sizes = [16, 8], strides = [1, 1]} : vector<16x32xf32> to vector<16x8xf32>
    %45 = arith.truncf %44 : vector<16x8xf32> to vector<16x8xbf16>
    %cst_23 = arith.constant dense<0.000000e+00> : vector<16x16xf32>
    %46 = tpu.matmul %41, %43, %cst_23 {dimension_numbers = #tpu.dot_dimension_numbers<[1], [1], [0], [0], [0, 0, 1, 0], [], []>} : vector<16x8xbf16>, vector<16x8xbf16>, vector<16x16xf32> -> vector<16x16xf32>
    %47 = arith.addf %46, %0 : vector<16x16xf32>
    %cst_24 = arith.constant dense<0xFF800000> : vector<16xf32>
    %48 = vector.multi_reduction <maximumf>, %47, %cst_24 [1] : vector<16x16xf32> to vector<16xf32>
    %49 = vector.shape_cast %48 : vector<16xf32> to vector<16x1xf32>
    %50 = vector.broadcast %49 : vector<16x1xf32> to vector<16x16xf32>
    %51 = arith.subf %47, %50 : vector<16x16xf32>
    %52 = math.exp %51 : vector<16x16xf32>
    %cst_25 = arith.constant dense<0.000000e+00> : vector<16xf32>
    %53 = vector.multi_reduction <add>, %52, %cst_25 [1] : vector<16x16xf32> to vector<16xf32>
    %54 = vector.shape_cast %53 : vector<16xf32> to vector<16x1xf32>
    %55 = tpu.reciprocal %54 {approx = true} : vector<16x1xf32> -> vector<16x1xf32>
    %56 = vector.broadcast %55 : vector<16x1xf32> to vector<16x16xf32>
    %57 = arith.mulf %52, %56 : vector<16x16xf32>
    %58 = arith.truncf %57 : vector<16x16xf32> to vector<16x16xbf16>
    %cst_26 = arith.constant dense<0.000000e+00> : vector<16x8xf32>
    %59 = tpu.matmul %58, %45, %cst_26 {dimension_numbers = #tpu.dot_dimension_numbers<[1], [0], [0], [1], [0, 0, 1, 1], [], []>} : vector<16x16xbf16>, vector<16x8xbf16>, vector<16x8xf32> -> vector<16x8xf32>
    %60 = vector.extract_strided_slice %17 {offsets = [0, 16], sizes = [16, 8], strides = [1, 1]} : vector<16x32xf32> to vector<16x8xf32>
    %61 = arith.truncf %60 : vector<16x8xf32> to vector<16x8xbf16>
    %62 = vector.extract_strided_slice %18 {offsets = [0, 16], sizes = [16, 8], strides = [1, 1]} : vector<16x32xf32> to vector<16x8xf32>
    %63 = arith.truncf %62 : vector<16x8xf32> to vector<16x8xbf16>
    %64 = vector.extract_strided_slice %19 {offsets = [0, 16], sizes = [16, 8], strides = [1, 1]} : vector<16x32xf32> to vector<16x8xf32>
    %65 = arith.truncf %64 : vector<16x8xf32> to vector<16x8xbf16>
    %cst_27 = arith.constant dense<0.000000e+00> : vector<16x16xf32>
    %66 = tpu.matmul %61, %63, %cst_27 {dimension_numbers = #tpu.dot_dimension_numbers<[1], [1], [0], [0], [0, 0, 1, 0], [], []>} : vector<16x8xbf16>, vector<16x8xbf16>, vector<16x16xf32> -> vector<16x16xf32>
    %67 = arith.addf %66, %0 : vector<16x16xf32>
    %cst_28 = arith.constant dense<0xFF800000> : vector<16xf32>
    %68 = vector.multi_reduction <maximumf>, %67, %cst_28 [1] : vector<16x16xf32> to vector<16xf32>
    %69 = vector.shape_cast %68 : vector<16xf32> to vector<16x1xf32>
    %70 = vector.broadcast %69 : vector<16x1xf32> to vector<16x16xf32>
    %71 = arith.subf %67, %70 : vector<16x16xf32>
    %72 = math.exp %71 : vector<16x16xf32>
    %cst_29 = arith.constant dense<0.000000e+00> : vector<16xf32>
    %73 = vector.multi_reduction <add>, %72, %cst_29 [1] : vector<16x16xf32> to vector<16xf32>
    %74 = vector.shape_cast %73 : vector<16xf32> to vector<16x1xf32>
    %75 = tpu.reciprocal %74 {approx = true} : vector<16x1xf32> -> vector<16x1xf32>
    %76 = vector.broadcast %75 : vector<16x1xf32> to vector<16x16xf32>
    %77 = arith.mulf %72, %76 : vector<16x16xf32>
    %78 = arith.truncf %77 : vector<16x16xf32> to vector<16x16xbf16>
    %cst_30 = arith.constant dense<0.000000e+00> : vector<16x8xf32>
    %79 = tpu.matmul %78, %65, %cst_30 {dimension_numbers = #tpu.dot_dimension_numbers<[1], [0], [0], [1], [0, 0, 1, 1], [], []>} : vector<16x16xbf16>, vector<16x8xbf16>, vector<16x8xf32> -> vector<16x8xf32>
    %80 = vector.extract_strided_slice %17 {offsets = [0, 24], sizes = [16, 8], strides = [1, 1]} : vector<16x32xf32> to vector<16x8xf32>
    %81 = arith.truncf %80 : vector<16x8xf32> to vector<16x8xbf16>
    %82 = vector.extract_strided_slice %18 {offsets = [0, 24], sizes = [16, 8], strides = [1, 1]} : vector<16x32xf32> to vector<16x8xf32>
    %83 = arith.truncf %82 : vector<16x8xf32> to vector<16x8xbf16>
    %84 = vector.extract_strided_slice %19 {offsets = [0, 24], sizes = [16, 8], strides = [1, 1]} : vector<16x32xf32> to vector<16x8xf32>
    %85 = arith.truncf %84 : vector<16x8xf32> to vector<16x8xbf16>
    %cst_31 = arith.constant dense<0.000000e+00> : vector<16x16xf32>
    %86 = tpu.matmul %81, %83, %cst_31 {dimension_numbers = #tpu.dot_dimension_numbers<[1], [1], [0], [0], [0, 0, 1, 0], [], []>} : vector<16x8xbf16>, vector<16x8xbf16>, vector<16x16xf32> -> vector<16x16xf32>
    %87 = arith.addf %86, %0 : vector<16x16xf32>
    %cst_32 = arith.constant dense<0xFF800000> : vector<16xf32>
    %88 = vector.multi_reduction <maximumf>, %87, %cst_32 [1] : vector<16x16xf32> to vector<16xf32>
    %89 = vector.shape_cast %88 : vector<16xf32> to vector<16x1xf32>
    %90 = vector.broadcast %89 : vector<16x1xf32> to vector<16x16xf32>
    %91 = arith.subf %87, %90 : vector<16x16xf32>
    %92 = math.exp %91 : vector<16x16xf32>
    %cst_33 = arith.constant dense<0.000000e+00> : vector<16xf32>
    %93 = vector.multi_reduction <add>, %92, %cst_33 [1] : vector<16x16xf32> to vector<16xf32>
    %94 = vector.shape_cast %93 : vector<16xf32> to vector<16x1xf32>
    %95 = tpu.reciprocal %94 {approx = true} : vector<16x1xf32> -> vector<16x1xf32>
    %96 = vector.broadcast %95 : vector<16x1xf32> to vector<16x16xf32>
    %97 = arith.mulf %92, %96 : vector<16x16xf32>
    %98 = arith.truncf %97 : vector<16x16xf32> to vector<16x16xbf16>
    %cst_34 = arith.constant dense<0.000000e+00> : vector<16x8xf32>
    %99 = tpu.matmul %98, %85, %cst_34 {dimension_numbers = #tpu.dot_dimension_numbers<[1], [0], [0], [1], [0, 0, 1, 1], [], []>} : vector<16x16xbf16>, vector<16x8xbf16>, vector<16x8xf32> -> vector<16x8xf32>
    %100 = tpu.concatenate %39, %59, %79, %99 in 1 : vector<16x8xf32>, vector<16x8xf32>, vector<16x8xf32>, vector<16x8xf32> -> vector<16x32xf32>
    %101 = arith.truncf %100 : vector<16x32xf32> to vector<16x32xbf16>
    %cst_35 = arith.constant dense<0.000000e+00> : vector<16x32xf32>
    %102 = tpu.matmul %101, %11, %cst_35 {dimension_numbers = #tpu.dot_dimension_numbers<[1], [0], [0], [1], [0, 0, 1, 1], [], []>} : vector<16x32xbf16>, vector<32x32xbf16>, vector<16x32xf32> -> vector<16x32xf32>
    %103 = vector.broadcast %12 : vector<1x32xf32> to vector<16x32xf32>
    %104 = arith.addf %102, %103 : vector<16x32xf32>
    %105 = arith.addf %3, %104 : vector<16x32xf32>
    %106 = vector.extract_strided_slice %5 {offsets = [2, 0], sizes = [1, 32], strides = [1, 1]} : vector<6x32xf32> to vector<1x32xf32>
    %107 = vector.extract_strided_slice %5 {offsets = [3, 0], sizes = [1, 32], strides = [1, 1]} : vector<6x32xf32> to vector<1x32xf32>
    %cst_36 = arith.constant dense<0.000000e+00> : vector<16xf32>
    %108 = vector.multi_reduction <add>, %105, %cst_36 [1] : vector<16x32xf32> to vector<16xf32>
    %109 = vector.shape_cast %108 : vector<16xf32> to vector<16x1xf32>
    %cst_37 = arith.constant 3.200000e+01 : f32
    %110 = vector.broadcast %cst_37 : f32 to vector<16x1xf32>
    %111 = arith.divf %109, %110 : vector<16x1xf32>
    %112 = vector.broadcast %111 : vector<16x1xf32> to vector<16x32xf32>
    %113 = arith.subf %105, %112 : vector<16x32xf32>
    %114 = arith.mulf %113, %113 : vector<16x32xf32>
    %cst_38 = arith.constant dense<0.000000e+00> : vector<16xf32>
    %115 = vector.multi_reduction <add>, %114, %cst_38 [1] : vector<16x32xf32> to vector<16xf32>
    %116 = vector.shape_cast %115 : vector<16xf32> to vector<16x1xf32>
    %cst_39 = arith.constant 3.200000e+01 : f32
    %117 = vector.broadcast %cst_39 : f32 to vector<16x1xf32>
    %118 = arith.divf %116, %117 : vector<16x1xf32>
    %119 = vector.broadcast %111 : vector<16x1xf32> to vector<16x32xf32>
    %120 = arith.subf %105, %119 : vector<16x32xf32>
    %cst_40 = arith.constant 9.99999974E-6 : f32
    %121 = vector.broadcast %cst_40 : f32 to vector<16x1xf32>
    %122 = arith.addf %118, %121 : vector<16x1xf32>
    %123 = math.rsqrt %122 : vector<16x1xf32>
    %124 = vector.broadcast %123 : vector<16x1xf32> to vector<16x32xf32>
    %125 = arith.mulf %120, %124 : vector<16x32xf32>
    %126 = vector.broadcast %106 : vector<1x32xf32> to vector<16x32xf32>
    %127 = arith.mulf %125, %126 : vector<16x32xf32>
    %128 = vector.broadcast %107 : vector<1x32xf32> to vector<16x32xf32>
    %129 = arith.addf %127, %128 : vector<16x32xf32>
    %c0_41 = arith.constant 0 : index
    %c0_42 = arith.constant 0 : index
    %c0_43 = arith.constant 0 : index
    %130 = vector.load %arg7[%c0_41, %c0_42, %c0_43] : memref<2x32x64xbf16, #tpu.memory_space<vmem>>, vector<1x32x64xbf16>
    %131 = vector.shape_cast %130 : vector<1x32x64xbf16> to vector<32x64xbf16>
    %c0_44 = arith.constant 0 : index
    %c0_45 = arith.constant 0 : index
    %c0_46 = arith.constant 0 : index
    %132 = vector.load %arg10[%c0_44, %c0_45, %c0_46] : memref<2x1x64xf32, #tpu.memory_space<vmem>>, vector<1x1x64xf32>
    %133 = vector.shape_cast %132 : vector<1x1x64xf32> to vector<1x64xf32>
    %c0_47 = arith.constant 0 : index
    %c0_48 = arith.constant 0 : index
    %c0_49 = arith.constant 0 : index
    %134 = vector.load %arg8[%c0_47, %c0_48, %c0_49] : memref<2x64x32xbf16, #tpu.memory_space<vmem>>, vector<1x64x32xbf16>
    %135 = vector.shape_cast %134 : vector<1x64x32xbf16> to vector<64x32xbf16>
    %136 = vector.extract_strided_slice %5 {offsets = [1, 0], sizes = [1, 32], strides = [1, 1]} : vector<6x32xf32> to vector<1x32xf32>
    %137 = arith.truncf %129 : vector<16x32xf32> to vector<16x32xbf16>
    %cst_50 = arith.constant dense<0.000000e+00> : vector<16x64xf32>
    %138 = tpu.matmul %137, %131, %cst_50 {dimension_numbers = #tpu.dot_dimension_numbers<[1], [0], [0], [1], [0, 0, 1, 1], [], []>} : vector<16x32xbf16>, vector<32x64xbf16>, vector<16x64xf32> -> vector<16x64xf32>
    %139 = vector.broadcast %133 : vector<1x64xf32> to vector<16x64xf32>
    %140 = arith.addf %138, %139 : vector<16x64xf32>
    %cst_51 = arith.constant 0.000000e+00 : f32
    %141 = vector.broadcast %cst_51 : f32 to vector<16x64xf32>
    %142 = arith.maximumf %140, %141 : vector<16x64xf32>
    %143 = arith.truncf %142 : vector<16x64xf32> to vector<16x64xbf16>
    %cst_52 = arith.constant dense<0.000000e+00> : vector<16x32xf32>
    %144 = tpu.matmul %143, %135, %cst_52 {dimension_numbers = #tpu.dot_dimension_numbers<[1], [0], [0], [1], [0, 0, 1, 1], [], []>} : vector<16x64xbf16>, vector<64x32xbf16>, vector<16x32xf32> -> vector<16x32xf32>
    %145 = vector.broadcast %136 : vector<1x32xf32> to vector<16x32xf32>
    %146 = arith.addf %144, %145 : vector<16x32xf32>
    %147 = arith.addf %129, %146 : vector<16x32xf32>
    %148 = vector.extract_strided_slice %5 {offsets = [4, 0], sizes = [1, 32], strides = [1, 1]} : vector<6x32xf32> to vector<1x32xf32>
    %149 = vector.extract_strided_slice %5 {offsets = [5, 0], sizes = [1, 32], strides = [1, 1]} : vector<6x32xf32> to vector<1x32xf32>
    %cst_53 = arith.constant dense<0.000000e+00> : vector<16xf32>
    %150 = vector.multi_reduction <add>, %147, %cst_53 [1] : vector<16x32xf32> to vector<16xf32>
    %151 = vector.shape_cast %150 : vector<16xf32> to vector<16x1xf32>
    %cst_54 = arith.constant 3.200000e+01 : f32
    %152 = vector.broadcast %cst_54 : f32 to vector<16x1xf32>
    %153 = arith.divf %151, %152 : vector<16x1xf32>
    %154 = vector.broadcast %153 : vector<16x1xf32> to vector<16x32xf32>
    %155 = arith.subf %147, %154 : vector<16x32xf32>
    %156 = arith.mulf %155, %155 : vector<16x32xf32>
    %cst_55 = arith.constant dense<0.000000e+00> : vector<16xf32>
    %157 = vector.multi_reduction <add>, %156, %cst_55 [1] : vector<16x32xf32> to vector<16xf32>
    %158 = vector.shape_cast %157 : vector<16xf32> to vector<16x1xf32>
    %cst_56 = arith.constant 3.200000e+01 : f32
    %159 = vector.broadcast %cst_56 : f32 to vector<16x1xf32>
    %160 = arith.divf %158, %159 : vector<16x1xf32>
    %161 = vector.broadcast %153 : vector<16x1xf32> to vector<16x32xf32>
    %162 = arith.subf %147, %161 : vector<16x32xf32>
    %cst_57 = arith.constant 9.99999974E-6 : f32
    %163 = vector.broadcast %cst_57 : f32 to vector<16x1xf32>
    %164 = arith.addf %160, %163 : vector<16x1xf32>
    %165 = math.rsqrt %164 : vector<16x1xf32>
    %166 = vector.broadcast %165 : vector<16x1xf32> to vector<16x32xf32>
    %167 = arith.mulf %162, %166 : vector<16x32xf32>
    %168 = vector.broadcast %148 : vector<1x32xf32> to vector<16x32xf32>
    %169 = arith.mulf %167, %168 : vector<16x32xf32>
    %170 = vector.broadcast %149 : vector<1x32xf32> to vector<16x32xf32>
    %171 = arith.addf %169, %170 : vector<16x32xf32>
    %c1 = arith.constant 1 : index
    %c0_58 = arith.constant 0 : index
    %c0_59 = arith.constant 0 : index
    %172 = vector.load %arg11[%c1, %c0_58, %c0_59] : memref<2x6x32xf32, #tpu.memory_space<vmem>>, vector<1x6x32xf32>
    %173 = vector.shape_cast %172 : vector<1x6x32xf32> to vector<6x32xf32>
    %c1_60 = arith.constant 1 : index
    %c0_61 = arith.constant 0 : index
    %c0_62 = arith.constant 0 : index
    %174 = vector.load %arg5[%c1_60, %c0_61, %c0_62] : memref<2x32x96xbf16, #tpu.memory_space<vmem>>, vector<1x32x96xbf16>
    %175 = vector.shape_cast %174 : vector<1x32x96xbf16> to vector<32x96xbf16>
    %c1_63 = arith.constant 1 : index
    %c0_64 = arith.constant 0 : index
    %c0_65 = arith.constant 0 : index
    %176 = vector.load %arg9[%c1_63, %c0_64, %c0_65] : memref<2x1x96xf32, #tpu.memory_space<vmem>>, vector<1x1x96xf32>
    %177 = vector.shape_cast %176 : vector<1x1x96xf32> to vector<1x96xf32>
    %c1_66 = arith.constant 1 : index
    %c0_67 = arith.constant 0 : index
    %c0_68 = arith.constant 0 : index
    %178 = vector.load %arg6[%c1_66, %c0_67, %c0_68] : memref<2x32x32xbf16, #tpu.memory_space<vmem>>, vector<1x32x32xbf16>
    %179 = vector.shape_cast %178 : vector<1x32x32xbf16> to vector<32x32xbf16>
    %180 = vector.extract_strided_slice %173 {offsets = [0, 0], sizes = [1, 32], strides = [1, 1]} : vector<6x32xf32> to vector<1x32xf32>
    %181 = arith.truncf %171 : vector<16x32xf32> to vector<16x32xbf16>
    %cst_69 = arith.constant dense<0.000000e+00> : vector<16x96xf32>
    %182 = tpu.matmul %181, %175, %cst_69 {dimension_numbers = #tpu.dot_dimension_numbers<[1], [0], [0], [1], [0, 0, 1, 1], [], []>} : vector<16x32xbf16>, vector<32x96xbf16>, vector<16x96xf32> -> vector<16x96xf32>
    %183 = vector.broadcast %177 : vector<1x96xf32> to vector<16x96xf32>
    %184 = arith.addf %182, %183 : vector<16x96xf32>
    %185 = vector.extract_strided_slice %184 {offsets = [0, 0], sizes = [16, 32], strides = [1, 1]} : vector<16x96xf32> to vector<16x32xf32>
    %186 = vector.extract_strided_slice %184 {offsets = [0, 32], sizes = [16, 32], strides = [1, 1]} : vector<16x96xf32> to vector<16x32xf32>
    %187 = vector.extract_strided_slice %184 {offsets = [0, 64], sizes = [16, 32], strides = [1, 1]} : vector<16x96xf32> to vector<16x32xf32>
    %188 = vector.extract_strided_slice %185 {offsets = [0, 0], sizes = [16, 8], strides = [1, 1]} : vector<16x32xf32> to vector<16x8xf32>
    %189 = arith.truncf %188 : vector<16x8xf32> to vector<16x8xbf16>
    %190 = vector.extract_strided_slice %186 {offsets = [0, 0], sizes = [16, 8], strides = [1, 1]} : vector<16x32xf32> to vector<16x8xf32>
    %191 = arith.truncf %190 : vector<16x8xf32> to vector<16x8xbf16>
    %192 = vector.extract_strided_slice %187 {offsets = [0, 0], sizes = [16, 8], strides = [1, 1]} : vector<16x32xf32> to vector<16x8xf32>
    %193 = arith.truncf %192 : vector<16x8xf32> to vector<16x8xbf16>
    %cst_70 = arith.constant dense<0.000000e+00> : vector<16x16xf32>
    %194 = tpu.matmul %189, %191, %cst_70 {dimension_numbers = #tpu.dot_dimension_numbers<[1], [1], [0], [0], [0, 0, 1, 0], [], []>} : vector<16x8xbf16>, vector<16x8xbf16>, vector<16x16xf32> -> vector<16x16xf32>
    %195 = arith.addf %194, %0 : vector<16x16xf32>
    %cst_71 = arith.constant dense<0xFF800000> : vector<16xf32>
    %196 = vector.multi_reduction <maximumf>, %195, %cst_71 [1] : vector<16x16xf32> to vector<16xf32>
    %197 = vector.shape_cast %196 : vector<16xf32> to vector<16x1xf32>
    %198 = vector.broadcast %197 : vector<16x1xf32> to vector<16x16xf32>
    %199 = arith.subf %195, %198 : vector<16x16xf32>
    %200 = math.exp %199 : vector<16x16xf32>
    %cst_72 = arith.constant dense<0.000000e+00> : vector<16xf32>
    %201 = vector.multi_reduction <add>, %200, %cst_72 [1] : vector<16x16xf32> to vector<16xf32>
    %202 = vector.shape_cast %201 : vector<16xf32> to vector<16x1xf32>
    %203 = tpu.reciprocal %202 {approx = true} : vector<16x1xf32> -> vector<16x1xf32>
    %204 = vector.broadcast %203 : vector<16x1xf32> to vector<16x16xf32>
    %205 = arith.mulf %200, %204 : vector<16x16xf32>
    %206 = arith.truncf %205 : vector<16x16xf32> to vector<16x16xbf16>
    %cst_73 = arith.constant dense<0.000000e+00> : vector<16x8xf32>
    %207 = tpu.matmul %206, %193, %cst_73 {dimension_numbers = #tpu.dot_dimension_numbers<[1], [0], [0], [1], [0, 0, 1, 1], [], []>} : vector<16x16xbf16>, vector<16x8xbf16>, vector<16x8xf32> -> vector<16x8xf32>
    %208 = vector.extract_strided_slice %185 {offsets = [0, 8], sizes = [16, 8], strides = [1, 1]} : vector<16x32xf32> to vector<16x8xf32>
    %209 = arith.truncf %208 : vector<16x8xf32> to vector<16x8xbf16>
    %210 = vector.extract_strided_slice %186 {offsets = [0, 8], sizes = [16, 8], strides = [1, 1]} : vector<16x32xf32> to vector<16x8xf32>
    %211 = arith.truncf %210 : vector<16x8xf32> to vector<16x8xbf16>
    %212 = vector.extract_strided_slice %187 {offsets = [0, 8], sizes = [16, 8], strides = [1, 1]} : vector<16x32xf32> to vector<16x8xf32>
    %213 = arith.truncf %212 : vector<16x8xf32> to vector<16x8xbf16>
    %cst_74 = arith.constant dense<0.000000e+00> : vector<16x16xf32>
    %214 = tpu.matmul %209, %211, %cst_74 {dimension_numbers = #tpu.dot_dimension_numbers<[1], [1], [0], [0], [0, 0, 1, 0], [], []>} : vector<16x8xbf16>, vector<16x8xbf16>, vector<16x16xf32> -> vector<16x16xf32>
    %215 = arith.addf %214, %0 : vector<16x16xf32>
    %cst_75 = arith.constant dense<0xFF800000> : vector<16xf32>
    %216 = vector.multi_reduction <maximumf>, %215, %cst_75 [1] : vector<16x16xf32> to vector<16xf32>
    %217 = vector.shape_cast %216 : vector<16xf32> to vector<16x1xf32>
    %218 = vector.broadcast %217 : vector<16x1xf32> to vector<16x16xf32>
    %219 = arith.subf %215, %218 : vector<16x16xf32>
    %220 = math.exp %219 : vector<16x16xf32>
    %cst_76 = arith.constant dense<0.000000e+00> : vector<16xf32>
    %221 = vector.multi_reduction <add>, %220, %cst_76 [1] : vector<16x16xf32> to vector<16xf32>
    %222 = vector.shape_cast %221 : vector<16xf32> to vector<16x1xf32>
    %223 = tpu.reciprocal %222 {approx = true} : vector<16x1xf32> -> vector<16x1xf32>
    %224 = vector.broadcast %223 : vector<16x1xf32> to vector<16x16xf32>
    %225 = arith.mulf %220, %224 : vector<16x16xf32>
    %226 = arith.truncf %225 : vector<16x16xf32> to vector<16x16xbf16>
    %cst_77 = arith.constant dense<0.000000e+00> : vector<16x8xf32>
    %227 = tpu.matmul %226, %213, %cst_77 {dimension_numbers = #tpu.dot_dimension_numbers<[1], [0], [0], [1], [0, 0, 1, 1], [], []>} : vector<16x16xbf16>, vector<16x8xbf16>, vector<16x8xf32> -> vector<16x8xf32>
    %228 = vector.extract_strided_slice %185 {offsets = [0, 16], sizes = [16, 8], strides = [1, 1]} : vector<16x32xf32> to vector<16x8xf32>
    %229 = arith.truncf %228 : vector<16x8xf32> to vector<16x8xbf16>
    %230 = vector.extract_strided_slice %186 {offsets = [0, 16], sizes = [16, 8], strides = [1, 1]} : vector<16x32xf32> to vector<16x8xf32>
    %231 = arith.truncf %230 : vector<16x8xf32> to vector<16x8xbf16>
    %232 = vector.extract_strided_slice %187 {offsets = [0, 16], sizes = [16, 8], strides = [1, 1]} : vector<16x32xf32> to vector<16x8xf32>
    %233 = arith.truncf %232 : vector<16x8xf32> to vector<16x8xbf16>
    %cst_78 = arith.constant dense<0.000000e+00> : vector<16x16xf32>
    %234 = tpu.matmul %229, %231, %cst_78 {dimension_numbers = #tpu.dot_dimension_numbers<[1], [1], [0], [0], [0, 0, 1, 0], [], []>} : vector<16x8xbf16>, vector<16x8xbf16>, vector<16x16xf32> -> vector<16x16xf32>
    %235 = arith.addf %234, %0 : vector<16x16xf32>
    %cst_79 = arith.constant dense<0xFF800000> : vector<16xf32>
    %236 = vector.multi_reduction <maximumf>, %235, %cst_79 [1] : vector<16x16xf32> to vector<16xf32>
    %237 = vector.shape_cast %236 : vector<16xf32> to vector<16x1xf32>
    %238 = vector.broadcast %237 : vector<16x1xf32> to vector<16x16xf32>
    %239 = arith.subf %235, %238 : vector<16x16xf32>
    %240 = math.exp %239 : vector<16x16xf32>
    %cst_80 = arith.constant dense<0.000000e+00> : vector<16xf32>
    %241 = vector.multi_reduction <add>, %240, %cst_80 [1] : vector<16x16xf32> to vector<16xf32>
    %242 = vector.shape_cast %241 : vector<16xf32> to vector<16x1xf32>
    %243 = tpu.reciprocal %242 {approx = true} : vector<16x1xf32> -> vector<16x1xf32>
    %244 = vector.broadcast %243 : vector<16x1xf32> to vector<16x16xf32>
    %245 = arith.mulf %240, %244 : vector<16x16xf32>
    %246 = arith.truncf %245 : vector<16x16xf32> to vector<16x16xbf16>
    %cst_81 = arith.constant dense<0.000000e+00> : vector<16x8xf32>
    %247 = tpu.matmul %246, %233, %cst_81 {dimension_numbers = #tpu.dot_dimension_numbers<[1], [0], [0], [1], [0, 0, 1, 1], [], []>} : vector<16x16xbf16>, vector<16x8xbf16>, vector<16x8xf32> -> vector<16x8xf32>
    %248 = vector.extract_strided_slice %185 {offsets = [0, 24], sizes = [16, 8], strides = [1, 1]} : vector<16x32xf32> to vector<16x8xf32>
    %249 = arith.truncf %248 : vector<16x8xf32> to vector<16x8xbf16>
    %250 = vector.extract_strided_slice %186 {offsets = [0, 24], sizes = [16, 8], strides = [1, 1]} : vector<16x32xf32> to vector<16x8xf32>
    %251 = arith.truncf %250 : vector<16x8xf32> to vector<16x8xbf16>
    %252 = vector.extract_strided_slice %187 {offsets = [0, 24], sizes = [16, 8], strides = [1, 1]} : vector<16x32xf32> to vector<16x8xf32>
    %253 = arith.truncf %252 : vector<16x8xf32> to vector<16x8xbf16>
    %cst_82 = arith.constant dense<0.000000e+00> : vector<16x16xf32>
    %254 = tpu.matmul %249, %251, %cst_82 {dimension_numbers = #tpu.dot_dimension_numbers<[1], [1], [0], [0], [0, 0, 1, 0], [], []>} : vector<16x8xbf16>, vector<16x8xbf16>, vector<16x16xf32> -> vector<16x16xf32>
    %255 = arith.addf %254, %0 : vector<16x16xf32>
    %cst_83 = arith.constant dense<0xFF800000> : vector<16xf32>
    %256 = vector.multi_reduction <maximumf>, %255, %cst_83 [1] : vector<16x16xf32> to vector<16xf32>
    %257 = vector.shape_cast %256 : vector<16xf32> to vector<16x1xf32>
    %258 = vector.broadcast %257 : vector<16x1xf32> to vector<16x16xf32>
    %259 = arith.subf %255, %258 : vector<16x16xf32>
    %260 = math.exp %259 : vector<16x16xf32>
    %cst_84 = arith.constant dense<0.000000e+00> : vector<16xf32>
    %261 = vector.multi_reduction <add>, %260, %cst_84 [1] : vector<16x16xf32> to vector<16xf32>
    %262 = vector.shape_cast %261 : vector<16xf32> to vector<16x1xf32>
    %263 = tpu.reciprocal %262 {approx = true} : vector<16x1xf32> -> vector<16x1xf32>
    %264 = vector.broadcast %263 : vector<16x1xf32> to vector<16x16xf32>
    %265 = arith.mulf %260, %264 : vector<16x16xf32>
    %266 = arith.truncf %265 : vector<16x16xf32> to vector<16x16xbf16>
    %cst_85 = arith.constant dense<0.000000e+00> : vector<16x8xf32>
    %267 = tpu.matmul %266, %253, %cst_85 {dimension_numbers = #tpu.dot_dimension_numbers<[1], [0], [0], [1], [0, 0, 1, 1], [], []>} : vector<16x16xbf16>, vector<16x8xbf16>, vector<16x8xf32> -> vector<16x8xf32>
    %268 = tpu.concatenate %207, %227, %247, %267 in 1 : vector<16x8xf32>, vector<16x8xf32>, vector<16x8xf32>, vector<16x8xf32> -> vector<16x32xf32>
    %269 = arith.truncf %268 : vector<16x32xf32> to vector<16x32xbf16>
    %cst_86 = arith.constant dense<0.000000e+00> : vector<16x32xf32>
    %270 = tpu.matmul %269, %179, %cst_86 {dimension_numbers = #tpu.dot_dimension_numbers<[1], [0], [0], [1], [0, 0, 1, 1], [], []>} : vector<16x32xbf16>, vector<32x32xbf16>, vector<16x32xf32> -> vector<16x32xf32>
    %271 = vector.broadcast %180 : vector<1x32xf32> to vector<16x32xf32>
    %272 = arith.addf %270, %271 : vector<16x32xf32>
    %273 = arith.addf %171, %272 : vector<16x32xf32>
    %274 = vector.extract_strided_slice %173 {offsets = [2, 0], sizes = [1, 32], strides = [1, 1]} : vector<6x32xf32> to vector<1x32xf32>
    %275 = vector.extract_strided_slice %173 {offsets = [3, 0], sizes = [1, 32], strides = [1, 1]} : vector<6x32xf32> to vector<1x32xf32>
    %cst_87 = arith.constant dense<0.000000e+00> : vector<16xf32>
    %276 = vector.multi_reduction <add>, %273, %cst_87 [1] : vector<16x32xf32> to vector<16xf32>
    %277 = vector.shape_cast %276 : vector<16xf32> to vector<16x1xf32>
    %cst_88 = arith.constant 3.200000e+01 : f32
    %278 = vector.broadcast %cst_88 : f32 to vector<16x1xf32>
    %279 = arith.divf %277, %278 : vector<16x1xf32>
    %280 = vector.broadcast %279 : vector<16x1xf32> to vector<16x32xf32>
    %281 = arith.subf %273, %280 : vector<16x32xf32>
    %282 = arith.mulf %281, %281 : vector<16x32xf32>
    %cst_89 = arith.constant dense<0.000000e+00> : vector<16xf32>
    %283 = vector.multi_reduction <add>, %282, %cst_89 [1] : vector<16x32xf32> to vector<16xf32>
    %284 = vector.shape_cast %283 : vector<16xf32> to vector<16x1xf32>
    %cst_90 = arith.constant 3.200000e+01 : f32
    %285 = vector.broadcast %cst_90 : f32 to vector<16x1xf32>
    %286 = arith.divf %284, %285 : vector<16x1xf32>
    %287 = vector.broadcast %279 : vector<16x1xf32> to vector<16x32xf32>
    %288 = arith.subf %273, %287 : vector<16x32xf32>
    %cst_91 = arith.constant 9.99999974E-6 : f32
    %289 = vector.broadcast %cst_91 : f32 to vector<16x1xf32>
    %290 = arith.addf %286, %289 : vector<16x1xf32>
    %291 = math.rsqrt %290 : vector<16x1xf32>
    %292 = vector.broadcast %291 : vector<16x1xf32> to vector<16x32xf32>
    %293 = arith.mulf %288, %292 : vector<16x32xf32>
    %294 = vector.broadcast %274 : vector<1x32xf32> to vector<16x32xf32>
    %295 = arith.mulf %293, %294 : vector<16x32xf32>
    %296 = vector.broadcast %275 : vector<1x32xf32> to vector<16x32xf32>
    %297 = arith.addf %295, %296 : vector<16x32xf32>
    %c1_92 = arith.constant 1 : index
    %c0_93 = arith.constant 0 : index
    %c0_94 = arith.constant 0 : index
    %298 = vector.load %arg7[%c1_92, %c0_93, %c0_94] : memref<2x32x64xbf16, #tpu.memory_space<vmem>>, vector<1x32x64xbf16>
    %299 = vector.shape_cast %298 : vector<1x32x64xbf16> to vector<32x64xbf16>
    %c1_95 = arith.constant 1 : index
    %c0_96 = arith.constant 0 : index
    %c0_97 = arith.constant 0 : index
    %300 = vector.load %arg10[%c1_95, %c0_96, %c0_97] : memref<2x1x64xf32, #tpu.memory_space<vmem>>, vector<1x1x64xf32>
    %301 = vector.shape_cast %300 : vector<1x1x64xf32> to vector<1x64xf32>
    %c1_98 = arith.constant 1 : index
    %c0_99 = arith.constant 0 : index
    %c0_100 = arith.constant 0 : index
    %302 = vector.load %arg8[%c1_98, %c0_99, %c0_100] : memref<2x64x32xbf16, #tpu.memory_space<vmem>>, vector<1x64x32xbf16>
    %303 = vector.shape_cast %302 : vector<1x64x32xbf16> to vector<64x32xbf16>
    %304 = vector.extract_strided_slice %173 {offsets = [1, 0], sizes = [1, 32], strides = [1, 1]} : vector<6x32xf32> to vector<1x32xf32>
    %305 = arith.truncf %297 : vector<16x32xf32> to vector<16x32xbf16>
    %cst_101 = arith.constant dense<0.000000e+00> : vector<16x64xf32>
    %306 = tpu.matmul %305, %299, %cst_101 {dimension_numbers = #tpu.dot_dimension_numbers<[1], [0], [0], [1], [0, 0, 1, 1], [], []>} : vector<16x32xbf16>, vector<32x64xbf16>, vector<16x64xf32> -> vector<16x64xf32>
    %307 = vector.broadcast %301 : vector<1x64xf32> to vector<16x64xf32>
    %308 = arith.addf %306, %307 : vector<16x64xf32>
    %cst_102 = arith.constant 0.000000e+00 : f32
    %309 = vector.broadcast %cst_102 : f32 to vector<16x64xf32>
    %310 = arith.maximumf %308, %309 : vector<16x64xf32>
    %311 = arith.truncf %310 : vector<16x64xf32> to vector<16x64xbf16>
    %cst_103 = arith.constant dense<0.000000e+00> : vector<16x32xf32>
    %312 = tpu.matmul %311, %303, %cst_103 {dimension_numbers = #tpu.dot_dimension_numbers<[1], [0], [0], [1], [0, 0, 1, 1], [], []>} : vector<16x64xbf16>, vector<64x32xbf16>, vector<16x32xf32> -> vector<16x32xf32>
    %313 = vector.broadcast %304 : vector<1x32xf32> to vector<16x32xf32>
    %314 = arith.addf %312, %313 : vector<16x32xf32>
    %315 = arith.addf %297, %314 : vector<16x32xf32>
    %316 = vector.extract_strided_slice %173 {offsets = [4, 0], sizes = [1, 32], strides = [1, 1]} : vector<6x32xf32> to vector<1x32xf32>
    %317 = vector.extract_strided_slice %173 {offsets = [5, 0], sizes = [1, 32], strides = [1, 1]} : vector<6x32xf32> to vector<1x32xf32>
    %cst_104 = arith.constant dense<0.000000e+00> : vector<16xf32>
    %318 = vector.multi_reduction <add>, %315, %cst_104 [1] : vector<16x32xf32> to vector<16xf32>
    %319 = vector.shape_cast %318 : vector<16xf32> to vector<16x1xf32>
    %cst_105 = arith.constant 3.200000e+01 : f32
    %320 = vector.broadcast %cst_105 : f32 to vector<16x1xf32>
    %321 = arith.divf %319, %320 : vector<16x1xf32>
    %322 = vector.broadcast %321 : vector<16x1xf32> to vector<16x32xf32>
    %323 = arith.subf %315, %322 : vector<16x32xf32>
    %324 = arith.mulf %323, %323 : vector<16x32xf32>
    %cst_106 = arith.constant dense<0.000000e+00> : vector<16xf32>
    %325 = vector.multi_reduction <add>, %324, %cst_106 [1] : vector<16x32xf32> to vector<16xf32>
    %326 = vector.shape_cast %325 : vector<16xf32> to vector<16x1xf32>
    %cst_107 = arith.constant 3.200000e+01 : f32
    %327 = vector.broadcast %cst_107 : f32 to vector<16x1xf32>
    %328 = arith.divf %326, %327 : vector<16x1xf32>
    %329 = vector.broadcast %321 : vector<16x1xf32> to vector<16x32xf32>
    %330 = arith.subf %315, %329 : vector<16x32xf32>
    %cst_108 = arith.constant 9.99999974E-6 : f32
    %331 = vector.broadcast %cst_108 : f32 to vector<16x1xf32>
    %332 = arith.addf %328, %331 : vector<16x1xf32>
    %333 = math.rsqrt %332 : vector<16x1xf32>
    %334 = vector.broadcast %333 : vector<16x1xf32> to vector<16x32xf32>
    %335 = arith.mulf %330, %334 : vector<16x32xf32>
    %336 = vector.broadcast %316 : vector<1x32xf32> to vector<16x32xf32>
    %337 = arith.mulf %335, %336 : vector<16x32xf32>
    %338 = vector.broadcast %317 : vector<1x32xf32> to vector<16x32xf32>
    %339 = arith.addf %337, %338 : vector<16x32xf32>
    %c0_109 = arith.constant 0 : index
    %c0_110 = arith.constant 0 : index
    %340 = vector.load %arg1[%c0_109, %c0_110] : memref<16x32xf32, #tpu.memory_space<vmem>>, vector<16x32xf32>
    %c0_111 = arith.constant 0 : index
    %c0_112 = arith.constant 0 : index
    %c0_113 = arith.constant 0 : index
    %341 = vector.load %arg20[%c0_111, %c0_112, %c0_113] : memref<2x9x32xf32, #tpu.memory_space<vmem>>, vector<1x9x32xf32>
    %342 = vector.shape_cast %341 : vector<1x9x32xf32> to vector<9x32xf32>
    %c0_114 = arith.constant 0 : index
    %c0_115 = arith.constant 0 : index
    %c0_116 = arith.constant 0 : index
    %343 = vector.load %arg18[%c0_114, %c0_115, %c0_116] : memref<2x2x96xf32, #tpu.memory_space<vmem>>, vector<1x2x96xf32>
    %344 = vector.shape_cast %343 : vector<1x2x96xf32> to vector<2x96xf32>
    %c0_117 = arith.constant 0 : index
    %c0_118 = arith.constant 0 : index
    %c0_119 = arith.constant 0 : index
    %345 = vector.load %arg12[%c0_117, %c0_118, %c0_119] : memref<2x32x96xbf16, #tpu.memory_space<vmem>>, vector<1x32x96xbf16>
    %346 = vector.shape_cast %345 : vector<1x32x96xbf16> to vector<32x96xbf16>
    %347 = vector.extract_strided_slice %344 {offsets = [0, 0], sizes = [1, 96], strides = [1, 1]} : vector<2x96xf32> to vector<1x96xf32>
    %c0_120 = arith.constant 0 : index
    %c0_121 = arith.constant 0 : index
    %c0_122 = arith.constant 0 : index
    %348 = vector.load %arg13[%c0_120, %c0_121, %c0_122] : memref<2x32x32xbf16, #tpu.memory_space<vmem>>, vector<1x32x32xbf16>
    %349 = vector.shape_cast %348 : vector<1x32x32xbf16> to vector<32x32xbf16>
    %350 = vector.extract_strided_slice %342 {offsets = [0, 0], sizes = [1, 32], strides = [1, 1]} : vector<9x32xf32> to vector<1x32xf32>
    %351 = arith.truncf %340 : vector<16x32xf32> to vector<16x32xbf16>
    %cst_123 = arith.constant dense<0.000000e+00> : vector<16x96xf32>
    %352 = tpu.matmul %351, %346, %cst_123 {dimension_numbers = #tpu.dot_dimension_numbers<[1], [0], [0], [1], [0, 0, 1, 1], [], []>} : vector<16x32xbf16>, vector<32x96xbf16>, vector<16x96xf32> -> vector<16x96xf32>
    %353 = vector.broadcast %347 : vector<1x96xf32> to vector<16x96xf32>
    %354 = arith.addf %352, %353 : vector<16x96xf32>
    %355 = vector.extract_strided_slice %354 {offsets = [0, 0], sizes = [16, 32], strides = [1, 1]} : vector<16x96xf32> to vector<16x32xf32>
    %356 = vector.extract_strided_slice %354 {offsets = [0, 32], sizes = [16, 32], strides = [1, 1]} : vector<16x96xf32> to vector<16x32xf32>
    %357 = vector.extract_strided_slice %354 {offsets = [0, 64], sizes = [16, 32], strides = [1, 1]} : vector<16x96xf32> to vector<16x32xf32>
    %358 = vector.extract_strided_slice %355 {offsets = [0, 0], sizes = [16, 8], strides = [1, 1]} : vector<16x32xf32> to vector<16x8xf32>
    %359 = arith.truncf %358 : vector<16x8xf32> to vector<16x8xbf16>
    %360 = vector.extract_strided_slice %356 {offsets = [0, 0], sizes = [16, 8], strides = [1, 1]} : vector<16x32xf32> to vector<16x8xf32>
    %361 = arith.truncf %360 : vector<16x8xf32> to vector<16x8xbf16>
    %362 = vector.extract_strided_slice %357 {offsets = [0, 0], sizes = [16, 8], strides = [1, 1]} : vector<16x32xf32> to vector<16x8xf32>
    %363 = arith.truncf %362 : vector<16x8xf32> to vector<16x8xbf16>
    %cst_124 = arith.constant dense<0.000000e+00> : vector<16x16xf32>
    %364 = tpu.matmul %359, %361, %cst_124 {dimension_numbers = #tpu.dot_dimension_numbers<[1], [1], [0], [0], [0, 0, 1, 0], [], []>} : vector<16x8xbf16>, vector<16x8xbf16>, vector<16x16xf32> -> vector<16x16xf32>
    %365 = arith.addf %364, %1 : vector<16x16xf32>
    %cst_125 = arith.constant dense<0xFF800000> : vector<16xf32>
    %366 = vector.multi_reduction <maximumf>, %365, %cst_125 [1] : vector<16x16xf32> to vector<16xf32>
    %367 = vector.shape_cast %366 : vector<16xf32> to vector<16x1xf32>
    %368 = vector.broadcast %367 : vector<16x1xf32> to vector<16x16xf32>
    %369 = arith.subf %365, %368 : vector<16x16xf32>
    %370 = math.exp %369 : vector<16x16xf32>
    %cst_126 = arith.constant dense<0.000000e+00> : vector<16xf32>
    %371 = vector.multi_reduction <add>, %370, %cst_126 [1] : vector<16x16xf32> to vector<16xf32>
    %372 = vector.shape_cast %371 : vector<16xf32> to vector<16x1xf32>
    %373 = tpu.reciprocal %372 {approx = true} : vector<16x1xf32> -> vector<16x1xf32>
    %374 = vector.broadcast %373 : vector<16x1xf32> to vector<16x16xf32>
    %375 = arith.mulf %370, %374 : vector<16x16xf32>
    %376 = arith.truncf %375 : vector<16x16xf32> to vector<16x16xbf16>
    %cst_127 = arith.constant dense<0.000000e+00> : vector<16x8xf32>
    %377 = tpu.matmul %376, %363, %cst_127 {dimension_numbers = #tpu.dot_dimension_numbers<[1], [0], [0], [1], [0, 0, 1, 1], [], []>} : vector<16x16xbf16>, vector<16x8xbf16>, vector<16x8xf32> -> vector<16x8xf32>
    %378 = vector.extract_strided_slice %355 {offsets = [0, 8], sizes = [16, 8], strides = [1, 1]} : vector<16x32xf32> to vector<16x8xf32>
    %379 = arith.truncf %378 : vector<16x8xf32> to vector<16x8xbf16>
    %380 = vector.extract_strided_slice %356 {offsets = [0, 8], sizes = [16, 8], strides = [1, 1]} : vector<16x32xf32> to vector<16x8xf32>
    %381 = arith.truncf %380 : vector<16x8xf32> to vector<16x8xbf16>
    %382 = vector.extract_strided_slice %357 {offsets = [0, 8], sizes = [16, 8], strides = [1, 1]} : vector<16x32xf32> to vector<16x8xf32>
    %383 = arith.truncf %382 : vector<16x8xf32> to vector<16x8xbf16>
    %cst_128 = arith.constant dense<0.000000e+00> : vector<16x16xf32>
    %384 = tpu.matmul %379, %381, %cst_128 {dimension_numbers = #tpu.dot_dimension_numbers<[1], [1], [0], [0], [0, 0, 1, 0], [], []>} : vector<16x8xbf16>, vector<16x8xbf16>, vector<16x16xf32> -> vector<16x16xf32>
    %385 = arith.addf %384, %1 : vector<16x16xf32>
    %cst_129 = arith.constant dense<0xFF800000> : vector<16xf32>
    %386 = vector.multi_reduction <maximumf>, %385, %cst_129 [1] : vector<16x16xf32> to vector<16xf32>
    %387 = vector.shape_cast %386 : vector<16xf32> to vector<16x1xf32>
    %388 = vector.broadcast %387 : vector<16x1xf32> to vector<16x16xf32>
    %389 = arith.subf %385, %388 : vector<16x16xf32>
    %390 = math.exp %389 : vector<16x16xf32>
    %cst_130 = arith.constant dense<0.000000e+00> : vector<16xf32>
    %391 = vector.multi_reduction <add>, %390, %cst_130 [1] : vector<16x16xf32> to vector<16xf32>
    %392 = vector.shape_cast %391 : vector<16xf32> to vector<16x1xf32>
    %393 = tpu.reciprocal %392 {approx = true} : vector<16x1xf32> -> vector<16x1xf32>
    %394 = vector.broadcast %393 : vector<16x1xf32> to vector<16x16xf32>
    %395 = arith.mulf %390, %394 : vector<16x16xf32>
    %396 = arith.truncf %395 : vector<16x16xf32> to vector<16x16xbf16>
    %cst_131 = arith.constant dense<0.000000e+00> : vector<16x8xf32>
    %397 = tpu.matmul %396, %383, %cst_131 {dimension_numbers = #tpu.dot_dimension_numbers<[1], [0], [0], [1], [0, 0, 1, 1], [], []>} : vector<16x16xbf16>, vector<16x8xbf16>, vector<16x8xf32> -> vector<16x8xf32>
    %398 = vector.extract_strided_slice %355 {offsets = [0, 16], sizes = [16, 8], strides = [1, 1]} : vector<16x32xf32> to vector<16x8xf32>
    %399 = arith.truncf %398 : vector<16x8xf32> to vector<16x8xbf16>
    %400 = vector.extract_strided_slice %356 {offsets = [0, 16], sizes = [16, 8], strides = [1, 1]} : vector<16x32xf32> to vector<16x8xf32>
    %401 = arith.truncf %400 : vector<16x8xf32> to vector<16x8xbf16>
    %402 = vector.extract_strided_slice %357 {offsets = [0, 16], sizes = [16, 8], strides = [1, 1]} : vector<16x32xf32> to vector<16x8xf32>
    %403 = arith.truncf %402 : vector<16x8xf32> to vector<16x8xbf16>
    %cst_132 = arith.constant dense<0.000000e+00> : vector<16x16xf32>
    %404 = tpu.matmul %399, %401, %cst_132 {dimension_numbers = #tpu.dot_dimension_numbers<[1], [1], [0], [0], [0, 0, 1, 0], [], []>} : vector<16x8xbf16>, vector<16x8xbf16>, vector<16x16xf32> -> vector<16x16xf32>
    %405 = arith.addf %404, %1 : vector<16x16xf32>
    %cst_133 = arith.constant dense<0xFF800000> : vector<16xf32>
    %406 = vector.multi_reduction <maximumf>, %405, %cst_133 [1] : vector<16x16xf32> to vector<16xf32>
    %407 = vector.shape_cast %406 : vector<16xf32> to vector<16x1xf32>
    %408 = vector.broadcast %407 : vector<16x1xf32> to vector<16x16xf32>
    %409 = arith.subf %405, %408 : vector<16x16xf32>
    %410 = math.exp %409 : vector<16x16xf32>
    %cst_134 = arith.constant dense<0.000000e+00> : vector<16xf32>
    %411 = vector.multi_reduction <add>, %410, %cst_134 [1] : vector<16x16xf32> to vector<16xf32>
    %412 = vector.shape_cast %411 : vector<16xf32> to vector<16x1xf32>
    %413 = tpu.reciprocal %412 {approx = true} : vector<16x1xf32> -> vector<16x1xf32>
    %414 = vector.broadcast %413 : vector<16x1xf32> to vector<16x16xf32>
    %415 = arith.mulf %410, %414 : vector<16x16xf32>
    %416 = arith.truncf %415 : vector<16x16xf32> to vector<16x16xbf16>
    %cst_135 = arith.constant dense<0.000000e+00> : vector<16x8xf32>
    %417 = tpu.matmul %416, %403, %cst_135 {dimension_numbers = #tpu.dot_dimension_numbers<[1], [0], [0], [1], [0, 0, 1, 1], [], []>} : vector<16x16xbf16>, vector<16x8xbf16>, vector<16x8xf32> -> vector<16x8xf32>
    %418 = vector.extract_strided_slice %355 {offsets = [0, 24], sizes = [16, 8], strides = [1, 1]} : vector<16x32xf32> to vector<16x8xf32>
    %419 = arith.truncf %418 : vector<16x8xf32> to vector<16x8xbf16>
    %420 = vector.extract_strided_slice %356 {offsets = [0, 24], sizes = [16, 8], strides = [1, 1]} : vector<16x32xf32> to vector<16x8xf32>
    %421 = arith.truncf %420 : vector<16x8xf32> to vector<16x8xbf16>
    %422 = vector.extract_strided_slice %357 {offsets = [0, 24], sizes = [16, 8], strides = [1, 1]} : vector<16x32xf32> to vector<16x8xf32>
    %423 = arith.truncf %422 : vector<16x8xf32> to vector<16x8xbf16>
    %cst_136 = arith.constant dense<0.000000e+00> : vector<16x16xf32>
    %424 = tpu.matmul %419, %421, %cst_136 {dimension_numbers = #tpu.dot_dimension_numbers<[1], [1], [0], [0], [0, 0, 1, 0], [], []>} : vector<16x8xbf16>, vector<16x8xbf16>, vector<16x16xf32> -> vector<16x16xf32>
    %425 = arith.addf %424, %1 : vector<16x16xf32>
    %cst_137 = arith.constant dense<0xFF800000> : vector<16xf32>
    %426 = vector.multi_reduction <maximumf>, %425, %cst_137 [1] : vector<16x16xf32> to vector<16xf32>
    %427 = vector.shape_cast %426 : vector<16xf32> to vector<16x1xf32>
    %428 = vector.broadcast %427 : vector<16x1xf32> to vector<16x16xf32>
    %429 = arith.subf %425, %428 : vector<16x16xf32>
    %430 = math.exp %429 : vector<16x16xf32>
    %cst_138 = arith.constant dense<0.000000e+00> : vector<16xf32>
    %431 = vector.multi_reduction <add>, %430, %cst_138 [1] : vector<16x16xf32> to vector<16xf32>
    %432 = vector.shape_cast %431 : vector<16xf32> to vector<16x1xf32>
    %433 = tpu.reciprocal %432 {approx = true} : vector<16x1xf32> -> vector<16x1xf32>
    %434 = vector.broadcast %433 : vector<16x1xf32> to vector<16x16xf32>
    %435 = arith.mulf %430, %434 : vector<16x16xf32>
    %436 = arith.truncf %435 : vector<16x16xf32> to vector<16x16xbf16>
    %cst_139 = arith.constant dense<0.000000e+00> : vector<16x8xf32>
    %437 = tpu.matmul %436, %423, %cst_139 {dimension_numbers = #tpu.dot_dimension_numbers<[1], [0], [0], [1], [0, 0, 1, 1], [], []>} : vector<16x16xbf16>, vector<16x8xbf16>, vector<16x8xf32> -> vector<16x8xf32>
    %438 = tpu.concatenate %377, %397, %417, %437 in 1 : vector<16x8xf32>, vector<16x8xf32>, vector<16x8xf32>, vector<16x8xf32> -> vector<16x32xf32>
    %439 = arith.truncf %438 : vector<16x32xf32> to vector<16x32xbf16>
    %cst_140 = arith.constant dense<0.000000e+00> : vector<16x32xf32>
    %440 = tpu.matmul %439, %349, %cst_140 {dimension_numbers = #tpu.dot_dimension_numbers<[1], [0], [0], [1], [0, 0, 1, 1], [], []>} : vector<16x32xbf16>, vector<32x32xbf16>, vector<16x32xf32> -> vector<16x32xf32>
    %441 = vector.broadcast %350 : vector<1x32xf32> to vector<16x32xf32>
    %442 = arith.addf %440, %441 : vector<16x32xf32>
    %443 = arith.addf %340, %442 : vector<16x32xf32>
    %444 = vector.extract_strided_slice %342 {offsets = [3, 0], sizes = [1, 32], strides = [1, 1]} : vector<9x32xf32> to vector<1x32xf32>
    %445 = vector.extract_strided_slice %342 {offsets = [4, 0], sizes = [1, 32], strides = [1, 1]} : vector<9x32xf32> to vector<1x32xf32>
    %cst_141 = arith.constant dense<0.000000e+00> : vector<16xf32>
    %446 = vector.multi_reduction <add>, %443, %cst_141 [1] : vector<16x32xf32> to vector<16xf32>
    %447 = vector.shape_cast %446 : vector<16xf32> to vector<16x1xf32>
    %cst_142 = arith.constant 3.200000e+01 : f32
    %448 = vector.broadcast %cst_142 : f32 to vector<16x1xf32>
    %449 = arith.divf %447, %448 : vector<16x1xf32>
    %450 = vector.broadcast %449 : vector<16x1xf32> to vector<16x32xf32>
    %451 = arith.subf %443, %450 : vector<16x32xf32>
    %452 = arith.mulf %451, %451 : vector<16x32xf32>
    %cst_143 = arith.constant dense<0.000000e+00> : vector<16xf32>
    %453 = vector.multi_reduction <add>, %452, %cst_143 [1] : vector<16x32xf32> to vector<16xf32>
    %454 = vector.shape_cast %453 : vector<16xf32> to vector<16x1xf32>
    %cst_144 = arith.constant 3.200000e+01 : f32
    %455 = vector.broadcast %cst_144 : f32 to vector<16x1xf32>
    %456 = arith.divf %454, %455 : vector<16x1xf32>
    %457 = vector.broadcast %449 : vector<16x1xf32> to vector<16x32xf32>
    %458 = arith.subf %443, %457 : vector<16x32xf32>
    %cst_145 = arith.constant 9.99999974E-6 : f32
    %459 = vector.broadcast %cst_145 : f32 to vector<16x1xf32>
    %460 = arith.addf %456, %459 : vector<16x1xf32>
    %461 = math.rsqrt %460 : vector<16x1xf32>
    %462 = vector.broadcast %461 : vector<16x1xf32> to vector<16x32xf32>
    %463 = arith.mulf %458, %462 : vector<16x32xf32>
    %464 = vector.broadcast %444 : vector<1x32xf32> to vector<16x32xf32>
    %465 = arith.mulf %463, %464 : vector<16x32xf32>
    %466 = vector.broadcast %445 : vector<1x32xf32> to vector<16x32xf32>
    %467 = arith.addf %465, %466 : vector<16x32xf32>
    %c0_146 = arith.constant 0 : index
    %c0_147 = arith.constant 0 : index
    %c0_148 = arith.constant 0 : index
    %468 = vector.load %arg14[%c0_146, %c0_147, %c0_148] : memref<2x32x96xbf16, #tpu.memory_space<vmem>>, vector<1x32x96xbf16>
    %469 = vector.shape_cast %468 : vector<1x32x96xbf16> to vector<32x96xbf16>
    %470 = vector.extract_strided_slice %344 {offsets = [1, 0], sizes = [1, 96], strides = [1, 1]} : vector<2x96xf32> to vector<1x96xf32>
    %c0_149 = arith.constant 0 : index
    %c0_150 = arith.constant 0 : index
    %c0_151 = arith.constant 0 : index
    %471 = vector.load %arg15[%c0_149, %c0_150, %c0_151] : memref<2x32x32xbf16, #tpu.memory_space<vmem>>, vector<1x32x32xbf16>
    %472 = vector.shape_cast %471 : vector<1x32x32xbf16> to vector<32x32xbf16>
    %473 = vector.extract_strided_slice %342 {offsets = [1, 0], sizes = [1, 32], strides = [1, 1]} : vector<9x32xf32> to vector<1x32xf32>
    %474 = arith.truncf %467 : vector<16x32xf32> to vector<16x32xbf16>
    %475 = vector.extract_strided_slice %469 {offsets = [0, 0], sizes = [32, 32], strides = [1, 1]} : vector<32x96xbf16> to vector<32x32xbf16>
    %cst_152 = arith.constant dense<0.000000e+00> : vector<16x32xf32>
    %476 = tpu.matmul %474, %475, %cst_152 {dimension_numbers = #tpu.dot_dimension_numbers<[1], [0], [0], [1], [0, 0, 1, 1], [], []>} : vector<16x32xbf16>, vector<32x32xbf16>, vector<16x32xf32> -> vector<16x32xf32>
    %477 = vector.extract_strided_slice %470 {offsets = [0, 0], sizes = [1, 32], strides = [1, 1]} : vector<1x96xf32> to vector<1x32xf32>
    %478 = vector.broadcast %477 : vector<1x32xf32> to vector<16x32xf32>
    %479 = arith.addf %476, %478 : vector<16x32xf32>
    %480 = arith.truncf %339 : vector<16x32xf32> to vector<16x32xbf16>
    %481 = vector.extract_strided_slice %469 {offsets = [0, 32], sizes = [32, 64], strides = [1, 1]} : vector<32x96xbf16> to vector<32x64xbf16>
    %cst_153 = arith.constant dense<0.000000e+00> : vector<16x64xf32>
    %482 = tpu.matmul %480, %481, %cst_153 {dimension_numbers = #tpu.dot_dimension_numbers<[1], [0], [0], [1], [0, 0, 1, 1], [], []>} : vector<16x32xbf16>, vector<32x64xbf16>, vector<16x64xf32> -> vector<16x64xf32>
    %483 = vector.extract_strided_slice %470 {offsets = [0, 32], sizes = [1, 64], strides = [1, 1]} : vector<1x96xf32> to vector<1x64xf32>
    %484 = vector.broadcast %483 : vector<1x64xf32> to vector<16x64xf32>
    %485 = arith.addf %482, %484 : vector<16x64xf32>
    %486 = vector.extract_strided_slice %485 {offsets = [0, 0], sizes = [16, 32], strides = [1, 1]} : vector<16x64xf32> to vector<16x32xf32>
    %487 = vector.extract_strided_slice %485 {offsets = [0, 32], sizes = [16, 32], strides = [1, 1]} : vector<16x64xf32> to vector<16x32xf32>
    %488 = vector.extract_strided_slice %479 {offsets = [0, 0], sizes = [16, 8], strides = [1, 1]} : vector<16x32xf32> to vector<16x8xf32>
    %489 = arith.truncf %488 : vector<16x8xf32> to vector<16x8xbf16>
    %490 = vector.extract_strided_slice %486 {offsets = [0, 0], sizes = [16, 8], strides = [1, 1]} : vector<16x32xf32> to vector<16x8xf32>
    %491 = arith.truncf %490 : vector<16x8xf32> to vector<16x8xbf16>
    %492 = vector.extract_strided_slice %487 {offsets = [0, 0], sizes = [16, 8], strides = [1, 1]} : vector<16x32xf32> to vector<16x8xf32>
    %493 = arith.truncf %492 : vector<16x8xf32> to vector<16x8xbf16>
    %cst_154 = arith.constant dense<0.000000e+00> : vector<16x16xf32>
    %494 = tpu.matmul %489, %491, %cst_154 {dimension_numbers = #tpu.dot_dimension_numbers<[1], [1], [0], [0], [0, 0, 1, 0], [], []>} : vector<16x8xbf16>, vector<16x8xbf16>, vector<16x16xf32> -> vector<16x16xf32>
    %495 = arith.addf %494, %2 : vector<16x16xf32>
    %cst_155 = arith.constant dense<0xFF800000> : vector<16xf32>
    %496 = vector.multi_reduction <maximumf>, %495, %cst_155 [1] : vector<16x16xf32> to vector<16xf32>
    %497 = vector.shape_cast %496 : vector<16xf32> to vector<16x1xf32>
    %498 = vector.broadcast %497 : vector<16x1xf32> to vector<16x16xf32>
    %499 = arith.subf %495, %498 : vector<16x16xf32>
    %500 = math.exp %499 : vector<16x16xf32>
    %cst_156 = arith.constant dense<0.000000e+00> : vector<16xf32>
    %501 = vector.multi_reduction <add>, %500, %cst_156 [1] : vector<16x16xf32> to vector<16xf32>
    %502 = vector.shape_cast %501 : vector<16xf32> to vector<16x1xf32>
    %503 = tpu.reciprocal %502 {approx = true} : vector<16x1xf32> -> vector<16x1xf32>
    %504 = vector.broadcast %503 : vector<16x1xf32> to vector<16x16xf32>
    %505 = arith.mulf %500, %504 : vector<16x16xf32>
    %506 = arith.truncf %505 : vector<16x16xf32> to vector<16x16xbf16>
    %cst_157 = arith.constant dense<0.000000e+00> : vector<16x8xf32>
    %507 = tpu.matmul %506, %493, %cst_157 {dimension_numbers = #tpu.dot_dimension_numbers<[1], [0], [0], [1], [0, 0, 1, 1], [], []>} : vector<16x16xbf16>, vector<16x8xbf16>, vector<16x8xf32> -> vector<16x8xf32>
    %508 = vector.extract_strided_slice %479 {offsets = [0, 8], sizes = [16, 8], strides = [1, 1]} : vector<16x32xf32> to vector<16x8xf32>
    %509 = arith.truncf %508 : vector<16x8xf32> to vector<16x8xbf16>
    %510 = vector.extract_strided_slice %486 {offsets = [0, 8], sizes = [16, 8], strides = [1, 1]} : vector<16x32xf32> to vector<16x8xf32>
    %511 = arith.truncf %510 : vector<16x8xf32> to vector<16x8xbf16>
    %512 = vector.extract_strided_slice %487 {offsets = [0, 8], sizes = [16, 8], strides = [1, 1]} : vector<16x32xf32> to vector<16x8xf32>
    %513 = arith.truncf %512 : vector<16x8xf32> to vector<16x8xbf16>
    %cst_158 = arith.constant dense<0.000000e+00> : vector<16x16xf32>
    %514 = tpu.matmul %509, %511, %cst_158 {dimension_numbers = #tpu.dot_dimension_numbers<[1], [1], [0], [0], [0, 0, 1, 0], [], []>} : vector<16x8xbf16>, vector<16x8xbf16>, vector<16x16xf32> -> vector<16x16xf32>
    %515 = arith.addf %514, %2 : vector<16x16xf32>
    %cst_159 = arith.constant dense<0xFF800000> : vector<16xf32>
    %516 = vector.multi_reduction <maximumf>, %515, %cst_159 [1] : vector<16x16xf32> to vector<16xf32>
    %517 = vector.shape_cast %516 : vector<16xf32> to vector<16x1xf32>
    %518 = vector.broadcast %517 : vector<16x1xf32> to vector<16x16xf32>
    %519 = arith.subf %515, %518 : vector<16x16xf32>
    %520 = math.exp %519 : vector<16x16xf32>
    %cst_160 = arith.constant dense<0.000000e+00> : vector<16xf32>
    %521 = vector.multi_reduction <add>, %520, %cst_160 [1] : vector<16x16xf32> to vector<16xf32>
    %522 = vector.shape_cast %521 : vector<16xf32> to vector<16x1xf32>
    %523 = tpu.reciprocal %522 {approx = true} : vector<16x1xf32> -> vector<16x1xf32>
    %524 = vector.broadcast %523 : vector<16x1xf32> to vector<16x16xf32>
    %525 = arith.mulf %520, %524 : vector<16x16xf32>
    %526 = arith.truncf %525 : vector<16x16xf32> to vector<16x16xbf16>
    %cst_161 = arith.constant dense<0.000000e+00> : vector<16x8xf32>
    %527 = tpu.matmul %526, %513, %cst_161 {dimension_numbers = #tpu.dot_dimension_numbers<[1], [0], [0], [1], [0, 0, 1, 1], [], []>} : vector<16x16xbf16>, vector<16x8xbf16>, vector<16x8xf32> -> vector<16x8xf32>
    %528 = vector.extract_strided_slice %479 {offsets = [0, 16], sizes = [16, 8], strides = [1, 1]} : vector<16x32xf32> to vector<16x8xf32>
    %529 = arith.truncf %528 : vector<16x8xf32> to vector<16x8xbf16>
    %530 = vector.extract_strided_slice %486 {offsets = [0, 16], sizes = [16, 8], strides = [1, 1]} : vector<16x32xf32> to vector<16x8xf32>
    %531 = arith.truncf %530 : vector<16x8xf32> to vector<16x8xbf16>
    %532 = vector.extract_strided_slice %487 {offsets = [0, 16], sizes = [16, 8], strides = [1, 1]} : vector<16x32xf32> to vector<16x8xf32>
    %533 = arith.truncf %532 : vector<16x8xf32> to vector<16x8xbf16>
    %cst_162 = arith.constant dense<0.000000e+00> : vector<16x16xf32>
    %534 = tpu.matmul %529, %531, %cst_162 {dimension_numbers = #tpu.dot_dimension_numbers<[1], [1], [0], [0], [0, 0, 1, 0], [], []>} : vector<16x8xbf16>, vector<16x8xbf16>, vector<16x16xf32> -> vector<16x16xf32>
    %535 = arith.addf %534, %2 : vector<16x16xf32>
    %cst_163 = arith.constant dense<0xFF800000> : vector<16xf32>
    %536 = vector.multi_reduction <maximumf>, %535, %cst_163 [1] : vector<16x16xf32> to vector<16xf32>
    %537 = vector.shape_cast %536 : vector<16xf32> to vector<16x1xf32>
    %538 = vector.broadcast %537 : vector<16x1xf32> to vector<16x16xf32>
    %539 = arith.subf %535, %538 : vector<16x16xf32>
    %540 = math.exp %539 : vector<16x16xf32>
    %cst_164 = arith.constant dense<0.000000e+00> : vector<16xf32>
    %541 = vector.multi_reduction <add>, %540, %cst_164 [1] : vector<16x16xf32> to vector<16xf32>
    %542 = vector.shape_cast %541 : vector<16xf32> to vector<16x1xf32>
    %543 = tpu.reciprocal %542 {approx = true} : vector<16x1xf32> -> vector<16x1xf32>
    %544 = vector.broadcast %543 : vector<16x1xf32> to vector<16x16xf32>
    %545 = arith.mulf %540, %544 : vector<16x16xf32>
    %546 = arith.truncf %545 : vector<16x16xf32> to vector<16x16xbf16>
    %cst_165 = arith.constant dense<0.000000e+00> : vector<16x8xf32>
    %547 = tpu.matmul %546, %533, %cst_165 {dimension_numbers = #tpu.dot_dimension_numbers<[1], [0], [0], [1], [0, 0, 1, 1], [], []>} : vector<16x16xbf16>, vector<16x8xbf16>, vector<16x8xf32> -> vector<16x8xf32>
    %548 = vector.extract_strided_slice %479 {offsets = [0, 24], sizes = [16, 8], strides = [1, 1]} : vector<16x32xf32> to vector<16x8xf32>
    %549 = arith.truncf %548 : vector<16x8xf32> to vector<16x8xbf16>
    %550 = vector.extract_strided_slice %486 {offsets = [0, 24], sizes = [16, 8], strides = [1, 1]} : vector<16x32xf32> to vector<16x8xf32>
    %551 = arith.truncf %550 : vector<16x8xf32> to vector<16x8xbf16>
    %552 = vector.extract_strided_slice %487 {offsets = [0, 24], sizes = [16, 8], strides = [1, 1]} : vector<16x32xf32> to vector<16x8xf32>
    %553 = arith.truncf %552 : vector<16x8xf32> to vector<16x8xbf16>
    %cst_166 = arith.constant dense<0.000000e+00> : vector<16x16xf32>
    %554 = tpu.matmul %549, %551, %cst_166 {dimension_numbers = #tpu.dot_dimension_numbers<[1], [1], [0], [0], [0, 0, 1, 0], [], []>} : vector<16x8xbf16>, vector<16x8xbf16>, vector<16x16xf32> -> vector<16x16xf32>
    %555 = arith.addf %554, %2 : vector<16x16xf32>
    %cst_167 = arith.constant dense<0xFF800000> : vector<16xf32>
    %556 = vector.multi_reduction <maximumf>, %555, %cst_167 [1] : vector<16x16xf32> to vector<16xf32>
    %557 = vector.shape_cast %556 : vector<16xf32> to vector<16x1xf32>
    %558 = vector.broadcast %557 : vector<16x1xf32> to vector<16x16xf32>
    %559 = arith.subf %555, %558 : vector<16x16xf32>
    %560 = math.exp %559 : vector<16x16xf32>
    %cst_168 = arith.constant dense<0.000000e+00> : vector<16xf32>
    %561 = vector.multi_reduction <add>, %560, %cst_168 [1] : vector<16x16xf32> to vector<16xf32>
    %562 = vector.shape_cast %561 : vector<16xf32> to vector<16x1xf32>
    %563 = tpu.reciprocal %562 {approx = true} : vector<16x1xf32> -> vector<16x1xf32>
    %564 = vector.broadcast %563 : vector<16x1xf32> to vector<16x16xf32>
    %565 = arith.mulf %560, %564 : vector<16x16xf32>
    %566 = arith.truncf %565 : vector<16x16xf32> to vector<16x16xbf16>
    %cst_169 = arith.constant dense<0.000000e+00> : vector<16x8xf32>
    %567 = tpu.matmul %566, %553, %cst_169 {dimension_numbers = #tpu.dot_dimension_numbers<[1], [0], [0], [1], [0, 0, 1, 1], [], []>} : vector<16x16xbf16>, vector<16x8xbf16>, vector<16x8xf32> -> vector<16x8xf32>
    %568 = tpu.concatenate %507, %527, %547, %567 in 1 : vector<16x8xf32>, vector<16x8xf32>, vector<16x8xf32>, vector<16x8xf32> -> vector<16x32xf32>
    %569 = arith.truncf %568 : vector<16x32xf32> to vector<16x32xbf16>
    %cst_170 = arith.constant dense<0.000000e+00> : vector<16x32xf32>
    %570 = tpu.matmul %569, %472, %cst_170 {dimension_numbers = #tpu.dot_dimension_numbers<[1], [0], [0], [1], [0, 0, 1, 1], [], []>} : vector<16x32xbf16>, vector<32x32xbf16>, vector<16x32xf32> -> vector<16x32xf32>
    %571 = vector.broadcast %473 : vector<1x32xf32> to vector<16x32xf32>
    %572 = arith.addf %570, %571 : vector<16x32xf32>
    %573 = arith.addf %467, %572 : vector<16x32xf32>
    %574 = vector.extract_strided_slice %342 {offsets = [5, 0], sizes = [1, 32], strides = [1, 1]} : vector<9x32xf32> to vector<1x32xf32>
    %575 = vector.extract_strided_slice %342 {offsets = [6, 0], sizes = [1, 32], strides = [1, 1]} : vector<9x32xf32> to vector<1x32xf32>
    %cst_171 = arith.constant dense<0.000000e+00> : vector<16xf32>
    %576 = vector.multi_reduction <add>, %573, %cst_171 [1] : vector<16x32xf32> to vector<16xf32>
    %577 = vector.shape_cast %576 : vector<16xf32> to vector<16x1xf32>
    %cst_172 = arith.constant 3.200000e+01 : f32
    %578 = vector.broadcast %cst_172 : f32 to vector<16x1xf32>
    %579 = arith.divf %577, %578 : vector<16x1xf32>
    %580 = vector.broadcast %579 : vector<16x1xf32> to vector<16x32xf32>
    %581 = arith.subf %573, %580 : vector<16x32xf32>
    %582 = arith.mulf %581, %581 : vector<16x32xf32>
    %cst_173 = arith.constant dense<0.000000e+00> : vector<16xf32>
    %583 = vector.multi_reduction <add>, %582, %cst_173 [1] : vector<16x32xf32> to vector<16xf32>
    %584 = vector.shape_cast %583 : vector<16xf32> to vector<16x1xf32>
    %cst_174 = arith.constant 3.200000e+01 : f32
    %585 = vector.broadcast %cst_174 : f32 to vector<16x1xf32>
    %586 = arith.divf %584, %585 : vector<16x1xf32>
    %587 = vector.broadcast %579 : vector<16x1xf32> to vector<16x32xf32>
    %588 = arith.subf %573, %587 : vector<16x32xf32>
    %cst_175 = arith.constant 9.99999974E-6 : f32
    %589 = vector.broadcast %cst_175 : f32 to vector<16x1xf32>
    %590 = arith.addf %586, %589 : vector<16x1xf32>
    %591 = math.rsqrt %590 : vector<16x1xf32>
    %592 = vector.broadcast %591 : vector<16x1xf32> to vector<16x32xf32>
    %593 = arith.mulf %588, %592 : vector<16x32xf32>
    %594 = vector.broadcast %574 : vector<1x32xf32> to vector<16x32xf32>
    %595 = arith.mulf %593, %594 : vector<16x32xf32>
    %596 = vector.broadcast %575 : vector<1x32xf32> to vector<16x32xf32>
    %597 = arith.addf %595, %596 : vector<16x32xf32>
    %c0_176 = arith.constant 0 : index
    %c0_177 = arith.constant 0 : index
    %c0_178 = arith.constant 0 : index
    %598 = vector.load %arg16[%c0_176, %c0_177, %c0_178] : memref<2x32x64xbf16, #tpu.memory_space<vmem>>, vector<1x32x64xbf16>
    %599 = vector.shape_cast %598 : vector<1x32x64xbf16> to vector<32x64xbf16>
    %c0_179 = arith.constant 0 : index
    %c0_180 = arith.constant 0 : index
    %c0_181 = arith.constant 0 : index
    %600 = vector.load %arg19[%c0_179, %c0_180, %c0_181] : memref<2x1x64xf32, #tpu.memory_space<vmem>>, vector<1x1x64xf32>
    %601 = vector.shape_cast %600 : vector<1x1x64xf32> to vector<1x64xf32>
    %c0_182 = arith.constant 0 : index
    %c0_183 = arith.constant 0 : index
    %c0_184 = arith.constant 0 : index
    %602 = vector.load %arg17[%c0_182, %c0_183, %c0_184] : memref<2x64x32xbf16, #tpu.memory_space<vmem>>, vector<1x64x32xbf16>
    %603 = vector.shape_cast %602 : vector<1x64x32xbf16> to vector<64x32xbf16>
    %604 = vector.extract_strided_slice %342 {offsets = [2, 0], sizes = [1, 32], strides = [1, 1]} : vector<9x32xf32> to vector<1x32xf32>
    %605 = arith.truncf %597 : vector<16x32xf32> to vector<16x32xbf16>
    %cst_185 = arith.constant dense<0.000000e+00> : vector<16x64xf32>
    %606 = tpu.matmul %605, %599, %cst_185 {dimension_numbers = #tpu.dot_dimension_numbers<[1], [0], [0], [1], [0, 0, 1, 1], [], []>} : vector<16x32xbf16>, vector<32x64xbf16>, vector<16x64xf32> -> vector<16x64xf32>
    %607 = vector.broadcast %601 : vector<1x64xf32> to vector<16x64xf32>
    %608 = arith.addf %606, %607 : vector<16x64xf32>
    %cst_186 = arith.constant 0.000000e+00 : f32
    %609 = vector.broadcast %cst_186 : f32 to vector<16x64xf32>
    %610 = arith.maximumf %608, %609 : vector<16x64xf32>
    %611 = arith.truncf %610 : vector<16x64xf32> to vector<16x64xbf16>
    %cst_187 = arith.constant dense<0.000000e+00> : vector<16x32xf32>
    %612 = tpu.matmul %611, %603, %cst_187 {dimension_numbers = #tpu.dot_dimension_numbers<[1], [0], [0], [1], [0, 0, 1, 1], [], []>} : vector<16x64xbf16>, vector<64x32xbf16>, vector<16x32xf32> -> vector<16x32xf32>
    %613 = vector.broadcast %604 : vector<1x32xf32> to vector<16x32xf32>
    %614 = arith.addf %612, %613 : vector<16x32xf32>
    %615 = arith.addf %597, %614 : vector<16x32xf32>
    %616 = vector.extract_strided_slice %342 {offsets = [7, 0], sizes = [1, 32], strides = [1, 1]} : vector<9x32xf32> to vector<1x32xf32>
    %617 = vector.extract_strided_slice %342 {offsets = [8, 0], sizes = [1, 32], strides = [1, 1]} : vector<9x32xf32> to vector<1x32xf32>
    %cst_188 = arith.constant dense<0.000000e+00> : vector<16xf32>
    %618 = vector.multi_reduction <add>, %615, %cst_188 [1] : vector<16x32xf32> to vector<16xf32>
    %619 = vector.shape_cast %618 : vector<16xf32> to vector<16x1xf32>
    %cst_189 = arith.constant 3.200000e+01 : f32
    %620 = vector.broadcast %cst_189 : f32 to vector<16x1xf32>
    %621 = arith.divf %619, %620 : vector<16x1xf32>
    %622 = vector.broadcast %621 : vector<16x1xf32> to vector<16x32xf32>
    %623 = arith.subf %615, %622 : vector<16x32xf32>
    %624 = arith.mulf %623, %623 : vector<16x32xf32>
    %cst_190 = arith.constant dense<0.000000e+00> : vector<16xf32>
    %625 = vector.multi_reduction <add>, %624, %cst_190 [1] : vector<16x32xf32> to vector<16xf32>
    %626 = vector.shape_cast %625 : vector<16xf32> to vector<16x1xf32>
    %cst_191 = arith.constant 3.200000e+01 : f32
    %627 = vector.broadcast %cst_191 : f32 to vector<16x1xf32>
    %628 = arith.divf %626, %627 : vector<16x1xf32>
    %629 = vector.broadcast %621 : vector<16x1xf32> to vector<16x32xf32>
    %630 = arith.subf %615, %629 : vector<16x32xf32>
    %cst_192 = arith.constant 9.99999974E-6 : f32
    %631 = vector.broadcast %cst_192 : f32 to vector<16x1xf32>
    %632 = arith.addf %628, %631 : vector<16x1xf32>
    %633 = math.rsqrt %632 : vector<16x1xf32>
    %634 = vector.broadcast %633 : vector<16x1xf32> to vector<16x32xf32>
    %635 = arith.mulf %630, %634 : vector<16x32xf32>
    %636 = vector.broadcast %616 : vector<1x32xf32> to vector<16x32xf32>
    %637 = arith.mulf %635, %636 : vector<16x32xf32>
    %638 = vector.broadcast %617 : vector<1x32xf32> to vector<16x32xf32>
    %639 = arith.addf %637, %638 : vector<16x32xf32>
    %c1_193 = arith.constant 1 : index
    %c0_194 = arith.constant 0 : index
    %c0_195 = arith.constant 0 : index
    %640 = vector.load %arg20[%c1_193, %c0_194, %c0_195] : memref<2x9x32xf32, #tpu.memory_space<vmem>>, vector<1x9x32xf32>
    %641 = vector.shape_cast %640 : vector<1x9x32xf32> to vector<9x32xf32>
    %c1_196 = arith.constant 1 : index
    %c0_197 = arith.constant 0 : index
    %c0_198 = arith.constant 0 : index
    %642 = vector.load %arg18[%c1_196, %c0_197, %c0_198] : memref<2x2x96xf32, #tpu.memory_space<vmem>>, vector<1x2x96xf32>
    %643 = vector.shape_cast %642 : vector<1x2x96xf32> to vector<2x96xf32>
    %c1_199 = arith.constant 1 : index
    %c0_200 = arith.constant 0 : index
    %c0_201 = arith.constant 0 : index
    %644 = vector.load %arg12[%c1_199, %c0_200, %c0_201] : memref<2x32x96xbf16, #tpu.memory_space<vmem>>, vector<1x32x96xbf16>
    %645 = vector.shape_cast %644 : vector<1x32x96xbf16> to vector<32x96xbf16>
    %646 = vector.extract_strided_slice %643 {offsets = [0, 0], sizes = [1, 96], strides = [1, 1]} : vector<2x96xf32> to vector<1x96xf32>
    %c1_202 = arith.constant 1 : index
    %c0_203 = arith.constant 0 : index
    %c0_204 = arith.constant 0 : index
    %647 = vector.load %arg13[%c1_202, %c0_203, %c0_204] : memref<2x32x32xbf16, #tpu.memory_space<vmem>>, vector<1x32x32xbf16>
    %648 = vector.shape_cast %647 : vector<1x32x32xbf16> to vector<32x32xbf16>
    %649 = vector.extract_strided_slice %641 {offsets = [0, 0], sizes = [1, 32], strides = [1, 1]} : vector<9x32xf32> to vector<1x32xf32>
    %650 = arith.truncf %639 : vector<16x32xf32> to vector<16x32xbf16>
    %cst_205 = arith.constant dense<0.000000e+00> : vector<16x96xf32>
    %651 = tpu.matmul %650, %645, %cst_205 {dimension_numbers = #tpu.dot_dimension_numbers<[1], [0], [0], [1], [0, 0, 1, 1], [], []>} : vector<16x32xbf16>, vector<32x96xbf16>, vector<16x96xf32> -> vector<16x96xf32>
    %652 = vector.broadcast %646 : vector<1x96xf32> to vector<16x96xf32>
    %653 = arith.addf %651, %652 : vector<16x96xf32>
    %654 = vector.extract_strided_slice %653 {offsets = [0, 0], sizes = [16, 32], strides = [1, 1]} : vector<16x96xf32> to vector<16x32xf32>
    %655 = vector.extract_strided_slice %653 {offsets = [0, 32], sizes = [16, 32], strides = [1, 1]} : vector<16x96xf32> to vector<16x32xf32>
    %656 = vector.extract_strided_slice %653 {offsets = [0, 64], sizes = [16, 32], strides = [1, 1]} : vector<16x96xf32> to vector<16x32xf32>
    %657 = vector.extract_strided_slice %654 {offsets = [0, 0], sizes = [16, 8], strides = [1, 1]} : vector<16x32xf32> to vector<16x8xf32>
    %658 = arith.truncf %657 : vector<16x8xf32> to vector<16x8xbf16>
    %659 = vector.extract_strided_slice %655 {offsets = [0, 0], sizes = [16, 8], strides = [1, 1]} : vector<16x32xf32> to vector<16x8xf32>
    %660 = arith.truncf %659 : vector<16x8xf32> to vector<16x8xbf16>
    %661 = vector.extract_strided_slice %656 {offsets = [0, 0], sizes = [16, 8], strides = [1, 1]} : vector<16x32xf32> to vector<16x8xf32>
    %662 = arith.truncf %661 : vector<16x8xf32> to vector<16x8xbf16>
    %cst_206 = arith.constant dense<0.000000e+00> : vector<16x16xf32>
    %663 = tpu.matmul %658, %660, %cst_206 {dimension_numbers = #tpu.dot_dimension_numbers<[1], [1], [0], [0], [0, 0, 1, 0], [], []>} : vector<16x8xbf16>, vector<16x8xbf16>, vector<16x16xf32> -> vector<16x16xf32>
    %664 = arith.addf %663, %1 : vector<16x16xf32>
    %cst_207 = arith.constant dense<0xFF800000> : vector<16xf32>
    %665 = vector.multi_reduction <maximumf>, %664, %cst_207 [1] : vector<16x16xf32> to vector<16xf32>
    %666 = vector.shape_cast %665 : vector<16xf32> to vector<16x1xf32>
    %667 = vector.broadcast %666 : vector<16x1xf32> to vector<16x16xf32>
    %668 = arith.subf %664, %667 : vector<16x16xf32>
    %669 = math.exp %668 : vector<16x16xf32>
    %cst_208 = arith.constant dense<0.000000e+00> : vector<16xf32>
    %670 = vector.multi_reduction <add>, %669, %cst_208 [1] : vector<16x16xf32> to vector<16xf32>
    %671 = vector.shape_cast %670 : vector<16xf32> to vector<16x1xf32>
    %672 = tpu.reciprocal %671 {approx = true} : vector<16x1xf32> -> vector<16x1xf32>
    %673 = vector.broadcast %672 : vector<16x1xf32> to vector<16x16xf32>
    %674 = arith.mulf %669, %673 : vector<16x16xf32>
    %675 = arith.truncf %674 : vector<16x16xf32> to vector<16x16xbf16>
    %cst_209 = arith.constant dense<0.000000e+00> : vector<16x8xf32>
    %676 = tpu.matmul %675, %662, %cst_209 {dimension_numbers = #tpu.dot_dimension_numbers<[1], [0], [0], [1], [0, 0, 1, 1], [], []>} : vector<16x16xbf16>, vector<16x8xbf16>, vector<16x8xf32> -> vector<16x8xf32>
    %677 = vector.extract_strided_slice %654 {offsets = [0, 8], sizes = [16, 8], strides = [1, 1]} : vector<16x32xf32> to vector<16x8xf32>
    %678 = arith.truncf %677 : vector<16x8xf32> to vector<16x8xbf16>
    %679 = vector.extract_strided_slice %655 {offsets = [0, 8], sizes = [16, 8], strides = [1, 1]} : vector<16x32xf32> to vector<16x8xf32>
    %680 = arith.truncf %679 : vector<16x8xf32> to vector<16x8xbf16>
    %681 = vector.extract_strided_slice %656 {offsets = [0, 8], sizes = [16, 8], strides = [1, 1]} : vector<16x32xf32> to vector<16x8xf32>
    %682 = arith.truncf %681 : vector<16x8xf32> to vector<16x8xbf16>
    %cst_210 = arith.constant dense<0.000000e+00> : vector<16x16xf32>
    %683 = tpu.matmul %678, %680, %cst_210 {dimension_numbers = #tpu.dot_dimension_numbers<[1], [1], [0], [0], [0, 0, 1, 0], [], []>} : vector<16x8xbf16>, vector<16x8xbf16>, vector<16x16xf32> -> vector<16x16xf32>
    %684 = arith.addf %683, %1 : vector<16x16xf32>
    %cst_211 = arith.constant dense<0xFF800000> : vector<16xf32>
    %685 = vector.multi_reduction <maximumf>, %684, %cst_211 [1] : vector<16x16xf32> to vector<16xf32>
    %686 = vector.shape_cast %685 : vector<16xf32> to vector<16x1xf32>
    %687 = vector.broadcast %686 : vector<16x1xf32> to vector<16x16xf32>
    %688 = arith.subf %684, %687 : vector<16x16xf32>
    %689 = math.exp %688 : vector<16x16xf32>
    %cst_212 = arith.constant dense<0.000000e+00> : vector<16xf32>
    %690 = vector.multi_reduction <add>, %689, %cst_212 [1] : vector<16x16xf32> to vector<16xf32>
    %691 = vector.shape_cast %690 : vector<16xf32> to vector<16x1xf32>
    %692 = tpu.reciprocal %691 {approx = true} : vector<16x1xf32> -> vector<16x1xf32>
    %693 = vector.broadcast %692 : vector<16x1xf32> to vector<16x16xf32>
    %694 = arith.mulf %689, %693 : vector<16x16xf32>
    %695 = arith.truncf %694 : vector<16x16xf32> to vector<16x16xbf16>
    %cst_213 = arith.constant dense<0.000000e+00> : vector<16x8xf32>
    %696 = tpu.matmul %695, %682, %cst_213 {dimension_numbers = #tpu.dot_dimension_numbers<[1], [0], [0], [1], [0, 0, 1, 1], [], []>} : vector<16x16xbf16>, vector<16x8xbf16>, vector<16x8xf32> -> vector<16x8xf32>
    %697 = vector.extract_strided_slice %654 {offsets = [0, 16], sizes = [16, 8], strides = [1, 1]} : vector<16x32xf32> to vector<16x8xf32>
    %698 = arith.truncf %697 : vector<16x8xf32> to vector<16x8xbf16>
    %699 = vector.extract_strided_slice %655 {offsets = [0, 16], sizes = [16, 8], strides = [1, 1]} : vector<16x32xf32> to vector<16x8xf32>
    %700 = arith.truncf %699 : vector<16x8xf32> to vector<16x8xbf16>
    %701 = vector.extract_strided_slice %656 {offsets = [0, 16], sizes = [16, 8], strides = [1, 1]} : vector<16x32xf32> to vector<16x8xf32>
    %702 = arith.truncf %701 : vector<16x8xf32> to vector<16x8xbf16>
    %cst_214 = arith.constant dense<0.000000e+00> : vector<16x16xf32>
    %703 = tpu.matmul %698, %700, %cst_214 {dimension_numbers = #tpu.dot_dimension_numbers<[1], [1], [0], [0], [0, 0, 1, 0], [], []>} : vector<16x8xbf16>, vector<16x8xbf16>, vector<16x16xf32> -> vector<16x16xf32>
    %704 = arith.addf %703, %1 : vector<16x16xf32>
    %cst_215 = arith.constant dense<0xFF800000> : vector<16xf32>
    %705 = vector.multi_reduction <maximumf>, %704, %cst_215 [1] : vector<16x16xf32> to vector<16xf32>
    %706 = vector.shape_cast %705 : vector<16xf32> to vector<16x1xf32>
    %707 = vector.broadcast %706 : vector<16x1xf32> to vector<16x16xf32>
    %708 = arith.subf %704, %707 : vector<16x16xf32>
    %709 = math.exp %708 : vector<16x16xf32>
    %cst_216 = arith.constant dense<0.000000e+00> : vector<16xf32>
    %710 = vector.multi_reduction <add>, %709, %cst_216 [1] : vector<16x16xf32> to vector<16xf32>
    %711 = vector.shape_cast %710 : vector<16xf32> to vector<16x1xf32>
    %712 = tpu.reciprocal %711 {approx = true} : vector<16x1xf32> -> vector<16x1xf32>
    %713 = vector.broadcast %712 : vector<16x1xf32> to vector<16x16xf32>
    %714 = arith.mulf %709, %713 : vector<16x16xf32>
    %715 = arith.truncf %714 : vector<16x16xf32> to vector<16x16xbf16>
    %cst_217 = arith.constant dense<0.000000e+00> : vector<16x8xf32>
    %716 = tpu.matmul %715, %702, %cst_217 {dimension_numbers = #tpu.dot_dimension_numbers<[1], [0], [0], [1], [0, 0, 1, 1], [], []>} : vector<16x16xbf16>, vector<16x8xbf16>, vector<16x8xf32> -> vector<16x8xf32>
    %717 = vector.extract_strided_slice %654 {offsets = [0, 24], sizes = [16, 8], strides = [1, 1]} : vector<16x32xf32> to vector<16x8xf32>
    %718 = arith.truncf %717 : vector<16x8xf32> to vector<16x8xbf16>
    %719 = vector.extract_strided_slice %655 {offsets = [0, 24], sizes = [16, 8], strides = [1, 1]} : vector<16x32xf32> to vector<16x8xf32>
    %720 = arith.truncf %719 : vector<16x8xf32> to vector<16x8xbf16>
    %721 = vector.extract_strided_slice %656 {offsets = [0, 24], sizes = [16, 8], strides = [1, 1]} : vector<16x32xf32> to vector<16x8xf32>
    %722 = arith.truncf %721 : vector<16x8xf32> to vector<16x8xbf16>
    %cst_218 = arith.constant dense<0.000000e+00> : vector<16x16xf32>
    %723 = tpu.matmul %718, %720, %cst_218 {dimension_numbers = #tpu.dot_dimension_numbers<[1], [1], [0], [0], [0, 0, 1, 0], [], []>} : vector<16x8xbf16>, vector<16x8xbf16>, vector<16x16xf32> -> vector<16x16xf32>
    %724 = arith.addf %723, %1 : vector<16x16xf32>
    %cst_219 = arith.constant dense<0xFF800000> : vector<16xf32>
    %725 = vector.multi_reduction <maximumf>, %724, %cst_219 [1] : vector<16x16xf32> to vector<16xf32>
    %726 = vector.shape_cast %725 : vector<16xf32> to vector<16x1xf32>
    %727 = vector.broadcast %726 : vector<16x1xf32> to vector<16x16xf32>
    %728 = arith.subf %724, %727 : vector<16x16xf32>
    %729 = math.exp %728 : vector<16x16xf32>
    %cst_220 = arith.constant dense<0.000000e+00> : vector<16xf32>
    %730 = vector.multi_reduction <add>, %729, %cst_220 [1] : vector<16x16xf32> to vector<16xf32>
    %731 = vector.shape_cast %730 : vector<16xf32> to vector<16x1xf32>
    %732 = tpu.reciprocal %731 {approx = true} : vector<16x1xf32> -> vector<16x1xf32>
    %733 = vector.broadcast %732 : vector<16x1xf32> to vector<16x16xf32>
    %734 = arith.mulf %729, %733 : vector<16x16xf32>
    %735 = arith.truncf %734 : vector<16x16xf32> to vector<16x16xbf16>
    %cst_221 = arith.constant dense<0.000000e+00> : vector<16x8xf32>
    %736 = tpu.matmul %735, %722, %cst_221 {dimension_numbers = #tpu.dot_dimension_numbers<[1], [0], [0], [1], [0, 0, 1, 1], [], []>} : vector<16x16xbf16>, vector<16x8xbf16>, vector<16x8xf32> -> vector<16x8xf32>
    %737 = tpu.concatenate %676, %696, %716, %736 in 1 : vector<16x8xf32>, vector<16x8xf32>, vector<16x8xf32>, vector<16x8xf32> -> vector<16x32xf32>
    %738 = arith.truncf %737 : vector<16x32xf32> to vector<16x32xbf16>
    %cst_222 = arith.constant dense<0.000000e+00> : vector<16x32xf32>
    %739 = tpu.matmul %738, %648, %cst_222 {dimension_numbers = #tpu.dot_dimension_numbers<[1], [0], [0], [1], [0, 0, 1, 1], [], []>} : vector<16x32xbf16>, vector<32x32xbf16>, vector<16x32xf32> -> vector<16x32xf32>
    %740 = vector.broadcast %649 : vector<1x32xf32> to vector<16x32xf32>
    %741 = arith.addf %739, %740 : vector<16x32xf32>
    %742 = arith.addf %639, %741 : vector<16x32xf32>
    %743 = vector.extract_strided_slice %641 {offsets = [3, 0], sizes = [1, 32], strides = [1, 1]} : vector<9x32xf32> to vector<1x32xf32>
    %744 = vector.extract_strided_slice %641 {offsets = [4, 0], sizes = [1, 32], strides = [1, 1]} : vector<9x32xf32> to vector<1x32xf32>
    %cst_223 = arith.constant dense<0.000000e+00> : vector<16xf32>
    %745 = vector.multi_reduction <add>, %742, %cst_223 [1] : vector<16x32xf32> to vector<16xf32>
    %746 = vector.shape_cast %745 : vector<16xf32> to vector<16x1xf32>
    %cst_224 = arith.constant 3.200000e+01 : f32
    %747 = vector.broadcast %cst_224 : f32 to vector<16x1xf32>
    %748 = arith.divf %746, %747 : vector<16x1xf32>
    %749 = vector.broadcast %748 : vector<16x1xf32> to vector<16x32xf32>
    %750 = arith.subf %742, %749 : vector<16x32xf32>
    %751 = arith.mulf %750, %750 : vector<16x32xf32>
    %cst_225 = arith.constant dense<0.000000e+00> : vector<16xf32>
    %752 = vector.multi_reduction <add>, %751, %cst_225 [1] : vector<16x32xf32> to vector<16xf32>
    %753 = vector.shape_cast %752 : vector<16xf32> to vector<16x1xf32>
    %cst_226 = arith.constant 3.200000e+01 : f32
    %754 = vector.broadcast %cst_226 : f32 to vector<16x1xf32>
    %755 = arith.divf %753, %754 : vector<16x1xf32>
    %756 = vector.broadcast %748 : vector<16x1xf32> to vector<16x32xf32>
    %757 = arith.subf %742, %756 : vector<16x32xf32>
    %cst_227 = arith.constant 9.99999974E-6 : f32
    %758 = vector.broadcast %cst_227 : f32 to vector<16x1xf32>
    %759 = arith.addf %755, %758 : vector<16x1xf32>
    %760 = math.rsqrt %759 : vector<16x1xf32>
    %761 = vector.broadcast %760 : vector<16x1xf32> to vector<16x32xf32>
    %762 = arith.mulf %757, %761 : vector<16x32xf32>
    %763 = vector.broadcast %743 : vector<1x32xf32> to vector<16x32xf32>
    %764 = arith.mulf %762, %763 : vector<16x32xf32>
    %765 = vector.broadcast %744 : vector<1x32xf32> to vector<16x32xf32>
    %766 = arith.addf %764, %765 : vector<16x32xf32>
    %c1_228 = arith.constant 1 : index
    %c0_229 = arith.constant 0 : index
    %c0_230 = arith.constant 0 : index
    %767 = vector.load %arg14[%c1_228, %c0_229, %c0_230] : memref<2x32x96xbf16, #tpu.memory_space<vmem>>, vector<1x32x96xbf16>
    %768 = vector.shape_cast %767 : vector<1x32x96xbf16> to vector<32x96xbf16>
    %769 = vector.extract_strided_slice %643 {offsets = [1, 0], sizes = [1, 96], strides = [1, 1]} : vector<2x96xf32> to vector<1x96xf32>
    %c1_231 = arith.constant 1 : index
    %c0_232 = arith.constant 0 : index
    %c0_233 = arith.constant 0 : index
    %770 = vector.load %arg15[%c1_231, %c0_232, %c0_233] : memref<2x32x32xbf16, #tpu.memory_space<vmem>>, vector<1x32x32xbf16>
    %771 = vector.shape_cast %770 : vector<1x32x32xbf16> to vector<32x32xbf16>
    %772 = vector.extract_strided_slice %641 {offsets = [1, 0], sizes = [1, 32], strides = [1, 1]} : vector<9x32xf32> to vector<1x32xf32>
    %773 = arith.truncf %766 : vector<16x32xf32> to vector<16x32xbf16>
    %774 = vector.extract_strided_slice %768 {offsets = [0, 0], sizes = [32, 32], strides = [1, 1]} : vector<32x96xbf16> to vector<32x32xbf16>
    %cst_234 = arith.constant dense<0.000000e+00> : vector<16x32xf32>
    %775 = tpu.matmul %773, %774, %cst_234 {dimension_numbers = #tpu.dot_dimension_numbers<[1], [0], [0], [1], [0, 0, 1, 1], [], []>} : vector<16x32xbf16>, vector<32x32xbf16>, vector<16x32xf32> -> vector<16x32xf32>
    %776 = vector.extract_strided_slice %769 {offsets = [0, 0], sizes = [1, 32], strides = [1, 1]} : vector<1x96xf32> to vector<1x32xf32>
    %777 = vector.broadcast %776 : vector<1x32xf32> to vector<16x32xf32>
    %778 = arith.addf %775, %777 : vector<16x32xf32>
    %779 = arith.truncf %339 : vector<16x32xf32> to vector<16x32xbf16>
    %780 = vector.extract_strided_slice %768 {offsets = [0, 32], sizes = [32, 64], strides = [1, 1]} : vector<32x96xbf16> to vector<32x64xbf16>
    %cst_235 = arith.constant dense<0.000000e+00> : vector<16x64xf32>
    %781 = tpu.matmul %779, %780, %cst_235 {dimension_numbers = #tpu.dot_dimension_numbers<[1], [0], [0], [1], [0, 0, 1, 1], [], []>} : vector<16x32xbf16>, vector<32x64xbf16>, vector<16x64xf32> -> vector<16x64xf32>
    %782 = vector.extract_strided_slice %769 {offsets = [0, 32], sizes = [1, 64], strides = [1, 1]} : vector<1x96xf32> to vector<1x64xf32>
    %783 = vector.broadcast %782 : vector<1x64xf32> to vector<16x64xf32>
    %784 = arith.addf %781, %783 : vector<16x64xf32>
    %785 = vector.extract_strided_slice %784 {offsets = [0, 0], sizes = [16, 32], strides = [1, 1]} : vector<16x64xf32> to vector<16x32xf32>
    %786 = vector.extract_strided_slice %784 {offsets = [0, 32], sizes = [16, 32], strides = [1, 1]} : vector<16x64xf32> to vector<16x32xf32>
    %787 = vector.extract_strided_slice %778 {offsets = [0, 0], sizes = [16, 8], strides = [1, 1]} : vector<16x32xf32> to vector<16x8xf32>
    %788 = arith.truncf %787 : vector<16x8xf32> to vector<16x8xbf16>
    %789 = vector.extract_strided_slice %785 {offsets = [0, 0], sizes = [16, 8], strides = [1, 1]} : vector<16x32xf32> to vector<16x8xf32>
    %790 = arith.truncf %789 : vector<16x8xf32> to vector<16x8xbf16>
    %791 = vector.extract_strided_slice %786 {offsets = [0, 0], sizes = [16, 8], strides = [1, 1]} : vector<16x32xf32> to vector<16x8xf32>
    %792 = arith.truncf %791 : vector<16x8xf32> to vector<16x8xbf16>
    %cst_236 = arith.constant dense<0.000000e+00> : vector<16x16xf32>
    %793 = tpu.matmul %788, %790, %cst_236 {dimension_numbers = #tpu.dot_dimension_numbers<[1], [1], [0], [0], [0, 0, 1, 0], [], []>} : vector<16x8xbf16>, vector<16x8xbf16>, vector<16x16xf32> -> vector<16x16xf32>
    %794 = arith.addf %793, %2 : vector<16x16xf32>
    %cst_237 = arith.constant dense<0xFF800000> : vector<16xf32>
    %795 = vector.multi_reduction <maximumf>, %794, %cst_237 [1] : vector<16x16xf32> to vector<16xf32>
    %796 = vector.shape_cast %795 : vector<16xf32> to vector<16x1xf32>
    %797 = vector.broadcast %796 : vector<16x1xf32> to vector<16x16xf32>
    %798 = arith.subf %794, %797 : vector<16x16xf32>
    %799 = math.exp %798 : vector<16x16xf32>
    %cst_238 = arith.constant dense<0.000000e+00> : vector<16xf32>
    %800 = vector.multi_reduction <add>, %799, %cst_238 [1] : vector<16x16xf32> to vector<16xf32>
    %801 = vector.shape_cast %800 : vector<16xf32> to vector<16x1xf32>
    %802 = tpu.reciprocal %801 {approx = true} : vector<16x1xf32> -> vector<16x1xf32>
    %803 = vector.broadcast %802 : vector<16x1xf32> to vector<16x16xf32>
    %804 = arith.mulf %799, %803 : vector<16x16xf32>
    %805 = arith.truncf %804 : vector<16x16xf32> to vector<16x16xbf16>
    %cst_239 = arith.constant dense<0.000000e+00> : vector<16x8xf32>
    %806 = tpu.matmul %805, %792, %cst_239 {dimension_numbers = #tpu.dot_dimension_numbers<[1], [0], [0], [1], [0, 0, 1, 1], [], []>} : vector<16x16xbf16>, vector<16x8xbf16>, vector<16x8xf32> -> vector<16x8xf32>
    %807 = vector.extract_strided_slice %778 {offsets = [0, 8], sizes = [16, 8], strides = [1, 1]} : vector<16x32xf32> to vector<16x8xf32>
    %808 = arith.truncf %807 : vector<16x8xf32> to vector<16x8xbf16>
    %809 = vector.extract_strided_slice %785 {offsets = [0, 8], sizes = [16, 8], strides = [1, 1]} : vector<16x32xf32> to vector<16x8xf32>
    %810 = arith.truncf %809 : vector<16x8xf32> to vector<16x8xbf16>
    %811 = vector.extract_strided_slice %786 {offsets = [0, 8], sizes = [16, 8], strides = [1, 1]} : vector<16x32xf32> to vector<16x8xf32>
    %812 = arith.truncf %811 : vector<16x8xf32> to vector<16x8xbf16>
    %cst_240 = arith.constant dense<0.000000e+00> : vector<16x16xf32>
    %813 = tpu.matmul %808, %810, %cst_240 {dimension_numbers = #tpu.dot_dimension_numbers<[1], [1], [0], [0], [0, 0, 1, 0], [], []>} : vector<16x8xbf16>, vector<16x8xbf16>, vector<16x16xf32> -> vector<16x16xf32>
    %814 = arith.addf %813, %2 : vector<16x16xf32>
    %cst_241 = arith.constant dense<0xFF800000> : vector<16xf32>
    %815 = vector.multi_reduction <maximumf>, %814, %cst_241 [1] : vector<16x16xf32> to vector<16xf32>
    %816 = vector.shape_cast %815 : vector<16xf32> to vector<16x1xf32>
    %817 = vector.broadcast %816 : vector<16x1xf32> to vector<16x16xf32>
    %818 = arith.subf %814, %817 : vector<16x16xf32>
    %819 = math.exp %818 : vector<16x16xf32>
    %cst_242 = arith.constant dense<0.000000e+00> : vector<16xf32>
    %820 = vector.multi_reduction <add>, %819, %cst_242 [1] : vector<16x16xf32> to vector<16xf32>
    %821 = vector.shape_cast %820 : vector<16xf32> to vector<16x1xf32>
    %822 = tpu.reciprocal %821 {approx = true} : vector<16x1xf32> -> vector<16x1xf32>
    %823 = vector.broadcast %822 : vector<16x1xf32> to vector<16x16xf32>
    %824 = arith.mulf %819, %823 : vector<16x16xf32>
    %825 = arith.truncf %824 : vector<16x16xf32> to vector<16x16xbf16>
    %cst_243 = arith.constant dense<0.000000e+00> : vector<16x8xf32>
    %826 = tpu.matmul %825, %812, %cst_243 {dimension_numbers = #tpu.dot_dimension_numbers<[1], [0], [0], [1], [0, 0, 1, 1], [], []>} : vector<16x16xbf16>, vector<16x8xbf16>, vector<16x8xf32> -> vector<16x8xf32>
    %827 = vector.extract_strided_slice %778 {offsets = [0, 16], sizes = [16, 8], strides = [1, 1]} : vector<16x32xf32> to vector<16x8xf32>
    %828 = arith.truncf %827 : vector<16x8xf32> to vector<16x8xbf16>
    %829 = vector.extract_strided_slice %785 {offsets = [0, 16], sizes = [16, 8], strides = [1, 1]} : vector<16x32xf32> to vector<16x8xf32>
    %830 = arith.truncf %829 : vector<16x8xf32> to vector<16x8xbf16>
    %831 = vector.extract_strided_slice %786 {offsets = [0, 16], sizes = [16, 8], strides = [1, 1]} : vector<16x32xf32> to vector<16x8xf32>
    %832 = arith.truncf %831 : vector<16x8xf32> to vector<16x8xbf16>
    %cst_244 = arith.constant dense<0.000000e+00> : vector<16x16xf32>
    %833 = tpu.matmul %828, %830, %cst_244 {dimension_numbers = #tpu.dot_dimension_numbers<[1], [1], [0], [0], [0, 0, 1, 0], [], []>} : vector<16x8xbf16>, vector<16x8xbf16>, vector<16x16xf32> -> vector<16x16xf32>
    %834 = arith.addf %833, %2 : vector<16x16xf32>
    %cst_245 = arith.constant dense<0xFF800000> : vector<16xf32>
    %835 = vector.multi_reduction <maximumf>, %834, %cst_245 [1] : vector<16x16xf32> to vector<16xf32>
    %836 = vector.shape_cast %835 : vector<16xf32> to vector<16x1xf32>
    %837 = vector.broadcast %836 : vector<16x1xf32> to vector<16x16xf32>
    %838 = arith.subf %834, %837 : vector<16x16xf32>
    %839 = math.exp %838 : vector<16x16xf32>
    %cst_246 = arith.constant dense<0.000000e+00> : vector<16xf32>
    %840 = vector.multi_reduction <add>, %839, %cst_246 [1] : vector<16x16xf32> to vector<16xf32>
    %841 = vector.shape_cast %840 : vector<16xf32> to vector<16x1xf32>
    %842 = tpu.reciprocal %841 {approx = true} : vector<16x1xf32> -> vector<16x1xf32>
    %843 = vector.broadcast %842 : vector<16x1xf32> to vector<16x16xf32>
    %844 = arith.mulf %839, %843 : vector<16x16xf32>
    %845 = arith.truncf %844 : vector<16x16xf32> to vector<16x16xbf16>
    %cst_247 = arith.constant dense<0.000000e+00> : vector<16x8xf32>
    %846 = tpu.matmul %845, %832, %cst_247 {dimension_numbers = #tpu.dot_dimension_numbers<[1], [0], [0], [1], [0, 0, 1, 1], [], []>} : vector<16x16xbf16>, vector<16x8xbf16>, vector<16x8xf32> -> vector<16x8xf32>
    %847 = vector.extract_strided_slice %778 {offsets = [0, 24], sizes = [16, 8], strides = [1, 1]} : vector<16x32xf32> to vector<16x8xf32>
    %848 = arith.truncf %847 : vector<16x8xf32> to vector<16x8xbf16>
    %849 = vector.extract_strided_slice %785 {offsets = [0, 24], sizes = [16, 8], strides = [1, 1]} : vector<16x32xf32> to vector<16x8xf32>
    %850 = arith.truncf %849 : vector<16x8xf32> to vector<16x8xbf16>
    %851 = vector.extract_strided_slice %786 {offsets = [0, 24], sizes = [16, 8], strides = [1, 1]} : vector<16x32xf32> to vector<16x8xf32>
    %852 = arith.truncf %851 : vector<16x8xf32> to vector<16x8xbf16>
    %cst_248 = arith.constant dense<0.000000e+00> : vector<16x16xf32>
    %853 = tpu.matmul %848, %850, %cst_248 {dimension_numbers = #tpu.dot_dimension_numbers<[1], [1], [0], [0], [0, 0, 1, 0], [], []>} : vector<16x8xbf16>, vector<16x8xbf16>, vector<16x16xf32> -> vector<16x16xf32>
    %854 = arith.addf %853, %2 : vector<16x16xf32>
    %cst_249 = arith.constant dense<0xFF800000> : vector<16xf32>
    %855 = vector.multi_reduction <maximumf>, %854, %cst_249 [1] : vector<16x16xf32> to vector<16xf32>
    %856 = vector.shape_cast %855 : vector<16xf32> to vector<16x1xf32>
    %857 = vector.broadcast %856 : vector<16x1xf32> to vector<16x16xf32>
    %858 = arith.subf %854, %857 : vector<16x16xf32>
    %859 = math.exp %858 : vector<16x16xf32>
    %cst_250 = arith.constant dense<0.000000e+00> : vector<16xf32>
    %860 = vector.multi_reduction <add>, %859, %cst_250 [1] : vector<16x16xf32> to vector<16xf32>
    %861 = vector.shape_cast %860 : vector<16xf32> to vector<16x1xf32>
    %862 = tpu.reciprocal %861 {approx = true} : vector<16x1xf32> -> vector<16x1xf32>
    %863 = vector.broadcast %862 : vector<16x1xf32> to vector<16x16xf32>
    %864 = arith.mulf %859, %863 : vector<16x16xf32>
    %865 = arith.truncf %864 : vector<16x16xf32> to vector<16x16xbf16>
    %cst_251 = arith.constant dense<0.000000e+00> : vector<16x8xf32>
    %866 = tpu.matmul %865, %852, %cst_251 {dimension_numbers = #tpu.dot_dimension_numbers<[1], [0], [0], [1], [0, 0, 1, 1], [], []>} : vector<16x16xbf16>, vector<16x8xbf16>, vector<16x8xf32> -> vector<16x8xf32>
    %867 = tpu.concatenate %806, %826, %846, %866 in 1 : vector<16x8xf32>, vector<16x8xf32>, vector<16x8xf32>, vector<16x8xf32> -> vector<16x32xf32>
    %868 = arith.truncf %867 : vector<16x32xf32> to vector<16x32xbf16>
    %cst_252 = arith.constant dense<0.000000e+00> : vector<16x32xf32>
    %869 = tpu.matmul %868, %771, %cst_252 {dimension_numbers = #tpu.dot_dimension_numbers<[1], [0], [0], [1], [0, 0, 1, 1], [], []>} : vector<16x32xbf16>, vector<32x32xbf16>, vector<16x32xf32> -> vector<16x32xf32>
    %870 = vector.broadcast %772 : vector<1x32xf32> to vector<16x32xf32>
    %871 = arith.addf %869, %870 : vector<16x32xf32>
    %872 = arith.addf %766, %871 : vector<16x32xf32>
    %873 = vector.extract_strided_slice %641 {offsets = [5, 0], sizes = [1, 32], strides = [1, 1]} : vector<9x32xf32> to vector<1x32xf32>
    %874 = vector.extract_strided_slice %641 {offsets = [6, 0], sizes = [1, 32], strides = [1, 1]} : vector<9x32xf32> to vector<1x32xf32>
    %cst_253 = arith.constant dense<0.000000e+00> : vector<16xf32>
    %875 = vector.multi_reduction <add>, %872, %cst_253 [1] : vector<16x32xf32> to vector<16xf32>
    %876 = vector.shape_cast %875 : vector<16xf32> to vector<16x1xf32>
    %cst_254 = arith.constant 3.200000e+01 : f32
    %877 = vector.broadcast %cst_254 : f32 to vector<16x1xf32>
    %878 = arith.divf %876, %877 : vector<16x1xf32>
    %879 = vector.broadcast %878 : vector<16x1xf32> to vector<16x32xf32>
    %880 = arith.subf %872, %879 : vector<16x32xf32>
    %881 = arith.mulf %880, %880 : vector<16x32xf32>
    %cst_255 = arith.constant dense<0.000000e+00> : vector<16xf32>
    %882 = vector.multi_reduction <add>, %881, %cst_255 [1] : vector<16x32xf32> to vector<16xf32>
    %883 = vector.shape_cast %882 : vector<16xf32> to vector<16x1xf32>
    %cst_256 = arith.constant 3.200000e+01 : f32
    %884 = vector.broadcast %cst_256 : f32 to vector<16x1xf32>
    %885 = arith.divf %883, %884 : vector<16x1xf32>
    %886 = vector.broadcast %878 : vector<16x1xf32> to vector<16x32xf32>
    %887 = arith.subf %872, %886 : vector<16x32xf32>
    %cst_257 = arith.constant 9.99999974E-6 : f32
    %888 = vector.broadcast %cst_257 : f32 to vector<16x1xf32>
    %889 = arith.addf %885, %888 : vector<16x1xf32>
    %890 = math.rsqrt %889 : vector<16x1xf32>
    %891 = vector.broadcast %890 : vector<16x1xf32> to vector<16x32xf32>
    %892 = arith.mulf %887, %891 : vector<16x32xf32>
    %893 = vector.broadcast %873 : vector<1x32xf32> to vector<16x32xf32>
    %894 = arith.mulf %892, %893 : vector<16x32xf32>
    %895 = vector.broadcast %874 : vector<1x32xf32> to vector<16x32xf32>
    %896 = arith.addf %894, %895 : vector<16x32xf32>
    %c1_258 = arith.constant 1 : index
    %c0_259 = arith.constant 0 : index
    %c0_260 = arith.constant 0 : index
    %897 = vector.load %arg16[%c1_258, %c0_259, %c0_260] : memref<2x32x64xbf16, #tpu.memory_space<vmem>>, vector<1x32x64xbf16>
    %898 = vector.shape_cast %897 : vector<1x32x64xbf16> to vector<32x64xbf16>
    %c1_261 = arith.constant 1 : index
    %c0_262 = arith.constant 0 : index
    %c0_263 = arith.constant 0 : index
    %899 = vector.load %arg19[%c1_261, %c0_262, %c0_263] : memref<2x1x64xf32, #tpu.memory_space<vmem>>, vector<1x1x64xf32>
    %900 = vector.shape_cast %899 : vector<1x1x64xf32> to vector<1x64xf32>
    %c1_264 = arith.constant 1 : index
    %c0_265 = arith.constant 0 : index
    %c0_266 = arith.constant 0 : index
    %901 = vector.load %arg17[%c1_264, %c0_265, %c0_266] : memref<2x64x32xbf16, #tpu.memory_space<vmem>>, vector<1x64x32xbf16>
    %902 = vector.shape_cast %901 : vector<1x64x32xbf16> to vector<64x32xbf16>
    %903 = vector.extract_strided_slice %641 {offsets = [2, 0], sizes = [1, 32], strides = [1, 1]} : vector<9x32xf32> to vector<1x32xf32>
    %904 = arith.truncf %896 : vector<16x32xf32> to vector<16x32xbf16>
    %cst_267 = arith.constant dense<0.000000e+00> : vector<16x64xf32>
    %905 = tpu.matmul %904, %898, %cst_267 {dimension_numbers = #tpu.dot_dimension_numbers<[1], [0], [0], [1], [0, 0, 1, 1], [], []>} : vector<16x32xbf16>, vector<32x64xbf16>, vector<16x64xf32> -> vector<16x64xf32>
    %906 = vector.broadcast %900 : vector<1x64xf32> to vector<16x64xf32>
    %907 = arith.addf %905, %906 : vector<16x64xf32>
    %cst_268 = arith.constant 0.000000e+00 : f32
    %908 = vector.broadcast %cst_268 : f32 to vector<16x64xf32>
    %909 = arith.maximumf %907, %908 : vector<16x64xf32>
    %910 = arith.truncf %909 : vector<16x64xf32> to vector<16x64xbf16>
    %cst_269 = arith.constant dense<0.000000e+00> : vector<16x32xf32>
    %911 = tpu.matmul %910, %902, %cst_269 {dimension_numbers = #tpu.dot_dimension_numbers<[1], [0], [0], [1], [0, 0, 1, 1], [], []>} : vector<16x64xbf16>, vector<64x32xbf16>, vector<16x32xf32> -> vector<16x32xf32>
    %912 = vector.broadcast %903 : vector<1x32xf32> to vector<16x32xf32>
    %913 = arith.addf %911, %912 : vector<16x32xf32>
    %914 = arith.addf %896, %913 : vector<16x32xf32>
    %915 = vector.extract_strided_slice %641 {offsets = [7, 0], sizes = [1, 32], strides = [1, 1]} : vector<9x32xf32> to vector<1x32xf32>
    %916 = vector.extract_strided_slice %641 {offsets = [8, 0], sizes = [1, 32], strides = [1, 1]} : vector<9x32xf32> to vector<1x32xf32>
    %cst_270 = arith.constant dense<0.000000e+00> : vector<16xf32>
    %917 = vector.multi_reduction <add>, %914, %cst_270 [1] : vector<16x32xf32> to vector<16xf32>
    %918 = vector.shape_cast %917 : vector<16xf32> to vector<16x1xf32>
    %cst_271 = arith.constant 3.200000e+01 : f32
    %919 = vector.broadcast %cst_271 : f32 to vector<16x1xf32>
    %920 = arith.divf %918, %919 : vector<16x1xf32>
    %921 = vector.broadcast %920 : vector<16x1xf32> to vector<16x32xf32>
    %922 = arith.subf %914, %921 : vector<16x32xf32>
    %923 = arith.mulf %922, %922 : vector<16x32xf32>
    %cst_272 = arith.constant dense<0.000000e+00> : vector<16xf32>
    %924 = vector.multi_reduction <add>, %923, %cst_272 [1] : vector<16x32xf32> to vector<16xf32>
    %925 = vector.shape_cast %924 : vector<16xf32> to vector<16x1xf32>
    %cst_273 = arith.constant 3.200000e+01 : f32
    %926 = vector.broadcast %cst_273 : f32 to vector<16x1xf32>
    %927 = arith.divf %925, %926 : vector<16x1xf32>
    %928 = vector.broadcast %920 : vector<16x1xf32> to vector<16x32xf32>
    %929 = arith.subf %914, %928 : vector<16x32xf32>
    %cst_274 = arith.constant 9.99999974E-6 : f32
    %930 = vector.broadcast %cst_274 : f32 to vector<16x1xf32>
    %931 = arith.addf %927, %930 : vector<16x1xf32>
    %932 = math.rsqrt %931 : vector<16x1xf32>
    %933 = vector.broadcast %932 : vector<16x1xf32> to vector<16x32xf32>
    %934 = arith.mulf %929, %933 : vector<16x32xf32>
    %935 = vector.broadcast %915 : vector<1x32xf32> to vector<16x32xf32>
    %936 = arith.mulf %934, %935 : vector<16x32xf32>
    %937 = vector.broadcast %916 : vector<1x32xf32> to vector<16x32xf32>
    %938 = arith.addf %936, %937 : vector<16x32xf32>
    %939 = arith.truncf %938 : vector<16x32xf32> to vector<16x32xbf16>
    %c0_275 = arith.constant 0 : index
    %c0_276 = arith.constant 0 : index
    %940 = vector.load %arg21[%c0_275, %c0_276] : memref<32x128xbf16, #tpu.memory_space<vmem>>, vector<32x128xbf16>
    %cst_277 = arith.constant dense<0.000000e+00> : vector<16x128xf32>
    %941 = tpu.matmul %939, %940, %cst_277 {dimension_numbers = #tpu.dot_dimension_numbers<[1], [0], [0], [1], [0, 0, 1, 1], [], []>} : vector<16x32xbf16>, vector<32x128xbf16>, vector<16x128xf32> -> vector<16x128xf32>
    %c0_278 = arith.constant 0 : index
    %c0_279 = arith.constant 0 : index
    %942 = vector.load %arg22[%c0_278, %c0_279] : memref<1x128xf32, #tpu.memory_space<vmem>>, vector<1x128xf32>
    %943 = vector.broadcast %942 : vector<1x128xf32> to vector<16x128xf32>
    %944 = arith.addf %941, %943 : vector<16x128xf32>
    %c0_280 = arith.constant 0 : index
    %c0_281 = arith.constant 0 : index
    %945 = vector.load %arg23[%c0_280, %c0_281] : memref<16x128xf32, #tpu.memory_space<vmem>>, vector<16x128xf32>
    tpu.vector_store %arg23[%c0_280, %c0_281], %944 {strides = array<i32>} : memref<16x128xf32, #tpu.memory_space<vmem>>, vector<16x128xf32>,
    return
  }
}

</mosaic_0001>

<llo_original>
// kernel: transformer_forward.1
$region0: #{transformer_forward.1}
  #allocation0 [shape = 'u32[]', space=smem, size = 0x4, offset = 0x4, fixed_abs, tag = 'smem constant byte address 0x4 - core index']
  #allocation1 [shape = 'u32[144,128]{1,0:T(1,128)}', space=vmem, size = 0x12000, scoped, tag = 'internal scratch']
  %s0 = inlined_call_operand.vmem [shape: f32[16,32], index: 0, kind: input, shape index: {}]
  %s1 = inlined_call_operand.vmem [shape: f32[16,32], index: 1, kind: input, shape index: {}]
  %s2 = inlined_call_operand.vmem [shape: f32[16,16], index: 2, kind: input, shape index: {}, may-alias: {2,3}]
  %s3 = inlined_call_operand.vmem [shape: f32[16,16], index: 3, kind: input, shape index: {}, may-alias: {2,3}]
  %s4 = inlined_call_operand.vmem [shape: f32[16,16], index: 4, kind: input, shape index: {}]
  %s5 = inlined_call_operand.vmem [shape: bf16[2,32,96], index: 5, kind: input, shape index: {}]
  %s6 = inlined_call_operand.vmem [shape: bf16[2,32,32], index: 6, kind: input, shape index: {}]
  %s7 = inlined_call_operand.vmem [shape: bf16[2,32,64], index: 7, kind: input, shape index: {}]
  %s8 = inlined_call_operand.vmem [shape: bf16[2,64,32], index: 8, kind: input, shape index: {}]
  %s9 = inlined_call_operand.vmem [shape: f32[2,1,96], index: 9, kind: input, shape index: {}]
  %s10 = inlined_call_operand.vmem [shape: f32[2,1,64], index: 10, kind: input, shape index: {}]
  %s11 = inlined_call_operand.vmem [shape: f32[2,6,32], index: 11, kind: input, shape index: {}]
  %s12 = inlined_call_operand.vmem [shape: bf16[2,32,96], index: 12, kind: input, shape index: {}]
  %s13 = inlined_call_operand.vmem [shape: bf16[2,32,32], index: 13, kind: input, shape index: {}]
  %s14 = inlined_call_operand.vmem [shape: bf16[2,32,96], index: 14, kind: input, shape index: {}]
  %s15 = inlined_call_operand.vmem [shape: bf16[2,32,32], index: 15, kind: input, shape index: {}]
  %s16 = inlined_call_operand.vmem [shape: bf16[2,32,64], index: 16, kind: input, shape index: {}]
  %s17 = inlined_call_operand.vmem [shape: bf16[2,64,32], index: 17, kind: input, shape index: {}]
  %s18 = inlined_call_operand.vmem [shape: f32[2,2,96], index: 18, kind: input, shape index: {}]
  %s19 = inlined_call_operand.vmem [shape: f32[2,1,64], index: 19, kind: input, shape index: {}]
  %s20 = inlined_call_operand.vmem [shape: f32[2,9,32], index: 20, kind: input, shape index: {}]
  %s21 = inlined_call_operand.vmem [shape: bf16[32,128], index: 21, kind: input, shape index: {}]
  %s22 = inlined_call_operand.vmem [shape: f32[1,128], index: 22, kind: input, shape index: {}]
  %s23 = inlined_call_operand.vmem [shape: f32[16,128], index: 23, kind: output, shape index: {}]
  %s24 = sld [smem:[#allocation0]]
  $region102: #{transformer_forward.1} parent=0
    _
  %s26 = ssub.s32 1, %s24
  %s27 = scalar_select 0, %s26, %s24
  // Predicated region
  $region2: #{transformer_forward.1} parent=0 // pred_check
    _
  $region3: #{transformer_forward.1} parent=0 // pred_check_branch
    %29 = sbr.rel (0) target = $region5
  $region4: #{transformer_forward.1} parent=0 // pred_region
    _
  $region5: #{transformer_forward.1} parent=0 // pred_fallthru
    _
  // Predicated region
  $region6: #{transformer_forward.1} parent=0 // pred_check
    _
  $region7: #{transformer_forward.1} parent=0 // pred_check_branch
    %31 = sbr.rel (0) target = $region9
  $region8: #{transformer_forward.1} parent=0 // pred_region
    _
  $region9: #{transformer_forward.1} parent=0 // pred_fallthru
    _
  // Predicated region
  $region10: #{transformer_forward.1} parent=0 // pred_check
    _
  $region11: #{transformer_forward.1} parent=0 // pred_check_branch
    %33 = sbr.rel (0) target = $region13
  $region12: #{transformer_forward.1} parent=0 // pred_region
    _
  $region13: #{transformer_forward.1} parent=0 // pred_fallthru
    _
  // Predicated region
  $region14: #{transformer_forward.1} parent=0 // pred_check
    _
  $region15: #{transformer_forward.1} parent=0 // pred_check_branch
    %35 = sbr.rel (0) target = $region17
  $region16: #{transformer_forward.1} parent=0 // pred_region
    _
  $region17: #{transformer_forward.1} parent=0 // pred_fallthru
    _
  // Predicated region
  $region18: #{transformer_forward.1} parent=0 // pred_check
    _
  $region19: #{transformer_forward.1} parent=0 // pred_check_branch
    %37 = sbr.rel (0) target = $region21
  $region20: #{transformer_forward.1} parent=0 // pred_region
    _
  $region21: #{transformer_forward.1} parent=0 // pred_fallthru
    _
  // Predicated region
  $region22: #{transformer_forward.1} parent=0 // pred_check
    _
  $region23: #{transformer_forward.1} parent=0 // pred_check_branch
    %39 = sbr.rel (0) target = $region25
  $region24: #{transformer_forward.1} parent=0 // pred_region
    _
  $region25: #{transformer_forward.1} parent=0 // pred_fallthru
    _
  // Predicated region
  $region26: #{transformer_forward.1} parent=0 // pred_check
    _
  $region27: #{transformer_forward.1} parent=0 // pred_check_branch
    %41 = sbr.rel (0) target = $region29
  $region28: #{transformer_forward.1} parent=0 // pred_region
    _
  $region29: #{transformer_forward.1} parent=0 // pred_fallthru
    _
  // Predicated region
  $region30: #{transformer_forward.1} parent=0 // pred_check
    _
  $region31: #{transformer_forward.1} parent=0 // pred_check_branch
    %43 = sbr.rel (0) target = $region33
  $region32: #{transformer_forward.1} parent=0 // pred_region
    _
  $region33: #{transformer_forward.1} parent=0 // pred_fallthru
    _
  // Predicated region
  $region34: #{transformer_forward.1} parent=0 // pred_check
    _
  $region35: #{transformer_forward.1} parent=0 // pred_check_branch
    %45 = sbr.rel (0) target = $region37
  $region36: #{transformer_forward.1} parent=0 // pred_region
    _
  $region37: #{transformer_forward.1} parent=0 // pred_fallthru
    _
  // Predicated region
  $region38: #{transformer_forward.1} parent=0 // pred_check
    _
  $region39: #{transformer_forward.1} parent=0 // pred_check_branch
    %47 = sbr.rel (0) target = $region41
  $region40: #{transformer_forward.1} parent=0 // pred_region
    _
  $region41: #{transformer_forward.1} parent=0 // pred_fallthru
    _
  // Predicated region
  $region42: #{transformer_forward.1} parent=0 // pred_check
    _
  $region43: #{transformer_forward.1} parent=0 // pred_check_branch
    %49 = sbr.rel (0) target = $region45
  $region44: #{transformer_forward.1} parent=0 // pred_region
    _
  $region45: #{transformer_forward.1} parent=0 // pred_fallthru
    _
  // Predicated region
  $region46: #{transformer_forward.1} parent=0 // pred_check
    _
  $region47: #{transformer_forward.1} parent=0 // pred_check_branch
    %51 = sbr.rel (0) target = $region49
  $region48: #{transformer_forward.1} parent=0 // pred_region
    _
  $region49: #{transformer_forward.1} parent=0 // pred_fallthru
    _
  // Predicated region
  $region50: #{transformer_forward.1} parent=0 // pred_check
    _
  $region51: #{transformer_forward.1} parent=0 // pred_check_branch
    %53 = sbr.rel (0) target = $region53
  $region52: #{transformer_forward.1} parent=0 // pred_region
    _
  $region53: #{transformer_forward.1} parent=0 // pred_fallthru
    _
  // Predicated region
  $region54: #{transformer_forward.1} parent=0 // pred_check
    _
  $region55: #{transformer_forward.1} parent=0 // pred_check_branch
    %55 = sbr.rel (0) target = $region57
  $region56: #{transformer_forward.1} parent=0 // pred_region
    _
  $region57: #{transformer_forward.1} parent=0 // pred_fallthru
    _
  // Predicated region
  $region58: #{transformer_forward.1} parent=0 // pred_check
    _
  $region59: #{transformer_forward.1} parent=0 // pred_check_branch
    %57 = sbr.rel (0) target = $region61
  $region60: #{transformer_forward.1} parent=0 // pred_region
    _
  $region61: #{transformer_forward.1} parent=0 // pred_fallthru
    _
  // Predicated region
  $region62: #{transformer_forward.1} parent=0 // pred_check
    _
  $region63: #{transformer_forward.1} parent=0 // pred_check_branch
    %59 = sbr.rel (0) target = $region65
  $region64: #{transformer_forward.1} parent=0 // pred_region
    _
  $region65: #{transformer_forward.1} parent=0 // pred_fallthru
    _
  // Predicated region
  $region66: #{transformer_forward.1} parent=0 // pred_check
    _
  $region67: #{transformer_forward.1} parent=0 // pred_check_branch
    %61 = sbr.rel (0) target = $region69
  $region68: #{transformer_forward.1} parent=0 // pred_region
    _
  $region69: #{transformer_forward.1} parent=0 // pred_fallthru
    _
  // Predicated region
  $region70: #{transformer_forward.1} parent=0 // pred_check
    _
  $region71: #{transformer_forward.1} parent=0 // pred_check_branch
    %63 = sbr.rel (0) target = $region73
  $region72: #{transformer_forward.1} parent=0 // pred_region
    _
  $region73: #{transformer_forward.1} parent=0 // pred_fallthru
    _
  // Predicated region
  $region74: #{transformer_forward.1} parent=0 // pred_check
    _
  $region75: #{transformer_forward.1} parent=0 // pred_check_branch
    %65 = sbr.rel (0) target = $region77
  $region76: #{transformer_forward.1} parent=0 // pred_region
    _
  $region77: #{transformer_forward.1} parent=0 // pred_fallthru
    _
  // Predicated region
  $region78: #{transformer_forward.1} parent=0 // pred_check
    _
  $region79: #{transformer_forward.1} parent=0 // pred_check_branch
    %67 = sbr.rel (0) target = $region81
  $region80: #{transformer_forward.1} parent=0 // pred_region
    _
  $region81: #{transformer_forward.1} parent=0 // pred_fallthru
    _
  // Predicated region
  $region82: #{transformer_forward.1} parent=0 // pred_check
    _
  $region83: #{transformer_forward.1} parent=0 // pred_check_branch
    %69 = sbr.rel (0) target = $region85
  $region84: #{transformer_forward.1} parent=0 // pred_region
    _
  $region85: #{transformer_forward.1} parent=0 // pred_fallthru
    _
  // Predicated region
  $region86: #{transformer_forward.1} parent=0 // pred_check
    _
  $region87: #{transformer_forward.1} parent=0 // pred_check_branch
    %71 = sbr.rel (0) target = $region89
  $region88: #{transformer_forward.1} parent=0 // pred_region
    _
  $region89: #{transformer_forward.1} parent=0 // pred_fallthru
    _
  // Predicated region
  $region90: #{transformer_forward.1} parent=0 // pred_check
    _
  $region91: #{transformer_forward.1} parent=0 // pred_check_branch
    %73 = sbr.rel (0) target = $region93
  $region92: #{transformer_forward.1} parent=0 // pred_region
    _
  $region93: #{transformer_forward.1} parent=0 // pred_fallthru
    _
  %v75 = vld [vmem:[%s2] sm:$0xff]
  %v76 = vld [vmem:[%s2 + $0x8] sm:$0xff]
  %v77 = vld [vmem:[%s3] sm:$0xff]
  %v78 = vld [vmem:[%s3 + $0x8] sm:$0xff]
  %v79 = vld [vmem:[%s4] sm:$0xff]
  %v80 = vld [vmem:[%s4 + $0x8] sm:$0xff]
  %v81 = vld [vmem:[%s0] sm:$0xff]
  %v82 = vld [vmem:[%s0 + $0x8] sm:$0xff]
  %v83 = vld [vmem:[%s11] sm:$0x3f]
  %v84 = vld [vmem:[%s5] sm:$0xf]
  %v85 = vld [vmem:[%s5 + $0x4] sm:$0xf]
  %v86 = vld [vmem:[%s5 + $0x8] sm:$0xf]
  %v87 = vld [vmem:[%s5 + $0xc] sm:$0xf]
  %v88 = vld [vmem:[%s9] sm:$0x1]
  %v89 = vld [vmem:[%s6] sm:$0xf]
  %v90 = vld [vmem:[%s6 + $0x4] sm:$0xf]
  %v91 = vld [vmem:[%s6 + $0x8] sm:$0xf]
  %v92 = vld [vmem:[%s6 + $0xc] sm:$0xf]
  %v93 = vpack.c.bf16 %v82, %v81
  %v95 = vlaneseq
  %v96 = vshrl.u32 %v95, 7
  %v97 = vsub.s32 0, %v96
  %v98 = vrot.slane %v88, %v97
  %v104 = vunpack.c.l.b16 %v84
  %v105 = vunpack.c.l.b16 %v85
  %v106 = vunpack.c.l.b16 %v86
  %v107 = vunpack.c.l.b16 %v87
  %v108 = vpack.c.b16 %v105, %v104
  %v109 = vpack.c.b16 %v107, %v106
  %vm112 = vcmask 261120
  %v114 = vsel %vm112, %v93, 0
  %116 = vmatprep.subr.bf16.mxu0 0
  %117 = vmatpush1.bf16.msra.mxu0 %v108
  %118 = vmatprep.subr.bf16.mxu0 0
  %119 = vmatpush1.bf16.msra.mxu0 %v109
  %120 = vmatprep.subr.bf16.mxu0 0
  %121 = vmatpush1.bf16.msra.mxu0 0
  %122 = vmatprep.subr.bf16.mxu0 0
  %123 = vmatpush1.bf16.msra.mxu0 0
  %124 = vmatprep.subr.bf16.mxu0 0
  %125 = vmatpush1.bf16.msra.mxu0 0
  %126 = vmatprep.subr.bf16.mxu0 0
  %127 = vmatpush1.bf16.msra.mxu0 0
  %128 = vmatprep.subr.bf16.mxu0 0
  %129 = vmatpush1.bf16.msra.mxu0 0
  %130 = vmatprep.subr.bf16.mxu0 0
  %131 = vmatpush1.bf16.msra.mxu0 0
  %132 = vmatprep.subr.bf16.mxu0 0
  %133 = vmatpush1.bf16.msra.mxu0 0
  %134 = vmatprep.subr.bf16.mxu0 0
  %135 = vmatpush1.bf16.msra.mxu0 0
  %136 = vmatprep.subr.bf16.mxu0 0
  %137 = vmatpush1.bf16.msra.mxu0 0
  %138 = vmatprep.subr.bf16.mxu0 0
  %139 = vmatpush1.bf16.msra.mxu0 0
  %140 = vmatprep.subr.bf16.mxu0 0
  %141 = vmatpush1.bf16.msra.mxu0 0
  %142 = vmatprep.subr.bf16.mxu0 0
  %143 = vmatpush1.bf16.msra.mxu0 0
  %144 = vmatprep.subr.bf16.mxu0 0
  %145 = vmatpush1.bf16.msra.mxu0 0
  %146 = vmatprep.subr.bf16.mxu0 0
  %147 = vmatpush1.bf16.msra.mxu0 0
  %148 = vmatprep.mubr.bf16.mxu0 0
  %149 = vmatmul.mubr.bf16.gmra.mrb[0].mxu0 %v114
  %v150 = vpop.f32.mrb[0].mxu0
  %v151 = vadd.f32 %v98, %v150
  %v152 = vpop.f32.mrb[0].mxu0
  %v153 = vpop.f32.mrb[0].mxu0
  %v154 = vadd.f32 %v98, %v153
  %v155 = vpop.f32.mrb[0].mxu0
  %156 = vdwg.mxu0
  %v157 = vpack.c.bf16 %v154, %v151
  %159 = vrot.lane.b32.xlu0 %v157, 96
  %v160 = vpop.permute.xlu0 %159
  %vm161 = vcmask 64512
  %v163 = vsel %vm161, %v157, 0
  %v166 = vsel %vm161, %v160, 0
  %168 = vmatprep.subr.bf16.mxu0 0
  %169 = vmatpush1.bf16.xpose.msra.mxu0 %v166
  %170 = vmatprep.subr.bf16.mxu0 0
  %171 = vmatpush1.bf16.xpose.msra.mxu0 0
  %172 = vmatprep.subr.bf16.mxu0 0
  %173 = vmatpush1.bf16.xpose.msra.mxu0 0
  %174 = vmatprep.subr.bf16.mxu0 0
  %175 = vmatpush1.bf16.xpose.msra.mxu0 0
  %176 = vmatprep.subr.bf16.mxu0 0
  %177 = vmatpush1.bf16.xpose.msra.mxu0 0
  %178 = vmatprep.subr.bf16.mxu0 0
  %179 = vmatpush1.bf16.xpose.msra.mxu0 0
  %180 = vmatprep.subr.bf16.mxu0 0
  %181 = vmatpush1.bf16.xpose.msra.mxu0 0
  %182 = vmatprep.subr.bf16.mxu0 0
  %183 = vmatpush1.bf16.xpose.msra.mxu0 0
  %184 = vmatprep.subr.bf16.mxu0 0
  %185 = vmatpush1.bf16.xpose.msra.mxu0 0
  %186 = vmatprep.subr.bf16.mxu0 0
  %187 = vmatpush1.bf16.xpose.msra.mxu0 0
  %188 = vmatprep.subr.bf16.mxu0 0
  %189 = vmatpush1.bf16.xpose.msra.mxu0 0
  %190 = vmatprep.subr.bf16.mxu0 0
  %191 = vmatpush1.bf16.xpose.msra.mxu0 0
  %192 = vmatprep.subr.bf16.mxu0 0
  %193 = vmatpush1.bf16.xpose.msra.mxu0 0
  %194 = vmatprep.subr.bf16.mxu0 0
  %195 = vmatpush1.bf16.xpose.msra.mxu0 0
  %196 = vmatprep.subr.bf16.mxu0 0
  %197 = vmatpush1.bf16.xpose.msra.mxu0 0
  %198 = vmatprep.subr.bf16.mxu0 0
  %199 = vmatpush1.bf16.xpose.msra.mxu0 0
  %200 = vmatprep.mubr.bf16.mxu0 0
  %201 = vmatmul.mubr.bf16.gmra.mrb[0].mxu0 %v163
  %v202 = vpop.f32.mrb[0].mxu0
  %v203 = vadd.f32 %v75, %v202
  %v204 = vpop.f32.mrb[0].mxu0
  %v205 = vpop.f32.mrb[0].mxu0
  %v206 = vadd.f32 %v76, %v205
  %v207 = vpop.f32.mrb[0].mxu0
  %208 = vdwg.mxu0
  %vm209 = vcmask 130048
  %v210 = vsel %vm209, %v203, -inf
  %211 = vmax.xlane.f32.xlu0 %v210
  %v212 = vpop.xlane.xlu0 %211
  %v213 = vsel %vm209, %v206, -inf
  %214 = vmax.xlane.f32.xlu0 %v213
  %v215 = vpop.xlane.xlu0 %214
  %v216 = vsub.f32 %v203, %v212
  %v217 = vsub.f32 %v206, %v215
  %v218 = vmul.f32 %v216, 1.442695
  %v219 = vpow.pop %v218
  %v220 = vmul.f32 %v217, 1.442695
  %v221 = vpow.pop %v220
  %v222 = vsel %vm209, %v219, 0.0
  %223 = vadd.xlane.f32.xlu0 %v222
  %v224 = vpop.xlane.xlu0 %223
  %v225 = vsel %vm209, %v221, 0.0
  %226 = vadd.xlane.f32.xlu0 %v225
  %v227 = vpop.xlane.xlu0 %226
  %v228 = vrcp.pop %v224
  %v229 = vrcp.pop %v227
  %v230 = vmul.f32 %v219, %v228
  %v231 = vmul.f32 %v221, %v229
  %v232 = vpack.c.bf16 %v231, %v230
  %233 = vrot.lane.b32.xlu0 %v157, 64
  %v234 = vpop.permute.xlu0 %233
  %v237 = vsel %vm209, %v232, 0
  %239 = vmatprep.subr.bf16.mxu0 0
  %240 = vmatpush1.bf16.msra.mxu0 %v234
  %241 = vmatprep.subr.bf16.mxu0 0
  %242 = vmatpush1.bf16.msra.mxu0 0
  %243 = vmatprep.subr.bf16.mxu0 0
  %244 = vmatpush1.bf16.msra.mxu0 0
  %245 = vmatprep.subr.bf16.mxu0 0
  %246 = vmatpush1.bf16.msra.mxu0 0
  %247 = vmatprep.subr.bf16.mxu0 0
  %248 = vmatpush1.bf16.msra.mxu0 0
  %249 = vmatprep.subr.bf16.mxu0 0
  %250 = vmatpush1.bf16.msra.mxu0 0
  %251 = vmatprep.subr.bf16.mxu0 0
  %252 = vmatpush1.bf16.msra.mxu0 0
  %253 = vmatprep.subr.bf16.mxu0 0
  %254 = vmatpush1.bf16.msra.mxu0 0
  %255 = vmatprep.subr.bf16.mxu0 0
  %256 = vmatpush1.bf16.msra.mxu0 0
  %257 = vmatprep.subr.bf16.mxu0 0
  %258 = vmatpush1.bf16.msra.mxu0 0
  %259 = vmatprep.subr.bf16.mxu0 0
  %260 = vmatpush1.bf16.msra.mxu0 0
  %261 = vmatprep.subr.bf16.mxu0 0
  %262 = vmatpush1.bf16.msra.mxu0 0
  %263 = vmatprep.subr.bf16.mxu0 0
  %264 = vmatpush1.bf16.msra.mxu0 0
  %265 = vmatprep.subr.bf16.mxu0 0
  %266 = vmatpush1.bf16.msra.mxu0 0
  %267 = vmatprep.subr.bf16.mxu0 0
  %268 = vmatpush1.bf16.msra.mxu0 0
  %269 = vmatprep.subr.bf16.mxu0 0
  %270 = vmatpush1.bf16.msra.mxu0 0
  %271 = vmatprep.mubr.bf16.mxu0 0
  %272 = vmatmul.mubr.bf16.gmra.mrb[0].mxu0 %v237
  %v273 = vpop.f32.mrb[0].mxu0
  %v274 = vadd.f32 0.0, %v273
  %v275 = vpop.f32.mrb[0].mxu0
  %v276 = vpop.f32.mrb[0].mxu0
  %v277 = vadd.f32 0.0, %v276
  %v278 = vpop.f32.mrb[0].mxu0
  %279 = vdwg.mxu0
  %280 = vrot.lane.b32.xlu0 %v157, 120
  %v281 = vpop.permute.xlu0 %280
  %282 = vrot.lane.b32.xlu0 %v157, 88
  %v283 = vpop.permute.xlu0 %282
  %v285 = vsel %vm161, %v281, 0
  %v288 = vsel %vm161, %v283, 0
  %290 = vmatprep.subr.bf16.mxu0 0
  %291 = vmatpush1.bf16.xpose.msra.mxu0 %v288
  %292 = vmatprep.subr.bf16.mxu0 0
  %293 = vmatpush1.bf16.xpose.msra.mxu0 0
  %294 = vmatprep.subr.bf16.mxu0 0
  %295 = vmatpush1.bf16.xpose.msra.mxu0 0
  %296 = vmatprep.subr.bf16.mxu0 0
  %297 = vmatpush1.bf16.xpose.msra.mxu0 0
  %298 = vmatprep.subr.bf16.mxu0 0
  %299 = vmatpush1.bf16.xpose.msra.mxu0 0
  %300 = vmatprep.subr.bf16.mxu0 0
  %301 = vmatpush1.bf16.xpose.msra.mxu0 0
  %302 = vmatprep.subr.bf16.mxu0 0
  %303 = vmatpush1.bf16.xpose.msra.mxu0 0
  %304 = vmatprep.subr.bf16.mxu0 0
  %305 = vmatpush1.bf16.xpose.msra.mxu0 0
  %306 = vmatprep.subr.bf16.mxu0 0
  %307 = vmatpush1.bf16.xpose.msra.mxu0 0
  %308 = vmatprep.subr.bf16.mxu0 0
  %309 = vmatpush1.bf16.xpose.msra.mxu0 0
  %310 = vmatprep.subr.bf16.mxu0 0
  %311 = vmatpush1.bf16.xpose.msra.mxu0 0
  %312 = vmatprep.subr.bf16.mxu0 0
  %313 = vmatpush1.bf16.xpose.msra.mxu0 0
  %314 = vmatprep.subr.bf16.mxu0 0
  %315 = vmatpush1.bf16.xpose.msra.mxu0 0
  %316 = vmatprep.subr.bf16.mxu0 0
  %317 = vmatpush1.bf16.xpose.msra.mxu0 0
  %318 = vmatprep.subr.bf16.mxu0 0
  %319 = vmatpush1.bf16.xpose.msra.mxu0 0
  %320 = vmatprep.subr.bf16.mxu0 0
  %321 = vmatpush1.bf16.xpose.msra.mxu0 0
  %322 = vmatprep.mubr.bf16.mxu0 0
  %323 = vmatmul.mubr.bf16.gmra.mrb[0].mxu0 %v285
  %v324 = vpop.f32.mrb[0].mxu0
  %v325 = vadd.f32 %v75, %v324
  %v326 = vpop.f32.mrb[0].mxu0
  %v327 = vpop.f32.mrb[0].mxu0
  %v328 = vadd.f32 %v76, %v327
  %v329 = vpop.f32.mrb[0].mxu0
  %330 = vdwg.mxu0
  %v331 = vsel %vm209, %v325, -inf
  %332 = vmax.xlane.f32.xlu0 %v331
  %v333 = vpop.xlane.xlu0 %332
  %v334 = vsel %vm209, %v328, -inf
  %335 = vmax.xlane.f32.xlu0 %v334
  %v336 = vpop.xlane.xlu0 %335
  %v337 = vsub.f32 %v325, %v333
  %v338 = vsub.f32 %v328, %v336
  %v339 = vmul.f32 %v337, 1.442695
  %v340 = vpow.pop %v339
  %v341 = vmul.f32 %v338, 1.442695
  %v342 = vpow.pop %v341
  %v343 = vsel %vm209, %v340, 0.0
  %344 = vadd.xlane.f32.xlu0 %v343
  %v345 = vpop.xlane.xlu0 %344
  %v346 = vsel %vm209, %v342, 0.0
  %347 = vadd.xlane.f32.xlu0 %v346
  %v348 = vpop.xlane.xlu0 %347
  %v349 = vrcp.pop %v345
  %v350 = vrcp.pop %v348
  %v351 = vmul.f32 %v340, %v349
  %v352 = vmul.f32 %v342, %v350
  %v353 = vpack.c.bf16 %v352, %v351
  %354 = vrot.lane.b32.xlu0 %v157, 56
  %v355 = vpop.permute.xlu0 %354
  %v358 = vsel %vm209, %v353, 0
  %360 = vmatprep.subr.bf16.mxu0 0
  %361 = vmatpush1.bf16.msra.mxu0 %v355
  %362 = vmatprep.subr.bf16.mxu0 0
  %363 = vmatpush1.bf16.msra.mxu0 0
  %364 = vmatprep.subr.bf16.mxu0 0
  %365 = vmatpush1.bf16.msra.mxu0 0
  %366 = vmatprep.subr.bf16.mxu0 0
  %367 = vmatpush1.bf16.msra.mxu0 0
  %368 = vmatprep.subr.bf16.mxu0 0
  %369 = vmatpush1.bf16.msra.mxu0 0
  %370 = vmatprep.subr.bf16.mxu0 0
  %371 = vmatpush1.bf16.msra.mxu0 0
  %372 = vmatprep.subr.bf16.mxu0 0
  %373 = vmatpush1.bf16.msra.mxu0 0
  %374 = vmatprep.subr.bf16.mxu0 0
  %375 = vmatpush1.bf16.msra.mxu0 0
  %376 = vmatprep.subr.bf16.mxu0 0
  %377 = vmatpush1.bf16.msra.mxu0 0
  %378 = vmatprep.subr.bf16.mxu0 0
  %379 = vmatpush1.bf16.msra.mxu0 0
  %380 = vmatprep.subr.bf16.mxu0 0
  %381 = vmatpush1.bf16.msra.mxu0 0
  %382 = vmatprep.subr.bf16.mxu0 0
  %383 = vmatpush1.bf16.msra.mxu0 0
  %384 = vmatprep.subr.bf16.mxu0 0
  %385 = vmatpush1.bf16.msra.mxu0 0
  %386 = vmatprep.subr.bf16.mxu0 0
  %387 = vmatpush1.bf16.msra.mxu0 0
  %388 = vmatprep.subr.bf16.mxu0 0
  %389 = vmatpush1.bf16.msra.mxu0 0
  %390 = vmatprep.subr.bf16.mxu0 0
  %391 = vmatpush1.bf16.msra.mxu0 0
  %392 = vmatprep.mubr.bf16.mxu0 0
  %393 = vmatmul.mubr.bf16.gmra.mrb[0].mxu0 %v358
  %v394 = vpop.f32.mrb[0].mxu0
  %v395 = vadd.f32 0.0, %v394
  %v396 = vpop.f32.mrb[0].mxu0
  %v397 = vpop.f32.mrb[0].mxu0
  %v398 = vadd.f32 0.0, %v397
  %v399 = vpop.f32.mrb[0].mxu0
  %400 = vdwg.mxu0
  %401 = vrot.lane.b32.xlu0 %v157, 112
  %v402 = vpop.permute.xlu0 %401
  %403 = vrot.lane.b32.xlu0 %v157, 80
  %v404 = vpop.permute.xlu0 %403
  %v406 = vsel %vm161, %v402, 0
  %v409 = vsel %vm161, %v404, 0
  %411 = vmatprep.subr.bf16.mxu0 0
  %412 = vmatpush1.bf16.xpose.msra.mxu0 %v409
  %413 = vmatprep.subr.bf16.mxu0 0
  %414 = vmatpush1.bf16.xpose.msra.mxu0 0
  %415 = vmatprep.subr.bf16.mxu0 0
  %416 = vmatpush1.bf16.xpose.msra.mxu0 0
  %417 = vmatprep.subr.bf16.mxu0 0
  %418 = vmatpush1.bf16.xpose.msra.mxu0 0
  %419 = vmatprep.subr.bf16.mxu0 0
  %420 = vmatpush1.bf16.xpose.msra.mxu0 0
  %421 = vmatprep.subr.bf16.mxu0 0
  %422 = vmatpush1.bf16.xpose.msra.mxu0 0
  %423 = vmatprep.subr.bf16.mxu0 0
  %424 = vmatpush1.bf16.xpose.msra.mxu0 0
  %425 = vmatprep.subr.bf16.mxu0 0
  %426 = vmatpush1.bf16.xpose.msra.mxu0 0
  %427 = vmatprep.subr.bf16.mxu0 0
  %428 = vmatpush1.bf16.xpose.msra.mxu0 0
  %429 = vmatprep.subr.bf16.mxu0 0
  %430 = vmatpush1.bf16.xpose.msra.mxu0 0
  %431 = vmatprep.subr.bf16.mxu0 0
  %432 = vmatpush1.bf16.xpose.msra.mxu0 0
  %433 = vmatprep.subr.bf16.mxu0 0
  %434 = vmatpush1.bf16.xpose.msra.mxu0 0
  %435 = vmatprep.subr.bf16.mxu0 0
  %436 = vmatpush1.bf16.xpose.msra.mxu0 0
  %437 = vmatprep.subr.bf16.mxu0 0
  %438 = vmatpush1.bf16.xpose.msra.mxu0 0
  %439 = vmatprep.subr.bf16.mxu0 0
  %440 = vmatpush1.bf16.xpose.msra.mxu0 0
  %441 = vmatprep.subr.bf16.mxu0 0
  %442 = vmatpush1.bf16.xpose.msra.mxu0 0
  %443 = vmatprep.mubr.bf16.mxu0 0
  %444 = vmatmul.mubr.bf16.gmra.mrb[0].mxu0 %v406
  %v445 = vpop.f32.mrb[0].mxu0
  %v446 = vadd.f32 %v75, %v445
  %v447 = vpop.f32.mrb[0].mxu0
  %v448 = vpop.f32.mrb[0].mxu0
  %v449 = vadd.f32 %v76, %v448
  %v450 = vpop.f32.mrb[0].mxu0
  %451 = vdwg.mxu0
  %v452 = vsel %vm209, %v446, -inf
  %453 = vmax.xlane.f32.xlu0 %v452
  %v454 = vpop.xlane.xlu0 %453
  %v455 = vsel %vm209, %v449, -inf
  %456 = vmax.xlane.f32.xlu0 %v455
  %v457 = vpop.xlane.xlu0 %456
  %v458 = vsub.f32 %v446, %v454
  %v459 = vsub.f32 %v449, %v457
  %v460 = vmul.f32 %v458, 1.442695
  %v461 = vpow.pop %v460
  %v462 = vmul.f32 %v459, 1.442695
  %v463 = vpow.pop %v462
  %v464 = vsel %vm209, %v461, 0.0
  %465 = vadd.xlane.f32.xlu0 %v464
  %v466 = vpop.xlane.xlu0 %465
  %v467 = vsel %vm209, %v463, 0.0
  %468 = vadd.xlane.f32.xlu0 %v467
  %v469 = vpop.xlane.xlu0 %468
  %v470 = vrcp.pop %v466
  %v471 = vrcp.pop %v469
  %v472 = vmul.f32 %v461, %v470
  %v473 = vmul.f32 %v463, %v471
  %v474 = vpack.c.bf16 %v473, %v472
  %475 = vrot.lane.b32.xlu0 %v157, 48
  %v476 = vpop.permute.xlu0 %475
  %v479 = vsel %vm209, %v474, 0
  %481 = vmatprep.subr.bf16.mxu0 0
  %482 = vmatpush1.bf16.msra.mxu0 %v476
  %483 = vmatprep.subr.bf16.mxu0 0
  %484 = vmatpush1.bf16.msra.mxu0 0
  %485 = vmatprep.subr.bf16.mxu0 0
  %486 = vmatpush1.bf16.msra.mxu0 0
  %487 = vmatprep.subr.bf16.mxu0 0
  %488 = vmatpush1.bf16.msra.mxu0 0
  %489 = vmatprep.subr.bf16.mxu0 0
  %490 = vmatpush1.bf16.msra.mxu0 0
  %491 = vmatprep.subr.bf16.mxu0 0
  %492 = vmatpush1.bf16.msra.mxu0 0
  %493 = vmatprep.subr.bf16.mxu0 0
  %494 = vmatpush1.bf16.msra.mxu0 0
  %495 = vmatprep.subr.bf16.mxu0 0
  %496 = vmatpush1.bf16.msra.mxu0 0
  %497 = vmatprep.subr.bf16.mxu0 0
  %498 = vmatpush1.bf16.msra.mxu0 0
  %499 = vmatprep.subr.bf16.mxu0 0
  %500 = vmatpush1.bf16.msra.mxu0 0
  %501 = vmatprep.subr.bf16.mxu0 0
  %502 = vmatpush1.bf16.msra.mxu0 0
  %503 = vmatprep.subr.bf16.mxu0 0
  %504 = vmatpush1.bf16.msra.mxu0 0
  %505 = vmatprep.subr.bf16.mxu0 0
  %506 = vmatpush1.bf16.msra.mxu0 0
  %507 = vmatprep.subr.bf16.mxu0 0
  %508 = vmatpush1.bf16.msra.mxu0 0
  %509 = vmatprep.subr.bf16.mxu0 0
  %510 = vmatpush1.bf16.msra.mxu0 0
  %511 = vmatprep.subr.bf16.mxu0 0
  %512 = vmatpush1.bf16.msra.mxu0 0
  %513 = vmatprep.mubr.bf16.mxu0 0
  %514 = vmatmul.mubr.bf16.gmra.mrb[0].mxu0 %v479
  %v515 = vpop.f32.mrb[0].mxu0
  %v516 = vadd.f32 0.0, %v515
  %v517 = vpop.f32.mrb[0].mxu0
  %v518 = vpop.f32.mrb[0].mxu0
  %v519 = vadd.f32 0.0, %v518
  %v520 = vpop.f32.mrb[0].mxu0
  %521 = vdwg.mxu0
  %522 = vrot.lane.b32.xlu0 %v157, 104
  %v523 = vpop.permute.xlu0 %522
  %524 = vrot.lane.b32.xlu0 %v157, 72
  %v525 = vpop.permute.xlu0 %524
  %v527 = vsel %vm161, %v523, 0
  %v530 = vsel %vm161, %v525, 0
  %532 = vmatprep.subr.bf16.mxu0 0
  %533 = vmatpush1.bf16.xpose.msra.mxu0 %v530
  %534 = vmatprep.subr.bf16.mxu0 0
  %535 = vmatpush1.bf16.xpose.msra.mxu0 0
  %536 = vmatprep.subr.bf16.mxu0 0
  %537 = vmatpush1.bf16.xpose.msra.mxu0 0
  %538 = vmatprep.subr.bf16.mxu0 0
  %539 = vmatpush1.bf16.xpose.msra.mxu0 0
  %540 = vmatprep.subr.bf16.mxu0 0
  %541 = vmatpush1.bf16.xpose.msra.mxu0 0
  %542 = vmatprep.subr.bf16.mxu0 0
  %543 = vmatpush1.bf16.xpose.msra.mxu0 0
  %544 = vmatprep.subr.bf16.mxu0 0
  %545 = vmatpush1.bf16.xpose.msra.mxu0 0
  %546 = vmatprep.subr.bf16.mxu0 0
  %547 = vmatpush1.bf16.xpose.msra.mxu0 0
  %548 = vmatprep.subr.bf16.mxu0 0
  %549 = vmatpush1.bf16.xpose.msra.mxu0 0
  %550 = vmatprep.subr.bf16.mxu0 0
  %551 = vmatpush1.bf16.xpose.msra.mxu0 0
  %552 = vmatprep.subr.bf16.mxu0 0
  %553 = vmatpush1.bf16.xpose.msra.mxu0 0
  %554 = vmatprep.subr.bf16.mxu0 0
  %555 = vmatpush1.bf16.xpose.msra.mxu0 0
  %556 = vmatprep.subr.bf16.mxu0 0
  %557 = vmatpush1.bf16.xpose.msra.mxu0 0
  %558 = vmatprep.subr.bf16.mxu0 0
  %559 = vmatpush1.bf16.xpose.msra.mxu0 0
  %560 = vmatprep.subr.bf16.mxu0 0
  %561 = vmatpush1.bf16.xpose.msra.mxu0 0
  %562 = vmatprep.subr.bf16.mxu0 0
  %563 = vmatpush1.bf16.xpose.msra.mxu0 0
  %564 = vmatprep.mubr.bf16.mxu0 0
  %565 = vmatmul.mubr.bf16.gmra.mrb[0].mxu0 %v527
  %v566 = vpop.f32.mrb[0].mxu0
  %v567 = vadd.f32 %v75, %v566
  %v568 = vpop.f32.mrb[0].mxu0
  %v569 = vpop.f32.mrb[0].mxu0
  %v570 = vadd.f32 %v76, %v569
  %v571 = vpop.f32.mrb[0].mxu0
  %572 = vdwg.mxu0
  %v573 = vsel %vm209, %v567, -inf
  %574 = vmax.xlane.f32.xlu0 %v573
  %v575 = vpop.xlane.xlu0 %574
  %v576 = vsel %vm209, %v570, -inf
  %577 = vmax.xlane.f32.xlu0 %v576
  %v578 = vpop.xlane.xlu0 %577
  %v579 = vsub.f32 %v567, %v575
  %v580 = vsub.f32 %v570, %v578
  %v581 = vmul.f32 %v579, 1.442695
  %v582 = vpow.pop %v581
  %v583 = vmul.f32 %v580, 1.442695
  %v584 = vpow.pop %v583
  %v585 = vsel %vm209, %v582, 0.0
  %586 = vadd.xlane.f32.xlu0 %v585
  %v587 = vpop.xlane.xlu0 %586
  %v588 = vsel %vm209, %v584, 0.0
  %589 = vadd.xlane.f32.xlu0 %v588
  %v590 = vpop.xlane.xlu0 %589
  %v591 = vrcp.pop %v587
  %v592 = vrcp.pop %v590
  %v593 = vmul.f32 %v582, %v591
  %v594 = vmul.f32 %v584, %v592
  %v595 = vpack.c.bf16 %v594, %v593
  %596 = vrot.lane.b32.xlu0 %v157, 40
  %v597 = vpop.permute.xlu0 %596
  %v600 = vsel %vm209, %v595, 0
  %602 = vmatprep.subr.bf16.mxu0 0
  %603 = vmatpush1.bf16.msra.mxu0 %v597
  %604 = vmatprep.subr.bf16.mxu0 0
  %605 = vmatpush1.bf16.msra.mxu0 0
  %606 = vmatprep.subr.bf16.mxu0 0
  %607 = vmatpush1.bf16.msra.mxu0 0
  %608 = vmatprep.subr.bf16.mxu0 0
  %609 = vmatpush1.bf16.msra.mxu0 0
  %610 = vmatprep.subr.bf16.mxu0 0
  %611 = vmatpush1.bf16.msra.mxu0 0
  %612 = vmatprep.subr.bf16.mxu0 0
  %613 = vmatpush1.bf16.msra.mxu0 0
  %614 = vmatprep.subr.bf16.mxu0 0
  %615 = vmatpush1.bf16.msra.mxu0 0
  %616 = vmatprep.subr.bf16.mxu0 0
  %617 = vmatpush1.bf16.msra.mxu0 0
  %618 = vmatprep.subr.bf16.mxu0 0
  %619 = vmatpush1.bf16.msra.mxu0 0
  %620 = vmatprep.subr.bf16.mxu0 0
  %621 = vmatpush1.bf16.msra.mxu0 0
  %622 = vmatprep.subr.bf16.mxu0 0
  %623 = vmatpush1.bf16.msra.mxu0 0
  %624 = vmatprep.subr.bf16.mxu0 0
  %625 = vmatpush1.bf16.msra.mxu0 0
  %626 = vmatprep.subr.bf16.mxu0 0
  %627 = vmatpush1.bf16.msra.mxu0 0
  %628 = vmatprep.subr.bf16.mxu0 0
  %629 = vmatpush1.bf16.msra.mxu0 0
  %630 = vmatprep.subr.bf16.mxu0 0
  %631 = vmatpush1.bf16.msra.mxu0 0
  %632 = vmatprep.subr.bf16.mxu0 0
  %633 = vmatpush1.bf16.msra.mxu0 0
  %634 = vmatprep.mubr.bf16.mxu0 0
  %635 = vmatmul.mubr.bf16.gmra.mrb[0].mxu0 %v600
  %v636 = vpop.f32.mrb[0].mxu0
  %v637 = vadd.f32 0.0, %v636
  %v638 = vpop.f32.mrb[0].mxu0
  %v639 = vpop.f32.mrb[0].mxu0
  %v640 = vadd.f32 0.0, %v639
  %v641 = vpop.f32.mrb[0].mxu0
  %642 = vdwg.mxu0
  %645 = vrot.lane.b32.xlu0 %v395, 8
  %v646 = vpop.permute.xlu0 %645
  %647 = vrot.lane.b32.xlu0 %v398, 8
  %v648 = vpop.permute.xlu0 %647
  %653 = vrot.lane.b32.xlu0 %v516, 16
  %v654 = vpop.permute.xlu0 %653
  %655 = vrot.lane.b32.xlu0 %v519, 16
  %v656 = vpop.permute.xlu0 %655
  %661 = vrot.lane.b32.xlu0 %v637, 24
  %v662 = vpop.permute.xlu0 %661
  %663 = vrot.lane.b32.xlu0 %v640, 24
  %v664 = vpop.permute.xlu0 %663
  %v667 = vsel %vm161, %v274, %v646
  %v668 = vsel %vm161, %v277, %v648
  %v669 = vsel %vm209, %v667, %v654
  %v670 = vsel %vm209, %v668, %v656
  %vm671 = vcmask 195584
  %v672 = vsel %vm671, %v669, %v662
  %v673 = vsel %vm671, %v670, %v664
  %v674 = vpack.c.bf16 %v673, %v672
  %v675 = vlaneseq
  %v676 = vshrl.u32 %v675, 7
  %v677 = vsub.s32 0, %v676
  %v678 = vrot.slane %v83, %v677
  %v683 = vunpack.c.l.b16 %v89
  %v684 = vunpack.c.l.b16 %v90
  %v685 = vunpack.c.l.b16 %v91
  %v686 = vunpack.c.l.b16 %v92
  %v687 = vpack.c.b16 %v684, %v683
  %v688 = vpack.c.b16 %v686, %v685
  %v692 = vsel %vm112, %v674, 0
  %694 = vmatprep.subr.bf16.mxu0 0
  %695 = vmatpush1.bf16.msra.mxu0 %v687
  %696 = vmatprep.subr.bf16.mxu0 0
  %697 = vmatpush1.bf16.msra.mxu0 %v688
  %698 = vmatprep.subr.bf16.mxu0 0
  %699 = vmatpush1.bf16.msra.mxu0 0
  %700 = vmatprep.subr.bf16.mxu0 0
  %701 = vmatpush1.bf16.msra.mxu0 0
  %702 = vmatprep.subr.bf16.mxu0 0
  %703 = vmatpush1.bf16.msra.mxu0 0
  %704 = vmatprep.subr.bf16.mxu0 0
  %705 = vmatpush1.bf16.msra.mxu0 0
  %706 = vmatprep.subr.bf16.mxu0 0
  %707 = vmatpush1.bf16.msra.mxu0 0
  %708 = vmatprep.subr.bf16.mxu0 0
  %709 = vmatpush1.bf16.msra.mxu0 0
  %710 = vmatprep.subr.bf16.mxu0 0
  %711 = vmatpush1.bf16.msra.mxu0 0
  %712 = vmatprep.subr.bf16.mxu0 0
  %713 = vmatpush1.bf16.msra.mxu0 0
  %714 = vmatprep.subr.bf16.mxu0 0
  %715 = vmatpush1.bf16.msra.mxu0 0
  %716 = vmatprep.subr.bf16.mxu0 0
  %717 = vmatpush1.bf16.msra.mxu0 0
  %718 = vmatprep.subr.bf16.mxu0 0
  %719 = vmatpush1.bf16.msra.mxu0 0
  %720 = vmatprep.subr.bf16.mxu0 0
  %721 = vmatpush1.bf16.msra.mxu0 0
  %722 = vmatprep.subr.bf16.mxu0 0
  %723 = vmatpush1.bf16.msra.mxu0 0
  %724 = vmatprep.subr.bf16.mxu0 0
  %725 = vmatpush1.bf16.msra.mxu0 0
  %726 = vmatprep.mubr.bf16.mxu0 0
  %727 = vmatmul.mubr.bf16.gmra.mrb[0].mxu0 %v692
  %v728 = vpop.f32.mrb[0].mxu0
  %v729 = vadd.f32 %v678, %v728
  %v730 = vpop.f32.mrb[0].mxu0
  %v731 = vpop.f32.mrb[0].mxu0
  %v732 = vadd.f32 %v678, %v731
  %v733 = vpop.f32.mrb[0].mxu0
  %734 = vdwg.mxu0
  %v735 = vadd.f32 %v81, %v729
  %v736 = vadd.f32 %v82, %v732
  %v737 = vsel %vm112, %v735, 0.0
  %738 = vadd.xlane.f32.xlu0 %v737
  %v739 = vpop.xlane.xlu0 %738
  %v740 = vsel %vm112, %v736, 0.0
  %741 = vadd.xlane.f32.xlu0 %v740
  %v742 = vpop.xlane.xlu0 %741
  %v743 = vrcp.pop 32.0
  %v744 = vmul.f32 %v739, %v743
  %v745 = vmul.f32 %v742, %v743
  %v746 = vsub.f32 %v735, %v744
  %v747 = vsub.f32 %v736, %v745
  %v748 = vmul.f32 %v746, %v746
  %v749 = vmul.f32 %v747, %v747
  %v750 = vsel %vm112, %v748, 0.0
  %751 = vadd.xlane.f32.xlu0 %v750
  %v752 = vpop.xlane.xlu0 %751
  %v753 = vsel %vm112, %v749, 0.0
  %754 = vadd.xlane.f32.xlu0 %v753
  %v755 = vpop.xlane.xlu0 %754
  %v756 = vmul.f32 %v752, %v743
  %v757 = vmul.f32 %v755, %v743
  %v758 = vadd.f32 %v756, 1e-05
  %v759 = vadd.f32 %v757, 1e-05
  %v760 = vrsqrt.pop %v758
  %v761 = vrsqrt.pop %v759
  %v762 = vmul.f32 %v746, %v760
  %v763 = vmul.f32 %v747, %v761
  %v764 = vlaneseq
  %v765 = vshrl.u32 %v764, 7
  %v766 = vsub.s32 2, %v765
  %v767 = vrot.slane %v83, %v766
  %v768 = vmul.f32 %v762, %v767
  %v769 = vmul.f32 %v763, %v767
  %v770 = vlaneseq
  %v771 = vshrl.u32 %v770, 7
  %v772 = vsub.s32 3, %v771
  %v773 = vrot.slane %v83, %v772
  %v774 = vadd.f32 %v768, %v773
  %v775 = vadd.f32 %v769, %v773
  %v776 = vld [vmem:[%s7] sm:$0xf]
  %v777 = vld [vmem:[%s7 + $0x4] sm:$0xf]
  %v778 = vld [vmem:[%s7 + $0x8] sm:$0xf]
  %v779 = vld [vmem:[%s7 + $0xc] sm:$0xf]
  %v780 = vld [vmem:[%s10] sm:$0x1]
  %v781 = vld [vmem:[%s8] sm:$0xf]
  %v782 = vld [vmem:[%s8 + $0x4] sm:$0xf]
  %v783 = vld [vmem:[%s8 + $0x8] sm:$0xf]
  %v784 = vld [vmem:[%s8 + $0xc] sm:$0xf]
  %v785 = vld [vmem:[%s8 + $0x10] sm:$0xf]
  %v786 = vld [vmem:[%s8 + $0x14] sm:$0xf]
  %v787 = vld [vmem:[%s8 + $0x18] sm:$0xf]
  %v788 = vld [vmem:[%s8 + $0x1c] sm:$0xf]
  %v789 = vpack.c.bf16 %v775, %v774
  %v791 = vlaneseq
  %v792 = vshrl.u32 %v791, 7
  %v793 = vsub.s32 0, %v792
  %v794 = vrot.slane %v780, %v793
  %v800 = vunpack.c.l.b16 %v776
  %v801 = vunpack.c.l.b16 %v777
  %v802 = vunpack.c.l.b16 %v778
  %v803 = vunpack.c.l.b16 %v779
  %v804 = vpack.c.b16 %v801, %v800
  %v805 = vpack.c.b16 %v803, %v802
  %v809 = vsel %vm112, %v789, 0
  %811 = vmatprep.subr.bf16.mxu0 0
  %812 = vmatpush1.bf16.msra.mxu0 %v804
  %813 = vmatprep.subr.bf16.mxu0 0
  %814 = vmatpush1.bf16.msra.mxu0 %v805
  %815 = vmatprep.subr.bf16.mxu0 0
  %816 = vmatpush1.bf16.msra.mxu0 0
  %817 = vmatprep.subr.bf16.mxu0 0
  %818 = vmatpush1.bf16.msra.mxu0 0
  %819 = vmatprep.subr.bf16.mxu0 0
  %820 = vmatpush1.bf16.msra.mxu0 0
  %821 = vmatprep.subr.bf16.mxu0 0
  %822 = vmatpush1.bf16.msra.mxu0 0
  %823 = vmatprep.subr.bf16.mxu0 0
  %824 = vmatpush1.bf16.msra.mxu0 0
  %825 = vmatprep.subr.bf16.mxu0 0
  %826 = vmatpush1.bf16.msra.mxu0 0
  %827 = vmatprep.subr.bf16.mxu0 0
  %828 = vmatpush1.bf16.msra.mxu0 0
  %829 = vmatprep.subr.bf16.mxu0 0
  %830 = vmatpush1.bf16.msra.mxu0 0
  %831 = vmatprep.subr.bf16.mxu0 0
  %832 = vmatpush1.bf16.msra.mxu0 0
  %833 = vmatprep.subr.bf16.mxu0 0
  %834 = vmatpush1.bf16.msra.mxu0 0
  %835 = vmatprep.subr.bf16.mxu0 0
  %836 = vmatpush1.bf16.msra.mxu0 0
  %837 = vmatprep.subr.bf16.mxu0 0
  %838 = vmatpush1.bf16.msra.mxu0 0
  %839 = vmatprep.subr.bf16.mxu0 0
  %840 = vmatpush1.bf16.msra.mxu0 0
  %841 = vmatprep.subr.bf16.mxu0 0
  %842 = vmatpush1.bf16.msra.mxu0 0
  %843 = vmatprep.mubr.bf16.mxu0 0
  %844 = vmatmul.mubr.bf16.gmra.mrb[0].mxu0 %v809
  %v845 = vpop.f32.mrb[0].mxu0
  %v846 = vadd.f32 %v794, %v845
  %v847 = vpop.f32.mrb[0].mxu0
  %v848 = vpop.f32.mrb[0].mxu0
  %v849 = vadd.f32 %v794, %v848
  %v850 = vpop.f32.mrb[0].mxu0
  %851 = vdwg.mxu0
  %v852 = vmax.f32 %v846, 0.0
  %v853 = vmax.f32 %v849, 0.0
  %v854 = vpack.c.bf16 %v853, %v852
  %v855 = vlaneseq
  %v856 = vshrl.u32 %v855, 7
  %v857 = vsub.s32 1, %v856
  %v858 = vrot.slane %v83, %v857
  %v867 = vunpack.c.l.b16 %v781
  %v868 = vunpack.c.l.b16 %v782
  %v869 = vunpack.c.l.b16 %v783
  %v870 = vunpack.c.l.b16 %v784
  %v871 = vunpack.c.l.b16 %v785
  %v872 = vunpack.c.l.b16 %v786
  %v873 = vunpack.c.l.b16 %v787
  %v874 = vunpack.c.l.b16 %v788
  %v875 = vpack.c.b16 %v868, %v867
  %v876 = vpack.c.b16 %v870, %v869
  %v877 = vpack.c.b16 %v872, %v871
  %v878 = vpack.c.b16 %v874, %v873
  %vm883 = vcmask 523264
  %v885 = vsel %vm883, %v854, 0
  %887 = vmatprep.subr.bf16.mxu0 0
  %888 = vmatpush1.bf16.msra.mxu0 %v875
  %889 = vmatprep.subr.bf16.mxu0 0
  %890 = vmatpush1.bf16.msra.mxu0 %v876
  %891 = vmatprep.subr.bf16.mxu0 0
  %892 = vmatpush1.bf16.msra.mxu0 %v877
  %893 = vmatprep.subr.bf16.mxu0 0
  %894 = vmatpush1.bf16.msra.mxu0 %v878
  %895 = vmatprep.subr.bf16.mxu0 0
  %896 = vmatpush1.bf16.msra.mxu0 0
  %897 = vmatprep.subr.bf16.mxu0 0
  %898 = vmatpush1.bf16.msra.mxu0 0
  %899 = vmatprep.subr.bf16.mxu0 0
  %900 = vmatpush1.bf16.msra.mxu0 0
  %901 = vmatprep.subr.bf16.mxu0 0
  %902 = vmatpush1.bf16.msra.mxu0 0
  %903 = vmatprep.subr.bf16.mxu0 0
  %904 = vmatpush1.bf16.msra.mxu0 0
  %905 = vmatprep.subr.bf16.mxu0 0
  %906 = vmatpush1.bf16.msra.mxu0 0
  %907 = vmatprep.subr.bf16.mxu0 0
  %908 = vmatpush1.bf16.msra.mxu0 0
  %909 = vmatprep.subr.bf16.mxu0 0
  %910 = vmatpush1.bf16.msra.mxu0 0
  %911 = vmatprep.subr.bf16.mxu0 0
  %912 = vmatpush1.bf16.msra.mxu0 0
  %913 = vmatprep.subr.bf16.mxu0 0
  %914 = vmatpush1.bf16.msra.mxu0 0
  %915 = vmatprep.subr.bf16.mxu0 0
  %916 = vmatpush1.bf16.msra.mxu0 0
  %917 = vmatprep.subr.bf16.mxu0 0
  %918 = vmatpush1.bf16.msra.mxu0 0
  %919 = vmatprep.mubr.bf16.mxu0 0
  %920 = vmatmul.mubr.bf16.gmra.mrb[0].mxu0 %v885
  %v921 = vpop.f32.mrb[0].mxu0
  %v922 = vadd.f32 %v858, %v921
  %v923 = vpop.f32.mrb[0].mxu0
  %v924 = vpop.f32.mrb[0].mxu0
  %v925 = vadd.f32 %v858, %v924
  %v926 = vpop.f32.mrb[0].mxu0
  %927 = vdwg.mxu0
  %v928 = vadd.f32 %v774, %v922
  %v929 = vadd.f32 %v775, %v925
  %v930 = vsel %vm112, %v928, 0.0
  %931 = vadd.xlane.f32.xlu0 %v930
  %v932 = vpop.xlane.xlu0 %931
  %v933 = vsel %vm112, %v929, 0.0
  %934 = vadd.xlane.f32.xlu0 %v933
  %v935 = vpop.xlane.xlu0 %934
  %v936 = vmul.f32 %v932, %v743
  %v937 = vmul.f32 %v935, %v743
  %v938 = vsub.f32 %v928, %v936
  %v939 = vsub.f32 %v929, %v937
  %v940 = vmul.f32 %v938, %v938
  %v941 = vmul.f32 %v939, %v939
  %v942 = vsel %vm112, %v940, 0.0
  %943 = vadd.xlane.f32.xlu0 %v942
  %v944 = vpop.xlane.xlu0 %943
  %v945 = vsel %vm112, %v941, 0.0
  %946 = vadd.xlane.f32.xlu0 %v945
  %v947 = vpop.xlane.xlu0 %946
  %v948 = vmul.f32 %v944, %v743
  %v949 = vmul.f32 %v947, %v743
  %v950 = vadd.f32 %v948, 1e-05
  %v951 = vadd.f32 %v949, 1e-05
  %v952 = vrsqrt.pop %v950
  %v953 = vrsqrt.pop %v951
  %v954 = vmul.f32 %v938, %v952
  %v955 = vmul.f32 %v939, %v953
  %v956 = vlaneseq
  %v957 = vshrl.u32 %v956, 7
  %v958 = vsub.s32 4, %v957
  %v959 = vrot.slane %v83, %v958
  %v960 = vmul.f32 %v954, %v959
  %v961 = vmul.f32 %v955, %v959
  %v962 = vlaneseq
  %v963 = vshrl.u32 %v962, 7
  %v964 = vsub.s32 5, %v963
  %v965 = vrot.slane %v83, %v964
  %v966 = vadd.f32 %v960, %v965
  %v967 = vadd.f32 %v961, %v965
  %s968 = scalar_lea.vmem %s11, 8
  %v969 = vld [vmem:[%s968] sm:$0x3f]
  %s970 = scalar_lea.vmem %s5, 16
  %v971 = vld [vmem:[%s970] sm:$0xf]
  %v972 = vld [vmem:[%s970 + $0x4] sm:$0xf]
  %v973 = vld [vmem:[%s970 + $0x8] sm:$0xf]
  %v974 = vld [vmem:[%s970 + $0xc] sm:$0xf]
  %s975 = scalar_lea.vmem %s9, 1
  %v976 = vld [vmem:[%s975] sm:$0x1]
  %s977 = scalar_lea.vmem %s6, 16
  %v978 = vld [vmem:[%s977] sm:$0xf]
  %v979 = vld [vmem:[%s977 + $0x4] sm:$0xf]
  %v980 = vld [vmem:[%s977 + $0x8] sm:$0xf]
  %v981 = vld [vmem:[%s977 + $0xc] sm:$0xf]
  %v982 = vpack.c.bf16 %v967, %v966
  %v984 = vlaneseq
  %v985 = vshrl.u32 %v984, 7
  %v986 = vsub.s32 0, %v985
  %v987 = vrot.slane %v976, %v986
  %v993 = vunpack.c.l.b16 %v971
  %v994 = vunpack.c.l.b16 %v972
  %v995 = vunpack.c.l.b16 %v973
  %v996 = vunpack.c.l.b16 %v974
  %v997 = vpack.c.b16 %v994, %v993
  %v998 = vpack.c.b16 %v996, %v995
  %v1002 = vsel %vm112, %v982, 0
  %1004 = vmatprep.subr.bf16.mxu0 0
  %1005 = vmatpush1.bf16.msra.mxu0 %v997
  %1006 = vmatprep.subr.bf16.mxu0 0
  %1007 = vmatpush1.bf16.msra.mxu0 %v998
  %1008 = vmatprep.subr.bf16.mxu0 0
  %1009 = vmatpush1.bf16.msra.mxu0 0
  %1010 = vmatprep.subr.bf16.mxu0 0
  %1011 = vmatpush1.bf16.msra.mxu0 0
  %1012 = vmatprep.subr.bf16.mxu0 0
  %1013 = vmatpush1.bf16.msra.mxu0 0
  %1014 = vmatprep.subr.bf16.mxu0 0
  %1015 = vmatpush1.bf16.msra.mxu0 0
  %1016 = vmatprep.subr.bf16.mxu0 0
  %1017 = vmatpush1.bf16.msra.mxu0 0
  %1018 = vmatprep.subr.bf16.mxu0 0
  %1019 = vmatpush1.bf16.msra.mxu0 0
  %1020 = vmatprep.subr.bf16.mxu0 0
  %1021 = vmatpush1.bf16.msra.mxu0 0
  %1022 = vmatprep.subr.bf16.mxu0 0
  %1023 = vmatpush1.bf16.msra.mxu0 0
  %1024 = vmatprep.subr.bf16.mxu0 0
  %1025 = vmatpush1.bf16.msra.mxu0 0
  %1026 = vmatprep.subr.bf16.mxu0 0
  %1027 = vmatpush1.bf16.msra.mxu0 0
  %1028 = vmatprep.subr.bf16.mxu0 0
  %1029 = vmatpush1.bf16.msra.mxu0 0
  %1030 = vmatprep.subr.bf16.mxu0 0
  %1031 = vmatpush1.bf16.msra.mxu0 0
  %1032 = vmatprep.subr.bf16.mxu0 0
  %1033 = vmatpush1.bf16.msra.mxu0 0
  %1034 = vmatprep.subr.bf16.mxu0 0
  %1035 = vmatpush1.bf16.msra.mxu0 0
  %1036 = vmatprep.mubr.bf16.mxu0 0
  %1037 = vmatmul.mubr.bf16.gmra.mrb[0].mxu0 %v1002
  %v1038 = vpop.f32.mrb[0].mxu0
  %v1039 = vadd.f32 %v987, %v1038
  %v1040 = vpop.f32.mrb[0].mxu0
  %v1041 = vpop.f32.mrb[0].mxu0
  %v1042 = vadd.f32 %v987, %v1041
  %v1043 = vpop.f32.mrb[0].mxu0
  %1044 = vdwg.mxu0
  %v1045 = vpack.c.bf16 %v1042, %v1039
  %1047 = vrot.lane.b32.xlu0 %v1045, 96
  %v1048 = vpop.permute.xlu0 %1047
  %v1050 = vsel %vm161, %v1045, 0
  %v1053 = vsel %vm161, %v1048, 0
  %1055 = vmatprep.subr.bf16.mxu0 0
  %1056 = vmatpush1.bf16.xpose.msra.mxu0 %v1053
  %1057 = vmatprep.subr.bf16.mxu0 0
  %1058 = vmatpush1.bf16.xpose.msra.mxu0 0
  %1059 = vmatprep.subr.bf16.mxu0 0
  %1060 = vmatpush1.bf16.xpose.msra.mxu0 0
  %1061 = vmatprep.subr.bf16.mxu0 0
  %1062 = vmatpush1.bf16.xpose.msra.mxu0 0
  %1063 = vmatprep.subr.bf16.mxu0 0
  %1064 = vmatpush1.bf16.xpose.msra.mxu0 0
  %1065 = vmatprep.subr.bf16.mxu0 0
  %1066 = vmatpush1.bf16.xpose.msra.mxu0 0
  %1067 = vmatprep.subr.bf16.mxu0 0
  %1068 = vmatpush1.bf16.xpose.msra.mxu0 0
  %1069 = vmatprep.subr.bf16.mxu0 0
  %1070 = vmatpush1.bf16.xpose.msra.mxu0 0
  %1071 = vmatprep.subr.bf16.mxu0 0
  %1072 = vmatpush1.bf16.xpose.msra.mxu0 0
  %1073 = vmatprep.subr.bf16.mxu0 0
  %1074 = vmatpush1.bf16.xpose.msra.mxu0 0
  %1075 = vmatprep.subr.bf16.mxu0 0
  %1076 = vmatpush1.bf16.xpose.msra.mxu0 0
  %1077 = vmatprep.subr.bf16.mxu0 0
  %1078 = vmatpush1.bf16.xpose.msra.mxu0 0
  %1079 = vmatprep.subr.bf16.mxu0 0
  %1080 = vmatpush1.bf16.xpose.msra.mxu0 0
  %1081 = vmatprep.subr.bf16.mxu0 0
  %1082 = vmatpush1.bf16.xpose.msra.mxu0 0
  %1083 = vmatprep.subr.bf16.mxu0 0
  %1084 = vmatpush1.bf16.xpose.msra.mxu0 0
  %1085 = vmatprep.subr.bf16.mxu0 0
  %1086 = vmatpush1.bf16.xpose.msra.mxu0 0
  %1087 = vmatprep.mubr.bf16.mxu0 0
  %1088 = vmatmul.mubr.bf16.gmra.mrb[0].mxu0 %v1050
  %v1089 = vpop.f32.mrb[0].mxu0
  %v1090 = vadd.f32 %v75, %v1089
  %v1091 = vpop.f32.mrb[0].mxu0
  %v1092 = vpop.f32.mrb[0].mxu0
  %v1093 = vadd.f32 %v76, %v1092
  %v1094 = vpop.f32.mrb[0].mxu0
  %1095 = vdwg.mxu0
  %v1096 = vsel %vm209, %v1090, -inf
  %1097 = vmax.xlane.f32.xlu0 %v1096
  %v1098 = vpop.xlane.xlu0 %1097
  %v1099 = vsel %vm209, %v1093, -inf
  %1100 = vmax.xlane.f32.xlu0 %v1099
  %v1101 = vpop.xlane.xlu0 %1100
  %v1102 = vsub.f32 %v1090, %v1098
  %v1103 = vsub.f32 %v1093, %v1101
  %v1104 = vmul.f32 %v1102, 1.442695
  %v1105 = vpow.pop %v1104
  %v1106 = vmul.f32 %v1103, 1.442695
  %v1107 = vpow.pop %v1106
  %v1108 = vsel %vm209, %v1105, 0.0
  %1109 = vadd.xlane.f32.xlu0 %v1108
  %v1110 = vpop.xlane.xlu0 %1109
  %v1111 = vsel %vm209, %v1107, 0.0
  %1112 = vadd.xlane.f32.xlu0 %v1111
  %v1113 = vpop.xlane.xlu0 %1112
  %v1114 = vrcp.pop %v1110
  %v1115 = vrcp.pop %v1113
  %v1116 = vmul.f32 %v1105, %v1114
  %v1117 = vmul.f32 %v1107, %v1115
  %v1118 = vpack.c.bf16 %v1117, %v1116
  %1119 = vrot.lane.b32.xlu0 %v1045, 64
  %v1120 = vpop.permute.xlu0 %1119
  %v1123 = vsel %vm209, %v1118, 0
  %1125 = vmatprep.subr.bf16.mxu0 0
  %1126 = vmatpush1.bf16.msra.mxu0 %v1120
  %1127 = vmatprep.subr.bf16.mxu0 0
  %1128 = vmatpush1.bf16.msra.mxu0 0
  %1129 = vmatprep.subr.bf16.mxu0 0
  %1130 = vmatpush1.bf16.msra.mxu0 0
  %1131 = vmatprep.subr.bf16.mxu0 0
  %1132 = vmatpush1.bf16.msra.mxu0 0
  %1133 = vmatprep.subr.bf16.mxu0 0
  %1134 = vmatpush1.bf16.msra.mxu0 0
  %1135 = vmatprep.subr.bf16.mxu0 0
  %1136 = vmatpush1.bf16.msra.mxu0 0
  %1137 = vmatprep.subr.bf16.mxu0 0
  %1138 = vmatpush1.bf16.msra.mxu0 0
  %1139 = vmatprep.subr.bf16.mxu0 0
  %1140 = vmatpush1.bf16.msra.mxu0 0
  %1141 = vmatprep.subr.bf16.mxu0 0
  %1142 = vmatpush1.bf16.msra.mxu0 0
  %1143 = vmatprep.subr.bf16.mxu0 0
  %1144 = vmatpush1.bf16.msra.mxu0 0
  %1145 = vmatprep.subr.bf16.mxu0 0
  %1146 = vmatpush1.bf16.msra.mxu0 0
  %1147 = vmatprep.subr.bf16.mxu0 0
  %1148 = vmatpush1.bf16.msra.mxu0 0
  %1149 = vmatprep.subr.bf16.mxu0 0
  %1150 = vmatpush1.bf16.msra.mxu0 0
  %1151 = vmatprep.subr.bf16.mxu0 0
  %1152 = vmatpush1.bf16.msra.mxu0 0
  %1153 = vmatprep.subr.bf16.mxu0 0
  %1154 = vmatpush1.bf16.msra.mxu0 0
  %1155 = vmatprep.subr.bf16.mxu0 0
  %1156 = vmatpush1.bf16.msra.mxu0 0
  %1157 = vmatprep.mubr.bf16.mxu0 0
  %1158 = vmatmul.mubr.bf16.gmra.mrb[0].mxu0 %v1123
  %v1159 = vpop.f32.mrb[0].mxu0
  %v1160 = vadd.f32 0.0, %v1159
  %v1161 = vpop.f32.mrb[0].mxu0
  %v1162 = vpop.f32.mrb[0].mxu0
  %v1163 = vadd.f32 0.0, %v1162
  %v1164 = vpop.f32.mrb[0].mxu0
  %1165 = vdwg.mxu0
  %1166 = vrot.lane.b32.xlu0 %v1045, 120
  %v1167 = vpop.permute.xlu0 %1166
  %1168 = vrot.lane.b32.xlu0 %v1045, 88
  %v1169 = vpop.permute.xlu0 %1168
  %v1171 = vsel %vm161, %v1167, 0
  %v1174 = vsel %vm161, %v1169, 0
  %1176 = vmatprep.subr.bf16.mxu0 0
  %1177 = vmatpush1.bf16.xpose.msra.mxu0 %v1174
  %1178 = vmatprep.subr.bf16.mxu0 0
  %1179 = vmatpush1.bf16.xpose.msra.mxu0 0
  %1180 = vmatprep.subr.bf16.mxu0 0
  %1181 = vmatpush1.bf16.xpose.msra.mxu0 0
  %1182 = vmatprep.subr.bf16.mxu0 0
  %1183 = vmatpush1.bf16.xpose.msra.mxu0 0
  %1184 = vmatprep.subr.bf16.mxu0 0
  %1185 = vmatpush1.bf16.xpose.msra.mxu0 0
  %1186 = vmatprep.subr.bf16.mxu0 0
  %1187 = vmatpush1.bf16.xpose.msra.mxu0 0
  %1188 = vmatprep.subr.bf16.mxu0 0
  %1189 = vmatpush1.bf16.xpose.msra.mxu0 0
  %1190 = vmatprep.subr.bf16.mxu0 0
  %1191 = vmatpush1.bf16.xpose.msra.mxu0 0
  %1192 = vmatprep.subr.bf16.mxu0 0
  %1193 = vmatpush1.bf16.xpose.msra.mxu0 0
  %1194 = vmatprep.subr.bf16.mxu0 0
  %1195 = vmatpush1.bf16.xpose.msra.mxu0 0
  %1196 = vmatprep.subr.bf16.mxu0 0
  %1197 = vmatpush1.bf16.xpose.msra.mxu0 0
  %1198 = vmatprep.subr.bf16.mxu0 0
  %1199 = vmatpush1.bf16.xpose.msra.mxu0 0
  %1200 = vmatprep.subr.bf16.mxu0 0
  %1201 = vmatpush1.bf16.xpose.msra.mxu0 0
  %1202 = vmatprep.subr.bf16.mxu0 0
  %1203 = vmatpush1.bf16.xpose.msra.mxu0 0
  %1204 = vmatprep.subr.bf16.mxu0 0
  %1205 = vmatpush1.bf16.xpose.msra.mxu0 0
  %1206 = vmatprep.subr.bf16.mxu0 0
  %1207 = vmatpush1.bf16.xpose.msra.mxu0 0
  %1208 = vmatprep.mubr.bf16.mxu0 0
  %1209 = vmatmul.mubr.bf16.gmra.mrb[0].mxu0 %v1171
  %v1210 = vpop.f32.mrb[0].mxu0
  %v1211 = vadd.f32 %v75, %v1210
  %v1212 = vpop.f32.mrb[0].mxu0
  %v1213 = vpop.f32.mrb[0].mxu0
  %v1214 = vadd.f32 %v76, %v1213
  %v1215 = vpop.f32.mrb[0].mxu0
  %1216 = vdwg.mxu0
  %v1217 = vsel %vm209, %v1211, -inf
  %1218 = vmax.xlane.f32.xlu0 %v1217
  %v1219 = vpop.xlane.xlu0 %1218
  %v1220 = vsel %vm209, %v1214, -inf
  %1221 = vmax.xlane.f32.xlu0 %v1220
  %v1222 = vpop.xlane.xlu0 %1221
  %v1223 = vsub.f32 %v1211, %v1219
  %v1224 = vsub.f32 %v1214, %v1222
  %v1225 = vmul.f32 %v1223, 1.442695
  %v1226 = vpow.pop %v1225
  %v1227 = vmul.f32 %v1224, 1.442695
  %v1228 = vpow.pop %v1227
  %v1229 = vsel %vm209, %v1226, 0.0
  %1230 = vadd.xlane.f32.xlu0 %v1229
  %v1231 = vpop.xlane.xlu0 %1230
  %v1232 = vsel %vm209, %v1228, 0.0
  %1233 = vadd.xlane.f32.xlu0 %v1232
  %v1234 = vpop.xlane.xlu0 %1233
  %v1235 = vrcp.pop %v1231
  %v1236 = vrcp.pop %v1234
  %v1237 = vmul.f32 %v1226, %v1235
  %v1238 = vmul.f32 %v1228, %v1236
  %v1239 = vpack.c.bf16 %v1238, %v1237
  %1240 = vrot.lane.b32.xlu0 %v1045, 56
  %v1241 = vpop.permute.xlu0 %1240
  %v1244 = vsel %vm209, %v1239, 0
  %1246 = vmatprep.subr.bf16.mxu0 0
  %1247 = vmatpush1.bf16.msra.mxu0 %v1241
  %1248 = vmatprep.subr.bf16.mxu0 0
  %1249 = vmatpush1.bf16.msra.mxu0 0
  %1250 = vmatprep.subr.bf16.mxu0 0
  %1251 = vmatpush1.bf16.msra.mxu0 0
  %1252 = vmatprep.subr.bf16.mxu0 0
  %1253 = vmatpush1.bf16.msra.mxu0 0
  %1254 = vmatprep.subr.bf16.mxu0 0
  %1255 = vmatpush1.bf16.msra.mxu0 0
  %1256 = vmatprep.subr.bf16.mxu0 0
  %1257 = vmatpush1.bf16.msra.mxu0 0
  %1258 = vmatprep.subr.bf16.mxu0 0
  %1259 = vmatpush1.bf16.msra.mxu0 0
  %1260 = vmatprep.subr.bf16.mxu0 0
  %1261 = vmatpush1.bf16.msra.mxu0 0
  %1262 = vmatprep.subr.bf16.mxu0 0
  %1263 = vmatpush1.bf16.msra.mxu0 0
  %1264 = vmatprep.subr.bf16.mxu0 0
  %1265 = vmatpush1.bf16.msra.mxu0 0
  %1266 = vmatprep.subr.bf16.mxu0 0
  %1267 = vmatpush1.bf16.msra.mxu0 0
  %1268 = vmatprep.subr.bf16.mxu0 0
  %1269 = vmatpush1.bf16.msra.mxu0 0
  %1270 = vmatprep.subr.bf16.mxu0 0
  %1271 = vmatpush1.bf16.msra.mxu0 0
  %1272 = vmatprep.subr.bf16.mxu0 0
  %1273 = vmatpush1.bf16.msra.mxu0 0
  %1274 = vmatprep.subr.bf16.mxu0 0
  %1275 = vmatpush1.bf16.msra.mxu0 0
  %1276 = vmatprep.subr.bf16.mxu0 0
  %1277 = vmatpush1.bf16.msra.mxu0 0
  %1278 = vmatprep.mubr.bf16.mxu0 0
  %1279 = vmatmul.mubr.bf16.gmra.mrb[0].mxu0 %v1244
  %v1280 = vpop.f32.mrb[0].mxu0
  %v1281 = vadd.f32 0.0, %v1280
  %v1282 = vpop.f32.mrb[0].mxu0
  %v1283 = vpop.f32.mrb[0].mxu0
  %v1284 = vadd.f32 0.0, %v1283
  %v1285 = vpop.f32.mrb[0].mxu0
  %1286 = vdwg.mxu0
  %1287 = vrot.lane.b32.xlu0 %v1045, 112
  %v1288 = vpop.permute.xlu0 %1287
  %1289 = vrot.lane.b32.xlu0 %v1045, 80
  %v1290 = vpop.permute.xlu0 %1289
  %v1292 = vsel %vm161, %v1288, 0
  %v1295 = vsel %vm161, %v1290, 0
  %1297 = vmatprep.subr.bf16.mxu0 0
  %1298 = vmatpush1.bf16.xpose.msra.mxu0 %v1295
  %1299 = vmatprep.subr.bf16.mxu0 0
  %1300 = vmatpush1.bf16.xpose.msra.mxu0 0
  %1301 = vmatprep.subr.bf16.mxu0 0
  %1302 = vmatpush1.bf16.xpose.msra.mxu0 0
  %1303 = vmatprep.subr.bf16.mxu0 0
  %1304 = vmatpush1.bf16.xpose.msra.mxu0 0
  %1305 = vmatprep.subr.bf16.mxu0 0
  %1306 = vmatpush1.bf16.xpose.msra.mxu0 0
  %1307 = vmatprep.subr.bf16.mxu0 0
  %1308 = vmatpush1.bf16.xpose.msra.mxu0 0
  %1309 = vmatprep.subr.bf16.mxu0 0
  %1310 = vmatpush1.bf16.xpose.msra.mxu0 0
  %1311 = vmatprep.subr.bf16.mxu0 0
  %1312 = vmatpush1.bf16.xpose.msra.mxu0 0
  %1313 = vmatprep.subr.bf16.mxu0 0
  %1314 = vmatpush1.bf16.xpose.msra.mxu0 0
  %1315 = vmatprep.subr.bf16.mxu0 0
  %1316 = vmatpush1.bf16.xpose.msra.mxu0 0
  %1317 = vmatprep.subr.bf16.mxu0 0
  %1318 = vmatpush1.bf16.xpose.msra.mxu0 0
  %1319 = vmatprep.subr.bf16.mxu0 0
  %1320 = vmatpush1.bf16.xpose.msra.mxu0 0
  %1321 = vmatprep.subr.bf16.mxu0 0
  %1322 = vmatpush1.bf16.xpose.msra.mxu0 0
  %1323 = vmatprep.subr.bf16.mxu0 0
  %1324 = vmatpush1.bf16.xpose.msra.mxu0 0
  %1325 = vmatprep.subr.bf16.mxu0 0
  %1326 = vmatpush1.bf16.xpose.msra.mxu0 0
  %1327 = vmatprep.subr.bf16.mxu0 0
  %1328 = vmatpush1.bf16.xpose.msra.mxu0 0
  %1329 = vmatprep.mubr.bf16.mxu0 0
  %1330 = vmatmul.mubr.bf16.gmra.mrb[0].mxu0 %v1292
  %v1331 = vpop.f32.mrb[0].mxu0
  %v1332 = vadd.f32 %v75, %v1331
  %v1333 = vpop.f32.mrb[0].mxu0
  %v1334 = vpop.f32.mrb[0].mxu0
  %v1335 = vadd.f32 %v76, %v1334
  %v1336 = vpop.f32.mrb[0].mxu0
  %1337 = vdwg.mxu0
  %v1338 = vsel %vm209, %v1332, -inf
  %1339 = vmax.xlane.f32.xlu0 %v1338
  %v1340 = vpop.xlane.xlu0 %1339
  %v1341 = vsel %vm209, %v1335, -inf
  %1342 = vmax.xlane.f32.xlu0 %v1341
  %v1343 = vpop.xlane.xlu0 %1342
  %v1344 = vsub.f32 %v1332, %v1340
  %v1345 = vsub.f32 %v1335, %v1343
  %v1346 = vmul.f32 %v1344, 1.442695
  %v1347 = vpow.pop %v1346
  %v1348 = vmul.f32 %v1345, 1.442695
  %v1349 = vpow.pop %v1348
  %v1350 = vsel %vm209, %v1347, 0.0
  %1351 = vadd.xlane.f32.xlu0 %v1350
  %v1352 = vpop.xlane.xlu0 %1351
  %v1353 = vsel %vm209, %v1349, 0.0
  %1354 = vadd.xlane.f32.xlu0 %v1353
  %v1355 = vpop.xlane.xlu0 %1354
  %v1356 = vrcp.pop %v1352
  %v1357 = vrcp.pop %v1355
  %v1358 = vmul.f32 %v1347, %v1356
  %v1359 = vmul.f32 %v1349, %v1357
  %v1360 = vpack.c.bf16 %v1359, %v1358
  %1361 = vrot.lane.b32.xlu0 %v1045, 48
  %v1362 = vpop.permute.xlu0 %1361
  %v1365 = vsel %vm209, %v1360, 0
  %1367 = vmatprep.subr.bf16.mxu0 0
  %1368 = vmatpush1.bf16.msra.mxu0 %v1362
  %1369 = vmatprep.subr.bf16.mxu0 0
  %1370 = vmatpush1.bf16.msra.mxu0 0
  %1371 = vmatprep.subr.bf16.mxu0 0
  %1372 = vmatpush1.bf16.msra.mxu0 0
  %1373 = vmatprep.subr.bf16.mxu0 0
  %1374 = vmatpush1.bf16.msra.mxu0 0
  %1375 = vmatprep.subr.bf16.mxu0 0
  %1376 = vmatpush1.bf16.msra.mxu0 0
  %1377 = vmatprep.subr.bf16.mxu0 0
  %1378 = vmatpush1.bf16.msra.mxu0 0
  %1379 = vmatprep.subr.bf16.mxu0 0
  %1380 = vmatpush1.bf16.msra.mxu0 0
  %1381 = vmatprep.subr.bf16.mxu0 0
  %1382 = vmatpush1.bf16.msra.mxu0 0
  %1383 = vmatprep.subr.bf16.mxu0 0
  %1384 = vmatpush1.bf16.msra.mxu0 0
  %1385 = vmatprep.subr.bf16.mxu0 0
  %1386 = vmatpush1.bf16.msra.mxu0 0
  %1387 = vmatprep.subr.bf16.mxu0 0
  %1388 = vmatpush1.bf16.msra.mxu0 0
  %1389 = vmatprep.subr.bf16.mxu0 0
  %1390 = vmatpush1.bf16.msra.mxu0 0
  %1391 = vmatprep.subr.bf16.mxu0 0
  %1392 = vmatpush1.bf16.msra.mxu0 0
  %1393 = vmatprep.subr.bf16.mxu0 0
  %1394 = vmatpush1.bf16.msra.mxu0 0
  %1395 = vmatprep.subr.bf16.mxu0 0
  %1396 = vmatpush1.bf16.msra.mxu0 0
  %1397 = vmatprep.subr.bf16.mxu0 0
  %1398 = vmatpush1.bf16.msra.mxu0 0
  %1399 = vmatprep.mubr.bf16.mxu0 0
  %1400 = vmatmul.mubr.bf16.gmra.mrb[0].mxu0 %v1365
  %v1401 = vpop.f32.mrb[0].mxu0
  %v1402 = vadd.f32 0.0, %v1401
  %v1403 = vpop.f32.mrb[0].mxu0
  %v1404 = vpop.f32.mrb[0].mxu0
  %v1405 = vadd.f32 0.0, %v1404
  %v1406 = vpop.f32.mrb[0].mxu0
  %1407 = vdwg.mxu0
  %1408 = vrot.lane.b32.xlu0 %v1045, 104
  %v1409 = vpop.permute.xlu0 %1408
  %1410 = vrot.lane.b32.xlu0 %v1045, 72
  %v1411 = vpop.permute.xlu0 %1410
  %v1413 = vsel %vm161, %v1409, 0
  %v1416 = vsel %vm161, %v1411, 0
  %1418 = vmatprep.subr.bf16.mxu0 0
  %1419 = vmatpush1.bf16.xpose.msra.mxu0 %v1416
  %1420 = vmatprep.subr.bf16.mxu0 0
  %1421 = vmatpush1.bf16.xpose.msra.mxu0 0
  %1422 = vmatprep.subr.bf16.mxu0 0
  %1423 = vmatpush1.bf16.xpose.msra.mxu0 0
  %1424 = vmatprep.subr.bf16.mxu0 0
  %1425 = vmatpush1.bf16.xpose.msra.mxu0 0
  %1426 = vmatprep.subr.bf16.mxu0 0
  %1427 = vmatpush1.bf16.xpose.msra.mxu0 0
  %1428 = vmatprep.subr.bf16.mxu0 0
  %1429 = vmatpush1.bf16.xpose.msra.mxu0 0
  %1430 = vmatprep.subr.bf16.mxu0 0
  %1431 = vmatpush1.bf16.xpose.msra.mxu0 0
  %1432 = vmatprep.subr.bf16.mxu0 0
  %1433 = vmatpush1.bf16.xpose.msra.mxu0 0
  %1434 = vmatprep.subr.bf16.mxu0 0
  %1435 = vmatpush1.bf16.xpose.msra.mxu0 0
  %1436 = vmatprep.subr.bf16.mxu0 0
  %1437 = vmatpush1.bf16.xpose.msra.mxu0 0
  %1438 = vmatprep.subr.bf16.mxu0 0
  %1439 = vmatpush1.bf16.xpose.msra.mxu0 0
  %1440 = vmatprep.subr.bf16.mxu0 0
  %1441 = vmatpush1.bf16.xpose.msra.mxu0 0
  %1442 = vmatprep.subr.bf16.mxu0 0
  %1443 = vmatpush1.bf16.xpose.msra.mxu0 0
  %1444 = vmatprep.subr.bf16.mxu0 0
  %1445 = vmatpush1.bf16.xpose.msra.mxu0 0
  %1446 = vmatprep.subr.bf16.mxu0 0
  %1447 = vmatpush1.bf16.xpose.msra.mxu0 0
  %1448 = vmatprep.subr.bf16.mxu0 0
  %1449 = vmatpush1.bf16.xpose.msra.mxu0 0
  %1450 = vmatprep.mubr.bf16.mxu0 0
  %1451 = vmatmul.mubr.bf16.gmra.mrb[0].mxu0 %v1413
  %v1452 = vpop.f32.mrb[0].mxu0
  %v1453 = vadd.f32 %v75, %v1452
  %v1454 = vpop.f32.mrb[0].mxu0
  %v1455 = vpop.f32.mrb[0].mxu0
  %v1456 = vadd.f32 %v76, %v1455
  %v1457 = vpop.f32.mrb[0].mxu0
  %1458 = vdwg.mxu0
  %v1459 = vsel %vm209, %v1453, -inf
  %1460 = vmax.xlane.f32.xlu0 %v1459
  %v1461 = vpop.xlane.xlu0 %1460
  %v1462 = vsel %vm209, %v1456, -inf
  %1463 = vmax.xlane.f32.xlu0 %v1462
  %v1464 = vpop.xlane.xlu0 %1463
  %v1465 = vsub.f32 %v1453, %v1461
  %v1466 = vsub.f32 %v1456, %v1464
  %v1467 = vmul.f32 %v1465, 1.442695
  %v1468 = vpow.pop %v1467
  %v1469 = vmul.f32 %v1466, 1.442695
  %v1470 = vpow.pop %v1469
  %v1471 = vsel %vm209, %v1468, 0.0
  %1472 = vadd.xlane.f32.xlu0 %v1471
  %v1473 = vpop.xlane.xlu0 %1472
  %v1474 = vsel %vm209, %v1470, 0.0
  %1475 = vadd.xlane.f32.xlu0 %v1474
  %v1476 = vpop.xlane.xlu0 %1475
  %v1477 = vrcp.pop %v1473
  %v1478 = vrcp.pop %v1476
  %v1479 = vmul.f32 %v1468, %v1477
  %v1480 = vmul.f32 %v1470, %v1478
  %v1481 = vpack.c.bf16 %v1480, %v1479
  %1482 = vrot.lane.b32.xlu0 %v1045, 40
  %v1483 = vpop.permute.xlu0 %1482
  %v1486 = vsel %vm209, %v1481, 0
  %1488 = vmatprep.subr.bf16.mxu0 0
  %1489 = vmatpush1.bf16.msra.mxu0 %v1483
  %1490 = vmatprep.subr.bf16.mxu0 0
  %1491 = vmatpush1.bf16.msra.mxu0 0
  %1492 = vmatprep.subr.bf16.mxu0 0
  %1493 = vmatpush1.bf16.msra.mxu0 0
  %1494 = vmatprep.subr.bf16.mxu0 0
  %1495 = vmatpush1.bf16.msra.mxu0 0
  %1496 = vmatprep.subr.bf16.mxu0 0
  %1497 = vmatpush1.bf16.msra.mxu0 0
  %1498 = vmatprep.subr.bf16.mxu0 0
  %1499 = vmatpush1.bf16.msra.mxu0 0
  %1500 = vmatprep.subr.bf16.mxu0 0
  %1501 = vmatpush1.bf16.msra.mxu0 0
  %1502 = vmatprep.subr.bf16.mxu0 0
  %1503 = vmatpush1.bf16.msra.mxu0 0
  %1504 = vmatprep.subr.bf16.mxu0 0
  %1505 = vmatpush1.bf16.msra.mxu0 0
  %1506 = vmatprep.subr.bf16.mxu0 0
  %1507 = vmatpush1.bf16.msra.mxu0 0
  %1508 = vmatprep.subr.bf16.mxu0 0
  %1509 = vmatpush1.bf16.msra.mxu0 0
  %1510 = vmatprep.subr.bf16.mxu0 0
  %1511 = vmatpush1.bf16.msra.mxu0 0
  %1512 = vmatprep.subr.bf16.mxu0 0
  %1513 = vmatpush1.bf16.msra.mxu0 0
  %1514 = vmatprep.subr.bf16.mxu0 0
  %1515 = vmatpush1.bf16.msra.mxu0 0
  %1516 = vmatprep.subr.bf16.mxu0 0
  %1517 = vmatpush1.bf16.msra.mxu0 0
  %1518 = vmatprep.subr.bf16.mxu0 0
  %1519 = vmatpush1.bf16.msra.mxu0 0
  %1520 = vmatprep.mubr.bf16.mxu0 0
  %1521 = vmatmul.mubr.bf16.gmra.mrb[0].mxu0 %v1486
  %v1522 = vpop.f32.mrb[0].mxu0
  %v1523 = vadd.f32 0.0, %v1522
  %v1524 = vpop.f32.mrb[0].mxu0
  %v1525 = vpop.f32.mrb[0].mxu0
  %v1526 = vadd.f32 0.0, %v1525
  %v1527 = vpop.f32.mrb[0].mxu0
  %1528 = vdwg.mxu0
  %1531 = vrot.lane.b32.xlu0 %v1281, 8
  %v1532 = vpop.permute.xlu0 %1531
  %1533 = vrot.lane.b32.xlu0 %v1284, 8
  %v1534 = vpop.permute.xlu0 %1533
  %1539 = vrot.lane.b32.xlu0 %v1402, 16
  %v1540 = vpop.permute.xlu0 %1539
  %1541 = vrot.lane.b32.xlu0 %v1405, 16
  %v1542 = vpop.permute.xlu0 %1541
  %1547 = vrot.lane.b32.xlu0 %v1523, 24
  %v1548 = vpop.permute.xlu0 %1547
  %1549 = vrot.lane.b32.xlu0 %v1526, 24
  %v1550 = vpop.permute.xlu0 %1549
  %v1553 = vsel %vm161, %v1160, %v1532
  %v1554 = vsel %vm161, %v1163, %v1534
  %v1555 = vsel %vm209, %v1553, %v1540
  %v1556 = vsel %vm209, %v1554, %v1542
  %v1557 = vsel %vm671, %v1555, %v1548
  %v1558 = vsel %vm671, %v1556, %v1550
  %v1559 = vpack.c.bf16 %v1558, %v1557
  %v1560 = vlaneseq
  %v1561 = vshrl.u32 %v1560, 7
  %v1562 = vsub.s32 0, %v1561
  %v1563 = vrot.slane %v969, %v1562
  %v1568 = vunpack.c.l.b16 %v978
  %v1569 = vunpack.c.l.b16 %v979
  %v1570 = vunpack.c.l.b16 %v980
  %v1571 = vunpack.c.l.b16 %v981
  %v1572 = vpack.c.b16 %v1569, %v1568
  %v1573 = vpack.c.b16 %v1571, %v1570
  %v1577 = vsel %vm112, %v1559, 0
  %1579 = vmatprep.subr.bf16.mxu0 0
  %1580 = vmatpush1.bf16.msra.mxu0 %v1572
  %1581 = vmatprep.subr.bf16.mxu0 0
  %1582 = vmatpush1.bf16.msra.mxu0 %v1573
  %1583 = vmatprep.subr.bf16.mxu0 0
  %1584 = vmatpush1.bf16.msra.mxu0 0
  %1585 = vmatprep.subr.bf16.mxu0 0
  %1586 = vmatpush1.bf16.msra.mxu0 0
  %1587 = vmatprep.subr.bf16.mxu0 0
  %1588 = vmatpush1.bf16.msra.mxu0 0
  %1589 = vmatprep.subr.bf16.mxu0 0
  %1590 = vmatpush1.bf16.msra.mxu0 0
  %1591 = vmatprep.subr.bf16.mxu0 0
  %1592 = vmatpush1.bf16.msra.mxu0 0
  %1593 = vmatprep.subr.bf16.mxu0 0
  %1594 = vmatpush1.bf16.msra.mxu0 0
  %1595 = vmatprep.subr.bf16.mxu0 0
  %1596 = vmatpush1.bf16.msra.mxu0 0
  %1597 = vmatprep.subr.bf16.mxu0 0
  %1598 = vmatpush1.bf16.msra.mxu0 0
  %1599 = vmatprep.subr.bf16.mxu0 0
  %1600 = vmatpush1.bf16.msra.mxu0 0
  %1601 = vmatprep.subr.bf16.mxu0 0
  %1602 = vmatpush1.bf16.msra.mxu0 0
  %1603 = vmatprep.subr.bf16.mxu0 0
  %1604 = vmatpush1.bf16.msra.mxu0 0
  %1605 = vmatprep.subr.bf16.mxu0 0
  %1606 = vmatpush1.bf16.msra.mxu0 0
  %1607 = vmatprep.subr.bf16.mxu0 0
  %1608 = vmatpush1.bf16.msra.mxu0 0
  %1609 = vmatprep.subr.bf16.mxu0 0
  %1610 = vmatpush1.bf16.msra.mxu0 0
  %1611 = vmatprep.mubr.bf16.mxu0 0
  %1612 = vmatmul.mubr.bf16.gmra.mrb[0].mxu0 %v1577
  %v1613 = vpop.f32.mrb[0].mxu0
  %v1614 = vadd.f32 %v1563, %v1613
  %v1615 = vpop.f32.mrb[0].mxu0
  %v1616 = vpop.f32.mrb[0].mxu0
  %v1617 = vadd.f32 %v1563, %v1616
  %v1618 = vpop.f32.mrb[0].mxu0
  %1619 = vdwg.mxu0
  %v1620 = vadd.f32 %v966, %v1614
  %v1621 = vadd.f32 %v967, %v1617
  %v1622 = vsel %vm112, %v1620, 0.0
  %1623 = vadd.xlane.f32.xlu0 %v1622
  %v1624 = vpop.xlane.xlu0 %1623
  %v1625 = vsel %vm112, %v1621, 0.0
  %1626 = vadd.xlane.f32.xlu0 %v1625
  %v1627 = vpop.xlane.xlu0 %1626
  %v1628 = vmul.f32 %v1624, %v743
  %v1629 = vmul.f32 %v1627, %v743
  %v1630 = vsub.f32 %v1620, %v1628
  %v1631 = vsub.f32 %v1621, %v1629
  %v1632 = vmul.f32 %v1630, %v1630
  %v1633 = vmul.f32 %v1631, %v1631
  %v1634 = vsel %vm112, %v1632, 0.0
  %1635 = vadd.xlane.f32.xlu0 %v1634
  %v1636 = vpop.xlane.xlu0 %1635
  %v1637 = vsel %vm112, %v1633, 0.0
  %1638 = vadd.xlane.f32.xlu0 %v1637
  %v1639 = vpop.xlane.xlu0 %1638
  %v1640 = vmul.f32 %v1636, %v743
  %v1641 = vmul.f32 %v1639, %v743
  %v1642 = vadd.f32 %v1640, 1e-05
  %v1643 = vadd.f32 %v1641, 1e-05
  %v1644 = vrsqrt.pop %v1642
  %v1645 = vrsqrt.pop %v1643
  %v1646 = vmul.f32 %v1630, %v1644
  %v1647 = vmul.f32 %v1631, %v1645
  %v1648 = vlaneseq
  %v1649 = vshrl.u32 %v1648, 7
  %v1650 = vsub.s32 2, %v1649
  %v1651 = vrot.slane %v969, %v1650
  %v1652 = vmul.f32 %v1646, %v1651
  %v1653 = vmul.f32 %v1647, %v1651
  %v1654 = vlaneseq
  %v1655 = vshrl.u32 %v1654, 7
  %v1656 = vsub.s32 3, %v1655
  %v1657 = vrot.slane %v969, %v1656
  %v1658 = vadd.f32 %v1652, %v1657
  %v1659 = vadd.f32 %v1653, %v1657
  %s1660 = scalar_lea.vmem %s7, 16
  %v1661 = vld [vmem:[%s1660] sm:$0xf]
  %v1662 = vld [vmem:[%s1660 + $0x4] sm:$0xf]
  %v1663 = vld [vmem:[%s1660 + $0x8] sm:$0xf]
  %v1664 = vld [vmem:[%s1660 + $0xc] sm:$0xf]
  %s1665 = scalar_lea.vmem %s10, 1
  %v1666 = vld [vmem:[%s1665] sm:$0x1]
  %s1667 = scalar_lea.vmem %s8, 32
  %v1668 = vld [vmem:[%s1667] sm:$0xf]
  %v1669 = vld [vmem:[%s1667 + $0x4] sm:$0xf]
  %v1670 = vld [vmem:[%s1667 + $0x8] sm:$0xf]
  %v1671 = vld [vmem:[%s1667 + $0xc] sm:$0xf]
  %v1672 = vld [vmem:[%s1667 + $0x10] sm:$0xf]
  %v1673 = vld [vmem:[%s1667 + $0x14] sm:$0xf]
  %v1674 = vld [vmem:[%s1667 + $0x18] sm:$0xf]
  %v1675 = vld [vmem:[%s1667 + $0x1c] sm:$0xf]
  %v1676 = vpack.c.bf16 %v1659, %v1658
  %v1678 = vlaneseq
  %v1679 = vshrl.u32 %v1678, 7
  %v1680 = vsub.s32 0, %v1679
  %v1681 = vrot.slane %v1666, %v1680
  %v1687 = vunpack.c.l.b16 %v1661
  %v1688 = vunpack.c.l.b16 %v1662
  %v1689 = vunpack.c.l.b16 %v1663
  %v1690 = vunpack.c.l.b16 %v1664
  %v1691 = vpack.c.b16 %v1688, %v1687
  %v1692 = vpack.c.b16 %v1690, %v1689
  %v1696 = vsel %vm112, %v1676, 0
  %1698 = vmatprep.subr.bf16.mxu0 0
  %1699 = vmatpush1.bf16.msra.mxu0 %v1691
  %1700 = vmatprep.subr.bf16.mxu0 0
  %1701 = vmatpush1.bf16.msra.mxu0 %v1692
  %1702 = vmatprep.subr.bf16.mxu0 0
  %1703 = vmatpush1.bf16.msra.mxu0 0
  %1704 = vmatprep.subr.bf16.mxu0 0
  %1705 = vmatpush1.bf16.msra.mxu0 0
  %1706 = vmatprep.subr.bf16.mxu0 0
  %1707 = vmatpush1.bf16.msra.mxu0 0
  %1708 = vmatprep.subr.bf16.mxu0 0
  %1709 = vmatpush1.bf16.msra.mxu0 0
  %1710 = vmatprep.subr.bf16.mxu0 0
  %1711 = vmatpush1.bf16.msra.mxu0 0
  %1712 = vmatprep.subr.bf16.mxu0 0
  %1713 = vmatpush1.bf16.msra.mxu0 0
  %1714 = vmatprep.subr.bf16.mxu0 0
  %1715 = vmatpush1.bf16.msra.mxu0 0
  %1716 = vmatprep.subr.bf16.mxu0 0
  %1717 = vmatpush1.bf16.msra.mxu0 0
  %1718 = vmatprep.subr.bf16.mxu0 0
  %1719 = vmatpush1.bf16.msra.mxu0 0
  %1720 = vmatprep.subr.bf16.mxu0 0
  %1721 = vmatpush1.bf16.msra.mxu0 0
  %1722 = vmatprep.subr.bf16.mxu0 0
  %1723 = vmatpush1.bf16.msra.mxu0 0
  %1724 = vmatprep.subr.bf16.mxu0 0
  %1725 = vmatpush1.bf16.msra.mxu0 0
  %1726 = vmatprep.subr.bf16.mxu0 0
  %1727 = vmatpush1.bf16.msra.mxu0 0
  %1728 = vmatprep.subr.bf16.mxu0 0
  %1729 = vmatpush1.bf16.msra.mxu0 0
  %1730 = vmatprep.mubr.bf16.mxu0 0
  %1731 = vmatmul.mubr.bf16.gmra.mrb[0].mxu0 %v1696
  %v1732 = vpop.f32.mrb[0].mxu0
  %v1733 = vadd.f32 %v1681, %v1732
  %v1734 = vpop.f32.mrb[0].mxu0
  %v1735 = vpop.f32.mrb[0].mxu0
  %v1736 = vadd.f32 %v1681, %v1735
  %v1737 = vpop.f32.mrb[0].mxu0
  %1738 = vdwg.mxu0
  %v1739 = vmax.f32 %v1733, 0.0
  %v1740 = vmax.f32 %v1736, 0.0
  %v1741 = vpack.c.bf16 %v1740, %v1739
  %v1742 = vlaneseq
  %v1743 = vshrl.u32 %v1742, 7
  %v1744 = vsub.s32 1, %v1743
  %v1745 = vrot.slane %v969, %v1744
  %v1754 = vunpack.c.l.b16 %v1668
  %v1755 = vunpack.c.l.b16 %v1669
  %v1756 = vunpack.c.l.b16 %v1670
  %v1757 = vunpack.c.l.b16 %v1671
  %v1758 = vunpack.c.l.b16 %v1672
  %v1759 = vunpack.c.l.b16 %v1673
  %v1760 = vunpack.c.l.b16 %v1674
  %v1761 = vunpack.c.l.b16 %v1675
  %v1762 = vpack.c.b16 %v1755, %v1754
  %v1763 = vpack.c.b16 %v1757, %v1756
  %v1764 = vpack.c.b16 %v1759, %v1758
  %v1765 = vpack.c.b16 %v1761, %v1760
  %v1771 = vsel %vm883, %v1741, 0
  %1773 = vmatprep.subr.bf16.mxu0 0
  %1774 = vmatpush1.bf16.msra.mxu0 %v1762
  %1775 = vmatprep.subr.bf16.mxu0 0
  %1776 = vmatpush1.bf16.msra.mxu0 %v1763
  %1777 = vmatprep.subr.bf16.mxu0 0
  %1778 = vmatpush1.bf16.msra.mxu0 %v1764
  %1779 = vmatprep.subr.bf16.mxu0 0
  %1780 = vmatpush1.bf16.msra.mxu0 %v1765
  %1781 = vmatprep.subr.bf16.mxu0 0
  %1782 = vmatpush1.bf16.msra.mxu0 0
  %1783 = vmatprep.subr.bf16.mxu0 0
  %1784 = vmatpush1.bf16.msra.mxu0 0
  %1785 = vmatprep.subr.bf16.mxu0 0
  %1786 = vmatpush1.bf16.msra.mxu0 0
  %1787 = vmatprep.subr.bf16.mxu0 0
  %1788 = vmatpush1.bf16.msra.mxu0 0
  %1789 = vmatprep.subr.bf16.mxu0 0
  %1790 = vmatpush1.bf16.msra.mxu0 0
  %1791 = vmatprep.subr.bf16.mxu0 0
  %1792 = vmatpush1.bf16.msra.mxu0 0
  %1793 = vmatprep.subr.bf16.mxu0 0
  %1794 = vmatpush1.bf16.msra.mxu0 0
  %1795 = vmatprep.subr.bf16.mxu0 0
  %1796 = vmatpush1.bf16.msra.mxu0 0
  %1797 = vmatprep.subr.bf16.mxu0 0
  %1798 = vmatpush1.bf16.msra.mxu0 0
  %1799 = vmatprep.subr.bf16.mxu0 0
  %1800 = vmatpush1.bf16.msra.mxu0 0
  %1801 = vmatprep.subr.bf16.mxu0 0
  %1802 = vmatpush1.bf16.msra.mxu0 0
  %1803 = vmatprep.subr.bf16.mxu0 0
  %1804 = vmatpush1.bf16.msra.mxu0 0
  %1805 = vmatprep.mubr.bf16.mxu0 0
  %1806 = vmatmul.mubr.bf16.gmra.mrb[0].mxu0 %v1771
  %v1807 = vpop.f32.mrb[0].mxu0
  %v1808 = vadd.f32 %v1745, %v1807
  %v1809 = vpop.f32.mrb[0].mxu0
  %v1810 = vpop.f32.mrb[0].mxu0
  %v1811 = vadd.f32 %v1745, %v1810
  %v1812 = vpop.f32.mrb[0].mxu0
  %1813 = vdwg.mxu0
  %v1814 = vadd.f32 %v1658, %v1808
  %v1815 = vadd.f32 %v1659, %v1811
  %v1816 = vsel %vm112, %v1814, 0.0
  %1817 = vadd.xlane.f32.xlu0 %v1816
  %v1818 = vpop.xlane.xlu0 %1817
  %v1819 = vsel %vm112, %v1815, 0.0
  %1820 = vadd.xlane.f32.xlu0 %v1819
  %v1821 = vpop.xlane.xlu0 %1820
  %v1822 = vmul.f32 %v1818, %v743
  %v1823 = vmul.f32 %v1821, %v743
  %v1824 = vsub.f32 %v1814, %v1822
  %v1825 = vsub.f32 %v1815, %v1823
  %v1826 = vmul.f32 %v1824, %v1824
  %v1827 = vmul.f32 %v1825, %v1825
  %v1828 = vsel %vm112, %v1826, 0.0
  %1829 = vadd.xlane.f32.xlu0 %v1828
  %v1830 = vpop.xlane.xlu0 %1829
  %v1831 = vsel %vm112, %v1827, 0.0
  %1832 = vadd.xlane.f32.xlu0 %v1831
  %v1833 = vpop.xlane.xlu0 %1832
  %v1834 = vmul.f32 %v1830, %v743
  %v1835 = vmul.f32 %v1833, %v743
  %v1836 = vadd.f32 %v1834, 1e-05
  %v1837 = vadd.f32 %v1835, 1e-05
  %v1838 = vrsqrt.pop %v1836
  %v1839 = vrsqrt.pop %v1837
  %v1840 = vmul.f32 %v1824, %v1838
  %v1841 = vmul.f32 %v1825, %v1839
  %v1842 = vlaneseq
  %v1843 = vshrl.u32 %v1842, 7
  %v1844 = vsub.s32 4, %v1843
  %v1845 = vrot.slane %v969, %v1844
  %v1846 = vmul.f32 %v1840, %v1845
  %v1847 = vmul.f32 %v1841, %v1845
  %v1848 = vlaneseq
  %v1849 = vshrl.u32 %v1848, 7
  %v1850 = vsub.s32 5, %v1849
  %v1851 = vrot.slane %v969, %v1850
  %v1852 = vadd.f32 %v1846, %v1851
  %v1853 = vadd.f32 %v1847, %v1851
  %v1854 = vld [vmem:[%s1] sm:$0xff]
  %v1855 = vld [vmem:[%s1 + $0x8] sm:$0xff]
  %v1856 = vld [vmem:[%s20] sm:$0xff]
  %v1857 = vld [vmem:[%s20 + $0x8] sm:$0x1]
  %v1858 = vld [vmem:[%s18] sm:$0x3]
  %v1859 = vld [vmem:[%s12] sm:$0xf]
  %v1860 = vld [vmem:[%s12 + $0x4] sm:$0xf]
  %v1861 = vld [vmem:[%s12 + $0x8] sm:$0xf]
  %v1862 = vld [vmem:[%s12 + $0xc] sm:$0xf]
  %v1863 = vld [vmem:[%s13] sm:$0xf]
  %v1864 = vld [vmem:[%s13 + $0x4] sm:$0xf]
  %v1865 = vld [vmem:[%s13 + $0x8] sm:$0xf]
  %v1866 = vld [vmem:[%s13 + $0xc] sm:$0xf]
  %v1867 = vpack.c.bf16 %v1855, %v1854
  %v1868 = vlaneseq
  %v1869 = vshrl.u32 %v1868, 7
  %v1870 = vsub.s32 0, %v1869
  %v1871 = vrot.slane %v1858, %v1870
  %v1876 = vunpack.c.l.b16 %v1859
  %v1877 = vunpack.c.l.b16 %v1860
  %v1878 = vunpack.c.l.b16 %v1861
  %v1879 = vunpack.c.l.b16 %v1862
  %v1880 = vpack.c.b16 %v1877, %v1876
  %v1881 = vpack.c.b16 %v1879, %v1878
  %v1885 = vsel %vm112, %v1867, 0
  %1887 = vmatprep.subr.bf16.mxu0 0
  %1888 = vmatpush1.bf16.msra.mxu0 %v1880
  %1889 = vmatprep.subr.bf16.mxu0 0
  %1890 = vmatpush1.bf16.msra.mxu0 %v1881
  %1891 = vmatprep.subr.bf16.mxu0 0
  %1892 = vmatpush1.bf16.msra.mxu0 0
  %1893 = vmatprep.subr.bf16.mxu0 0
  %1894 = vmatpush1.bf16.msra.mxu0 0
  %1895 = vmatprep.subr.bf16.mxu0 0
  %1896 = vmatpush1.bf16.msra.mxu0 0
  %1897 = vmatprep.subr.bf16.mxu0 0
  %1898 = vmatpush1.bf16.msra.mxu0 0
  %1899 = vmatprep.subr.bf16.mxu0 0
  %1900 = vmatpush1.bf16.msra.mxu0 0
  %1901 = vmatprep.subr.bf16.mxu0 0
  %1902 = vmatpush1.bf16.msra.mxu0 0
  %1903 = vmatprep.subr.bf16.mxu0 0
  %1904 = vmatpush1.bf16.msra.mxu0 0
  %1905 = vmatprep.subr.bf16.mxu0 0
  %1906 = vmatpush1.bf16.msra.mxu0 0
  %1907 = vmatprep.subr.bf16.mxu0 0
  %1908 = vmatpush1.bf16.msra.mxu0 0
  %1909 = vmatprep.subr.bf16.mxu0 0
  %1910 = vmatpush1.bf16.msra.mxu0 0
  %1911 = vmatprep.subr.bf16.mxu0 0
  %1912 = vmatpush1.bf16.msra.mxu0 0
  %1913 = vmatprep.subr.bf16.mxu0 0
  %1914 = vmatpush1.bf16.msra.mxu0 0
  %1915 = vmatprep.subr.bf16.mxu0 0
  %1916 = vmatpush1.bf16.msra.mxu0 0
  %1917 = vmatprep.subr.bf16.mxu0 0
  %1918 = vmatpush1.bf16.msra.mxu0 0
  %1919 = vmatprep.mubr.bf16.mxu0 0
  %1920 = vmatmul.mubr.bf16.gmra.mrb[0].mxu0 %v1885
  %v1921 = vpop.f32.mrb[0].mxu0
  %v1922 = vadd.f32 %v1871, %v1921
  %v1923 = vpop.f32.mrb[0].mxu0
  %v1924 = vpop.f32.mrb[0].mxu0
  %v1925 = vadd.f32 %v1871, %v1924
  %v1926 = vpop.f32.mrb[0].mxu0
  %1927 = vdwg.mxu0
  %v1928 = vpack.c.bf16 %v1925, %v1922
  %1930 = vrot.lane.b32.xlu0 %v1928, 96
  %v1931 = vpop.permute.xlu0 %1930
  %v1933 = vsel %vm161, %v1928, 0
  %v1936 = vsel %vm161, %v1931, 0
  %1938 = vmatprep.subr.bf16.mxu0 0
  %1939 = vmatpush1.bf16.xpose.msra.mxu0 %v1936
  %1940 = vmatprep.subr.bf16.mxu0 0
  %1941 = vmatpush1.bf16.xpose.msra.mxu0 0
  %1942 = vmatprep.subr.bf16.mxu0 0
  %1943 = vmatpush1.bf16.xpose.msra.mxu0 0
  %1944 = vmatprep.subr.bf16.mxu0 0
  %1945 = vmatpush1.bf16.xpose.msra.mxu0 0
  %1946 = vmatprep.subr.bf16.mxu0 0
  %1947 = vmatpush1.bf16.xpose.msra.mxu0 0
  %1948 = vmatprep.subr.bf16.mxu0 0
  %1949 = vmatpush1.bf16.xpose.msra.mxu0 0
  %1950 = vmatprep.subr.bf16.mxu0 0
  %1951 = vmatpush1.bf16.xpose.msra.mxu0 0
  %1952 = vmatprep.subr.bf16.mxu0 0
  %1953 = vmatpush1.bf16.xpose.msra.mxu0 0
  %1954 = vmatprep.subr.bf16.mxu0 0
  %1955 = vmatpush1.bf16.xpose.msra.mxu0 0
  %1956 = vmatprep.subr.bf16.mxu0 0
  %1957 = vmatpush1.bf16.xpose.msra.mxu0 0
  %1958 = vmatprep.subr.bf16.mxu0 0
  %1959 = vmatpush1.bf16.xpose.msra.mxu0 0
  %1960 = vmatprep.subr.bf16.mxu0 0
  %1961 = vmatpush1.bf16.xpose.msra.mxu0 0
  %1962 = vmatprep.subr.bf16.mxu0 0
  %1963 = vmatpush1.bf16.xpose.msra.mxu0 0
  %1964 = vmatprep.subr.bf16.mxu0 0
  %1965 = vmatpush1.bf16.xpose.msra.mxu0 0
  %1966 = vmatprep.subr.bf16.mxu0 0
  %1967 = vmatpush1.bf16.xpose.msra.mxu0 0
  %1968 = vmatprep.subr.bf16.mxu0 0
  %1969 = vmatpush1.bf16.xpose.msra.mxu0 0
  %1970 = vmatprep.mubr.bf16.mxu0 0
  %1971 = vmatmul.mubr.bf16.gmra.mrb[0].mxu0 %v1933
  %v1972 = vpop.f32.mrb[0].mxu0
  %v1973 = vadd.f32 %v77, %v1972
  %v1974 = vpop.f32.mrb[0].mxu0
  %v1975 = vpop.f32.mrb[0].mxu0
  %v1976 = vadd.f32 %v78, %v1975
  %v1977 = vpop.f32.mrb[0].mxu0
  %1978 = vdwg.mxu0
  %v1979 = vsel %vm209, %v1973, -inf
  %1980 = vmax.xlane.f32.xlu0 %v1979
  %v1981 = vpop.xlane.xlu0 %1980
  %v1982 = vsel %vm209, %v1976, -inf
  %1983 = vmax.xlane.f32.xlu0 %v1982
  %v1984 = vpop.xlane.xlu0 %1983
  %v1985 = vsub.f32 %v1973, %v1981
  %v1986 = vsub.f32 %v1976, %v1984
  %v1987 = vmul.f32 %v1985, 1.442695
  %v1988 = vpow.pop %v1987
  %v1989 = vmul.f32 %v1986, 1.442695
  %v1990 = vpow.pop %v1989
  %v1991 = vsel %vm209, %v1988, 0.0
  %1992 = vadd.xlane.f32.xlu0 %v1991
  %v1993 = vpop.xlane.xlu0 %1992
  %v1994 = vsel %vm209, %v1990, 0.0
  %1995 = vadd.xlane.f32.xlu0 %v1994
  %v1996 = vpop.xlane.xlu0 %1995
  %v1997 = vrcp.pop %v1993
  %v1998 = vrcp.pop %v1996
  %v1999 = vmul.f32 %v1988, %v1997
  %v2000 = vmul.f32 %v1990, %v1998
  %v2001 = vpack.c.bf16 %v2000, %v1999
  %2002 = vrot.lane.b32.xlu0 %v1928, 64
  %v2003 = vpop.permute.xlu0 %2002
  %v2006 = vsel %vm209, %v2001, 0
  %2008 = vmatprep.subr.bf16.mxu0 0
  %2009 = vmatpush1.bf16.msra.mxu0 %v2003
  %2010 = vmatprep.subr.bf16.mxu0 0
  %2011 = vmatpush1.bf16.msra.mxu0 0
  %2012 = vmatprep.subr.bf16.mxu0 0
  %2013 = vmatpush1.bf16.msra.mxu0 0
  %2014 = vmatprep.subr.bf16.mxu0 0
  %2015 = vmatpush1.bf16.msra.mxu0 0
  %2016 = vmatprep.subr.bf16.mxu0 0
  %2017 = vmatpush1.bf16.msra.mxu0 0
  %2018 = vmatprep.subr.bf16.mxu0 0
  %2019 = vmatpush1.bf16.msra.mxu0 0
  %2020 = vmatprep.subr.bf16.mxu0 0
  %2021 = vmatpush1.bf16.msra.mxu0 0
  %2022 = vmatprep.subr.bf16.mxu0 0
  %2023 = vmatpush1.bf16.msra.mxu0 0
  %2024 = vmatprep.subr.bf16.mxu0 0
  %2025 = vmatpush1.bf16.msra.mxu0 0
  %2026 = vmatprep.subr.bf16.mxu0 0
  %2027 = vmatpush1.bf16.msra.mxu0 0
  %2028 = vmatprep.subr.bf16.mxu0 0
  %2029 = vmatpush1.bf16.msra.mxu0 0
  %2030 = vmatprep.subr.bf16.mxu0 0
  %2031 = vmatpush1.bf16.msra.mxu0 0
  %2032 = vmatprep.subr.bf16.mxu0 0
  %2033 = vmatpush1.bf16.msra.mxu0 0
  %2034 = vmatprep.subr.bf16.mxu0 0
  %2035 = vmatpush1.bf16.msra.mxu0 0
  %2036 = vmatprep.subr.bf16.mxu0 0
  %2037 = vmatpush1.bf16.msra.mxu0 0
  %2038 = vmatprep.subr.bf16.mxu0 0
  %2039 = vmatpush1.bf16.msra.mxu0 0
  %2040 = vmatprep.mubr.bf16.mxu0 0
  %2041 = vmatmul.mubr.bf16.gmra.mrb[0].mxu0 %v2006
  %v2042 = vpop.f32.mrb[0].mxu0
  %v2043 = vadd.f32 0.0, %v2042
  %v2044 = vpop.f32.mrb[0].mxu0
  %v2045 = vpop.f32.mrb[0].mxu0
  %v2046 = vadd.f32 0.0, %v2045
  %v2047 = vpop.f32.mrb[0].mxu0
  %2048 = vdwg.mxu0
  %2049 = vrot.lane.b32.xlu0 %v1928, 120
  %v2050 = vpop.permute.xlu0 %2049
  %2051 = vrot.lane.b32.xlu0 %v1928, 88
  %v2052 = vpop.permute.xlu0 %2051
  %v2054 = vsel %vm161, %v2050, 0
  %v2057 = vsel %vm161, %v2052, 0
  %2059 = vmatprep.subr.bf16.mxu0 0
  %2060 = vmatpush1.bf16.xpose.msra.mxu0 %v2057
  %2061 = vmatprep.subr.bf16.mxu0 0
  %2062 = vmatpush1.bf16.xpose.msra.mxu0 0
  %2063 = vmatprep.subr.bf16.mxu0 0
  %2064 = vmatpush1.bf16.xpose.msra.mxu0 0
  %2065 = vmatprep.subr.bf16.mxu0 0
  %2066 = vmatpush1.bf16.xpose.msra.mxu0 0
  %2067 = vmatprep.subr.bf16.mxu0 0
  %2068 = vmatpush1.bf16.xpose.msra.mxu0 0
  %2069 = vmatprep.subr.bf16.mxu0 0
  %2070 = vmatpush1.bf16.xpose.msra.mxu0 0
  %2071 = vmatprep.subr.bf16.mxu0 0
  %2072 = vmatpush1.bf16.xpose.msra.mxu0 0
  %2073 = vmatprep.subr.bf16.mxu0 0
  %2074 = vmatpush1.bf16.xpose.msra.mxu0 0
  %2075 = vmatprep.subr.bf16.mxu0 0
  %2076 = vmatpush1.bf16.xpose.msra.mxu0 0
  %2077 = vmatprep.subr.bf16.mxu0 0
  %2078 = vmatpush1.bf16.xpose.msra.mxu0 0
  %2079 = vmatprep.subr.bf16.mxu0 0
  %2080 = vmatpush1.bf16.xpose.msra.mxu0 0
  %2081 = vmatprep.subr.bf16.mxu0 0
  %2082 = vmatpush1.bf16.xpose.msra.mxu0 0
  %2083 = vmatprep.subr.bf16.mxu0 0
  %2084 = vmatpush1.bf16.xpose.msra.mxu0 0
  %2085 = vmatprep.subr.bf16.mxu0 0
  %2086 = vmatpush1.bf16.xpose.msra.mxu0 0
  %2087 = vmatprep.subr.bf16.mxu0 0
  %2088 = vmatpush1.bf16.xpose.msra.mxu0 0
  %2089 = vmatprep.subr.bf16.mxu0 0
  %2090 = vmatpush1.bf16.xpose.msra.mxu0 0
  %2091 = vmatprep.mubr.bf16.mxu0 0
  %2092 = vmatmul.mubr.bf16.gmra.mrb[0].mxu0 %v2054
  %v2093 = vpop.f32.mrb[0].mxu0
  %v2094 = vadd.f32 %v77, %v2093
  %v2095 = vpop.f32.mrb[0].mxu0
  %v2096 = vpop.f32.mrb[0].mxu0
  %v2097 = vadd.f32 %v78, %v2096
  %v2098 = vpop.f32.mrb[0].mxu0
  %2099 = vdwg.mxu0
  %v2100 = vsel %vm209, %v2094, -inf
  %2101 = vmax.xlane.f32.xlu0 %v2100
  %v2102 = vpop.xlane.xlu0 %2101
  %v2103 = vsel %vm209, %v2097, -inf
  %2104 = vmax.xlane.f32.xlu0 %v2103
  %v2105 = vpop.xlane.xlu0 %2104
  %v2106 = vsub.f32 %v2094, %v2102
  %v2107 = vsub.f32 %v2097, %v2105
  %v2108 = vmul.f32 %v2106, 1.442695
  %v2109 = vpow.pop %v2108
  %v2110 = vmul.f32 %v2107, 1.442695
  %v2111 = vpow.pop %v2110
  %v2112 = vsel %vm209, %v2109, 0.0
  %2113 = vadd.xlane.f32.xlu0 %v2112
  %v2114 = vpop.xlane.xlu0 %2113
  %v2115 = vsel %vm209, %v2111, 0.0
  %2116 = vadd.xlane.f32.xlu0 %v2115
  %v2117 = vpop.xlane.xlu0 %2116
  %v2118 = vrcp.pop %v2114
  %v2119 = vrcp.pop %v2117
  %v2120 = vmul.f32 %v2109, %v2118
  %v2121 = vmul.f32 %v2111, %v2119
  %v2122 = vpack.c.bf16 %v2121, %v2120
  %2123 = vrot.lane.b32.xlu0 %v1928, 56
  %v2124 = vpop.permute.xlu0 %2123
  %v2127 = vsel %vm209, %v2122, 0
  %2129 = vmatprep.subr.bf16.mxu0 0
  %2130 = vmatpush1.bf16.msra.mxu0 %v2124
  %2131 = vmatprep.subr.bf16.mxu0 0
  %2132 = vmatpush1.bf16.msra.mxu0 0
  %2133 = vmatprep.subr.bf16.mxu0 0
  %2134 = vmatpush1.bf16.msra.mxu0 0
  %2135 = vmatprep.subr.bf16.mxu0 0
  %2136 = vmatpush1.bf16.msra.mxu0 0
  %2137 = vmatprep.subr.bf16.mxu0 0
  %2138 = vmatpush1.bf16.msra.mxu0 0
  %2139 = vmatprep.subr.bf16.mxu0 0
  %2140 = vmatpush1.bf16.msra.mxu0 0
  %2141 = vmatprep.subr.bf16.mxu0 0
  %2142 = vmatpush1.bf16.msra.mxu0 0
  %2143 = vmatprep.subr.bf16.mxu0 0
  %2144 = vmatpush1.bf16.msra.mxu0 0
  %2145 = vmatprep.subr.bf16.mxu0 0
  %2146 = vmatpush1.bf16.msra.mxu0 0
  %2147 = vmatprep.subr.bf16.mxu0 0
  %2148 = vmatpush1.bf16.msra.mxu0 0
  %2149 = vmatprep.subr.bf16.mxu0 0
  %2150 = vmatpush1.bf16.msra.mxu0 0
  %2151 = vmatprep.subr.bf16.mxu0 0
  %2152 = vmatpush1.bf16.msra.mxu0 0
  %2153 = vmatprep.subr.bf16.mxu0 0
  %2154 = vmatpush1.bf16.msra.mxu0 0
  %2155 = vmatprep.subr.bf16.mxu0 0
  %2156 = vmatpush1.bf16.msra.mxu0 0
  %2157 = vmatprep.subr.bf16.mxu0 0
  %2158 = vmatpush1.bf16.msra.mxu0 0
  %2159 = vmatprep.subr.bf16.mxu0 0
  %2160 = vmatpush1.bf16.msra.mxu0 0
  %2161 = vmatprep.mubr.bf16.mxu0 0
  %2162 = vmatmul.mubr.bf16.gmra.mrb[0].mxu0 %v2127
  %v2163 = vpop.f32.mrb[0].mxu0
  %v2164 = vadd.f32 0.0, %v2163
  %v2165 = vpop.f32.mrb[0].mxu0
  %v2166 = vpop.f32.mrb[0].mxu0
  %v2167 = vadd.f32 0.0, %v2166
  %v2168 = vpop.f32.mrb[0].mxu0
  %2169 = vdwg.mxu0
  %2170 = vrot.lane.b32.xlu0 %v1928, 112
  %v2171 = vpop.permute.xlu0 %2170
  %2172 = vrot.lane.b32.xlu0 %v1928, 80
  %v2173 = vpop.permute.xlu0 %2172
  %v2175 = vsel %vm161, %v2171, 0
  %v2178 = vsel %vm161, %v2173, 0
  %2180 = vmatprep.subr.bf16.mxu0 0
  %2181 = vmatpush1.bf16.xpose.msra.mxu0 %v2178
  %2182 = vmatprep.subr.bf16.mxu0 0
  %2183 = vmatpush1.bf16.xpose.msra.mxu0 0
  %2184 = vmatprep.subr.bf16.mxu0 0
  %2185 = vmatpush1.bf16.xpose.msra.mxu0 0
  %2186 = vmatprep.subr.bf16.mxu0 0
  %2187 = vmatpush1.bf16.xpose.msra.mxu0 0
  %2188 = vmatprep.subr.bf16.mxu0 0
  %2189 = vmatpush1.bf16.xpose.msra.mxu0 0
  %2190 = vmatprep.subr.bf16.mxu0 0
  %2191 = vmatpush1.bf16.xpose.msra.mxu0 0
  %2192 = vmatprep.subr.bf16.mxu0 0
  %2193 = vmatpush1.bf16.xpose.msra.mxu0 0
  %2194 = vmatprep.subr.bf16.mxu0 0
  %2195 = vmatpush1.bf16.xpose.msra.mxu0 0
  %2196 = vmatprep.subr.bf16.mxu0 0
  %2197 = vmatpush1.bf16.xpose.msra.mxu0 0
  %2198 = vmatprep.subr.bf16.mxu0 0
  %2199 = vmatpush1.bf16.xpose.msra.mxu0 0
  %2200 = vmatprep.subr.bf16.mxu0 0
  %2201 = vmatpush1.bf16.xpose.msra.mxu0 0
  %2202 = vmatprep.subr.bf16.mxu0 0
  %2203 = vmatpush1.bf16.xpose.msra.mxu0 0
  %2204 = vmatprep.subr.bf16.mxu0 0
  %2205 = vmatpush1.bf16.xpose.msra.mxu0 0
  %2206 = vmatprep.subr.bf16.mxu0 0
  %2207 = vmatpush1.bf16.xpose.msra.mxu0 0
  %2208 = vmatprep.subr.bf16.mxu0 0
  %2209 = vmatpush1.bf16.xpose.msra.mxu0 0
  %2210 = vmatprep.subr.bf16.mxu0 0
  %2211 = vmatpush1.bf16.xpose.msra.mxu0 0
  %2212 = vmatprep.mubr.bf16.mxu0 0
  %2213 = vmatmul.mubr.bf16.gmra.mrb[0].mxu0 %v2175
  %v2214 = vpop.f32.mrb[0].mxu0
  %v2215 = vadd.f32 %v77, %v2214
  %v2216 = vpop.f32.mrb[0].mxu0
  %v2217 = vpop.f32.mrb[0].mxu0
  %v2218 = vadd.f32 %v78, %v2217
  %v2219 = vpop.f32.mrb[0].mxu0
  %2220 = vdwg.mxu0
  %v2221 = vsel %vm209, %v2215, -inf
  %2222 = vmax.xlane.f32.xlu0 %v2221
  %v2223 = vpop.xlane.xlu0 %2222
  %v2224 = vsel %vm209, %v2218, -inf
  %2225 = vmax.xlane.f32.xlu0 %v2224
  %v2226 = vpop.xlane.xlu0 %2225
  %v2227 = vsub.f32 %v2215, %v2223
  %v2228 = vsub.f32 %v2218, %v2226
  %v2229 = vmul.f32 %v2227, 1.442695
  %v2230 = vpow.pop %v2229
  %v2231 = vmul.f32 %v2228, 1.442695
  %v2232 = vpow.pop %v2231
  %v2233 = vsel %vm209, %v2230, 0.0
  %2234 = vadd.xlane.f32.xlu0 %v2233
  %v2235 = vpop.xlane.xlu0 %2234
  %v2236 = vsel %vm209, %v2232, 0.0
  %2237 = vadd.xlane.f32.xlu0 %v2236
  %v2238 = vpop.xlane.xlu0 %2237
  %v2239 = vrcp.pop %v2235
  %v2240 = vrcp.pop %v2238
  %v2241 = vmul.f32 %v2230, %v2239
  %v2242 = vmul.f32 %v2232, %v2240
  %v2243 = vpack.c.bf16 %v2242, %v2241
  %2244 = vrot.lane.b32.xlu0 %v1928, 48
  %v2245 = vpop.permute.xlu0 %2244
  %v2248 = vsel %vm209, %v2243, 0
  %2250 = vmatprep.subr.bf16.mxu0 0
  %2251 = vmatpush1.bf16.msra.mxu0 %v2245
  %2252 = vmatprep.subr.bf16.mxu0 0
  %2253 = vmatpush1.bf16.msra.mxu0 0
  %2254 = vmatprep.subr.bf16.mxu0 0
  %2255 = vmatpush1.bf16.msra.mxu0 0
  %2256 = vmatprep.subr.bf16.mxu0 0
  %2257 = vmatpush1.bf16.msra.mxu0 0
  %2258 = vmatprep.subr.bf16.mxu0 0
  %2259 = vmatpush1.bf16.msra.mxu0 0
  %2260 = vmatprep.subr.bf16.mxu0 0
  %2261 = vmatpush1.bf16.msra.mxu0 0
  %2262 = vmatprep.subr.bf16.mxu0 0
  %2263 = vmatpush1.bf16.msra.mxu0 0
  %2264 = vmatprep.subr.bf16.mxu0 0
  %2265 = vmatpush1.bf16.msra.mxu0 0
  %2266 = vmatprep.subr.bf16.mxu0 0
  %2267 = vmatpush1.bf16.msra.mxu0 0
  %2268 = vmatprep.subr.bf16.mxu0 0
  %2269 = vmatpush1.bf16.msra.mxu0 0
  %2270 = vmatprep.subr.bf16.mxu0 0
  %2271 = vmatpush1.bf16.msra.mxu0 0
  %2272 = vmatprep.subr.bf16.mxu0 0
  %2273 = vmatpush1.bf16.msra.mxu0 0
  %2274 = vmatprep.subr.bf16.mxu0 0
  %2275 = vmatpush1.bf16.msra.mxu0 0
  %2276 = vmatprep.subr.bf16.mxu0 0
  %2277 = vmatpush1.bf16.msra.mxu0 0
  %2278 = vmatprep.subr.bf16.mxu0 0
  %2279 = vmatpush1.bf16.msra.mxu0 0
  %2280 = vmatprep.subr.bf16.mxu0 0
  %2281 = vmatpush1.bf16.msra.mxu0 0
  %2282 = vmatprep.mubr.bf16.mxu0 0
  %2283 = vmatmul.mubr.bf16.gmra.mrb[0].mxu0 %v2248
  %v2284 = vpop.f32.mrb[0].mxu0
  %v2285 = vadd.f32 0.0, %v2284
  %v2286 = vpop.f32.mrb[0].mxu0
  %v2287 = vpop.f32.mrb[0].mxu0
  %v2288 = vadd.f32 0.0, %v2287
  %v2289 = vpop.f32.mrb[0].mxu0
  %2290 = vdwg.mxu0
  %2291 = vrot.lane.b32.xlu0 %v1928, 104
  %v2292 = vpop.permute.xlu0 %2291
  %2293 = vrot.lane.b32.xlu0 %v1928, 72
  %v2294 = vpop.permute.xlu0 %2293
  %v2296 = vsel %vm161, %v2292, 0
  %v2299 = vsel %vm161, %v2294, 0
  %2301 = vmatprep.subr.bf16.mxu0 0
  %2302 = vmatpush1.bf16.xpose.msra.mxu0 %v2299
  %2303 = vmatprep.subr.bf16.mxu0 0
  %2304 = vmatpush1.bf16.xpose.msra.mxu0 0
  %2305 = vmatprep.subr.bf16.mxu0 0
  %2306 = vmatpush1.bf16.xpose.msra.mxu0 0
  %2307 = vmatprep.subr.bf16.mxu0 0
  %2308 = vmatpush1.bf16.xpose.msra.mxu0 0
  %2309 = vmatprep.subr.bf16.mxu0 0
  %2310 = vmatpush1.bf16.xpose.msra.mxu0 0
  %2311 = vmatprep.subr.bf16.mxu0 0
  %2312 = vmatpush1.bf16.xpose.msra.mxu0 0
  %2313 = vmatprep.subr.bf16.mxu0 0
  %2314 = vmatpush1.bf16.xpose.msra.mxu0 0
  %2315 = vmatprep.subr.bf16.mxu0 0
  %2316 = vmatpush1.bf16.xpose.msra.mxu0 0
  %2317 = vmatprep.subr.bf16.mxu0 0
  %2318 = vmatpush1.bf16.xpose.msra.mxu0 0
  %2319 = vmatprep.subr.bf16.mxu0 0
  %2320 = vmatpush1.bf16.xpose.msra.mxu0 0
  %2321 = vmatprep.subr.bf16.mxu0 0
  %2322 = vmatpush1.bf16.xpose.msra.mxu0 0
  %2323 = vmatprep.subr.bf16.mxu0 0
  %2324 = vmatpush1.bf16.xpose.msra.mxu0 0
  %2325 = vmatprep.subr.bf16.mxu0 0
  %2326 = vmatpush1.bf16.xpose.msra.mxu0 0
  %2327 = vmatprep.subr.bf16.mxu0 0
  %2328 = vmatpush1.bf16.xpose.msra.mxu0 0
  %2329 = vmatprep.subr.bf16.mxu0 0
  %2330 = vmatpush1.bf16.xpose.msra.mxu0 0
  %2331 = vmatprep.subr.bf16.mxu0 0
  %2332 = vmatpush1.bf16.xpose.msra.mxu0 0
  %2333 = vmatprep.mubr.bf16.mxu0 0
  %2334 = vmatmul.mubr.bf16.gmra.mrb[0].mxu0 %v2296
  %v2335 = vpop.f32.mrb[0].mxu0
  %v2336 = vadd.f32 %v77, %v2335
  %v2337 = vpop.f32.mrb[0].mxu0
  %v2338 = vpop.f32.mrb[0].mxu0
  %v2339 = vadd.f32 %v78, %v2338
  %v2340 = vpop.f32.mrb[0].mxu0
  %2341 = vdwg.mxu0
  %v2342 = vsel %vm209, %v2336, -inf
  %2343 = vmax.xlane.f32.xlu0 %v2342
  %v2344 = vpop.xlane.xlu0 %2343
  %v2345 = vsel %vm209, %v2339, -inf
  %2346 = vmax.xlane.f32.xlu0 %v2345
  %v2347 = vpop.xlane.xlu0 %2346
  %v2348 = vsub.f32 %v2336, %v2344
  %v2349 = vsub.f32 %v2339, %v2347
  %v2350 = vmul.f32 %v2348, 1.442695
  %v2351 = vpow.pop %v2350
  %v2352 = vmul.f32 %v2349, 1.442695
  %v2353 = vpow.pop %v2352
  %v2354 = vsel %vm209, %v2351, 0.0
  %2355 = vadd.xlane.f32.xlu0 %v2354
  %v2356 = vpop.xlane.xlu0 %2355
  %v2357 = vsel %vm209, %v2353, 0.0
  %2358 = vadd.xlane.f32.xlu0 %v2357
  %v2359 = vpop.xlane.xlu0 %2358
  %v2360 = vrcp.pop %v2356
  %v2361 = vrcp.pop %v2359
  %v2362 = vmul.f32 %v2351, %v2360
  %v2363 = vmul.f32 %v2353, %v2361
  %v2364 = vpack.c.bf16 %v2363, %v2362
  %2365 = vrot.lane.b32.xlu0 %v1928, 40
  %v2366 = vpop.permute.xlu0 %2365
  %v2369 = vsel %vm209, %v2364, 0
  %2371 = vmatprep.subr.bf16.mxu0 0
  %2372 = vmatpush1.bf16.msra.mxu0 %v2366
  %2373 = vmatprep.subr.bf16.mxu0 0
  %2374 = vmatpush1.bf16.msra.mxu0 0
  %2375 = vmatprep.subr.bf16.mxu0 0
  %2376 = vmatpush1.bf16.msra.mxu0 0
  %2377 = vmatprep.subr.bf16.mxu0 0
  %2378 = vmatpush1.bf16.msra.mxu0 0
  %2379 = vmatprep.subr.bf16.mxu0 0
  %2380 = vmatpush1.bf16.msra.mxu0 0
  %2381 = vmatprep.subr.bf16.mxu0 0
  %2382 = vmatpush1.bf16.msra.mxu0 0
  %2383 = vmatprep.subr.bf16.mxu0 0
  %2384 = vmatpush1.bf16.msra.mxu0 0
  %2385 = vmatprep.subr.bf16.mxu0 0
  %2386 = vmatpush1.bf16.msra.mxu0 0
  %2387 = vmatprep.subr.bf16.mxu0 0
  %2388 = vmatpush1.bf16.msra.mxu0 0
  %2389 = vmatprep.subr.bf16.mxu0 0
  %2390 = vmatpush1.bf16.msra.mxu0 0
  %2391 = vmatprep.subr.bf16.mxu0 0
  %2392 = vmatpush1.bf16.msra.mxu0 0
  %2393 = vmatprep.subr.bf16.mxu0 0
  %2394 = vmatpush1.bf16.msra.mxu0 0
  %2395 = vmatprep.subr.bf16.mxu0 0
  %2396 = vmatpush1.bf16.msra.mxu0 0
  %2397 = vmatprep.subr.bf16.mxu0 0
  %2398 = vmatpush1.bf16.msra.mxu0 0
  %2399 = vmatprep.subr.bf16.mxu0 0
  %2400 = vmatpush1.bf16.msra.mxu0 0
  %2401 = vmatprep.subr.bf16.mxu0 0
  %2402 = vmatpush1.bf16.msra.mxu0 0
  %2403 = vmatprep.mubr.bf16.mxu0 0
  %2404 = vmatmul.mubr.bf16.gmra.mrb[0].mxu0 %v2369
  %v2405 = vpop.f32.mrb[0].mxu0
  %v2406 = vadd.f32 0.0, %v2405
  %v2407 = vpop.f32.mrb[0].mxu0
  %v2408 = vpop.f32.mrb[0].mxu0
  %v2409 = vadd.f32 0.0, %v2408
  %v2410 = vpop.f32.mrb[0].mxu0
  %2411 = vdwg.mxu0
  %2414 = vrot.lane.b32.xlu0 %v2164, 8
  %v2415 = vpop.permute.xlu0 %2414
  %2416 = vrot.lane.b32.xlu0 %v2167, 8
  %v2417 = vpop.permute.xlu0 %2416
  %2422 = vrot.lane.b32.xlu0 %v2285, 16
  %v2423 = vpop.permute.xlu0 %2422
  %2424 = vrot.lane.b32.xlu0 %v2288, 16
  %v2425 = vpop.permute.xlu0 %2424
  %2430 = vrot.lane.b32.xlu0 %v2406, 24
  %v2431 = vpop.permute.xlu0 %2430
  %2432 = vrot.lane.b32.xlu0 %v2409, 24
  %v2433 = vpop.permute.xlu0 %2432
  %v2436 = vsel %vm161, %v2043, %v2415
  %v2437 = vsel %vm161, %v2046, %v2417
  %v2438 = vsel %vm209, %v2436, %v2423
  %v2439 = vsel %vm209, %v2437, %v2425
  %v2440 = vsel %vm671, %v2438, %v2431
  %v2441 = vsel %vm671, %v2439, %v2433
  %v2442 = vpack.c.bf16 %v2441, %v2440
  %v2443 = vlaneseq
  %v2444 = vshrl.u32 %v2443, 7
  %v2445 = vsub.s32 0, %v2444
  %v2446 = vrot.slane %v1856, %v2445
  %v2451 = vunpack.c.l.b16 %v1863
  %v2452 = vunpack.c.l.b16 %v1864
  %v2453 = vunpack.c.l.b16 %v1865
  %v2454 = vunpack.c.l.b16 %v1866
  %v2455 = vpack.c.b16 %v2452, %v2451
  %v2456 = vpack.c.b16 %v2454, %v2453
  %v2460 = vsel %vm112, %v2442, 0
  %2462 = vmatprep.subr.bf16.mxu0 0
  %2463 = vmatpush1.bf16.msra.mxu0 %v2455
  %2464 = vmatprep.subr.bf16.mxu0 0
  %2465 = vmatpush1.bf16.msra.mxu0 %v2456
  %2466 = vmatprep.subr.bf16.mxu0 0
  %2467 = vmatpush1.bf16.msra.mxu0 0
  %2468 = vmatprep.subr.bf16.mxu0 0
  %2469 = vmatpush1.bf16.msra.mxu0 0
  %2470 = vmatprep.subr.bf16.mxu0 0
  %2471 = vmatpush1.bf16.msra.mxu0 0
  %2472 = vmatprep.subr.bf16.mxu0 0
  %2473 = vmatpush1.bf16.msra.mxu0 0
  %2474 = vmatprep.subr.bf16.mxu0 0
  %2475 = vmatpush1.bf16.msra.mxu0 0
  %2476 = vmatprep.subr.bf16.mxu0 0
  %2477 = vmatpush1.bf16.msra.mxu0 0
  %2478 = vmatprep.subr.bf16.mxu0 0
  %2479 = vmatpush1.bf16.msra.mxu0 0
  %2480 = vmatprep.subr.bf16.mxu0 0
  %2481 = vmatpush1.bf16.msra.mxu0 0
  %2482 = vmatprep.subr.bf16.mxu0 0
  %2483 = vmatpush1.bf16.msra.mxu0 0
  %2484 = vmatprep.subr.bf16.mxu0 0
  %2485 = vmatpush1.bf16.msra.mxu0 0
  %2486 = vmatprep.subr.bf16.mxu0 0
  %2487 = vmatpush1.bf16.msra.mxu0 0
  %2488 = vmatprep.subr.bf16.mxu0 0
  %2489 = vmatpush1.bf16.msra.mxu0 0
  %2490 = vmatprep.subr.bf16.mxu0 0
  %2491 = vmatpush1.bf16.msra.mxu0 0
  %2492 = vmatprep.subr.bf16.mxu0 0
  %2493 = vmatpush1.bf16.msra.mxu0 0
  %2494 = vmatprep.mubr.bf16.mxu0 0
  %2495 = vmatmul.mubr.bf16.gmra.mrb[0].mxu0 %v2460
  %v2496 = vpop.f32.mrb[0].mxu0
  %v2497 = vadd.f32 %v2446, %v2496
  %v2498 = vpop.f32.mrb[0].mxu0
  %v2499 = vpop.f32.mrb[0].mxu0
  %v2500 = vadd.f32 %v2446, %v2499
  %v2501 = vpop.f32.mrb[0].mxu0
  %2502 = vdwg.mxu0
  %v2503 = vadd.f32 %v1854, %v2497
  %v2504 = vadd.f32 %v1855, %v2500
  %v2505 = vsel %vm112, %v2503, 0.0
  %2506 = vadd.xlane.f32.xlu0 %v2505
  %v2507 = vpop.xlane.xlu0 %2506
  %v2508 = vsel %vm112, %v2504, 0.0
  %2509 = vadd.xlane.f32.xlu0 %v2508
  %v2510 = vpop.xlane.xlu0 %2509
  %v2511 = vmul.f32 %v2507, %v743
  %v2512 = vmul.f32 %v2510, %v743
  %v2513 = vsub.f32 %v2503, %v2511
  %v2514 = vsub.f32 %v2504, %v2512
  %v2515 = vmul.f32 %v2513, %v2513
  %v2516 = vmul.f32 %v2514, %v2514
  %v2517 = vsel %vm112, %v2515, 0.0
  %2518 = vadd.xlane.f32.xlu0 %v2517
  %v2519 = vpop.xlane.xlu0 %2518
  %v2520 = vsel %vm112, %v2516, 0.0
  %2521 = vadd.xlane.f32.xlu0 %v2520
  %v2522 = vpop.xlane.xlu0 %2521
  %v2523 = vmul.f32 %v2519, %v743
  %v2524 = vmul.f32 %v2522, %v743
  %v2525 = vadd.f32 %v2523, 1e-05
  %v2526 = vadd.f32 %v2524, 1e-05
  %v2527 = vrsqrt.pop %v2525
  %v2528 = vrsqrt.pop %v2526
  %v2529 = vmul.f32 %v2513, %v2527
  %v2530 = vmul.f32 %v2514, %v2528
  %v2531 = vlaneseq
  %v2532 = vshrl.u32 %v2531, 7
  %v2533 = vsub.s32 3, %v2532
  %v2534 = vrot.slane %v1856, %v2533
  %v2535 = vmul.f32 %v2529, %v2534
  %v2536 = vmul.f32 %v2530, %v2534
  %v2537 = vlaneseq
  %v2538 = vshrl.u32 %v2537, 7
  %v2539 = vsub.s32 4, %v2538
  %v2540 = vrot.slane %v1856, %v2539
  %v2541 = vadd.f32 %v2535, %v2540
  %v2542 = vadd.f32 %v2536, %v2540
  %v2543 = vld [vmem:[%s14] sm:$0xf]
  %v2544 = vld [vmem:[%s14 + $0x4] sm:$0xf]
  %v2545 = vld [vmem:[%s14 + $0x8] sm:$0xf]
  %v2546 = vld [vmem:[%s14 + $0xc] sm:$0xf]
  %v2547 = vld [vmem:[%s15] sm:$0xf]
  %v2548 = vld [vmem:[%s15 + $0x4] sm:$0xf]
  %v2549 = vld [vmem:[%s15 + $0x8] sm:$0xf]
  %v2550 = vld [vmem:[%s15 + $0xc] sm:$0xf]
  %v2551 = vpack.c.bf16 %v2542, %v2541
  %v2552 = vlaneseq
  %v2553 = vshrl.u32 %v2552, 7
  %v2554 = vsub.s32 1, %v2553
  %v2555 = vrot.slane %v1858, %v2554
  %v2560 = vunpack.c.l.b16 %v2543
  %v2561 = vunpack.c.l.b16 %v2544
  %v2562 = vunpack.c.l.b16 %v2545
  %v2563 = vunpack.c.l.b16 %v2546
  %v2564 = vpack.c.b16 %v2561, %v2560
  %v2565 = vpack.c.b16 %v2563, %v2562
  %v2569 = vsel %vm112, %v2551, 0
  %2571 = vmatprep.subr.bf16.mxu0 0
  %2572 = vmatpush1.bf16.msra.mxu0 %v2564
  %2573 = vmatprep.subr.bf16.mxu0 0
  %2574 = vmatpush1.bf16.msra.mxu0 %v2565
  %2575 = vmatprep.subr.bf16.mxu0 0
  %2576 = vmatpush1.bf16.msra.mxu0 0
  %2577 = vmatprep.subr.bf16.mxu0 0
  %2578 = vmatpush1.bf16.msra.mxu0 0
  %2579 = vmatprep.subr.bf16.mxu0 0
  %2580 = vmatpush1.bf16.msra.mxu0 0
  %2581 = vmatprep.subr.bf16.mxu0 0
  %2582 = vmatpush1.bf16.msra.mxu0 0
  %2583 = vmatprep.subr.bf16.mxu0 0
  %2584 = vmatpush1.bf16.msra.mxu0 0
  %2585 = vmatprep.subr.bf16.mxu0 0
  %2586 = vmatpush1.bf16.msra.mxu0 0
  %2587 = vmatprep.subr.bf16.mxu0 0
  %2588 = vmatpush1.bf16.msra.mxu0 0
  %2589 = vmatprep.subr.bf16.mxu0 0
  %2590 = vmatpush1.bf16.msra.mxu0 0
  %2591 = vmatprep.subr.bf16.mxu0 0
  %2592 = vmatpush1.bf16.msra.mxu0 0
  %2593 = vmatprep.subr.bf16.mxu0 0
  %2594 = vmatpush1.bf16.msra.mxu0 0
  %2595 = vmatprep.subr.bf16.mxu0 0
  %2596 = vmatpush1.bf16.msra.mxu0 0
  %2597 = vmatprep.subr.bf16.mxu0 0
  %2598 = vmatpush1.bf16.msra.mxu0 0
  %2599 = vmatprep.subr.bf16.mxu0 0
  %2600 = vmatpush1.bf16.msra.mxu0 0
  %2601 = vmatprep.subr.bf16.mxu0 0
  %2602 = vmatpush1.bf16.msra.mxu0 0
  %2603 = vmatprep.mubr.bf16.mxu0 0
  %2604 = vmatmul.mubr.bf16.gmra.mrb[0].mxu0 %v2569
  %v2605 = vpop.f32.mrb[0].mxu0
  %v2606 = vadd.f32 %v2555, %v2605
  %v2607 = vpop.f32.mrb[0].mxu0
  %v2608 = vpop.f32.mrb[0].mxu0
  %v2609 = vadd.f32 %v2555, %v2608
  %v2610 = vpop.f32.mrb[0].mxu0
  %2611 = vdwg.mxu0
  %v2612 = vpack.c.bf16 %v1853, %v1852
  %2613 = vrot.lane.b32.xlu0 %v2564, 96
  %v2614 = vpop.permute.xlu0 %2613
  %2615 = vrot.lane.b32.xlu0 %v2565, 96
  %v2616 = vpop.permute.xlu0 %2615
  %2620 = vrot.lane.b32.xlu0 %v2555, 96
  %v2621 = vpop.permute.xlu0 %2620
  %v2624 = vsel %vm112, %v2612, 0
  %2626 = vmatprep.subr.bf16.mxu0 0
  %2627 = vmatpush1.bf16.msra.mxu0 %v2614
  %2628 = vmatprep.subr.bf16.mxu0 0
  %2629 = vmatpush1.bf16.msra.mxu0 %v2616
  %2630 = vmatprep.subr.bf16.mxu0 0
  %2631 = vmatpush1.bf16.msra.mxu0 0
  %2632 = vmatprep.subr.bf16.mxu0 0
  %2633 = vmatpush1.bf16.msra.mxu0 0
  %2634 = vmatprep.subr.bf16.mxu0 0
  %2635 = vmatpush1.bf16.msra.mxu0 0
  %2636 = vmatprep.subr.bf16.mxu0 0
  %2637 = vmatpush1.bf16.msra.mxu0 0
  %2638 = vmatprep.subr.bf16.mxu0 0
  %2639 = vmatpush1.bf16.msra.mxu0 0
  %2640 = vmatprep.subr.bf16.mxu0 0
  %2641 = vmatpush1.bf16.msra.mxu0 0
  %2642 = vmatprep.subr.bf16.mxu0 0
  %2643 = vmatpush1.bf16.msra.mxu0 0
  %2644 = vmatprep.subr.bf16.mxu0 0
  %2645 = vmatpush1.bf16.msra.mxu0 0
  %2646 = vmatprep.subr.bf16.mxu0 0
  %2647 = vmatpush1.bf16.msra.mxu0 0
  %2648 = vmatprep.subr.bf16.mxu0 0
  %2649 = vmatpush1.bf16.msra.mxu0 0
  %2650 = vmatprep.subr.bf16.mxu0 0
  %2651 = vmatpush1.bf16.msra.mxu0 0
  %2652 = vmatprep.subr.bf16.mxu0 0
  %2653 = vmatpush1.bf16.msra.mxu0 0
  %2654 = vmatprep.subr.bf16.mxu0 0
  %2655 = vmatpush1.bf16.msra.mxu0 0
  %2656 = vmatprep.subr.bf16.mxu0 0
  %2657 = vmatpush1.bf16.msra.mxu0 0
  %2658 = vmatprep.mubr.bf16.mxu0 0
  %2659 = vmatmul.mubr.bf16.gmra.mrb[0].mxu0 %v2624
  %v2660 = vpop.f32.mrb[0].mxu0
  %v2661 = vadd.f32 %v2621, %v2660
  %v2662 = vpop.f32.mrb[0].mxu0
  %v2663 = vpop.f32.mrb[0].mxu0
  %v2664 = vadd.f32 %v2621, %v2663
  %v2665 = vpop.f32.mrb[0].mxu0
  %2666 = vdwg.mxu0
  %v2667 = vpack.c.bf16 %v2609, %v2606
  %v2668 = vpack.c.bf16 %v2664, %v2661
  %v2670 = vsel %vm161, %v2667, 0
  %v2673 = vsel %vm161, %v2668, 0
  %2675 = vmatprep.subr.bf16.mxu0 0
  %2676 = vmatpush1.bf16.xpose.msra.mxu0 %v2673
  %2677 = vmatprep.subr.bf16.mxu0 0
  %2678 = vmatpush1.bf16.xpose.msra.mxu0 0
  %2679 = vmatprep.subr.bf16.mxu0 0
  %2680 = vmatpush1.bf16.xpose.msra.mxu0 0
  %2681 = vmatprep.subr.bf16.mxu0 0
  %2682 = vmatpush1.bf16.xpose.msra.mxu0 0
  %2683 = vmatprep.subr.bf16.mxu0 0
  %2684 = vmatpush1.bf16.xpose.msra.mxu0 0
  %2685 = vmatprep.subr.bf16.mxu0 0
  %2686 = vmatpush1.bf16.xpose.msra.mxu0 0
  %2687 = vmatprep.subr.bf16.mxu0 0
  %2688 = vmatpush1.bf16.xpose.msra.mxu0 0
  %2689 = vmatprep.subr.bf16.mxu0 0
  %2690 = vmatpush1.bf16.xpose.msra.mxu0 0
  %2691 = vmatprep.subr.bf16.mxu0 0
  %2692 = vmatpush1.bf16.xpose.msra.mxu0 0
  %2693 = vmatprep.subr.bf16.mxu0 0
  %2694 = vmatpush1.bf16.xpose.msra.mxu0 0
  %2695 = vmatprep.subr.bf16.mxu0 0
  %2696 = vmatpush1.bf16.xpose.msra.mxu0 0
  %2697 = vmatprep.subr.bf16.mxu0 0
  %2698 = vmatpush1.bf16.xpose.msra.mxu0 0
  %2699 = vmatprep.subr.bf16.mxu0 0
  %2700 = vmatpush1.bf16.xpose.msra.mxu0 0
  %2701 = vmatprep.subr.bf16.mxu0 0
  %2702 = vmatpush1.bf16.xpose.msra.mxu0 0
  %2703 = vmatprep.subr.bf16.mxu0 0
  %2704 = vmatpush1.bf16.xpose.msra.mxu0 0
  %2705 = vmatprep.subr.bf16.mxu0 0
  %2706 = vmatpush1.bf16.xpose.msra.mxu0 0
  %2707 = vmatprep.mubr.bf16.mxu0 0
  %2708 = vmatmul.mubr.bf16.gmra.mrb[0].mxu0 %v2670
  %v2709 = vpop.f32.mrb[0].mxu0
  %v2710 = vadd.f32 %v79, %v2709
  %v2711 = vpop.f32.mrb[0].mxu0
  %v2712 = vpop.f32.mrb[0].mxu0
  %v2713 = vadd.f32 %v80, %v2712
  %v2714 = vpop.f32.mrb[0].mxu0
  %2715 = vdwg.mxu0
  %v2716 = vsel %vm209, %v2710, -inf
  %2717 = vmax.xlane.f32.xlu0 %v2716
  %v2718 = vpop.xlane.xlu0 %2717
  %v2719 = vsel %vm209, %v2713, -inf
  %2720 = vmax.xlane.f32.xlu0 %v2719
  %v2721 = vpop.xlane.xlu0 %2720
  %v2722 = vsub.f32 %v2710, %v2718
  %v2723 = vsub.f32 %v2713, %v2721
  %v2724 = vmul.f32 %v2722, 1.442695
  %v2725 = vpow.pop %v2724
  %v2726 = vmul.f32 %v2723, 1.442695
  %v2727 = vpow.pop %v2726
  %v2728 = vsel %vm209, %v2725, 0.0
  %2729 = vadd.xlane.f32.xlu0 %v2728
  %v2730 = vpop.xlane.xlu0 %2729
  %v2731 = vsel %vm209, %v2727, 0.0
  %2732 = vadd.xlane.f32.xlu0 %v2731
  %v2733 = vpop.xlane.xlu0 %2732
  %v2734 = vrcp.pop %v2730
  %v2735 = vrcp.pop %v2733
  %v2736 = vmul.f32 %v2725, %v2734
  %v2737 = vmul.f32 %v2727, %v2735
  %v2738 = vpack.c.bf16 %v2737, %v2736
  %2740 = vrot.lane.b32.xlu0 %v2668, 96
  %v2741 = vpop.permute.xlu0 %2740
  %v2744 = vsel %vm209, %v2738, 0
  %2746 = vmatprep.subr.bf16.mxu0 0
  %2747 = vmatpush1.bf16.msra.mxu0 %v2741
  %2748 = vmatprep.subr.bf16.mxu0 0
  %2749 = vmatpush1.bf16.msra.mxu0 0
  %2750 = vmatprep.subr.bf16.mxu0 0
  %2751 = vmatpush1.bf16.msra.mxu0 0
  %2752 = vmatprep.subr.bf16.mxu0 0
  %2753 = vmatpush1.bf16.msra.mxu0 0
  %2754 = vmatprep.subr.bf16.mxu0 0
  %2755 = vmatpush1.bf16.msra.mxu0 0
  %2756 = vmatprep.subr.bf16.mxu0 0
  %2757 = vmatpush1.bf16.msra.mxu0 0
  %2758 = vmatprep.subr.bf16.mxu0 0
  %2759 = vmatpush1.bf16.msra.mxu0 0
  %2760 = vmatprep.subr.bf16.mxu0 0
  %2761 = vmatpush1.bf16.msra.mxu0 0
  %2762 = vmatprep.subr.bf16.mxu0 0
  %2763 = vmatpush1.bf16.msra.mxu0 0
  %2764 = vmatprep.subr.bf16.mxu0 0
  %2765 = vmatpush1.bf16.msra.mxu0 0
  %2766 = vmatprep.subr.bf16.mxu0 0
  %2767 = vmatpush1.bf16.msra.mxu0 0
  %2768 = vmatprep.subr.bf16.mxu0 0
  %2769 = vmatpush1.bf16.msra.mxu0 0
  %2770 = vmatprep.subr.bf16.mxu0 0
  %2771 = vmatpush1.bf16.msra.mxu0 0
  %2772 = vmatprep.subr.bf16.mxu0 0
  %2773 = vmatpush1.bf16.msra.mxu0 0
  %2774 = vmatprep.subr.bf16.mxu0 0
  %2775 = vmatpush1.bf16.msra.mxu0 0
  %2776 = vmatprep.subr.bf16.mxu0 0
  %2777 = vmatpush1.bf16.msra.mxu0 0
  %2778 = vmatprep.mubr.bf16.mxu0 0
  %2779 = vmatmul.mubr.bf16.gmra.mrb[0].mxu0 %v2744
  %v2780 = vpop.f32.mrb[0].mxu0
  %v2781 = vadd.f32 0.0, %v2780
  %v2782 = vpop.f32.mrb[0].mxu0
  %v2783 = vpop.f32.mrb[0].mxu0
  %v2784 = vadd.f32 0.0, %v2783
  %v2785 = vpop.f32.mrb[0].mxu0
  %2786 = vdwg.mxu0
  %2788 = vrot.lane.b32.xlu0 %v2667, 120
  %v2789 = vpop.permute.xlu0 %2788
  %2790 = vrot.lane.b32.xlu0 %v2668, 120
  %v2791 = vpop.permute.xlu0 %2790
  %v2793 = vsel %vm161, %v2789, 0
  %v2796 = vsel %vm161, %v2791, 0
  %2798 = vmatprep.subr.bf16.mxu0 0
  %2799 = vmatpush1.bf16.xpose.msra.mxu0 %v2796
  %2800 = vmatprep.subr.bf16.mxu0 0
  %2801 = vmatpush1.bf16.xpose.msra.mxu0 0
  %2802 = vmatprep.subr.bf16.mxu0 0
  %2803 = vmatpush1.bf16.xpose.msra.mxu0 0
  %2804 = vmatprep.subr.bf16.mxu0 0
  %2805 = vmatpush1.bf16.xpose.msra.mxu0 0
  %2806 = vmatprep.subr.bf16.mxu0 0
  %2807 = vmatpush1.bf16.xpose.msra.mxu0 0
  %2808 = vmatprep.subr.bf16.mxu0 0
  %2809 = vmatpush1.bf16.xpose.msra.mxu0 0
  %2810 = vmatprep.subr.bf16.mxu0 0
  %2811 = vmatpush1.bf16.xpose.msra.mxu0 0
  %2812 = vmatprep.subr.bf16.mxu0 0
  %2813 = vmatpush1.bf16.xpose.msra.mxu0 0
  %2814 = vmatprep.subr.bf16.mxu0 0
  %2815 = vmatpush1.bf16.xpose.msra.mxu0 0
  %2816 = vmatprep.subr.bf16.mxu0 0
  %2817 = vmatpush1.bf16.xpose.msra.mxu0 0
  %2818 = vmatprep.subr.bf16.mxu0 0
  %2819 = vmatpush1.bf16.xpose.msra.mxu0 0
  %2820 = vmatprep.subr.bf16.mxu0 0
  %2821 = vmatpush1.bf16.xpose.msra.mxu0 0
  %2822 = vmatprep.subr.bf16.mxu0 0
  %2823 = vmatpush1.bf16.xpose.msra.mxu0 0
  %2824 = vmatprep.subr.bf16.mxu0 0
  %2825 = vmatpush1.bf16.xpose.msra.mxu0 0
  %2826 = vmatprep.subr.bf16.mxu0 0
  %2827 = vmatpush1.bf16.xpose.msra.mxu0 0
  %2828 = vmatprep.subr.bf16.mxu0 0
  %2829 = vmatpush1.bf16.xpose.msra.mxu0 0
  %2830 = vmatprep.mubr.bf16.mxu0 0
  %2831 = vmatmul.mubr.bf16.gmra.mrb[0].mxu0 %v2793
  %v2832 = vpop.f32.mrb[0].mxu0
  %v2833 = vadd.f32 %v79, %v2832
  %v2834 = vpop.f32.mrb[0].mxu0
  %v2835 = vpop.f32.mrb[0].mxu0
  %v2836 = vadd.f32 %v80, %v2835
  %v2837 = vpop.f32.mrb[0].mxu0
  %2838 = vdwg.mxu0
  %v2839 = vsel %vm209, %v2833, -inf
  %2840 = vmax.xlane.f32.xlu0 %v2839
  %v2841 = vpop.xlane.xlu0 %2840
  %v2842 = vsel %vm209, %v2836, -inf
  %2843 = vmax.xlane.f32.xlu0 %v2842
  %v2844 = vpop.xlane.xlu0 %2843
  %v2845 = vsub.f32 %v2833, %v2841
  %v2846 = vsub.f32 %v2836, %v2844
  %v2847 = vmul.f32 %v2845, 1.442695
  %v2848 = vpow.pop %v2847
  %v2849 = vmul.f32 %v2846, 1.442695
  %v2850 = vpow.pop %v2849
  %v2851 = vsel %vm209, %v2848, 0.0
  %2852 = vadd.xlane.f32.xlu0 %v2851
  %v2853 = vpop.xlane.xlu0 %2852
  %v2854 = vsel %vm209, %v2850, 0.0
  %2855 = vadd.xlane.f32.xlu0 %v2854
  %v2856 = vpop.xlane.xlu0 %2855
  %v2857 = vrcp.pop %v2853
  %v2858 = vrcp.pop %v2856
  %v2859 = vmul.f32 %v2848, %v2857
  %v2860 = vmul.f32 %v2850, %v2858
  %v2861 = vpack.c.bf16 %v2860, %v2859
  %2862 = vrot.lane.b32.xlu0 %v2668, 88
  %v2863 = vpop.permute.xlu0 %2862
  %v2866 = vsel %vm209, %v2861, 0
  %2868 = vmatprep.subr.bf16.mxu0 0
  %2869 = vmatpush1.bf16.msra.mxu0 %v2863
  %2870 = vmatprep.subr.bf16.mxu0 0
  %2871 = vmatpush1.bf16.msra.mxu0 0
  %2872 = vmatprep.subr.bf16.mxu0 0
  %2873 = vmatpush1.bf16.msra.mxu0 0
  %2874 = vmatprep.subr.bf16.mxu0 0
  %2875 = vmatpush1.bf16.msra.mxu0 0
  %2876 = vmatprep.subr.bf16.mxu0 0
  %2877 = vmatpush1.bf16.msra.mxu0 0
  %2878 = vmatprep.subr.bf16.mxu0 0
  %2879 = vmatpush1.bf16.msra.mxu0 0
  %2880 = vmatprep.subr.bf16.mxu0 0
  %2881 = vmatpush1.bf16.msra.mxu0 0
  %2882 = vmatprep.subr.bf16.mxu0 0
  %2883 = vmatpush1.bf16.msra.mxu0 0
  %2884 = vmatprep.subr.bf16.mxu0 0
  %2885 = vmatpush1.bf16.msra.mxu0 0
  %2886 = vmatprep.subr.bf16.mxu0 0
  %2887 = vmatpush1.bf16.msra.mxu0 0
  %2888 = vmatprep.subr.bf16.mxu0 0
  %2889 = vmatpush1.bf16.msra.mxu0 0
  %2890 = vmatprep.subr.bf16.mxu0 0
  %2891 = vmatpush1.bf16.msra.mxu0 0
  %2892 = vmatprep.subr.bf16.mxu0 0
  %2893 = vmatpush1.bf16.msra.mxu0 0
  %2894 = vmatprep.subr.bf16.mxu0 0
  %2895 = vmatpush1.bf16.msra.mxu0 0
  %2896 = vmatprep.subr.bf16.mxu0 0
  %2897 = vmatpush1.bf16.msra.mxu0 0
  %2898 = vmatprep.subr.bf16.mxu0 0
  %2899 = vmatpush1.bf16.msra.mxu0 0
  %2900 = vmatprep.mubr.bf16.mxu0 0
  %2901 = vmatmul.mubr.bf16.gmra.mrb[0].mxu0 %v2866
  %v2902 = vpop.f32.mrb[0].mxu0
  %v2903 = vadd.f32 0.0, %v2902
  %v2904 = vpop.f32.mrb[0].mxu0
  %v2905 = vpop.f32.mrb[0].mxu0
  %v2906 = vadd.f32 0.0, %v2905
  %v2907 = vpop.f32.mrb[0].mxu0
  %2908 = vdwg.mxu0
  %2909 = vrot.lane.b32.xlu0 %v2667, 112
  %v2910 = vpop.permute.xlu0 %2909
  %2911 = vrot.lane.b32.xlu0 %v2668, 112
  %v2912 = vpop.permute.xlu0 %2911
  %v2914 = vsel %vm161, %v2910, 0
  %v2917 = vsel %vm161, %v2912, 0
  %2919 = vmatprep.subr.bf16.mxu0 0
  %2920 = vmatpush1.bf16.xpose.msra.mxu0 %v2917
  %2921 = vmatprep.subr.bf16.mxu0 0
  %2922 = vmatpush1.bf16.xpose.msra.mxu0 0
  %2923 = vmatprep.subr.bf16.mxu0 0
  %2924 = vmatpush1.bf16.xpose.msra.mxu0 0
  %2925 = vmatprep.subr.bf16.mxu0 0
  %2926 = vmatpush1.bf16.xpose.msra.mxu0 0
  %2927 = vmatprep.subr.bf16.mxu0 0
  %2928 = vmatpush1.bf16.xpose.msra.mxu0 0
  %2929 = vmatprep.subr.bf16.mxu0 0
  %2930 = vmatpush1.bf16.xpose.msra.mxu0 0
  %2931 = vmatprep.subr.bf16.mxu0 0
  %2932 = vmatpush1.bf16.xpose.msra.mxu0 0
  %2933 = vmatprep.subr.bf16.mxu0 0
  %2934 = vmatpush1.bf16.xpose.msra.mxu0 0
  %2935 = vmatprep.subr.bf16.mxu0 0
  %2936 = vmatpush1.bf16.xpose.msra.mxu0 0
  %2937 = vmatprep.subr.bf16.mxu0 0
  %2938 = vmatpush1.bf16.xpose.msra.mxu0 0
  %2939 = vmatprep.subr.bf16.mxu0 0
  %2940 = vmatpush1.bf16.xpose.msra.mxu0 0
  %2941 = vmatprep.subr.bf16.mxu0 0
  %2942 = vmatpush1.bf16.xpose.msra.mxu0 0
  %2943 = vmatprep.subr.bf16.mxu0 0
  %2944 = vmatpush1.bf16.xpose.msra.mxu0 0
  %2945 = vmatprep.subr.bf16.mxu0 0
  %2946 = vmatpush1.bf16.xpose.msra.mxu0 0
  %2947 = vmatprep.subr.bf16.mxu0 0
  %2948 = vmatpush1.bf16.xpose.msra.mxu0 0
  %2949 = vmatprep.subr.bf16.mxu0 0
  %2950 = vmatpush1.bf16.xpose.msra.mxu0 0
  %2951 = vmatprep.mubr.bf16.mxu0 0
  %2952 = vmatmul.mubr.bf16.gmra.mrb[0].mxu0 %v2914
  %v2953 = vpop.f32.mrb[0].mxu0
  %v2954 = vadd.f32 %v79, %v2953
  %v2955 = vpop.f32.mrb[0].mxu0
  %v2956 = vpop.f32.mrb[0].mxu0
  %v2957 = vadd.f32 %v80, %v2956
  %v2958 = vpop.f32.mrb[0].mxu0
  %2959 = vdwg.mxu0
  %v2960 = vsel %vm209, %v2954, -inf
  %2961 = vmax.xlane.f32.xlu0 %v2960
  %v2962 = vpop.xlane.xlu0 %2961
  %v2963 = vsel %vm209, %v2957, -inf
  %2964 = vmax.xlane.f32.xlu0 %v2963
  %v2965 = vpop.xlane.xlu0 %2964
  %v2966 = vsub.f32 %v2954, %v2962
  %v2967 = vsub.f32 %v2957, %v2965
  %v2968 = vmul.f32 %v2966, 1.442695
  %v2969 = vpow.pop %v2968
  %v2970 = vmul.f32 %v2967, 1.442695
  %v2971 = vpow.pop %v2970
  %v2972 = vsel %vm209, %v2969, 0.0
  %2973 = vadd.xlane.f32.xlu0 %v2972
  %v2974 = vpop.xlane.xlu0 %2973
  %v2975 = vsel %vm209, %v2971, 0.0
  %2976 = vadd.xlane.f32.xlu0 %v2975
  %v2977 = vpop.xlane.xlu0 %2976
  %v2978 = vrcp.pop %v2974
  %v2979 = vrcp.pop %v2977
  %v2980 = vmul.f32 %v2969, %v2978
  %v2981 = vmul.f32 %v2971, %v2979
  %v2982 = vpack.c.bf16 %v2981, %v2980
  %2983 = vrot.lane.b32.xlu0 %v2668, 80
  %v2984 = vpop.permute.xlu0 %2983
  %v2987 = vsel %vm209, %v2982, 0
  %2989 = vmatprep.subr.bf16.mxu0 0
  %2990 = vmatpush1.bf16.msra.mxu0 %v2984
  %2991 = vmatprep.subr.bf16.mxu0 0
  %2992 = vmatpush1.bf16.msra.mxu0 0
  %2993 = vmatprep.subr.bf16.mxu0 0
  %2994 = vmatpush1.bf16.msra.mxu0 0
  %2995 = vmatprep.subr.bf16.mxu0 0
  %2996 = vmatpush1.bf16.msra.mxu0 0
  %2997 = vmatprep.subr.bf16.mxu0 0
  %2998 = vmatpush1.bf16.msra.mxu0 0
  %2999 = vmatprep.subr.bf16.mxu0 0
  %3000 = vmatpush1.bf16.msra.mxu0 0
  %3001 = vmatprep.subr.bf16.mxu0 0
  %3002 = vmatpush1.bf16.msra.mxu0 0
  %3003 = vmatprep.subr.bf16.mxu0 0
  %3004 = vmatpush1.bf16.msra.mxu0 0
  %3005 = vmatprep.subr.bf16.mxu0 0
  %3006 = vmatpush1.bf16.msra.mxu0 0
  %3007 = vmatprep.subr.bf16.mxu0 0
  %3008 = vmatpush1.bf16.msra.mxu0 0
  %3009 = vmatprep.subr.bf16.mxu0 0
  %3010 = vmatpush1.bf16.msra.mxu0 0
  %3011 = vmatprep.subr.bf16.mxu0 0
  %3012 = vmatpush1.bf16.msra.mxu0 0
  %3013 = vmatprep.subr.bf16.mxu0 0
  %3014 = vmatpush1.bf16.msra.mxu0 0
  %3015 = vmatprep.subr.bf16.mxu0 0
  %3016 = vmatpush1.bf16.msra.mxu0 0
  %3017 = vmatprep.subr.bf16.mxu0 0
  %3018 = vmatpush1.bf16.msra.mxu0 0
  %3019 = vmatprep.subr.bf16.mxu0 0
  %3020 = vmatpush1.bf16.msra.mxu0 0
  %3021 = vmatprep.mubr.bf16.mxu0 0
  %3022 = vmatmul.mubr.bf16.gmra.mrb[0].mxu0 %v2987
  %v3023 = vpop.f32.mrb[0].mxu0
  %v3024 = vadd.f32 0.0, %v3023
  %v3025 = vpop.f32.mrb[0].mxu0
  %v3026 = vpop.f32.mrb[0].mxu0
  %v3027 = vadd.f32 0.0, %v3026
  %v3028 = vpop.f32.mrb[0].mxu0
  %3029 = vdwg.mxu0
  %3030 = vrot.lane.b32.xlu0 %v2667, 104
  %v3031 = vpop.permute.xlu0 %3030
  %3032 = vrot.lane.b32.xlu0 %v2668, 104
  %v3033 = vpop.permute.xlu0 %3032
  %v3035 = vsel %vm161, %v3031, 0
  %v3038 = vsel %vm161, %v3033, 0
  %3040 = vmatprep.subr.bf16.mxu0 0
  %3041 = vmatpush1.bf16.xpose.msra.mxu0 %v3038
  %3042 = vmatprep.subr.bf16.mxu0 0
  %3043 = vmatpush1.bf16.xpose.msra.mxu0 0
  %3044 = vmatprep.subr.bf16.mxu0 0
  %3045 = vmatpush1.bf16.xpose.msra.mxu0 0
  %3046 = vmatprep.subr.bf16.mxu0 0
  %3047 = vmatpush1.bf16.xpose.msra.mxu0 0
  %3048 = vmatprep.subr.bf16.mxu0 0
  %3049 = vmatpush1.bf16.xpose.msra.mxu0 0
  %3050 = vmatprep.subr.bf16.mxu0 0
  %3051 = vmatpush1.bf16.xpose.msra.mxu0 0
  %3052 = vmatprep.subr.bf16.mxu0 0
  %3053 = vmatpush1.bf16.xpose.msra.mxu0 0
  %3054 = vmatprep.subr.bf16.mxu0 0
  %3055 = vmatpush1.bf16.xpose.msra.mxu0 0
  %3056 = vmatprep.subr.bf16.mxu0 0
  %3057 = vmatpush1.bf16.xpose.msra.mxu0 0
  %3058 = vmatprep.subr.bf16.mxu0 0
  %3059 = vmatpush1.bf16.xpose.msra.mxu0 0
  %3060 = vmatprep.subr.bf16.mxu0 0
  %3061 = vmatpush1.bf16.xpose.msra.mxu0 0
  %3062 = vmatprep.subr.bf16.mxu0 0
  %3063 = vmatpush1.bf16.xpose.msra.mxu0 0
  %3064 = vmatprep.subr.bf16.mxu0 0
  %3065 = vmatpush1.bf16.xpose.msra.mxu0 0
  %3066 = vmatprep.subr.bf16.mxu0 0
  %3067 = vmatpush1.bf16.xpose.msra.mxu0 0
  %3068 = vmatprep.subr.bf16.mxu0 0
  %3069 = vmatpush1.bf16.xpose.msra.mxu0 0
  %3070 = vmatprep.subr.bf16.mxu0 0
  %3071 = vmatpush1.bf16.xpose.msra.mxu0 0
  %3072 = vmatprep.mubr.bf16.mxu0 0
  %3073 = vmatmul.mubr.bf16.gmra.mrb[0].mxu0 %v3035
  %v3074 = vpop.f32.mrb[0].mxu0
  %v3075 = vadd.f32 %v79, %v3074
  %v3076 = vpop.f32.mrb[0].mxu0
  %v3077 = vpop.f32.mrb[0].mxu0
  %v3078 = vadd.f32 %v80, %v3077
  %v3079 = vpop.f32.mrb[0].mxu0
  %3080 = vdwg.mxu0
  %v3081 = vsel %vm209, %v3075, -inf
  %3082 = vmax.xlane.f32.xlu0 %v3081
  %v3083 = vpop.xlane.xlu0 %3082
  %v3084 = vsel %vm209, %v3078, -inf
  %3085 = vmax.xlane.f32.xlu0 %v3084
  %v3086 = vpop.xlane.xlu0 %3085
  %v3087 = vsub.f32 %v3075, %v3083
  %v3088 = vsub.f32 %v3078, %v3086
  %v3089 = vmul.f32 %v3087, 1.442695
  %v3090 = vpow.pop %v3089
  %v3091 = vmul.f32 %v3088, 1.442695
  %v3092 = vpow.pop %v3091
  %v3093 = vsel %vm209, %v3090, 0.0
  %3094 = vadd.xlane.f32.xlu0 %v3093
  %v3095 = vpop.xlane.xlu0 %3094
  %v3096 = vsel %vm209, %v3092, 0.0
  %3097 = vadd.xlane.f32.xlu0 %v3096
  %v3098 = vpop.xlane.xlu0 %3097
  %v3099 = vrcp.pop %v3095
  %v3100 = vrcp.pop %v3098
  %v3101 = vmul.f32 %v3090, %v3099
  %v3102 = vmul.f32 %v3092, %v3100
  %v3103 = vpack.c.bf16 %v3102, %v3101
  %3104 = vrot.lane.b32.xlu0 %v2668, 72
  %v3105 = vpop.permute.xlu0 %3104
  %v3108 = vsel %vm209, %v3103, 0
  %3110 = vmatprep.subr.bf16.mxu0 0
  %3111 = vmatpush1.bf16.msra.mxu0 %v3105
  %3112 = vmatprep.subr.bf16.mxu0 0
  %3113 = vmatpush1.bf16.msra.mxu0 0
  %3114 = vmatprep.subr.bf16.mxu0 0
  %3115 = vmatpush1.bf16.msra.mxu0 0
  %3116 = vmatprep.subr.bf16.mxu0 0
  %3117 = vmatpush1.bf16.msra.mxu0 0
  %3118 = vmatprep.subr.bf16.mxu0 0
  %3119 = vmatpush1.bf16.msra.mxu0 0
  %3120 = vmatprep.subr.bf16.mxu0 0
  %3121 = vmatpush1.bf16.msra.mxu0 0
  %3122 = vmatprep.subr.bf16.mxu0 0
  %3123 = vmatpush1.bf16.msra.mxu0 0
  %3124 = vmatprep.subr.bf16.mxu0 0
  %3125 = vmatpush1.bf16.msra.mxu0 0
  %3126 = vmatprep.subr.bf16.mxu0 0
  %3127 = vmatpush1.bf16.msra.mxu0 0
  %3128 = vmatprep.subr.bf16.mxu0 0
  %3129 = vmatpush1.bf16.msra.mxu0 0
  %3130 = vmatprep.subr.bf16.mxu0 0
  %3131 = vmatpush1.bf16.msra.mxu0 0
  %3132 = vmatprep.subr.bf16.mxu0 0
  %3133 = vmatpush1.bf16.msra.mxu0 0
  %3134 = vmatprep.subr.bf16.mxu0 0
  %3135 = vmatpush1.bf16.msra.mxu0 0
  %3136 = vmatprep.subr.bf16.mxu0 0
  %3137 = vmatpush1.bf16.msra.mxu0 0
  %3138 = vmatprep.subr.bf16.mxu0 0
  %3139 = vmatpush1.bf16.msra.mxu0 0
  %3140 = vmatprep.subr.bf16.mxu0 0
  %3141 = vmatpush1.bf16.msra.mxu0 0
  %3142 = vmatprep.mubr.bf16.mxu0 0
  %3143 = vmatmul.mubr.bf16.gmra.mrb[0].mxu0 %v3108
  %v3144 = vpop.f32.mrb[0].mxu0
  %v3145 = vadd.f32 0.0, %v3144
  %v3146 = vpop.f32.mrb[0].mxu0
  %v3147 = vpop.f32.mrb[0].mxu0
  %v3148 = vadd.f32 0.0, %v3147
  %v3149 = vpop.f32.mrb[0].mxu0
  %3150 = vdwg.mxu0
  %3153 = vrot.lane.b32.xlu0 %v2903, 8
  %v3154 = vpop.permute.xlu0 %3153
  %3155 = vrot.lane.b32.xlu0 %v2906, 8
  %v3156 = vpop.permute.xlu0 %3155
  %3161 = vrot.lane.b32.xlu0 %v3024, 16
  %v3162 = vpop.permute.xlu0 %3161
  %3163 = vrot.lane.b32.xlu0 %v3027, 16
  %v3164 = vpop.permute.xlu0 %3163
  %3169 = vrot.lane.b32.xlu0 %v3145, 24
  %v3170 = vpop.permute.xlu0 %3169
  %3171 = vrot.lane.b32.xlu0 %v3148, 24
  %v3172 = vpop.permute.xlu0 %3171
  %v3175 = vsel %vm161, %v2781, %v3154
  %v3176 = vsel %vm161, %v2784, %v3156
  %v3177 = vsel %vm209, %v3175, %v3162
  %v3178 = vsel %vm209, %v3176, %v3164
  %v3179 = vsel %vm671, %v3177, %v3170
  %v3180 = vsel %vm671, %v3178, %v3172
  %v3181 = vpack.c.bf16 %v3180, %v3179
  %v3182 = vlaneseq
  %v3183 = vshrl.u32 %v3182, 7
  %v3184 = vsub.s32 1, %v3183
  %v3185 = vrot.slane %v1856, %v3184
  %v3190 = vunpack.c.l.b16 %v2547
  %v3191 = vunpack.c.l.b16 %v2548
  %v3192 = vunpack.c.l.b16 %v2549
  %v3193 = vunpack.c.l.b16 %v2550
  %v3194 = vpack.c.b16 %v3191, %v3190
  %v3195 = vpack.c.b16 %v3193, %v3192
  %v3199 = vsel %vm112, %v3181, 0
  %3201 = vmatprep.subr.bf16.mxu0 0
  %3202 = vmatpush1.bf16.msra.mxu0 %v3194
  %3203 = vmatprep.subr.bf16.mxu0 0
  %3204 = vmatpush1.bf16.msra.mxu0 %v3195
  %3205 = vmatprep.subr.bf16.mxu0 0
  %3206 = vmatpush1.bf16.msra.mxu0 0
  %3207 = vmatprep.subr.bf16.mxu0 0
  %3208 = vmatpush1.bf16.msra.mxu0 0
  %3209 = vmatprep.subr.bf16.mxu0 0
  %3210 = vmatpush1.bf16.msra.mxu0 0
  %3211 = vmatprep.subr.bf16.mxu0 0
  %3212 = vmatpush1.bf16.msra.mxu0 0
  %3213 = vmatprep.subr.bf16.mxu0 0
  %3214 = vmatpush1.bf16.msra.mxu0 0
  %3215 = vmatprep.subr.bf16.mxu0 0
  %3216 = vmatpush1.bf16.msra.mxu0 0
  %3217 = vmatprep.subr.bf16.mxu0 0
  %3218 = vmatpush1.bf16.msra.mxu0 0
  %3219 = vmatprep.subr.bf16.mxu0 0
  %3220 = vmatpush1.bf16.msra.mxu0 0
  %3221 = vmatprep.subr.bf16.mxu0 0
  %3222 = vmatpush1.bf16.msra.mxu0 0
  %3223 = vmatprep.subr.bf16.mxu0 0
  %3224 = vmatpush1.bf16.msra.mxu0 0
  %3225 = vmatprep.subr.bf16.mxu0 0
  %3226 = vmatpush1.bf16.msra.mxu0 0
  %3227 = vmatprep.subr.bf16.mxu0 0
  %3228 = vmatpush1.bf16.msra.mxu0 0
  %3229 = vmatprep.subr.bf16.mxu0 0
  %3230 = vmatpush1.bf16.msra.mxu0 0
  %3231 = vmatprep.subr.bf16.mxu0 0
  %3232 = vmatpush1.bf16.msra.mxu0 0
  %3233 = vmatprep.mubr.bf16.mxu0 0
  %3234 = vmatmul.mubr.bf16.gmra.mrb[0].mxu0 %v3199
  %v3235 = vpop.f32.mrb[0].mxu0
  %v3236 = vadd.f32 %v3185, %v3235
  %v3237 = vpop.f32.mrb[0].mxu0
  %v3238 = vpop.f32.mrb[0].mxu0
  %v3239 = vadd.f32 %v3185, %v3238
  %v3240 = vpop.f32.mrb[0].mxu0
  %3241 = vdwg.mxu0
  %v3242 = vadd.f32 %v2541, %v3236
  %v3243 = vadd.f32 %v2542, %v3239
  %v3244 = vsel %vm112, %v3242, 0.0
  %3245 = vadd.xlane.f32.xlu0 %v3244
  %v3246 = vpop.xlane.xlu0 %3245
  %v3247 = vsel %vm112, %v3243, 0.0
  %3248 = vadd.xlane.f32.xlu0 %v3247
  %v3249 = vpop.xlane.xlu0 %3248
  %v3250 = vmul.f32 %v3246, %v743
  %v3251 = vmul.f32 %v3249, %v743
  %v3252 = vsub.f32 %v3242, %v3250
  %v3253 = vsub.f32 %v3243, %v3251
  %v3254 = vmul.f32 %v3252, %v3252
  %v3255 = vmul.f32 %v3253, %v3253
  %v3256 = vsel %vm112, %v3254, 0.0
  %3257 = vadd.xlane.f32.xlu0 %v3256
  %v3258 = vpop.xlane.xlu0 %3257
  %v3259 = vsel %vm112, %v3255, 0.0
  %3260 = vadd.xlane.f32.xlu0 %v3259
  %v3261 = vpop.xlane.xlu0 %3260
  %v3262 = vmul.f32 %v3258, %v743
  %v3263 = vmul.f32 %v3261, %v743
  %v3264 = vadd.f32 %v3262, 1e-05
  %v3265 = vadd.f32 %v3263, 1e-05
  %v3266 = vrsqrt.pop %v3264
  %v3267 = vrsqrt.pop %v3265
  %v3268 = vmul.f32 %v3252, %v3266
  %v3269 = vmul.f32 %v3253, %v3267
  %v3270 = vlaneseq
  %v3271 = vshrl.u32 %v3270, 7
  %v3272 = vsub.s32 5, %v3271
  %v3273 = vrot.slane %v1856, %v3272
  %v3274 = vmul.f32 %v3268, %v3273
  %v3275 = vmul.f32 %v3269, %v3273
  %v3276 = vlaneseq
  %v3277 = vshrl.u32 %v3276, 7
  %v3278 = vsub.s32 6, %v3277
  %v3279 = vrot.slane %v1856, %v3278
  %v3280 = vadd.f32 %v3274, %v3279
  %v3281 = vadd.f32 %v3275, %v3279
  %v3282 = vld [vmem:[%s16] sm:$0xf]
  %v3283 = vld [vmem:[%s16 + $0x4] sm:$0xf]
  %v3284 = vld [vmem:[%s16 + $0x8] sm:$0xf]
  %v3285 = vld [vmem:[%s16 + $0xc] sm:$0xf]
  %v3286 = vld [vmem:[%s19] sm:$0x1]
  %v3287 = vld [vmem:[%s17] sm:$0xf]
  %v3288 = vld [vmem:[%s17 + $0x4] sm:$0xf]
  %v3289 = vld [vmem:[%s17 + $0x8] sm:$0xf]
  %v3290 = vld [vmem:[%s17 + $0xc] sm:$0xf]
  %v3291 = vld [vmem:[%s17 + $0x10] sm:$0xf]
  %v3292 = vld [vmem:[%s17 + $0x14] sm:$0xf]
  %v3293 = vld [vmem:[%s17 + $0x18] sm:$0xf]
  %v3294 = vld [vmem:[%s17 + $0x1c] sm:$0xf]
  %v3295 = vpack.c.bf16 %v3281, %v3280
  %v3297 = vlaneseq
  %v3298 = vshrl.u32 %v3297, 7
  %v3299 = vsub.s32 0, %v3298
  %v3300 = vrot.slane %v3286, %v3299
  %v3306 = vunpack.c.l.b16 %v3282
  %v3307 = vunpack.c.l.b16 %v3283
  %v3308 = vunpack.c.l.b16 %v3284
  %v3309 = vunpack.c.l.b16 %v3285
  %v3310 = vpack.c.b16 %v3307, %v3306
  %v3311 = vpack.c.b16 %v3309, %v3308
  %v3315 = vsel %vm112, %v3295, 0
  %3317 = vmatprep.subr.bf16.mxu0 0
  %3318 = vmatpush1.bf16.msra.mxu0 %v3310
  %3319 = vmatprep.subr.bf16.mxu0 0
  %3320 = vmatpush1.bf16.msra.mxu0 %v3311
  %3321 = vmatprep.subr.bf16.mxu0 0
  %3322 = vmatpush1.bf16.msra.mxu0 0
  %3323 = vmatprep.subr.bf16.mxu0 0
  %3324 = vmatpush1.bf16.msra.mxu0 0
  %3325 = vmatprep.subr.bf16.mxu0 0
  %3326 = vmatpush1.bf16.msra.mxu0 0
  %3327 = vmatprep.subr.bf16.mxu0 0
  %3328 = vmatpush1.bf16.msra.mxu0 0
  %3329 = vmatprep.subr.bf16.mxu0 0
  %3330 = vmatpush1.bf16.msra.mxu0 0
  %3331 = vmatprep.subr.bf16.mxu0 0
  %3332 = vmatpush1.bf16.msra.mxu0 0
  %3333 = vmatprep.subr.bf16.mxu0 0
  %3334 = vmatpush1.bf16.msra.mxu0 0
  %3335 = vmatprep.subr.bf16.mxu0 0
  %3336 = vmatpush1.bf16.msra.mxu0 0
  %3337 = vmatprep.subr.bf16.mxu0 0
  %3338 = vmatpush1.bf16.msra.mxu0 0
  %3339 = vmatprep.subr.bf16.mxu0 0
  %3340 = vmatpush1.bf16.msra.mxu0 0
  %3341 = vmatprep.subr.bf16.mxu0 0
  %3342 = vmatpush1.bf16.msra.mxu0 0
  %3343 = vmatprep.subr.bf16.mxu0 0
  %3344 = vmatpush1.bf16.msra.mxu0 0
  %3345 = vmatprep.subr.bf16.mxu0 0
  %3346 = vmatpush1.bf16.msra.mxu0 0
  %3347 = vmatprep.subr.bf16.mxu0 0
  %3348 = vmatpush1.bf16.msra.mxu0 0
  %3349 = vmatprep.mubr.bf16.mxu0 0
  %3350 = vmatmul.mubr.bf16.gmra.mrb[0].mxu0 %v3315
  %v3351 = vpop.f32.mrb[0].mxu0
  %v3352 = vadd.f32 %v3300, %v3351
  %v3353 = vpop.f32.mrb[0].mxu0
  %v3354 = vpop.f32.mrb[0].mxu0
  %v3355 = vadd.f32 %v3300, %v3354
  %v3356 = vpop.f32.mrb[0].mxu0
  %3357 = vdwg.mxu0
  %v3358 = vmax.f32 %v3352, 0.0
  %v3359 = vmax.f32 %v3355, 0.0
  %v3360 = vpack.c.bf16 %v3359, %v3358
  %v3361 = vlaneseq
  %v3362 = vshrl.u32 %v3361, 7
  %v3363 = vsub.s32 2, %v3362
  %v3364 = vrot.slane %v1856, %v3363
  %v3373 = vunpack.c.l.b16 %v3287
  %v3374 = vunpack.c.l.b16 %v3288
  %v3375 = vunpack.c.l.b16 %v3289
  %v3376 = vunpack.c.l.b16 %v3290
  %v3377 = vunpack.c.l.b16 %v3291
  %v3378 = vunpack.c.l.b16 %v3292
  %v3379 = vunpack.c.l.b16 %v3293
  %v3380 = vunpack.c.l.b16 %v3294
  %v3381 = vpack.c.b16 %v3374, %v3373
  %v3382 = vpack.c.b16 %v3376, %v3375
  %v3383 = vpack.c.b16 %v3378, %v3377
  %v3384 = vpack.c.b16 %v3380, %v3379
  %v3390 = vsel %vm883, %v3360, 0
  %3392 = vmatprep.subr.bf16.mxu0 0
  %3393 = vmatpush1.bf16.msra.mxu0 %v3381
  %3394 = vmatprep.subr.bf16.mxu0 0
  %3395 = vmatpush1.bf16.msra.mxu0 %v3382
  %3396 = vmatprep.subr.bf16.mxu0 0
  %3397 = vmatpush1.bf16.msra.mxu0 %v3383
  %3398 = vmatprep.subr.bf16.mxu0 0
  %3399 = vmatpush1.bf16.msra.mxu0 %v3384
  %3400 = vmatprep.subr.bf16.mxu0 0
  %3401 = vmatpush1.bf16.msra.mxu0 0
  %3402 = vmatprep.subr.bf16.mxu0 0
  %3403 = vmatpush1.bf16.msra.mxu0 0
  %3404 = vmatprep.subr.bf16.mxu0 0
  %3405 = vmatpush1.bf16.msra.mxu0 0
  %3406 = vmatprep.subr.bf16.mxu0 0
  %3407 = vmatpush1.bf16.msra.mxu0 0
  %3408 = vmatprep.subr.bf16.mxu0 0
  %3409 = vmatpush1.bf16.msra.mxu0 0
  %3410 = vmatprep.subr.bf16.mxu0 0
  %3411 = vmatpush1.bf16.msra.mxu0 0
  %3412 = vmatprep.subr.bf16.mxu0 0
  %3413 = vmatpush1.bf16.msra.mxu0 0
  %3414 = vmatprep.subr.bf16.mxu0 0
  %3415 = vmatpush1.bf16.msra.mxu0 0
  %3416 = vmatprep.subr.bf16.mxu0 0
  %3417 = vmatpush1.bf16.msra.mxu0 0
  %3418 = vmatprep.subr.bf16.mxu0 0
  %3419 = vmatpush1.bf16.msra.mxu0 0
  %3420 = vmatprep.subr.bf16.mxu0 0
  %3421 = vmatpush1.bf16.msra.mxu0 0
  %3422 = vmatprep.subr.bf16.mxu0 0
  %3423 = vmatpush1.bf16.msra.mxu0 0
  %3424 = vmatprep.mubr.bf16.mxu0 0
  %3425 = vmatmul.mubr.bf16.gmra.mrb[0].mxu0 %v3390
  %v3426 = vpop.f32.mrb[0].mxu0
  %v3427 = vadd.f32 %v3364, %v3426
  %v3428 = vpop.f32.mrb[0].mxu0
  %v3429 = vpop.f32.mrb[0].mxu0
  %v3430 = vadd.f32 %v3364, %v3429
  %v3431 = vpop.f32.mrb[0].mxu0
  %3432 = vdwg.mxu0
  %v3433 = vadd.f32 %v3280, %v3427
  %v3434 = vadd.f32 %v3281, %v3430
  %v3435 = vsel %vm112, %v3433, 0.0
  %3436 = vadd.xlane.f32.xlu0 %v3435
  %v3437 = vpop.xlane.xlu0 %3436
  %v3438 = vsel %vm112, %v3434, 0.0
  %3439 = vadd.xlane.f32.xlu0 %v3438
  %v3440 = vpop.xlane.xlu0 %3439
  %v3441 = vmul.f32 %v3437, %v743
  %v3442 = vmul.f32 %v3440, %v743
  %v3443 = vsub.f32 %v3433, %v3441
  %v3444 = vsub.f32 %v3434, %v3442
  %v3445 = vmul.f32 %v3443, %v3443
  %v3446 = vmul.f32 %v3444, %v3444
  %v3447 = vsel %vm112, %v3445, 0.0
  %3448 = vadd.xlane.f32.xlu0 %v3447
  %v3449 = vpop.xlane.xlu0 %3448
  %v3450 = vsel %vm112, %v3446, 0.0
  %3451 = vadd.xlane.f32.xlu0 %v3450
  %v3452 = vpop.xlane.xlu0 %3451
  %v3453 = vmul.f32 %v3449, %v743
  %v3454 = vmul.f32 %v3452, %v743
  %v3455 = vadd.f32 %v3453, 1e-05
  %v3456 = vadd.f32 %v3454, 1e-05
  %v3457 = vrsqrt.pop %v3455
  %v3458 = vrsqrt.pop %v3456
  %v3459 = vmul.f32 %v3443, %v3457
  %v3460 = vmul.f32 %v3444, %v3458
  %v3461 = vlaneseq
  %v3462 = vshrl.u32 %v3461, 7
  %v3463 = vsub.s32 7, %v3462
  %v3464 = vrot.slane %v1856, %v3463
  %v3465 = vmul.f32 %v3459, %v3464
  %v3466 = vmul.f32 %v3460, %v3464
  %v3467 = vlaneseq
  %v3468 = vshrl.u32 %v3467, 7
  %v3469 = vsub.s32 0, %v3468
  %v3470 = vrot.slane %v1857, %v3469
  %v3471 = vadd.f32 %v3465, %v3470
  %v3472 = vadd.f32 %v3466, %v3470
  %s3473 = scalar_lea.vmem %s20, 16
  %v3474 = vld [vmem:[%s3473] sm:$0xff]
  %v3475 = vld [vmem:[%s3473 + $0x8] sm:$0x1]
  %s3476 = scalar_lea.vmem %s18, 2
  %v3477 = vld [vmem:[%s3476] sm:$0x3]
  %s3478 = scalar_lea.vmem %s12, 16
  %v3479 = vld [vmem:[%s3478] sm:$0xf]
  %v3480 = vld [vmem:[%s3478 + $0x4] sm:$0xf]
  %v3481 = vld [vmem:[%s3478 + $0x8] sm:$0xf]
  %v3482 = vld [vmem:[%s3478 + $0xc] sm:$0xf]
  %s3483 = scalar_lea.vmem %s13, 16
  %v3484 = vld [vmem:[%s3483] sm:$0xf]
  %v3485 = vld [vmem:[%s3483 + $0x4] sm:$0xf]
  %v3486 = vld [vmem:[%s3483 + $0x8] sm:$0xf]
  %v3487 = vld [vmem:[%s3483 + $0xc] sm:$0xf]
  %v3488 = vpack.c.bf16 %v3472, %v3471
  %v3489 = vlaneseq
  %v3490 = vshrl.u32 %v3489, 7
  %v3491 = vsub.s32 0, %v3490
  %v3492 = vrot.slane %v3477, %v3491
  %v3497 = vunpack.c.l.b16 %v3479
  %v3498 = vunpack.c.l.b16 %v3480
  %v3499 = vunpack.c.l.b16 %v3481
  %v3500 = vunpack.c.l.b16 %v3482
  %v3501 = vpack.c.b16 %v3498, %v3497
  %v3502 = vpack.c.b16 %v3500, %v3499
  %v3506 = vsel %vm112, %v3488, 0
  %3508 = vmatprep.subr.bf16.mxu0 0
  %3509 = vmatpush1.bf16.msra.mxu0 %v3501
  %3510 = vmatprep.subr.bf16.mxu0 0
  %3511 = vmatpush1.bf16.msra.mxu0 %v3502
  %3512 = vmatprep.subr.bf16.mxu0 0
  %3513 = vmatpush1.bf16.msra.mxu0 0
  %3514 = vmatprep.subr.bf16.mxu0 0
  %3515 = vmatpush1.bf16.msra.mxu0 0
  %3516 = vmatprep.subr.bf16.mxu0 0
  %3517 = vmatpush1.bf16.msra.mxu0 0
  %3518 = vmatprep.subr.bf16.mxu0 0
  %3519 = vmatpush1.bf16.msra.mxu0 0
  %3520 = vmatprep.subr.bf16.mxu0 0
  %3521 = vmatpush1.bf16.msra.mxu0 0
  %3522 = vmatprep.subr.bf16.mxu0 0
  %3523 = vmatpush1.bf16.msra.mxu0 0
  %3524 = vmatprep.subr.bf16.mxu0 0
  %3525 = vmatpush1.bf16.msra.mxu0 0
  %3526 = vmatprep.subr.bf16.mxu0 0
  %3527 = vmatpush1.bf16.msra.mxu0 0
  %3528 = vmatprep.subr.bf16.mxu0 0
  %3529 = vmatpush1.bf16.msra.mxu0 0
  %3530 = vmatprep.subr.bf16.mxu0 0
  %3531 = vmatpush1.bf16.msra.mxu0 0
  %3532 = vmatprep.subr.bf16.mxu0 0
  %3533 = vmatpush1.bf16.msra.mxu0 0
  %3534 = vmatprep.subr.bf16.mxu0 0
  %3535 = vmatpush1.bf16.msra.mxu0 0
  %3536 = vmatprep.subr.bf16.mxu0 0
  %3537 = vmatpush1.bf16.msra.mxu0 0
  %3538 = vmatprep.subr.bf16.mxu0 0
  %3539 = vmatpush1.bf16.msra.mxu0 0
  %3540 = vmatprep.mubr.bf16.mxu0 0
  %3541 = vmatmul.mubr.bf16.gmra.mrb[0].mxu0 %v3506
  %v3542 = vpop.f32.mrb[0].mxu0
  %v3543 = vadd.f32 %v3492, %v3542
  %v3544 = vpop.f32.mrb[0].mxu0
  %v3545 = vpop.f32.mrb[0].mxu0
  %v3546 = vadd.f32 %v3492, %v3545
  %v3547 = vpop.f32.mrb[0].mxu0
  %3548 = vdwg.mxu0
  %v3549 = vpack.c.bf16 %v3546, %v3543
  %3551 = vrot.lane.b32.xlu0 %v3549, 96
  %v3552 = vpop.permute.xlu0 %3551
  %v3554 = vsel %vm161, %v3549, 0
  %v3557 = vsel %vm161, %v3552, 0
  %3559 = vmatprep.subr.bf16.mxu0 0
  %3560 = vmatpush1.bf16.xpose.msra.mxu0 %v3557
  %3561 = vmatprep.subr.bf16.mxu0 0
  %3562 = vmatpush1.bf16.xpose.msra.mxu0 0
  %3563 = vmatprep.subr.bf16.mxu0 0
  %3564 = vmatpush1.bf16.xpose.msra.mxu0 0
  %3565 = vmatprep.subr.bf16.mxu0 0
  %3566 = vmatpush1.bf16.xpose.msra.mxu0 0
  %3567 = vmatprep.subr.bf16.mxu0 0
  %3568 = vmatpush1.bf16.xpose.msra.mxu0 0
  %3569 = vmatprep.subr.bf16.mxu0 0
  %3570 = vmatpush1.bf16.xpose.msra.mxu0 0
  %3571 = vmatprep.subr.bf16.mxu0 0
  %3572 = vmatpush1.bf16.xpose.msra.mxu0 0
  %3573 = vmatprep.subr.bf16.mxu0 0
  %3574 = vmatpush1.bf16.xpose.msra.mxu0 0
  %3575 = vmatprep.subr.bf16.mxu0 0
  %3576 = vmatpush1.bf16.xpose.msra.mxu0 0
  %3577 = vmatprep.subr.bf16.mxu0 0
  %3578 = vmatpush1.bf16.xpose.msra.mxu0 0
  %3579 = vmatprep.subr.bf16.mxu0 0
  %3580 = vmatpush1.bf16.xpose.msra.mxu0 0
  %3581 = vmatprep.subr.bf16.mxu0 0
  %3582 = vmatpush1.bf16.xpose.msra.mxu0 0
  %3583 = vmatprep.subr.bf16.mxu0 0
  %3584 = vmatpush1.bf16.xpose.msra.mxu0 0
  %3585 = vmatprep.subr.bf16.mxu0 0
  %3586 = vmatpush1.bf16.xpose.msra.mxu0 0
  %3587 = vmatprep.subr.bf16.mxu0 0
  %3588 = vmatpush1.bf16.xpose.msra.mxu0 0
  %3589 = vmatprep.subr.bf16.mxu0 0
  %3590 = vmatpush1.bf16.xpose.msra.mxu0 0
  %3591 = vmatprep.mubr.bf16.mxu0 0
  %3592 = vmatmul.mubr.bf16.gmra.mrb[0].mxu0 %v3554
  %v3593 = vpop.f32.mrb[0].mxu0
  %v3594 = vadd.f32 %v77, %v3593
  %v3595 = vpop.f32.mrb[0].mxu0
  %v3596 = vpop.f32.mrb[0].mxu0
  %v3597 = vadd.f32 %v78, %v3596
  %v3598 = vpop.f32.mrb[0].mxu0
  %3599 = vdwg.mxu0
  %v3600 = vsel %vm209, %v3594, -inf
  %3601 = vmax.xlane.f32.xlu0 %v3600
  %v3602 = vpop.xlane.xlu0 %3601
  %v3603 = vsel %vm209, %v3597, -inf
  %3604 = vmax.xlane.f32.xlu0 %v3603
  %v3605 = vpop.xlane.xlu0 %3604
  %v3606 = vsub.f32 %v3594, %v3602
  %v3607 = vsub.f32 %v3597, %v3605
  %v3608 = vmul.f32 %v3606, 1.442695
  %v3609 = vpow.pop %v3608
  %v3610 = vmul.f32 %v3607, 1.442695
  %v3611 = vpow.pop %v3610
  %v3612 = vsel %vm209, %v3609, 0.0
  %3613 = vadd.xlane.f32.xlu0 %v3612
  %v3614 = vpop.xlane.xlu0 %3613
  %v3615 = vsel %vm209, %v3611, 0.0
  %3616 = vadd.xlane.f32.xlu0 %v3615
  %v3617 = vpop.xlane.xlu0 %3616
  %v3618 = vrcp.pop %v3614
  %v3619 = vrcp.pop %v3617
  %v3620 = vmul.f32 %v3609, %v3618
  %v3621 = vmul.f32 %v3611, %v3619
  %v3622 = vpack.c.bf16 %v3621, %v3620
  %3623 = vrot.lane.b32.xlu0 %v3549, 64
  %v3624 = vpop.permute.xlu0 %3623
  %v3627 = vsel %vm209, %v3622, 0
  %3629 = vmatprep.subr.bf16.mxu0 0
  %3630 = vmatpush1.bf16.msra.mxu0 %v3624
  %3631 = vmatprep.subr.bf16.mxu0 0
  %3632 = vmatpush1.bf16.msra.mxu0 0
  %3633 = vmatprep.subr.bf16.mxu0 0
  %3634 = vmatpush1.bf16.msra.mxu0 0
  %3635 = vmatprep.subr.bf16.mxu0 0
  %3636 = vmatpush1.bf16.msra.mxu0 0
  %3637 = vmatprep.subr.bf16.mxu0 0
  %3638 = vmatpush1.bf16.msra.mxu0 0
  %3639 = vmatprep.subr.bf16.mxu0 0
  %3640 = vmatpush1.bf16.msra.mxu0 0
  %3641 = vmatprep.subr.bf16.mxu0 0
  %3642 = vmatpush1.bf16.msra.mxu0 0
  %3643 = vmatprep.subr.bf16.mxu0 0
  %3644 = vmatpush1.bf16.msra.mxu0 0
  %3645 = vmatprep.subr.bf16.mxu0 0
  %3646 = vmatpush1.bf16.msra.mxu0 0
  %3647 = vmatprep.subr.bf16.mxu0 0
  %3648 = vmatpush1.bf16.msra.mxu0 0
  %3649 = vmatprep.subr.bf16.mxu0 0
  %3650 = vmatpush1.bf16.msra.mxu0 0
  %3651 = vmatprep.subr.bf16.mxu0 0
  %3652 = vmatpush1.bf16.msra.mxu0 0
  %3653 = vmatprep.subr.bf16.mxu0 0
  %3654 = vmatpush1.bf16.msra.mxu0 0
  %3655 = vmatprep.subr.bf16.mxu0 0
  %3656 = vmatpush1.bf16.msra.mxu0 0
  %3657 = vmatprep.subr.bf16.mxu0 0
  %3658 = vmatpush1.bf16.msra.mxu0 0
  %3659 = vmatprep.subr.bf16.mxu0 0
  %3660 = vmatpush1.bf16.msra.mxu0 0
  %3661 = vmatprep.mubr.bf16.mxu0 0
  %3662 = vmatmul.mubr.bf16.gmra.mrb[0].mxu0 %v3627
  %v3663 = vpop.f32.mrb[0].mxu0
  %v3664 = vadd.f32 0.0, %v3663
  %v3665 = vpop.f32.mrb[0].mxu0
  %v3666 = vpop.f32.mrb[0].mxu0
  %v3667 = vadd.f32 0.0, %v3666
  %v3668 = vpop.f32.mrb[0].mxu0
  %3669 = vdwg.mxu0
  %3670 = vrot.lane.b32.xlu0 %v3549, 120
  %v3671 = vpop.permute.xlu0 %3670
  %3672 = vrot.lane.b32.xlu0 %v3549, 88
  %v3673 = vpop.permute.xlu0 %3672
  %v3675 = vsel %vm161, %v3671, 0
  %v3678 = vsel %vm161, %v3673, 0
  %3680 = vmatprep.subr.bf16.mxu0 0
  %3681 = vmatpush1.bf16.xpose.msra.mxu0 %v3678
  %3682 = vmatprep.subr.bf16.mxu0 0
  %3683 = vmatpush1.bf16.xpose.msra.mxu0 0
  %3684 = vmatprep.subr.bf16.mxu0 0
  %3685 = vmatpush1.bf16.xpose.msra.mxu0 0
  %3686 = vmatprep.subr.bf16.mxu0 0
  %3687 = vmatpush1.bf16.xpose.msra.mxu0 0
  %3688 = vmatprep.subr.bf16.mxu0 0
  %3689 = vmatpush1.bf16.xpose.msra.mxu0 0
  %3690 = vmatprep.subr.bf16.mxu0 0
  %3691 = vmatpush1.bf16.xpose.msra.mxu0 0
  %3692 = vmatprep.subr.bf16.mxu0 0
  %3693 = vmatpush1.bf16.xpose.msra.mxu0 0
  %3694 = vmatprep.subr.bf16.mxu0 0
  %3695 = vmatpush1.bf16.xpose.msra.mxu0 0
  %3696 = vmatprep.subr.bf16.mxu0 0
  %3697 = vmatpush1.bf16.xpose.msra.mxu0 0
  %3698 = vmatprep.subr.bf16.mxu0 0
  %3699 = vmatpush1.bf16.xpose.msra.mxu0 0
  %3700 = vmatprep.subr.bf16.mxu0 0
  %3701 = vmatpush1.bf16.xpose.msra.mxu0 0
  %3702 = vmatprep.subr.bf16.mxu0 0
  %3703 = vmatpush1.bf16.xpose.msra.mxu0 0
  %3704 = vmatprep.subr.bf16.mxu0 0
  %3705 = vmatpush1.bf16.xpose.msra.mxu0 0
  %3706 = vmatprep.subr.bf16.mxu0 0
  %3707 = vmatpush1.bf16.xpose.msra.mxu0 0
  %3708 = vmatprep.subr.bf16.mxu0 0
  %3709 = vmatpush1.bf16.xpose.msra.mxu0 0
  %3710 = vmatprep.subr.bf16.mxu0 0
  %3711 = vmatpush1.bf16.xpose.msra.mxu0 0
  %3712 = vmatprep.mubr.bf16.mxu0 0
  %3713 = vmatmul.mubr.bf16.gmra.mrb[0].mxu0 %v3675
  %v3714 = vpop.f32.mrb[0].mxu0
  %v3715 = vadd.f32 %v77, %v3714
  %v3716 = vpop.f32.mrb[0].mxu0
  %v3717 = vpop.f32.mrb[0].mxu0
  %v3718 = vadd.f32 %v78, %v3717
  %v3719 = vpop.f32.mrb[0].mxu0
  %3720 = vdwg.mxu0
  %v3721 = vsel %vm209, %v3715, -inf
  %3722 = vmax.xlane.f32.xlu0 %v3721
  %v3723 = vpop.xlane.xlu0 %3722
  %v3724 = vsel %vm209, %v3718, -inf
  %3725 = vmax.xlane.f32.xlu0 %v3724
  %v3726 = vpop.xlane.xlu0 %3725
  %v3727 = vsub.f32 %v3715, %v3723
  %v3728 = vsub.f32 %v3718, %v3726
  %v3729 = vmul.f32 %v3727, 1.442695
  %v3730 = vpow.pop %v3729
  %v3731 = vmul.f32 %v3728, 1.442695
  %v3732 = vpow.pop %v3731
  %v3733 = vsel %vm209, %v3730, 0.0
  %3734 = vadd.xlane.f32.xlu0 %v3733
  %v3735 = vpop.xlane.xlu0 %3734
  %v3736 = vsel %vm209, %v3732, 0.0
  %3737 = vadd.xlane.f32.xlu0 %v3736
  %v3738 = vpop.xlane.xlu0 %3737
  %v3739 = vrcp.pop %v3735
  %v3740 = vrcp.pop %v3738
  %v3741 = vmul.f32 %v3730, %v3739
  %v3742 = vmul.f32 %v3732, %v3740
  %v3743 = vpack.c.bf16 %v3742, %v3741
  %3744 = vrot.lane.b32.xlu0 %v3549, 56
  %v3745 = vpop.permute.xlu0 %3744
  %v3748 = vsel %vm209, %v3743, 0
  %3750 = vmatprep.subr.bf16.mxu0 0
  %3751 = vmatpush1.bf16.msra.mxu0 %v3745
  %3752 = vmatprep.subr.bf16.mxu0 0
  %3753 = vmatpush1.bf16.msra.mxu0 0
  %3754 = vmatprep.subr.bf16.mxu0 0
  %3755 = vmatpush1.bf16.msra.mxu0 0
  %3756 = vmatprep.subr.bf16.mxu0 0
  %3757 = vmatpush1.bf16.msra.mxu0 0
  %3758 = vmatprep.subr.bf16.mxu0 0
  %3759 = vmatpush1.bf16.msra.mxu0 0
  %3760 = vmatprep.subr.bf16.mxu0 0
  %3761 = vmatpush1.bf16.msra.mxu0 0
  %3762 = vmatprep.subr.bf16.mxu0 0
  %3763 = vmatpush1.bf16.msra.mxu0 0
  %3764 = vmatprep.subr.bf16.mxu0 0
  %3765 = vmatpush1.bf16.msra.mxu0 0
  %3766 = vmatprep.subr.bf16.mxu0 0
  %3767 = vmatpush1.bf16.msra.mxu0 0
  %3768 = vmatprep.subr.bf16.mxu0 0
  %3769 = vmatpush1.bf16.msra.mxu0 0
  %3770 = vmatprep.subr.bf16.mxu0 0
  %3771 = vmatpush1.bf16.msra.mxu0 0
  %3772 = vmatprep.subr.bf16.mxu0 0
  %3773 = vmatpush1.bf16.msra.mxu0 0
  %3774 = vmatprep.subr.bf16.mxu0 0
  %3775 = vmatpush1.bf16.msra.mxu0 0
  %3776 = vmatprep.subr.bf16.mxu0 0
  %3777 = vmatpush1.bf16.msra.mxu0 0
  %3778 = vmatprep.subr.bf16.mxu0 0
  %3779 = vmatpush1.bf16.msra.mxu0 0
  %3780 = vmatprep.subr.bf16.mxu0 0
  %3781 = vmatpush1.bf16.msra.mxu0 0
  %3782 = vmatprep.mubr.bf16.mxu0 0
  %3783 = vmatmul.mubr.bf16.gmra.mrb[0].mxu0 %v3748
  %v3784 = vpop.f32.mrb[0].mxu0
  %v3785 = vadd.f32 0.0, %v3784
  %v3786 = vpop.f32.mrb[0].mxu0
  %v3787 = vpop.f32.mrb[0].mxu0
  %v3788 = vadd.f32 0.0, %v3787
  %v3789 = vpop.f32.mrb[0].mxu0
  %3790 = vdwg.mxu0
  %3791 = vrot.lane.b32.xlu0 %v3549, 112
  %v3792 = vpop.permute.xlu0 %3791
  %3793 = vrot.lane.b32.xlu0 %v3549, 80
  %v3794 = vpop.permute.xlu0 %3793
  %v3796 = vsel %vm161, %v3792, 0
  %v3799 = vsel %vm161, %v3794, 0
  %3801 = vmatprep.subr.bf16.mxu0 0
  %3802 = vmatpush1.bf16.xpose.msra.mxu0 %v3799
  %3803 = vmatprep.subr.bf16.mxu0 0
  %3804 = vmatpush1.bf16.xpose.msra.mxu0 0
  %3805 = vmatprep.subr.bf16.mxu0 0
  %3806 = vmatpush1.bf16.xpose.msra.mxu0 0
  %3807 = vmatprep.subr.bf16.mxu0 0
  %3808 = vmatpush1.bf16.xpose.msra.mxu0 0
  %3809 = vmatprep.subr.bf16.mxu0 0
  %3810 = vmatpush1.bf16.xpose.msra.mxu0 0
  %3811 = vmatprep.subr.bf16.mxu0 0
  %3812 = vmatpush1.bf16.xpose.msra.mxu0 0
  %3813 = vmatprep.subr.bf16.mxu0 0
  %3814 = vmatpush1.bf16.xpose.msra.mxu0 0
  %3815 = vmatprep.subr.bf16.mxu0 0
  %3816 = vmatpush1.bf16.xpose.msra.mxu0 0
  %3817 = vmatprep.subr.bf16.mxu0 0
  %3818 = vmatpush1.bf16.xpose.msra.mxu0 0
  %3819 = vmatprep.subr.bf16.mxu0 0
  %3820 = vmatpush1.bf16.xpose.msra.mxu0 0
  %3821 = vmatprep.subr.bf16.mxu0 0
  %3822 = vmatpush1.bf16.xpose.msra.mxu0 0
  %3823 = vmatprep.subr.bf16.mxu0 0
  %3824 = vmatpush1.bf16.xpose.msra.mxu0 0
  %3825 = vmatprep.subr.bf16.mxu0 0
  %3826 = vmatpush1.bf16.xpose.msra.mxu0 0
  %3827 = vmatprep.subr.bf16.mxu0 0
  %3828 = vmatpush1.bf16.xpose.msra.mxu0 0
  %3829 = vmatprep.subr.bf16.mxu0 0
  %3830 = vmatpush1.bf16.xpose.msra.mxu0 0
  %3831 = vmatprep.subr.bf16.mxu0 0
  %3832 = vmatpush1.bf16.xpose.msra.mxu0 0
  %3833 = vmatprep.mubr.bf16.mxu0 0
  %3834 = vmatmul.mubr.bf16.gmra.mrb[0].mxu0 %v3796
  %v3835 = vpop.f32.mrb[0].mxu0
  %v3836 = vadd.f32 %v77, %v3835
  %v3837 = vpop.f32.mrb[0].mxu0
  %v3838 = vpop.f32.mrb[0].mxu0
  %v3839 = vadd.f32 %v78, %v3838
  %v3840 = vpop.f32.mrb[0].mxu0
  %3841 = vdwg.mxu0
  %v3842 = vsel %vm209, %v3836, -inf
  %3843 = vmax.xlane.f32.xlu0 %v3842
  %v3844 = vpop.xlane.xlu0 %3843
  %v3845 = vsel %vm209, %v3839, -inf
  %3846 = vmax.xlane.f32.xlu0 %v3845
  %v3847 = vpop.xlane.xlu0 %3846
  %v3848 = vsub.f32 %v3836, %v3844
  %v3849 = vsub.f32 %v3839, %v3847
  %v3850 = vmul.f32 %v3848, 1.442695
  %v3851 = vpow.pop %v3850
  %v3852 = vmul.f32 %v3849, 1.442695
  %v3853 = vpow.pop %v3852
  %v3854 = vsel %vm209, %v3851, 0.0
  %3855 = vadd.xlane.f32.xlu0 %v3854
  %v3856 = vpop.xlane.xlu0 %3855
  %v3857 = vsel %vm209, %v3853, 0.0
  %3858 = vadd.xlane.f32.xlu0 %v3857
  %v3859 = vpop.xlane.xlu0 %3858
  %v3860 = vrcp.pop %v3856
  %v3861 = vrcp.pop %v3859
  %v3862 = vmul.f32 %v3851, %v3860
  %v3863 = vmul.f32 %v3853, %v3861
  %v3864 = vpack.c.bf16 %v3863, %v3862
  %3865 = vrot.lane.b32.xlu0 %v3549, 48
  %v3866 = vpop.permute.xlu0 %3865
  %v3869 = vsel %vm209, %v3864, 0
  %3871 = vmatprep.subr.bf16.mxu0 0
  %3872 = vmatpush1.bf16.msra.mxu0 %v3866
  %3873 = vmatprep.subr.bf16.mxu0 0
  %3874 = vmatpush1.bf16.msra.mxu0 0
  %3875 = vmatprep.subr.bf16.mxu0 0
  %3876 = vmatpush1.bf16.msra.mxu0 0
  %3877 = vmatprep.subr.bf16.mxu0 0
  %3878 = vmatpush1.bf16.msra.mxu0 0
  %3879 = vmatprep.subr.bf16.mxu0 0
  %3880 = vmatpush1.bf16.msra.mxu0 0
  %3881 = vmatprep.subr.bf16.mxu0 0
  %3882 = vmatpush1.bf16.msra.mxu0 0
  %3883 = vmatprep.subr.bf16.mxu0 0
  %3884 = vmatpush1.bf16.msra.mxu0 0
  %3885 = vmatprep.subr.bf16.mxu0 0
  %3886 = vmatpush1.bf16.msra.mxu0 0
  %3887 = vmatprep.subr.bf16.mxu0 0
  %3888 = vmatpush1.bf16.msra.mxu0 0
  %3889 = vmatprep.subr.bf16.mxu0 0
  %3890 = vmatpush1.bf16.msra.mxu0 0
  %3891 = vmatprep.subr.bf16.mxu0 0
  %3892 = vmatpush1.bf16.msra.mxu0 0
  %3893 = vmatprep.subr.bf16.mxu0 0
  %3894 = vmatpush1.bf16.msra.mxu0 0
  %3895 = vmatprep.subr.bf16.mxu0 0
  %3896 = vmatpush1.bf16.msra.mxu0 0
  %3897 = vmatprep.subr.bf16.mxu0 0
  %3898 = vmatpush1.bf16.msra.mxu0 0
  %3899 = vmatprep.subr.bf16.mxu0 0
  %3900 = vmatpush1.bf16.msra.mxu0 0
  %3901 = vmatprep.subr.bf16.mxu0 0
  %3902 = vmatpush1.bf16.msra.mxu0 0
  %3903 = vmatprep.mubr.bf16.mxu0 0
  %3904 = vmatmul.mubr.bf16.gmra.mrb[0].mxu0 %v3869
  %v3905 = vpop.f32.mrb[0].mxu0
  %v3906 = vadd.f32 0.0, %v3905
  %v3907 = vpop.f32.mrb[0].mxu0
  %v3908 = vpop.f32.mrb[0].mxu0
  %v3909 = vadd.f32 0.0, %v3908
  %v3910 = vpop.f32.mrb[0].mxu0
  %3911 = vdwg.mxu0
  %3912 = vrot.lane.b32.xlu0 %v3549, 104
  %v3913 = vpop.permute.xlu0 %3912
  %3914 = vrot.lane.b32.xlu0 %v3549, 72
  %v3915 = vpop.permute.xlu0 %3914
  %v3917 = vsel %vm161, %v3913, 0
  %v3920 = vsel %vm161, %v3915, 0
  %3922 = vmatprep.subr.bf16.mxu0 0
  %3923 = vmatpush1.bf16.xpose.msra.mxu0 %v3920
  %3924 = vmatprep.subr.bf16.mxu0 0
  %3925 = vmatpush1.bf16.xpose.msra.mxu0 0
  %3926 = vmatprep.subr.bf16.mxu0 0
  %3927 = vmatpush1.bf16.xpose.msra.mxu0 0
  %3928 = vmatprep.subr.bf16.mxu0 0
  %3929 = vmatpush1.bf16.xpose.msra.mxu0 0
  %3930 = vmatprep.subr.bf16.mxu0 0
  %3931 = vmatpush1.bf16.xpose.msra.mxu0 0
  %3932 = vmatprep.subr.bf16.mxu0 0
  %3933 = vmatpush1.bf16.xpose.msra.mxu0 0
  %3934 = vmatprep.subr.bf16.mxu0 0
  %3935 = vmatpush1.bf16.xpose.msra.mxu0 0
  %3936 = vmatprep.subr.bf16.mxu0 0
  %3937 = vmatpush1.bf16.xpose.msra.mxu0 0
  %3938 = vmatprep.subr.bf16.mxu0 0
  %3939 = vmatpush1.bf16.xpose.msra.mxu0 0
  %3940 = vmatprep.subr.bf16.mxu0 0
  %3941 = vmatpush1.bf16.xpose.msra.mxu0 0
  %3942 = vmatprep.subr.bf16.mxu0 0
  %3943 = vmatpush1.bf16.xpose.msra.mxu0 0
  %3944 = vmatprep.subr.bf16.mxu0 0
  %3945 = vmatpush1.bf16.xpose.msra.mxu0 0
  %3946 = vmatprep.subr.bf16.mxu0 0
  %3947 = vmatpush1.bf16.xpose.msra.mxu0 0
  %3948 = vmatprep.subr.bf16.mxu0 0
  %3949 = vmatpush1.bf16.xpose.msra.mxu0 0
  %3950 = vmatprep.subr.bf16.mxu0 0
  %3951 = vmatpush1.bf16.xpose.msra.mxu0 0
  %3952 = vmatprep.subr.bf16.mxu0 0
  %3953 = vmatpush1.bf16.xpose.msra.mxu0 0
  %3954 = vmatprep.mubr.bf16.mxu0 0
  %3955 = vmatmul.mubr.bf16.gmra.mrb[0].mxu0 %v3917
  %v3956 = vpop.f32.mrb[0].mxu0
  %v3957 = vadd.f32 %v77, %v3956
  %v3958 = vpop.f32.mrb[0].mxu0
  %v3959 = vpop.f32.mrb[0].mxu0
  %v3960 = vadd.f32 %v78, %v3959
  %v3961 = vpop.f32.mrb[0].mxu0
  %3962 = vdwg.mxu0
  %v3963 = vsel %vm209, %v3957, -inf
  %3964 = vmax.xlane.f32.xlu0 %v3963
  %v3965 = vpop.xlane.xlu0 %3964
  %v3966 = vsel %vm209, %v3960, -inf
  %3967 = vmax.xlane.f32.xlu0 %v3966
  %v3968 = vpop.xlane.xlu0 %3967
  %v3969 = vsub.f32 %v3957, %v3965
  %v3970 = vsub.f32 %v3960, %v3968
  %v3971 = vmul.f32 %v3969, 1.442695
  %v3972 = vpow.pop %v3971
  %v3973 = vmul.f32 %v3970, 1.442695
  %v3974 = vpow.pop %v3973
  %v3975 = vsel %vm209, %v3972, 0.0
  %3976 = vadd.xlane.f32.xlu0 %v3975
  %v3977 = vpop.xlane.xlu0 %3976
  %v3978 = vsel %vm209, %v3974, 0.0
  %3979 = vadd.xlane.f32.xlu0 %v3978
  %v3980 = vpop.xlane.xlu0 %3979
  %v3981 = vrcp.pop %v3977
  %v3982 = vrcp.pop %v3980
  %v3983 = vmul.f32 %v3972, %v3981
  %v3984 = vmul.f32 %v3974, %v3982
  %v3985 = vpack.c.bf16 %v3984, %v3983
  %3986 = vrot.lane.b32.xlu0 %v3549, 40
  %v3987 = vpop.permute.xlu0 %3986
  %v3990 = vsel %vm209, %v3985, 0
  %3992 = vmatprep.subr.bf16.mxu0 0
  %3993 = vmatpush1.bf16.msra.mxu0 %v3987
  %3994 = vmatprep.subr.bf16.mxu0 0
  %3995 = vmatpush1.bf16.msra.mxu0 0
  %3996 = vmatprep.subr.bf16.mxu0 0
  %3997 = vmatpush1.bf16.msra.mxu0 0
  %3998 = vmatprep.subr.bf16.mxu0 0
  %3999 = vmatpush1.bf16.msra.mxu0 0
  %4000 = vmatprep.subr.bf16.mxu0 0
  %4001 = vmatpush1.bf16.msra.mxu0 0
  %4002 = vmatprep.subr.bf16.mxu0 0
  %4003 = vmatpush1.bf16.msra.mxu0 0
  %4004 = vmatprep.subr.bf16.mxu0 0
  %4005 = vmatpush1.bf16.msra.mxu0 0
  %4006 = vmatprep.subr.bf16.mxu0 0
  %4007 = vmatpush1.bf16.msra.mxu0 0
  %4008 = vmatprep.subr.bf16.mxu0 0
  %4009 = vmatpush1.bf16.msra.mxu0 0
  %4010 = vmatprep.subr.bf16.mxu0 0
  %4011 = vmatpush1.bf16.msra.mxu0 0
  %4012 = vmatprep.subr.bf16.mxu0 0
  %4013 = vmatpush1.bf16.msra.mxu0 0
  %4014 = vmatprep.subr.bf16.mxu0 0
  %4015 = vmatpush1.bf16.msra.mxu0 0
  %4016 = vmatprep.subr.bf16.mxu0 0
  %4017 = vmatpush1.bf16.msra.mxu0 0
  %4018 = vmatprep.subr.bf16.mxu0 0
  %4019 = vmatpush1.bf16.msra.mxu0 0
  %4020 = vmatprep.subr.bf16.mxu0 0
  %4021 = vmatpush1.bf16.msra.mxu0 0
  %4022 = vmatprep.subr.bf16.mxu0 0
  %4023 = vmatpush1.bf16.msra.mxu0 0
  %4024 = vmatprep.mubr.bf16.mxu0 0
  %4025 = vmatmul.mubr.bf16.gmra.mrb[0].mxu0 %v3990
  %v4026 = vpop.f32.mrb[0].mxu0
  %v4027 = vadd.f32 0.0, %v4026
  %v4028 = vpop.f32.mrb[0].mxu0
  %v4029 = vpop.f32.mrb[0].mxu0
  %v4030 = vadd.f32 0.0, %v4029
  %v4031 = vpop.f32.mrb[0].mxu0
  %4032 = vdwg.mxu0
  %4035 = vrot.lane.b32.xlu0 %v3785, 8
  %v4036 = vpop.permute.xlu0 %4035
  %4037 = vrot.lane.b32.xlu0 %v3788, 8
  %v4038 = vpop.permute.xlu0 %4037
  %4043 = vrot.lane.b32.xlu0 %v3906, 16
  %v4044 = vpop.permute.xlu0 %4043
  %4045 = vrot.lane.b32.xlu0 %v3909, 16
  %v4046 = vpop.permute.xlu0 %4045
  %4051 = vrot.lane.b32.xlu0 %v4027, 24
  %v4052 = vpop.permute.xlu0 %4051
  %4053 = vrot.lane.b32.xlu0 %v4030, 24
  %v4054 = vpop.permute.xlu0 %4053
  %v4057 = vsel %vm161, %v3664, %v4036
  %v4058 = vsel %vm161, %v3667, %v4038
  %v4059 = vsel %vm209, %v4057, %v4044
  %v4060 = vsel %vm209, %v4058, %v4046
  %v4061 = vsel %vm671, %v4059, %v4052
  %v4062 = vsel %vm671, %v4060, %v4054
  %v4063 = vpack.c.bf16 %v4062, %v4061
  %v4064 = vlaneseq
  %v4065 = vshrl.u32 %v4064, 7
  %v4066 = vsub.s32 0, %v4065
  %v4067 = vrot.slane %v3474, %v4066
  %v4072 = vunpack.c.l.b16 %v3484
  %v4073 = vunpack.c.l.b16 %v3485
  %v4074 = vunpack.c.l.b16 %v3486
  %v4075 = vunpack.c.l.b16 %v3487
  %v4076 = vpack.c.b16 %v4073, %v4072
  %v4077 = vpack.c.b16 %v4075, %v4074
  %v4081 = vsel %vm112, %v4063, 0
  %4083 = vmatprep.subr.bf16.mxu0 0
  %4084 = vmatpush1.bf16.msra.mxu0 %v4076
  %4085 = vmatprep.subr.bf16.mxu0 0
  %4086 = vmatpush1.bf16.msra.mxu0 %v4077
  %4087 = vmatprep.subr.bf16.mxu0 0
  %4088 = vmatpush1.bf16.msra.mxu0 0
  %4089 = vmatprep.subr.bf16.mxu0 0
  %4090 = vmatpush1.bf16.msra.mxu0 0
  %4091 = vmatprep.subr.bf16.mxu0 0
  %4092 = vmatpush1.bf16.msra.mxu0 0
  %4093 = vmatprep.subr.bf16.mxu0 0
  %4094 = vmatpush1.bf16.msra.mxu0 0
  %4095 = vmatprep.subr.bf16.mxu0 0
  %4096 = vmatpush1.bf16.msra.mxu0 0
  %4097 = vmatprep.subr.bf16.mxu0 0
  %4098 = vmatpush1.bf16.msra.mxu0 0
  %4099 = vmatprep.subr.bf16.mxu0 0
  %4100 = vmatpush1.bf16.msra.mxu0 0
  %4101 = vmatprep.subr.bf16.mxu0 0
  %4102 = vmatpush1.bf16.msra.mxu0 0
  %4103 = vmatprep.subr.bf16.mxu0 0
  %4104 = vmatpush1.bf16.msra.mxu0 0
  %4105 = vmatprep.subr.bf16.mxu0 0
  %4106 = vmatpush1.bf16.msra.mxu0 0
  %4107 = vmatprep.subr.bf16.mxu0 0
  %4108 = vmatpush1.bf16.msra.mxu0 0
  %4109 = vmatprep.subr.bf16.mxu0 0
  %4110 = vmatpush1.bf16.msra.mxu0 0
  %4111 = vmatprep.subr.bf16.mxu0 0
  %4112 = vmatpush1.bf16.msra.mxu0 0
  %4113 = vmatprep.subr.bf16.mxu0 0
  %4114 = vmatpush1.bf16.msra.mxu0 0
  %4115 = vmatprep.mubr.bf16.mxu0 0
  %4116 = vmatmul.mubr.bf16.gmra.mrb[0].mxu0 %v4081
  %v4117 = vpop.f32.mrb[0].mxu0
  %v4118 = vadd.f32 %v4067, %v4117
  %v4119 = vpop.f32.mrb[0].mxu0
  %v4120 = vpop.f32.mrb[0].mxu0
  %v4121 = vadd.f32 %v4067, %v4120
  %v4122 = vpop.f32.mrb[0].mxu0
  %4123 = vdwg.mxu0
  %v4124 = vadd.f32 %v3471, %v4118
  %v4125 = vadd.f32 %v3472, %v4121
  %v4126 = vsel %vm112, %v4124, 0.0
  %4127 = vadd.xlane.f32.xlu0 %v4126
  %v4128 = vpop.xlane.xlu0 %4127
  %v4129 = vsel %vm112, %v4125, 0.0
  %4130 = vadd.xlane.f32.xlu0 %v4129
  %v4131 = vpop.xlane.xlu0 %4130
  %v4132 = vmul.f32 %v4128, %v743
  %v4133 = vmul.f32 %v4131, %v743
  %v4134 = vsub.f32 %v4124, %v4132
  %v4135 = vsub.f32 %v4125, %v4133
  %v4136 = vmul.f32 %v4134, %v4134
  %v4137 = vmul.f32 %v4135, %v4135
  %v4138 = vsel %vm112, %v4136, 0.0
  %4139 = vadd.xlane.f32.xlu0 %v4138
  %v4140 = vpop.xlane.xlu0 %4139
  %v4141 = vsel %vm112, %v4137, 0.0
  %4142 = vadd.xlane.f32.xlu0 %v4141
  %v4143 = vpop.xlane.xlu0 %4142
  %v4144 = vmul.f32 %v4140, %v743
  %v4145 = vmul.f32 %v4143, %v743
  %v4146 = vadd.f32 %v4144, 1e-05
  %v4147 = vadd.f32 %v4145, 1e-05
  %v4148 = vrsqrt.pop %v4146
  %v4149 = vrsqrt.pop %v4147
  %v4150 = vmul.f32 %v4134, %v4148
  %v4151 = vmul.f32 %v4135, %v4149
  %v4152 = vlaneseq
  %v4153 = vshrl.u32 %v4152, 7
  %v4154 = vsub.s32 3, %v4153
  %v4155 = vrot.slane %v3474, %v4154
  %v4156 = vmul.f32 %v4150, %v4155
  %v4157 = vmul.f32 %v4151, %v4155
  %v4158 = vlaneseq
  %v4159 = vshrl.u32 %v4158, 7
  %v4160 = vsub.s32 4, %v4159
  %v4161 = vrot.slane %v3474, %v4160
  %v4162 = vadd.f32 %v4156, %v4161
  %v4163 = vadd.f32 %v4157, %v4161
  %s4164 = scalar_lea.vmem %s14, 16
  %v4165 = vld [vmem:[%s4164] sm:$0xf]
  %v4166 = vld [vmem:[%s4164 + $0x4] sm:$0xf]
  %v4167 = vld [vmem:[%s4164 + $0x8] sm:$0xf]
  %v4168 = vld [vmem:[%s4164 + $0xc] sm:$0xf]
  %s4169 = scalar_lea.vmem %s15, 16
  %v4170 = vld [vmem:[%s4169] sm:$0xf]
  %v4171 = vld [vmem:[%s4169 + $0x4] sm:$0xf]
  %v4172 = vld [vmem:[%s4169 + $0x8] sm:$0xf]
  %v4173 = vld [vmem:[%s4169 + $0xc] sm:$0xf]
  %v4174 = vpack.c.bf16 %v4163, %v4162
  %v4175 = vlaneseq
  %v4176 = vshrl.u32 %v4175, 7
  %v4177 = vsub.s32 1, %v4176
  %v4178 = vrot.slane %v3477, %v4177
  %v4183 = vunpack.c.l.b16 %v4165
  %v4184 = vunpack.c.l.b16 %v4166
  %v4185 = vunpack.c.l.b16 %v4167
  %v4186 = vunpack.c.l.b16 %v4168
  %v4187 = vpack.c.b16 %v4184, %v4183
  %v4188 = vpack.c.b16 %v4186, %v4185
  %v4192 = vsel %vm112, %v4174, 0
  %4194 = vmatprep.subr.bf16.mxu0 0
  %4195 = vmatpush1.bf16.msra.mxu0 %v4187
  %4196 = vmatprep.subr.bf16.mxu0 0
  %4197 = vmatpush1.bf16.msra.mxu0 %v4188
  %4198 = vmatprep.subr.bf16.mxu0 0
  %4199 = vmatpush1.bf16.msra.mxu0 0
  %4200 = vmatprep.subr.bf16.mxu0 0
  %4201 = vmatpush1.bf16.msra.mxu0 0
  %4202 = vmatprep.subr.bf16.mxu0 0
  %4203 = vmatpush1.bf16.msra.mxu0 0
  %4204 = vmatprep.subr.bf16.mxu0 0
  %4205 = vmatpush1.bf16.msra.mxu0 0
  %4206 = vmatprep.subr.bf16.mxu0 0
  %4207 = vmatpush1.bf16.msra.mxu0 0
  %4208 = vmatprep.subr.bf16.mxu0 0
  %4209 = vmatpush1.bf16.msra.mxu0 0
  %4210 = vmatprep.subr.bf16.mxu0 0
  %4211 = vmatpush1.bf16.msra.mxu0 0
  %4212 = vmatprep.subr.bf16.mxu0 0
  %4213 = vmatpush1.bf16.msra.mxu0 0
  %4214 = vmatprep.subr.bf16.mxu0 0
  %4215 = vmatpush1.bf16.msra.mxu0 0
  %4216 = vmatprep.subr.bf16.mxu0 0
  %4217 = vmatpush1.bf16.msra.mxu0 0
  %4218 = vmatprep.subr.bf16.mxu0 0
  %4219 = vmatpush1.bf16.msra.mxu0 0
  %4220 = vmatprep.subr.bf16.mxu0 0
  %4221 = vmatpush1.bf16.msra.mxu0 0
  %4222 = vmatprep.subr.bf16.mxu0 0
  %4223 = vmatpush1.bf16.msra.mxu0 0
  %4224 = vmatprep.subr.bf16.mxu0 0
  %4225 = vmatpush1.bf16.msra.mxu0 0
  %4226 = vmatprep.mubr.bf16.mxu0 0
  %4227 = vmatmul.mubr.bf16.gmra.mrb[0].mxu0 %v4192
  %v4228 = vpop.f32.mrb[0].mxu0
  %v4229 = vadd.f32 %v4178, %v4228
  %v4230 = vpop.f32.mrb[0].mxu0
  %v4231 = vpop.f32.mrb[0].mxu0
  %v4232 = vadd.f32 %v4178, %v4231
  %v4233 = vpop.f32.mrb[0].mxu0
  %4234 = vdwg.mxu0
  %4235 = vrot.lane.b32.xlu0 %v4187, 96
  %v4236 = vpop.permute.xlu0 %4235
  %4237 = vrot.lane.b32.xlu0 %v4188, 96
  %v4238 = vpop.permute.xlu0 %4237
  %4242 = vrot.lane.b32.xlu0 %v4178, 96
  %v4243 = vpop.permute.xlu0 %4242
  %4245 = vmatprep.subr.bf16.mxu0 0
  %4246 = vmatpush1.bf16.msra.mxu0 %v4236
  %4247 = vmatprep.subr.bf16.mxu0 0
  %4248 = vmatpush1.bf16.msra.mxu0 %v4238
  %4249 = vmatprep.subr.bf16.mxu0 0
  %4250 = vmatpush1.bf16.msra.mxu0 0
  %4251 = vmatprep.subr.bf16.mxu0 0
  %4252 = vmatpush1.bf16.msra.mxu0 0
  %4253 = vmatprep.subr.bf16.mxu0 0
  %4254 = vmatpush1.bf16.msra.mxu0 0
  %4255 = vmatprep.subr.bf16.mxu0 0
  %4256 = vmatpush1.bf16.msra.mxu0 0
  %4257 = vmatprep.subr.bf16.mxu0 0
  %4258 = vmatpush1.bf16.msra.mxu0 0
  %4259 = vmatprep.subr.bf16.mxu0 0
  %4260 = vmatpush1.bf16.msra.mxu0 0
  %4261 = vmatprep.subr.bf16.mxu0 0
  %4262 = vmatpush1.bf16.msra.mxu0 0
  %4263 = vmatprep.subr.bf16.mxu0 0
  %4264 = vmatpush1.bf16.msra.mxu0 0
  %4265 = vmatprep.subr.bf16.mxu0 0
  %4266 = vmatpush1.bf16.msra.mxu0 0
  %4267 = vmatprep.subr.bf16.mxu0 0
  %4268 = vmatpush1.bf16.msra.mxu0 0
  %4269 = vmatprep.subr.bf16.mxu0 0
  %4270 = vmatpush1.bf16.msra.mxu0 0
  %4271 = vmatprep.subr.bf16.mxu0 0
  %4272 = vmatpush1.bf16.msra.mxu0 0
  %4273 = vmatprep.subr.bf16.mxu0 0
  %4274 = vmatpush1.bf16.msra.mxu0 0
  %4275 = vmatprep.subr.bf16.mxu0 0
  %4276 = vmatpush1.bf16.msra.mxu0 0
  %4277 = vmatprep.mubr.bf16.mxu0 0
  %4278 = vmatmul.mubr.bf16.gmra.mrb[0].mxu0 %v2624
  %v4279 = vpop.f32.mrb[0].mxu0
  %v4280 = vadd.f32 %v4243, %v4279
  %v4281 = vpop.f32.mrb[0].mxu0
  %v4282 = vpop.f32.mrb[0].mxu0
  %v4283 = vadd.f32 %v4243, %v4282
  %v4284 = vpop.f32.mrb[0].mxu0
  %4285 = vdwg.mxu0
  %v4286 = vpack.c.bf16 %v4232, %v4229
  %v4287 = vpack.c.bf16 %v4283, %v4280
  %v4289 = vsel %vm161, %v4286, 0
  %v4292 = vsel %vm161, %v4287, 0
  %4294 = vmatprep.subr.bf16.mxu0 0
  %4295 = vmatpush1.bf16.xpose.msra.mxu0 %v4292
  %4296 = vmatprep.subr.bf16.mxu0 0
  %4297 = vmatpush1.bf16.xpose.msra.mxu0 0
  %4298 = vmatprep.subr.bf16.mxu0 0
  %4299 = vmatpush1.bf16.xpose.msra.mxu0 0
  %4300 = vmatprep.subr.bf16.mxu0 0
  %4301 = vmatpush1.bf16.xpose.msra.mxu0 0
  %4302 = vmatprep.subr.bf16.mxu0 0
  %4303 = vmatpush1.bf16.xpose.msra.mxu0 0
  %4304 = vmatprep.subr.bf16.mxu0 0
  %4305 = vmatpush1.bf16.xpose.msra.mxu0 0
  %4306 = vmatprep.subr.bf16.mxu0 0
  %4307 = vmatpush1.bf16.xpose.msra.mxu0 0
  %4308 = vmatprep.subr.bf16.mxu0 0
  %4309 = vmatpush1.bf16.xpose.msra.mxu0 0
  %4310 = vmatprep.subr.bf16.mxu0 0
  %4311 = vmatpush1.bf16.xpose.msra.mxu0 0
  %4312 = vmatprep.subr.bf16.mxu0 0
  %4313 = vmatpush1.bf16.xpose.msra.mxu0 0
  %4314 = vmatprep.subr.bf16.mxu0 0
  %4315 = vmatpush1.bf16.xpose.msra.mxu0 0
  %4316 = vmatprep.subr.bf16.mxu0 0
  %4317 = vmatpush1.bf16.xpose.msra.mxu0 0
  %4318 = vmatprep.subr.bf16.mxu0 0
  %4319 = vmatpush1.bf16.xpose.msra.mxu0 0
  %4320 = vmatprep.subr.bf16.mxu0 0
  %4321 = vmatpush1.bf16.xpose.msra.mxu0 0
  %4322 = vmatprep.subr.bf16.mxu0 0
  %4323 = vmatpush1.bf16.xpose.msra.mxu0 0
  %4324 = vmatprep.subr.bf16.mxu0 0
  %4325 = vmatpush1.bf16.xpose.msra.mxu0 0
  %4326 = vmatprep.mubr.bf16.mxu0 0
  %4327 = vmatmul.mubr.bf16.gmra.mrb[0].mxu0 %v4289
  %v4328 = vpop.f32.mrb[0].mxu0
  %v4329 = vadd.f32 %v79, %v4328
  %v4330 = vpop.f32.mrb[0].mxu0
  %v4331 = vpop.f32.mrb[0].mxu0
  %v4332 = vadd.f32 %v80, %v4331
  %v4333 = vpop.f32.mrb[0].mxu0
  %4334 = vdwg.mxu0
  %v4335 = vsel %vm209, %v4329, -inf
  %4336 = vmax.xlane.f32.xlu0 %v4335
  %v4337 = vpop.xlane.xlu0 %4336
  %v4338 = vsel %vm209, %v4332, -inf
  %4339 = vmax.xlane.f32.xlu0 %v4338
  %v4340 = vpop.xlane.xlu0 %4339
  %v4341 = vsub.f32 %v4329, %v4337
  %v4342 = vsub.f32 %v4332, %v4340
  %v4343 = vmul.f32 %v4341, 1.442695
  %v4344 = vpow.pop %v4343
  %v4345 = vmul.f32 %v4342, 1.442695
  %v4346 = vpow.pop %v4345
  %v4347 = vsel %vm209, %v4344, 0.0
  %4348 = vadd.xlane.f32.xlu0 %v4347
  %v4349 = vpop.xlane.xlu0 %4348
  %v4350 = vsel %vm209, %v4346, 0.0
  %4351 = vadd.xlane.f32.xlu0 %v4350
  %v4352 = vpop.xlane.xlu0 %4351
  %v4353 = vrcp.pop %v4349
  %v4354 = vrcp.pop %v4352
  %v4355 = vmul.f32 %v4344, %v4353
  %v4356 = vmul.f32 %v4346, %v4354
  %v4357 = vpack.c.bf16 %v4356, %v4355
  %4359 = vrot.lane.b32.xlu0 %v4287, 96
  %v4360 = vpop.permute.xlu0 %4359
  %v4363 = vsel %vm209, %v4357, 0
  %4365 = vmatprep.subr.bf16.mxu0 0
  %4366 = vmatpush1.bf16.msra.mxu0 %v4360
  %4367 = vmatprep.subr.bf16.mxu0 0
  %4368 = vmatpush1.bf16.msra.mxu0 0
  %4369 = vmatprep.subr.bf16.mxu0 0
  %4370 = vmatpush1.bf16.msra.mxu0 0
  %4371 = vmatprep.subr.bf16.mxu0 0
  %4372 = vmatpush1.bf16.msra.mxu0 0
  %4373 = vmatprep.subr.bf16.mxu0 0
  %4374 = vmatpush1.bf16.msra.mxu0 0
  %4375 = vmatprep.subr.bf16.mxu0 0
  %4376 = vmatpush1.bf16.msra.mxu0 0
  %4377 = vmatprep.subr.bf16.mxu0 0
  %4378 = vmatpush1.bf16.msra.mxu0 0
  %4379 = vmatprep.subr.bf16.mxu0 0
  %4380 = vmatpush1.bf16.msra.mxu0 0
  %4381 = vmatprep.subr.bf16.mxu0 0
  %4382 = vmatpush1.bf16.msra.mxu0 0
  %4383 = vmatprep.subr.bf16.mxu0 0
  %4384 = vmatpush1.bf16.msra.mxu0 0
  %4385 = vmatprep.subr.bf16.mxu0 0
  %4386 = vmatpush1.bf16.msra.mxu0 0
  %4387 = vmatprep.subr.bf16.mxu0 0
  %4388 = vmatpush1.bf16.msra.mxu0 0
  %4389 = vmatprep.subr.bf16.mxu0 0
  %4390 = vmatpush1.bf16.msra.mxu0 0
  %4391 = vmatprep.subr.bf16.mxu0 0
  %4392 = vmatpush1.bf16.msra.mxu0 0
  %4393 = vmatprep.subr.bf16.mxu0 0
  %4394 = vmatpush1.bf16.msra.mxu0 0
  %4395 = vmatprep.subr.bf16.mxu0 0
  %4396 = vmatpush1.bf16.msra.mxu0 0
  %4397 = vmatprep.mubr.bf16.mxu0 0
  %4398 = vmatmul.mubr.bf16.gmra.mrb[0].mxu0 %v4363
  %v4399 = vpop.f32.mrb[0].mxu0
  %v4400 = vadd.f32 0.0, %v4399
  %v4401 = vpop.f32.mrb[0].mxu0
  %v4402 = vpop.f32.mrb[0].mxu0
  %v4403 = vadd.f32 0.0, %v4402
  %v4404 = vpop.f32.mrb[0].mxu0
  %4405 = vdwg.mxu0
  %4407 = vrot.lane.b32.xlu0 %v4286, 120
  %v4408 = vpop.permute.xlu0 %4407
  %4409 = vrot.lane.b32.xlu0 %v4287, 120
  %v4410 = vpop.permute.xlu0 %4409
  %v4412 = vsel %vm161, %v4408, 0
  %v4415 = vsel %vm161, %v4410, 0
  %4417 = vmatprep.subr.bf16.mxu0 0
  %4418 = vmatpush1.bf16.xpose.msra.mxu0 %v4415
  %4419 = vmatprep.subr.bf16.mxu0 0
  %4420 = vmatpush1.bf16.xpose.msra.mxu0 0
  %4421 = vmatprep.subr.bf16.mxu0 0
  %4422 = vmatpush1.bf16.xpose.msra.mxu0 0
  %4423 = vmatprep.subr.bf16.mxu0 0
  %4424 = vmatpush1.bf16.xpose.msra.mxu0 0
  %4425 = vmatprep.subr.bf16.mxu0 0
  %4426 = vmatpush1.bf16.xpose.msra.mxu0 0
  %4427 = vmatprep.subr.bf16.mxu0 0
  %4428 = vmatpush1.bf16.xpose.msra.mxu0 0
  %4429 = vmatprep.subr.bf16.mxu0 0
  %4430 = vmatpush1.bf16.xpose.msra.mxu0 0
  %4431 = vmatprep.subr.bf16.mxu0 0
  %4432 = vmatpush1.bf16.xpose.msra.mxu0 0
  %4433 = vmatprep.subr.bf16.mxu0 0
  %4434 = vmatpush1.bf16.xpose.msra.mxu0 0
  %4435 = vmatprep.subr.bf16.mxu0 0
  %4436 = vmatpush1.bf16.xpose.msra.mxu0 0
  %4437 = vmatprep.subr.bf16.mxu0 0
  %4438 = vmatpush1.bf16.xpose.msra.mxu0 0
  %4439 = vmatprep.subr.bf16.mxu0 0
  %4440 = vmatpush1.bf16.xpose.msra.mxu0 0
  %4441 = vmatprep.subr.bf16.mxu0 0
  %4442 = vmatpush1.bf16.xpose.msra.mxu0 0
  %4443 = vmatprep.subr.bf16.mxu0 0
  %4444 = vmatpush1.bf16.xpose.msra.mxu0 0
  %4445 = vmatprep.subr.bf16.mxu0 0
  %4446 = vmatpush1.bf16.xpose.msra.mxu0 0
  %4447 = vmatprep.subr.bf16.mxu0 0
  %4448 = vmatpush1.bf16.xpose.msra.mxu0 0
  %4449 = vmatprep.mubr.bf16.mxu0 0
  %4450 = vmatmul.mubr.bf16.gmra.mrb[0].mxu0 %v4412
  %v4451 = vpop.f32.mrb[0].mxu0
  %v4452 = vadd.f32 %v79, %v4451
  %v4453 = vpop.f32.mrb[0].mxu0
  %v4454 = vpop.f32.mrb[0].mxu0
  %v4455 = vadd.f32 %v80, %v4454
  %v4456 = vpop.f32.mrb[0].mxu0
  %4457 = vdwg.mxu0
  %v4458 = vsel %vm209, %v4452, -inf
  %4459 = vmax.xlane.f32.xlu0 %v4458
  %v4460 = vpop.xlane.xlu0 %4459
  %v4461 = vsel %vm209, %v4455, -inf
  %4462 = vmax.xlane.f32.xlu0 %v4461
  %v4463 = vpop.xlane.xlu0 %4462
  %v4464 = vsub.f32 %v4452, %v4460
  %v4465 = vsub.f32 %v4455, %v4463
  %v4466 = vmul.f32 %v4464, 1.442695
  %v4467 = vpow.pop %v4466
  %v4468 = vmul.f32 %v4465, 1.442695
  %v4469 = vpow.pop %v4468
  %v4470 = vsel %vm209, %v4467, 0.0
  %4471 = vadd.xlane.f32.xlu0 %v4470
  %v4472 = vpop.xlane.xlu0 %4471
  %v4473 = vsel %vm209, %v4469, 0.0
  %4474 = vadd.xlane.f32.xlu0 %v4473
  %v4475 = vpop.xlane.xlu0 %4474
  %v4476 = vrcp.pop %v4472
  %v4477 = vrcp.pop %v4475
  %v4478 = vmul.f32 %v4467, %v4476
  %v4479 = vmul.f32 %v4469, %v4477
  %v4480 = vpack.c.bf16 %v4479, %v4478
  %4481 = vrot.lane.b32.xlu0 %v4287, 88
  %v4482 = vpop.permute.xlu0 %4481
  %v4485 = vsel %vm209, %v4480, 0
  %4487 = vmatprep.subr.bf16.mxu0 0
  %4488 = vmatpush1.bf16.msra.mxu0 %v4482
  %4489 = vmatprep.subr.bf16.mxu0 0
  %4490 = vmatpush1.bf16.msra.mxu0 0
  %4491 = vmatprep.subr.bf16.mxu0 0
  %4492 = vmatpush1.bf16.msra.mxu0 0
  %4493 = vmatprep.subr.bf16.mxu0 0
  %4494 = vmatpush1.bf16.msra.mxu0 0
  %4495 = vmatprep.subr.bf16.mxu0 0
  %4496 = vmatpush1.bf16.msra.mxu0 0
  %4497 = vmatprep.subr.bf16.mxu0 0
  %4498 = vmatpush1.bf16.msra.mxu0 0
  %4499 = vmatprep.subr.bf16.mxu0 0
  %4500 = vmatpush1.bf16.msra.mxu0 0
  %4501 = vmatprep.subr.bf16.mxu0 0
  %4502 = vmatpush1.bf16.msra.mxu0 0
  %4503 = vmatprep.subr.bf16.mxu0 0
  %4504 = vmatpush1.bf16.msra.mxu0 0
  %4505 = vmatprep.subr.bf16.mxu0 0
  %4506 = vmatpush1.bf16.msra.mxu0 0
  %4507 = vmatprep.subr.bf16.mxu0 0
  %4508 = vmatpush1.bf16.msra.mxu0 0
  %4509 = vmatprep.subr.bf16.mxu0 0
  %4510 = vmatpush1.bf16.msra.mxu0 0
  %4511 = vmatprep.subr.bf16.mxu0 0
  %4512 = vmatpush1.bf16.msra.mxu0 0
  %4513 = vmatprep.subr.bf16.mxu0 0
  %4514 = vmatpush1.bf16.msra.mxu0 0
  %4515 = vmatprep.subr.bf16.mxu0 0
  %4516 = vmatpush1.bf16.msra.mxu0 0
  %4517 = vmatprep.subr.bf16.mxu0 0
  %4518 = vmatpush1.bf16.msra.mxu0 0
  %4519 = vmatprep.mubr.bf16.mxu0 0
  %4520 = vmatmul.mubr.bf16.gmra.mrb[0].mxu0 %v4485
  %v4521 = vpop.f32.mrb[0].mxu0
  %v4522 = vadd.f32 0.0, %v4521
  %v4523 = vpop.f32.mrb[0].mxu0
  %v4524 = vpop.f32.mrb[0].mxu0
  %v4525 = vadd.f32 0.0, %v4524
  %v4526 = vpop.f32.mrb[0].mxu0
  %4527 = vdwg.mxu0
  %4528 = vrot.lane.b32.xlu0 %v4286, 112
  %v4529 = vpop.permute.xlu0 %4528
  %4530 = vrot.lane.b32.xlu0 %v4287, 112
  %v4531 = vpop.permute.xlu0 %4530
  %v4533 = vsel %vm161, %v4529, 0
  %v4536 = vsel %vm161, %v4531, 0
  %4538 = vmatprep.subr.bf16.mxu0 0
  %4539 = vmatpush1.bf16.xpose.msra.mxu0 %v4536
  %4540 = vmatprep.subr.bf16.mxu0 0
  %4541 = vmatpush1.bf16.xpose.msra.mxu0 0
  %4542 = vmatprep.subr.bf16.mxu0 0
  %4543 = vmatpush1.bf16.xpose.msra.mxu0 0
  %4544 = vmatprep.subr.bf16.mxu0 0
  %4545 = vmatpush1.bf16.xpose.msra.mxu0 0
  %4546 = vmatprep.subr.bf16.mxu0 0
  %4547 = vmatpush1.bf16.xpose.msra.mxu0 0
  %4548 = vmatprep.subr.bf16.mxu0 0
  %4549 = vmatpush1.bf16.xpose.msra.mxu0 0
  %4550 = vmatprep.subr.bf16.mxu0 0
  %4551 = vmatpush1.bf16.xpose.msra.mxu0 0
  %4552 = vmatprep.subr.bf16.mxu0 0
  %4553 = vmatpush1.bf16.xpose.msra.mxu0 0
  %4554 = vmatprep.subr.bf16.mxu0 0
  %4555 = vmatpush1.bf16.xpose.msra.mxu0 0
  %4556 = vmatprep.subr.bf16.mxu0 0
  %4557 = vmatpush1.bf16.xpose.msra.mxu0 0
  %4558 = vmatprep.subr.bf16.mxu0 0
  %4559 = vmatpush1.bf16.xpose.msra.mxu0 0
  %4560 = vmatprep.subr.bf16.mxu0 0
  %4561 = vmatpush1.bf16.xpose.msra.mxu0 0
  %4562 = vmatprep.subr.bf16.mxu0 0
  %4563 = vmatpush1.bf16.xpose.msra.mxu0 0
  %4564 = vmatprep.subr.bf16.mxu0 0
  %4565 = vmatpush1.bf16.xpose.msra.mxu0 0
  %4566 = vmatprep.subr.bf16.mxu0 0
  %4567 = vmatpush1.bf16.xpose.msra.mxu0 0
  %4568 = vmatprep.subr.bf16.mxu0 0
  %4569 = vmatpush1.bf16.xpose.msra.mxu0 0
  %4570 = vmatprep.mubr.bf16.mxu0 0
  %4571 = vmatmul.mubr.bf16.gmra.mrb[0].mxu0 %v4533
  %v4572 = vpop.f32.mrb[0].mxu0
  %v4573 = vadd.f32 %v79, %v4572
  %v4574 = vpop.f32.mrb[0].mxu0
  %v4575 = vpop.f32.mrb[0].mxu0
  %v4576 = vadd.f32 %v80, %v4575
  %v4577 = vpop.f32.mrb[0].mxu0
  %4578 = vdwg.mxu0
  %v4579 = vsel %vm209, %v4573, -inf
  %4580 = vmax.xlane.f32.xlu0 %v4579
  %v4581 = vpop.xlane.xlu0 %4580
  %v4582 = vsel %vm209, %v4576, -inf
  %4583 = vmax.xlane.f32.xlu0 %v4582
  %v4584 = vpop.xlane.xlu0 %4583
  %v4585 = vsub.f32 %v4573, %v4581
  %v4586 = vsub.f32 %v4576, %v4584
  %v4587 = vmul.f32 %v4585, 1.442695
  %v4588 = vpow.pop %v4587
  %v4589 = vmul.f32 %v4586, 1.442695
  %v4590 = vpow.pop %v4589
  %v4591 = vsel %vm209, %v4588, 0.0
  %4592 = vadd.xlane.f32.xlu0 %v4591
  %v4593 = vpop.xlane.xlu0 %4592
  %v4594 = vsel %vm209, %v4590, 0.0
  %4595 = vadd.xlane.f32.xlu0 %v4594
  %v4596 = vpop.xlane.xlu0 %4595
  %v4597 = vrcp.pop %v4593
  %v4598 = vrcp.pop %v4596
  %v4599 = vmul.f32 %v4588, %v4597
  %v4600 = vmul.f32 %v4590, %v4598
  %v4601 = vpack.c.bf16 %v4600, %v4599
  %4602 = vrot.lane.b32.xlu0 %v4287, 80
  %v4603 = vpop.permute.xlu0 %4602
  %v4606 = vsel %vm209, %v4601, 0
  %4608 = vmatprep.subr.bf16.mxu0 0
  %4609 = vmatpush1.bf16.msra.mxu0 %v4603
  %4610 = vmatprep.subr.bf16.mxu0 0
  %4611 = vmatpush1.bf16.msra.mxu0 0
  %4612 = vmatprep.subr.bf16.mxu0 0
  %4613 = vmatpush1.bf16.msra.mxu0 0
  %4614 = vmatprep.subr.bf16.mxu0 0
  %4615 = vmatpush1.bf16.msra.mxu0 0
  %4616 = vmatprep.subr.bf16.mxu0 0
  %4617 = vmatpush1.bf16.msra.mxu0 0
  %4618 = vmatprep.subr.bf16.mxu0 0
  %4619 = vmatpush1.bf16.msra.mxu0 0
  %4620 = vmatprep.subr.bf16.mxu0 0
  %4621 = vmatpush1.bf16.msra.mxu0 0
  %4622 = vmatprep.subr.bf16.mxu0 0
  %4623 = vmatpush1.bf16.msra.mxu0 0
  %4624 = vmatprep.subr.bf16.mxu0 0
  %4625 = vmatpush1.bf16.msra.mxu0 0
  %4626 = vmatprep.subr.bf16.mxu0 0
  %4627 = vmatpush1.bf16.msra.mxu0 0
  %4628 = vmatprep.subr.bf16.mxu0 0
  %4629 = vmatpush1.bf16.msra.mxu0 0
  %4630 = vmatprep.subr.bf16.mxu0 0
  %4631 = vmatpush1.bf16.msra.mxu0 0
  %4632 = vmatprep.subr.bf16.mxu0 0
  %4633 = vmatpush1.bf16.msra.mxu0 0
  %4634 = vmatprep.subr.bf16.mxu0 0
  %4635 = vmatpush1.bf16.msra.mxu0 0
  %4636 = vmatprep.subr.bf16.mxu0 0
  %4637 = vmatpush1.bf16.msra.mxu0 0
  %4638 = vmatprep.subr.bf16.mxu0 0
  %4639 = vmatpush1.bf16.msra.mxu0 0
  %4640 = vmatprep.mubr.bf16.mxu0 0
  %4641 = vmatmul.mubr.bf16.gmra.mrb[0].mxu0 %v4606
  %v4642 = vpop.f32.mrb[0].mxu0
  %v4643 = vadd.f32 0.0, %v4642
  %v4644 = vpop.f32.mrb[0].mxu0
  %v4645 = vpop.f32.mrb[0].mxu0
  %v4646 = vadd.f32 0.0, %v4645
  %v4647 = vpop.f32.mrb[0].mxu0
  %4648 = vdwg.mxu0
  %4649 = vrot.lane.b32.xlu0 %v4286, 104
  %v4650 = vpop.permute.xlu0 %4649
  %4651 = vrot.lane.b32.xlu0 %v4287, 104
  %v4652 = vpop.permute.xlu0 %4651
  %v4654 = vsel %vm161, %v4650, 0
  %v4657 = vsel %vm161, %v4652, 0
  %4659 = vmatprep.subr.bf16.mxu0 0
  %4660 = vmatpush1.bf16.xpose.msra.mxu0 %v4657
  %4661 = vmatprep.subr.bf16.mxu0 0
  %4662 = vmatpush1.bf16.xpose.msra.mxu0 0
  %4663 = vmatprep.subr.bf16.mxu0 0
  %4664 = vmatpush1.bf16.xpose.msra.mxu0 0
  %4665 = vmatprep.subr.bf16.mxu0 0
  %4666 = vmatpush1.bf16.xpose.msra.mxu0 0
  %4667 = vmatprep.subr.bf16.mxu0 0
  %4668 = vmatpush1.bf16.xpose.msra.mxu0 0
  %4669 = vmatprep.subr.bf16.mxu0 0
  %4670 = vmatpush1.bf16.xpose.msra.mxu0 0
  %4671 = vmatprep.subr.bf16.mxu0 0
  %4672 = vmatpush1.bf16.xpose.msra.mxu0 0
  %4673 = vmatprep.subr.bf16.mxu0 0
  %4674 = vmatpush1.bf16.xpose.msra.mxu0 0
  %4675 = vmatprep.subr.bf16.mxu0 0
  %4676 = vmatpush1.bf16.xpose.msra.mxu0 0
  %4677 = vmatprep.subr.bf16.mxu0 0
  %4678 = vmatpush1.bf16.xpose.msra.mxu0 0
  %4679 = vmatprep.subr.bf16.mxu0 0
  %4680 = vmatpush1.bf16.xpose.msra.mxu0 0
  %4681 = vmatprep.subr.bf16.mxu0 0
  %4682 = vmatpush1.bf16.xpose.msra.mxu0 0
  %4683 = vmatprep.subr.bf16.mxu0 0
  %4684 = vmatpush1.bf16.xpose.msra.mxu0 0
  %4685 = vmatprep.subr.bf16.mxu0 0
  %4686 = vmatpush1.bf16.xpose.msra.mxu0 0
  %4687 = vmatprep.subr.bf16.mxu0 0
  %4688 = vmatpush1.bf16.xpose.msra.mxu0 0
  %4689 = vmatprep.subr.bf16.mxu0 0
  %4690 = vmatpush1.bf16.xpose.msra.mxu0 0
  %4691 = vmatprep.mubr.bf16.mxu0 0
  %4692 = vmatmul.mubr.bf16.gmra.mrb[0].mxu0 %v4654
  %v4693 = vpop.f32.mrb[0].mxu0
  %v4694 = vadd.f32 %v79, %v4693
  %v4695 = vpop.f32.mrb[0].mxu0
  %v4696 = vpop.f32.mrb[0].mxu0
  %v4697 = vadd.f32 %v80, %v4696
  %v4698 = vpop.f32.mrb[0].mxu0
  %4699 = vdwg.mxu0
  %v4700 = vsel %vm209, %v4694, -inf
  %4701 = vmax.xlane.f32.xlu0 %v4700
  %v4702 = vpop.xlane.xlu0 %4701
  %v4703 = vsel %vm209, %v4697, -inf
  %4704 = vmax.xlane.f32.xlu0 %v4703
  %v4705 = vpop.xlane.xlu0 %4704
  %v4706 = vsub.f32 %v4694, %v4702
  %v4707 = vsub.f32 %v4697, %v4705
  %v4708 = vmul.f32 %v4706, 1.442695
  %v4709 = vpow.pop %v4708
  %v4710 = vmul.f32 %v4707, 1.442695
  %v4711 = vpow.pop %v4710
  %v4712 = vsel %vm209, %v4709, 0.0
  %4713 = vadd.xlane.f32.xlu0 %v4712
  %v4714 = vpop.xlane.xlu0 %4713
  %v4715 = vsel %vm209, %v4711, 0.0
  %4716 = vadd.xlane.f32.xlu0 %v4715
  %v4717 = vpop.xlane.xlu0 %4716
  %v4718 = vrcp.pop %v4714
  %v4719 = vrcp.pop %v4717
  %v4720 = vmul.f32 %v4709, %v4718
  %v4721 = vmul.f32 %v4711, %v4719
  %v4722 = vpack.c.bf16 %v4721, %v4720
  %4723 = vrot.lane.b32.xlu0 %v4287, 72
  %v4724 = vpop.permute.xlu0 %4723
  %v4727 = vsel %vm209, %v4722, 0
  %4729 = vmatprep.subr.bf16.mxu0 0
  %4730 = vmatpush1.bf16.msra.mxu0 %v4724
  %4731 = vmatprep.subr.bf16.mxu0 0
  %4732 = vmatpush1.bf16.msra.mxu0 0
  %4733 = vmatprep.subr.bf16.mxu0 0
  %4734 = vmatpush1.bf16.msra.mxu0 0
  %4735 = vmatprep.subr.bf16.mxu0 0
  %4736 = vmatpush1.bf16.msra.mxu0 0
  %4737 = vmatprep.subr.bf16.mxu0 0
  %4738 = vmatpush1.bf16.msra.mxu0 0
  %4739 = vmatprep.subr.bf16.mxu0 0
  %4740 = vmatpush1.bf16.msra.mxu0 0
  %4741 = vmatprep.subr.bf16.mxu0 0
  %4742 = vmatpush1.bf16.msra.mxu0 0
  %4743 = vmatprep.subr.bf16.mxu0 0
  %4744 = vmatpush1.bf16.msra.mxu0 0
  %4745 = vmatprep.subr.bf16.mxu0 0
  %4746 = vmatpush1.bf16.msra.mxu0 0
  %4747 = vmatprep.subr.bf16.mxu0 0
  %4748 = vmatpush1.bf16.msra.mxu0 0
  %4749 = vmatprep.subr.bf16.mxu0 0
  %4750 = vmatpush1.bf16.msra.mxu0 0
  %4751 = vmatprep.subr.bf16.mxu0 0
  %4752 = vmatpush1.bf16.msra.mxu0 0
  %4753 = vmatprep.subr.bf16.mxu0 0
  %4754 = vmatpush1.bf16.msra.mxu0 0
  %4755 = vmatprep.subr.bf16.mxu0 0
  %4756 = vmatpush1.bf16.msra.mxu0 0
  %4757 = vmatprep.subr.bf16.mxu0 0
  %4758 = vmatpush1.bf16.msra.mxu0 0
  %4759 = vmatprep.subr.bf16.mxu0 0
  %4760 = vmatpush1.bf16.msra.mxu0 0
  %4761 = vmatprep.mubr.bf16.mxu0 0
  %4762 = vmatmul.mubr.bf16.gmra.mrb[0].mxu0 %v4727
  %v4763 = vpop.f32.mrb[0].mxu0
  %v4764 = vadd.f32 0.0, %v4763
  %v4765 = vpop.f32.mrb[0].mxu0
  %v4766 = vpop.f32.mrb[0].mxu0
  %v4767 = vadd.f32 0.0, %v4766
  %v4768 = vpop.f32.mrb[0].mxu0
  %4769 = vdwg.mxu0
  %4772 = vrot.lane.b32.xlu0 %v4522, 8
  %v4773 = vpop.permute.xlu0 %4772
  %4774 = vrot.lane.b32.xlu0 %v4525, 8
  %v4775 = vpop.permute.xlu0 %4774
  %4780 = vrot.lane.b32.xlu0 %v4643, 16
  %v4781 = vpop.permute.xlu0 %4780
  %4782 = vrot.lane.b32.xlu0 %v4646, 16
  %v4783 = vpop.permute.xlu0 %4782
  %4788 = vrot.lane.b32.xlu0 %v4764, 24
  %v4789 = vpop.permute.xlu0 %4788
  %4790 = vrot.lane.b32.xlu0 %v4767, 24
  %v4791 = vpop.permute.xlu0 %4790
  %v4794 = vsel %vm161, %v4400, %v4773
  %v4795 = vsel %vm161, %v4403, %v4775
  %v4796 = vsel %vm209, %v4794, %v4781
  %v4797 = vsel %vm209, %v4795, %v4783
  %v4798 = vsel %vm671, %v4796, %v4789
  %v4799 = vsel %vm671, %v4797, %v4791
  %v4800 = vpack.c.bf16 %v4799, %v4798
  %v4801 = vlaneseq
  %v4802 = vshrl.u32 %v4801, 7
  %v4803 = vsub.s32 1, %v4802
  %v4804 = vrot.slane %v3474, %v4803
  %v4809 = vunpack.c.l.b16 %v4170
  %v4810 = vunpack.c.l.b16 %v4171
  %v4811 = vunpack.c.l.b16 %v4172
  %v4812 = vunpack.c.l.b16 %v4173
  %v4813 = vpack.c.b16 %v4810, %v4809
  %v4814 = vpack.c.b16 %v4812, %v4811
  %v4818 = vsel %vm112, %v4800, 0
  %4820 = vmatprep.subr.bf16.mxu0 0
  %4821 = vmatpush1.bf16.msra.mxu0 %v4813
  %4822 = vmatprep.subr.bf16.mxu0 0
  %4823 = vmatpush1.bf16.msra.mxu0 %v4814
  %4824 = vmatprep.subr.bf16.mxu0 0
  %4825 = vmatpush1.bf16.msra.mxu0 0
  %4826 = vmatprep.subr.bf16.mxu0 0
  %4827 = vmatpush1.bf16.msra.mxu0 0
  %4828 = vmatprep.subr.bf16.mxu0 0
  %4829 = vmatpush1.bf16.msra.mxu0 0
  %4830 = vmatprep.subr.bf16.mxu0 0
  %4831 = vmatpush1.bf16.msra.mxu0 0
  %4832 = vmatprep.subr.bf16.mxu0 0
  %4833 = vmatpush1.bf16.msra.mxu0 0
  %4834 = vmatprep.subr.bf16.mxu0 0
  %4835 = vmatpush1.bf16.msra.mxu0 0
  %4836 = vmatprep.subr.bf16.mxu0 0
  %4837 = vmatpush1.bf16.msra.mxu0 0
  %4838 = vmatprep.subr.bf16.mxu0 0
  %4839 = vmatpush1.bf16.msra.mxu0 0
  %4840 = vmatprep.subr.bf16.mxu0 0
  %4841 = vmatpush1.bf16.msra.mxu0 0
  %4842 = vmatprep.subr.bf16.mxu0 0
  %4843 = vmatpush1.bf16.msra.mxu0 0
  %4844 = vmatprep.subr.bf16.mxu0 0
  %4845 = vmatpush1.bf16.msra.mxu0 0
  %4846 = vmatprep.subr.bf16.mxu0 0
  %4847 = vmatpush1.bf16.msra.mxu0 0
  %4848 = vmatprep.subr.bf16.mxu0 0
  %4849 = vmatpush1.bf16.msra.mxu0 0
  %4850 = vmatprep.subr.bf16.mxu0 0
  %4851 = vmatpush1.bf16.msra.mxu0 0
  %4852 = vmatprep.mubr.bf16.mxu0 0
  %4853 = vmatmul.mubr.bf16.gmra.mrb[0].mxu0 %v4818
  %v4854 = vpop.f32.mrb[0].mxu0
  %v4855 = vadd.f32 %v4804, %v4854
  %v4856 = vpop.f32.mrb[0].mxu0
  %v4857 = vpop.f32.mrb[0].mxu0
  %v4858 = vadd.f32 %v4804, %v4857
  %v4859 = vpop.f32.mrb[0].mxu0
  %4860 = vdwg.mxu0
  %v4861 = vadd.f32 %v4162, %v4855
  %v4862 = vadd.f32 %v4163, %v4858
  %v4863 = vsel %vm112, %v4861, 0.0
  %4864 = vadd.xlane.f32.xlu0 %v4863
  %v4865 = vpop.xlane.xlu0 %4864
  %v4866 = vsel %vm112, %v4862, 0.0
  %4867 = vadd.xlane.f32.xlu0 %v4866
  %v4868 = vpop.xlane.xlu0 %4867
  %v4869 = vmul.f32 %v4865, %v743
  %v4870 = vmul.f32 %v4868, %v743
  %v4871 = vsub.f32 %v4861, %v4869
  %v4872 = vsub.f32 %v4862, %v4870
  %v4873 = vmul.f32 %v4871, %v4871
  %v4874 = vmul.f32 %v4872, %v4872
  %v4875 = vsel %vm112, %v4873, 0.0
  %4876 = vadd.xlane.f32.xlu0 %v4875
  %v4877 = vpop.xlane.xlu0 %4876
  %v4878 = vsel %vm112, %v4874, 0.0
  %4879 = vadd.xlane.f32.xlu0 %v4878
  %v4880 = vpop.xlane.xlu0 %4879
  %v4881 = vmul.f32 %v4877, %v743
  %v4882 = vmul.f32 %v4880, %v743
  %v4883 = vadd.f32 %v4881, 1e-05
  %v4884 = vadd.f32 %v4882, 1e-05
  %v4885 = vrsqrt.pop %v4883
  %v4886 = vrsqrt.pop %v4884
  %v4887 = vmul.f32 %v4871, %v4885
  %v4888 = vmul.f32 %v4872, %v4886
  %v4889 = vlaneseq
  %v4890 = vshrl.u32 %v4889, 7
  %v4891 = vsub.s32 5, %v4890
  %v4892 = vrot.slane %v3474, %v4891
  %v4893 = vmul.f32 %v4887, %v4892
  %v4894 = vmul.f32 %v4888, %v4892
  %v4895 = vlaneseq
  %v4896 = vshrl.u32 %v4895, 7
  %v4897 = vsub.s32 6, %v4896
  %v4898 = vrot.slane %v3474, %v4897
  %v4899 = vadd.f32 %v4893, %v4898
  %v4900 = vadd.f32 %v4894, %v4898
  %s4901 = scalar_lea.vmem %s16, 16
  %v4902 = vld [vmem:[%s4901] sm:$0xf]
  %v4903 = vld [vmem:[%s4901 + $0x4] sm:$0xf]
  %v4904 = vld [vmem:[%s4901 + $0x8] sm:$0xf]
  %v4905 = vld [vmem:[%s4901 + $0xc] sm:$0xf]
  %s4906 = scalar_lea.vmem %s19, 1
  %v4907 = vld [vmem:[%s4906] sm:$0x1]
  %s4908 = scalar_lea.vmem %s17, 32
  %v4909 = vld [vmem:[%s4908] sm:$0xf]
  %v4910 = vld [vmem:[%s4908 + $0x4] sm:$0xf]
  %v4911 = vld [vmem:[%s4908 + $0x8] sm:$0xf]
  %v4912 = vld [vmem:[%s4908 + $0xc] sm:$0xf]
  %v4913 = vld [vmem:[%s4908 + $0x10] sm:$0xf]
  %v4914 = vld [vmem:[%s4908 + $0x14] sm:$0xf]
  %v4915 = vld [vmem:[%s4908 + $0x18] sm:$0xf]
  %v4916 = vld [vmem:[%s4908 + $0x1c] sm:$0xf]
  %v4917 = vpack.c.bf16 %v4900, %v4899
  %v4919 = vlaneseq
  %v4920 = vshrl.u32 %v4919, 7
  %v4921 = vsub.s32 0, %v4920
  %v4922 = vrot.slane %v4907, %v4921
  %v4928 = vunpack.c.l.b16 %v4902
  %v4929 = vunpack.c.l.b16 %v4903
  %v4930 = vunpack.c.l.b16 %v4904
  %v4931 = vunpack.c.l.b16 %v4905
  %v4932 = vpack.c.b16 %v4929, %v4928
  %v4933 = vpack.c.b16 %v4931, %v4930
  %v4937 = vsel %vm112, %v4917, 0
  %4939 = vmatprep.subr.bf16.mxu0 0
  %4940 = vmatpush1.bf16.msra.mxu0 %v4932
  %4941 = vmatprep.subr.bf16.mxu0 0
  %4942 = vmatpush1.bf16.msra.mxu0 %v4933
  %4943 = vmatprep.subr.bf16.mxu0 0
  %4944 = vmatpush1.bf16.msra.mxu0 0
  %4945 = vmatprep.subr.bf16.mxu0 0
  %4946 = vmatpush1.bf16.msra.mxu0 0
  %4947 = vmatprep.subr.bf16.mxu0 0
  %4948 = vmatpush1.bf16.msra.mxu0 0
  %4949 = vmatprep.subr.bf16.mxu0 0
  %4950 = vmatpush1.bf16.msra.mxu0 0
  %4951 = vmatprep.subr.bf16.mxu0 0
  %4952 = vmatpush1.bf16.msra.mxu0 0
  %4953 = vmatprep.subr.bf16.mxu0 0
  %4954 = vmatpush1.bf16.msra.mxu0 0
  %4955 = vmatprep.subr.bf16.mxu0 0
  %4956 = vmatpush1.bf16.msra.mxu0 0
  %4957 = vmatprep.subr.bf16.mxu0 0
  %4958 = vmatpush1.bf16.msra.mxu0 0
  %4959 = vmatprep.subr.bf16.mxu0 0
  %4960 = vmatpush1.bf16.msra.mxu0 0
  %4961 = vmatprep.subr.bf16.mxu0 0
  %4962 = vmatpush1.bf16.msra.mxu0 0
  %4963 = vmatprep.subr.bf16.mxu0 0
  %4964 = vmatpush1.bf16.msra.mxu0 0
  %4965 = vmatprep.subr.bf16.mxu0 0
  %4966 = vmatpush1.bf16.msra.mxu0 0
  %4967 = vmatprep.subr.bf16.mxu0 0
  %4968 = vmatpush1.bf16.msra.mxu0 0
  %4969 = vmatprep.subr.bf16.mxu0 0
  %4970 = vmatpush1.bf16.msra.mxu0 0
  %4971 = vmatprep.mubr.bf16.mxu0 0
  %4972 = vmatmul.mubr.bf16.gmra.mrb[0].mxu0 %v4937
  %v4973 = vpop.f32.mrb[0].mxu0
  %v4974 = vadd.f32 %v4922, %v4973
  %v4975 = vpop.f32.mrb[0].mxu0
  %v4976 = vpop.f32.mrb[0].mxu0
  %v4977 = vadd.f32 %v4922, %v4976
  %v4978 = vpop.f32.mrb[0].mxu0
  %4979 = vdwg.mxu0
  %v4980 = vmax.f32 %v4974, 0.0
  %v4981 = vmax.f32 %v4977, 0.0
  %v4982 = vpack.c.bf16 %v4981, %v4980
  %v4983 = vlaneseq
  %v4984 = vshrl.u32 %v4983, 7
  %v4985 = vsub.s32 2, %v4984
  %v4986 = vrot.slane %v3474, %v4985
  %v4995 = vunpack.c.l.b16 %v4909
  %v4996 = vunpack.c.l.b16 %v4910
  %v4997 = vunpack.c.l.b16 %v4911
  %v4998 = vunpack.c.l.b16 %v4912
  %v4999 = vunpack.c.l.b16 %v4913
  %v5000 = vunpack.c.l.b16 %v4914
  %v5001 = vunpack.c.l.b16 %v4915
  %v5002 = vunpack.c.l.b16 %v4916
  %v5003 = vpack.c.b16 %v4996, %v4995
  %v5004 = vpack.c.b16 %v4998, %v4997
  %v5005 = vpack.c.b16 %v5000, %v4999
  %v5006 = vpack.c.b16 %v5002, %v5001
  %v5012 = vsel %vm883, %v4982, 0
  %5014 = vmatprep.subr.bf16.mxu0 0
  %5015 = vmatpush1.bf16.msra.mxu0 %v5003
  %5016 = vmatprep.subr.bf16.mxu0 0
  %5017 = vmatpush1.bf16.msra.mxu0 %v5004
  %5018 = vmatprep.subr.bf16.mxu0 0
  %5019 = vmatpush1.bf16.msra.mxu0 %v5005
  %5020 = vmatprep.subr.bf16.mxu0 0
  %5021 = vmatpush1.bf16.msra.mxu0 %v5006
  %5022 = vmatprep.subr.bf16.mxu0 0
  %5023 = vmatpush1.bf16.msra.mxu0 0
  %5024 = vmatprep.subr.bf16.mxu0 0
  %5025 = vmatpush1.bf16.msra.mxu0 0
  %5026 = vmatprep.subr.bf16.mxu0 0
  %5027 = vmatpush1.bf16.msra.mxu0 0
  %5028 = vmatprep.subr.bf16.mxu0 0
  %5029 = vmatpush1.bf16.msra.mxu0 0
  %5030 = vmatprep.subr.bf16.mxu0 0
  %5031 = vmatpush1.bf16.msra.mxu0 0
  %5032 = vmatprep.subr.bf16.mxu0 0
  %5033 = vmatpush1.bf16.msra.mxu0 0
  %5034 = vmatprep.subr.bf16.mxu0 0
  %5035 = vmatpush1.bf16.msra.mxu0 0
  %5036 = vmatprep.subr.bf16.mxu0 0
  %5037 = vmatpush1.bf16.msra.mxu0 0
  %5038 = vmatprep.subr.bf16.mxu0 0
  %5039 = vmatpush1.bf16.msra.mxu0 0
  %5040 = vmatprep.subr.bf16.mxu0 0
  %5041 = vmatpush1.bf16.msra.mxu0 0
  %5042 = vmatprep.subr.bf16.mxu0 0
  %5043 = vmatpush1.bf16.msra.mxu0 0
  %5044 = vmatprep.subr.bf16.mxu0 0
  %5045 = vmatpush1.bf16.msra.mxu0 0
  %5046 = vmatprep.mubr.bf16.mxu0 0
  %5047 = vmatmul.mubr.bf16.gmra.mrb[0].mxu0 %v5012
  %v5048 = vpop.f32.mrb[0].mxu0
  %v5049 = vadd.f32 %v4986, %v5048
  %v5050 = vpop.f32.mrb[0].mxu0
  %v5051 = vpop.f32.mrb[0].mxu0
  %v5052 = vadd.f32 %v4986, %v5051
  %v5053 = vpop.f32.mrb[0].mxu0
  %5054 = vdwg.mxu0
  %v5055 = vadd.f32 %v4899, %v5049
  %v5056 = vadd.f32 %v4900, %v5052
  %v5057 = vsel %vm112, %v5055, 0.0
  %5058 = vadd.xlane.f32.xlu0 %v5057
  %v5059 = vpop.xlane.xlu0 %5058
  %v5060 = vsel %vm112, %v5056, 0.0
  %5061 = vadd.xlane.f32.xlu0 %v5060
  %v5062 = vpop.xlane.xlu0 %5061
  %v5063 = vmul.f32 %v5059, %v743
  %v5064 = vmul.f32 %v5062, %v743
  %v5065 = vsub.f32 %v5055, %v5063
  %v5066 = vsub.f32 %v5056, %v5064
  %v5067 = vmul.f32 %v5065, %v5065
  %v5068 = vmul.f32 %v5066, %v5066
  %v5069 = vsel %vm112, %v5067, 0.0
  %5070 = vadd.xlane.f32.xlu0 %v5069
  %v5071 = vpop.xlane.xlu0 %5070
  %v5072 = vsel %vm112, %v5068, 0.0
  %5073 = vadd.xlane.f32.xlu0 %v5072
  %v5074 = vpop.xlane.xlu0 %5073
  %v5075 = vmul.f32 %v5071, %v743
  %v5076 = vmul.f32 %v5074, %v743
  %v5077 = vadd.f32 %v5075, 1e-05
  %v5078 = vadd.f32 %v5076, 1e-05
  %v5079 = vrsqrt.pop %v5077
  %v5080 = vrsqrt.pop %v5078
  %v5081 = vmul.f32 %v5065, %v5079
  %v5082 = vmul.f32 %v5066, %v5080
  %v5083 = vlaneseq
  %v5084 = vshrl.u32 %v5083, 7
  %v5085 = vsub.s32 7, %v5084
  %v5086 = vrot.slane %v3474, %v5085
  %v5087 = vmul.f32 %v5081, %v5086
  %v5088 = vmul.f32 %v5082, %v5086
  %v5089 = vlaneseq
  %v5090 = vshrl.u32 %v5089, 7
  %v5091 = vsub.s32 0, %v5090
  %v5092 = vrot.slane %v3475, %v5091
  %v5093 = vadd.f32 %v5087, %v5092
  %v5094 = vadd.f32 %v5088, %v5092
  %v5095 = vpack.c.bf16 %v5094, %v5093
  %v5096 = vld [vmem:[%s21] sm:$0xf]
  %v5097 = vld [vmem:[%s21 + $0x4] sm:$0xf]
  %v5098 = vld [vmem:[%s21 + $0x8] sm:$0xf]
  %v5099 = vld [vmem:[%s21 + $0xc] sm:$0xf]
  %v5100 = vld [vmem:[%s22] sm:$0x1]
  %v5102 = vlaneseq
  %v5103 = vshrl.u32 %v5102, 7
  %v5104 = vsub.s32 0, %v5103
  %v5105 = vrot.slane %v5100, %v5104
  %v5111 = vunpack.c.l.b16 %v5096
  %v5112 = vunpack.c.l.b16 %v5097
  %v5113 = vunpack.c.l.b16 %v5098
  %v5114 = vunpack.c.l.b16 %v5099
  %v5115 = vpack.c.b16 %v5112, %v5111
  %v5116 = vpack.c.b16 %v5114, %v5113
  %v5120 = vsel %vm112, %v5095, 0
  %5122 = vmatprep.subr.bf16.mxu0 0
  %5123 = vmatpush1.bf16.msra.mxu0 %v5115
  %5124 = vmatprep.subr.bf16.mxu0 0
  %5125 = vmatpush1.bf16.msra.mxu0 %v5116
  %5126 = vmatprep.subr.bf16.mxu0 0
  %5127 = vmatpush1.bf16.msra.mxu0 0
  %5128 = vmatprep.subr.bf16.mxu0 0
  %5129 = vmatpush1.bf16.msra.mxu0 0
  %5130 = vmatprep.subr.bf16.mxu0 0
  %5131 = vmatpush1.bf16.msra.mxu0 0
  %5132 = vmatprep.subr.bf16.mxu0 0
  %5133 = vmatpush1.bf16.msra.mxu0 0
  %5134 = vmatprep.subr.bf16.mxu0 0
  %5135 = vmatpush1.bf16.msra.mxu0 0
  %5136 = vmatprep.subr.bf16.mxu0 0
  %5137 = vmatpush1.bf16.msra.mxu0 0
  %5138 = vmatprep.subr.bf16.mxu0 0
  %5139 = vmatpush1.bf16.msra.mxu0 0
  %5140 = vmatprep.subr.bf16.mxu0 0
  %5141 = vmatpush1.bf16.msra.mxu0 0
  %5142 = vmatprep.subr.bf16.mxu0 0
  %5143 = vmatpush1.bf16.msra.mxu0 0
  %5144 = vmatprep.subr.bf16.mxu0 0
  %5145 = vmatpush1.bf16.msra.mxu0 0
  %5146 = vmatprep.subr.bf16.mxu0 0
  %5147 = vmatpush1.bf16.msra.mxu0 0
  %5148 = vmatprep.subr.bf16.mxu0 0
  %5149 = vmatpush1.bf16.msra.mxu0 0
  %5150 = vmatprep.subr.bf16.mxu0 0
  %5151 = vmatpush1.bf16.msra.mxu0 0
  %5152 = vmatprep.subr.bf16.mxu0 0
  %5153 = vmatpush1.bf16.msra.mxu0 0
  %5154 = vmatprep.mubr.bf16.mxu0 0
  %5155 = vmatmul.mubr.bf16.gmra.mrb[0].mxu0 %v5120
  %v5156 = vpop.f32.mrb[0].mxu0
  %v5157 = vadd.f32 %v5105, %v5156
  %v5158 = vpop.f32.mrb[0].mxu0
  %v5159 = vpop.f32.mrb[0].mxu0
  %v5160 = vadd.f32 %v5105, %v5159
  %v5161 = vpop.f32.mrb[0].mxu0
  %5162 = vdwg.mxu0
  %5163 = vst [vmem:[%s23] sm:$0xff] %v5157
  %5164 = vst [vmem:[%s23 + $0x8] sm:$0xff] %v5160
  // Predicated region
  $region94: #{transformer_forward.1} parent=0 // pred_check
    _
  $region95: #{transformer_forward.1} parent=0 // pred_check_branch
    %5166 = sbr.rel (0) target = $region97
  $region96: #{transformer_forward.1} parent=0 // pred_region
    _
  $region97: #{transformer_forward.1} parent=0 // pred_fallthru
    _
  // Predicated region
  $region98: #{transformer_forward.1} parent=0 // pred_check
    _
  $region99: #{transformer_forward.1} parent=0 // pred_check_branch
    %5168 = sbr.rel (0) target = $region101
  $region100: #{transformer_forward.1} parent=0 // pred_region
    _
  $region101: #{transformer_forward.1} parent=0 // pred_fallthru
    _

</llo_original>
